<compile_context>
chip_gen: v5e
topology: v5e:2x2
jax: 0.10.0
libtpu: 0.0.40
codegen_flags: <defaults>
</compile_context>

<pallas_src>
import numpy as np
import jax
import jax.numpy as jnp
from jax.experimental import pallas as pl
from jax.experimental.pallas import tpu as pltpu

# ---------------- config (BabyAI defaults) ----------------
B = 2                      # batch
H = W = 7                  # 7x7 egocentric view (MaxPool2d(7,7) -> 1x1)
C_IN = 3                   # image channels
MAX_VALUE = 8              # obs_space['image'] vocab per channel (kept small)
N_VOCAB = C_IN * MAX_VALUE # 24 real BOW entries
VOCAB_PAD = 128            # vocab padded to full MXU lane width
IMAGE_DIM = 128            # image_dim (== embedding_size when use_memory=False)
HIDDEN = 64                # actor/critic hidden width
N_ACTIONS = 7              # action_space.n
MEMORY_DIM = 128
EPS = 1e-5
HWV = H * W                # 49 valid spatial rows per sample
PAD_HW = 64                # per-sample rows padded to a sublane-aligned size
M_PAD = B * PAD_HW         # 128 padded feature rows (clean MXU/bf16 tiles)
M_VALID = B * HWV          # 98 rows entering the BatchNorm statistics
OUT_SLAB = 128             # lane-dense output slab (>= N_ACTIONS + 1)

# conv tap enumeration (order shared by masks, rolls, and weight layout)
_TAPS = [(dy, dx) for dy in (-1, 0, 1) for dx in (-1, 0, 1)]
# output row m needs input row m + (dy*W + dx); roll(x, s)[m] = x[(m - s) % M]
_SHIFTS = [(-(dy * W + dx)) % M_PAD for dy, dx in _TAPS]


# ---------------- host-side constants ----------------
def _build_tap_masks():
    """mask[k, m, 0] = 1 iff output row m (= b*64 + y*7 + x, y,x in the 7x7
    image) has an in-bounds (dy,dx)-neighbour for tap k; pad rows (y*7+x >= 49)
    are always 0.  The center tap's mask (k=4) doubles as the valid-row mask."""
    m = np.zeros((9, M_PAD, 1), np.float32)
    for k, (dy, dx) in enumerate(_TAPS):
        for b in range(B):
            for y in range(H):
                for x in range(W):
                    if 0 <= y + dy < H and 0 <= x + dx < W:
                        m[k, b * PAD_HW + y * W + x, 0] = 1.0
    return m


_TAP_MASKS = _build_tap_masks()


# ---------------- Pallas kernel ----------------
def _conv3x3_bn_relu(x, slab_ref, mask_ref, w_ref, gamma, beta):
    """3x3 pad-1 conv + train-mode BatchNorm + ReLU over [M_PAD, 128] rows.

    x:    [M_PAD, 128] f32 feature rows (row m = b*64 + y*7 + x; rows 49..63 of
          each sample are padding and are masked out everywhere below)
    slab: VMEM scratch [M_PAD, 9*128] bf16 staging slab for the 9 rolled taps
    mask: ref [9, M_PAD, 1] f32 border/valid masks (mask[4] = valid-row mask)
    w:    ref [9*128, 128] bf16; block k rows = conv_weight[:, :, ky, kx].T
    """
    valid = mask_ref[4]                                    # [M_PAD, 1]
    for k in range(9):
        shift = _SHIFTS[k]
        shifted = pltpu.roll(x, shift=shift, axis=0) if shift else x
        slab_ref[:, k * IMAGE_DIM:(k + 1) * IMAGE_DIM] = (
            shifted * mask_ref[k]).astype(jnp.bfloat16)
    # one deep-K matmul (K = 9*128 = 1152) replaces 9 short K=128 pushes
    acc = jnp.dot(slab_ref[...], w_ref[...], preferred_element_type=jnp.float32)
    # Conv bias omitted: train-mode BN subtracts the batch mean, which cancels
    # a per-channel constant exactly.  Pad rows of acc are exactly 0 (masked
    # slab rows), so single-pass sums over all M_PAD rows with divisor 98 give
    # the correct biased batch statistics; variance clamped >= 0.
    inv_m = jnp.float32(1.0 / M_VALID)
    mean = jnp.sum(acc, axis=0, keepdims=True) * inv_m
    ex2 = jnp.sum(acc * acc, axis=0, keepdims=True) * inv_m
    var = jnp.maximum(ex2 - mean * mean, 0.0)
    y = (acc - mean) * jax.lax.rsqrt(var + EPS) * gamma + beta
    # ReLU, then zero the pad rows so they never contaminate pooling
    return jnp.maximum(y, 0.0) * valid


def fused_forward_kernel(idx_ref, mask_ref, emb_ref,
                         w1_ref, g1_ref, bn1_ref,
                         w2_ref, g2_ref, bn2_ref,
                         wh1_ref, bh1_ref, wh2_ref, bh2_ref,
                         out_ref, slab_ref):
    # ---- ImageBOWEmbedding: one-hot [M_PAD, 128] @ emb [128, 128] (bf16) ----
    vocab = jax.lax.broadcasted_iota(jnp.int32, (M_PAD, VOCAB_PAD), 1)
    bow = jnp.zeros((M_PAD, VOCAB_PAD), jnp.float32)
    for c in range(C_IN):
        bow = bow + ((idx_ref[c] + c * MAX_VALUE) == vocab).astype(jnp.float32)
    feats = jnp.dot(bow.astype(jnp.bfloat16), emb_ref[...],
                    preferred_element_type=jnp.float32)        # [M_PAD, 128]

    # ---- two Conv3x3 + BatchNorm + ReLU blocks (roll-based taps) ----
    y1 = _conv3x3_bn_relu(feats, slab_ref, mask_ref, w1_ref,
                          g1_ref[...], bn1_ref[...])
    y2 = _conv3x3_bn_relu(y1, slab_ref, mask_ref, w2_ref,
                          g2_ref[...], bn2_ref[...])

    # ---- FiLMPooling: MaxPool2d((7,7), stride=2) over a 7x7 map == per-sample
    #      global spatial max, then ReLU.  Pad rows of y2 are 0 and ReLU outputs
    #      are >= 0, so including them in the max is exact. ----
    parts = [jnp.max(y2[b * PAD_HW:(b + 1) * PAD_HW], axis=0, keepdims=True)
             for b in range(B)]
    pooled = jnp.maximum(jnp.concatenate(parts, axis=0), 0.0)   # [B, 128]

    # ---- actor & critic heads (weight-concatenated to fill 128 MXU lanes) ----
    h = jnp.tanh(jnp.dot(pooled.astype(jnp.bfloat16), wh1_ref[...],
                         preferred_element_type=jnp.float32) + bh1_ref[...])
    o2 = jnp.dot(h.astype(jnp.bfloat16), wh2_ref[...],
                 preferred_element_type=jnp.float32) + bh2_ref[...]   # [B,128]

    # cols 0..N_ACTIONS-1: actor logits -> log_softmax; col N_ACTIONS: value.
    lane = jax.lax.broadcasted_iota(jnp.int32, (B, OUT_SLAB), 1)
    is_logit = lane < N_ACTIONS
    neg = jnp.float32(-1e30)
    masked = jnp.where(is_logit, o2, neg)
    z = masked - jnp.max(masked, axis=1, keepdims=True)
    lse = jnp.log(jnp.sum(jnp.where(is_logit, jnp.exp(z), 0.0),
                          axis=1, keepdims=True))
    logp = z - lse
    out_ref[...] = jnp.where(is_logit, logp,
                             jnp.where(lane == N_ACTIONS, o2, 0.0))


# ---------------- wrapper ----------------
def _full_spec(shape):
    nd = len(shape)
    return pl.BlockSpec(shape, lambda *_: (0,) * nd)


@jax.jit
def acmodel_forward(params, image, actor_memory, manager_memory):
    """image: [B,H,W,3] int32 (obs.image); memories pass through unchanged."""
    assert image.shape == (B, H, W, C_IN)
    # channel-major raw indices, each sample's 49 rows padded to 64: [3, 128, 1]
    img = jnp.moveaxis(image.astype(jnp.int32), -1, 0).reshape(C_IN, B, HWV)
    img = jnp.pad(img, ((0, 0), (0, 0), (0, PAD_HW - HWV)))
    idx = img.reshape(C_IN, M_PAD, 1)
    tap_masks = jnp.asarray(_TAP_MASKS, dtype=jnp.float32)

    out = pl.pallas_call(
        fused_forward_kernel,
        out_shape=jax.ShapeDtypeStruct((B, OUT_SLAB), jnp.float32),
        grid=(1,),
        in_specs=[
            _full_spec((C_IN, M_PAD, 1)),               # image indices (padded)
            _full_spec((9, M_PAD, 1)),                  # tap border/valid masks
            _full_spec((VOCAB_PAD, IMAGE_DIM)),         # BOW embedding (bf16)
            _full_spec((9 * IMAGE_DIM, IMAGE_DIM)),     # conv1 weights (bf16)
            _full_spec((1, IMAGE_DIM)),                 # bn1 gamma
            _full_spec((1, IMAGE_DIM)),                 # bn1 beta
            _full_spec((9 * IMAGE_DIM, IMAGE_DIM)),     # conv2 weights (bf16)
            _full_spec((1, IMAGE_DIM)),                 # bn2 gamma
            _full_spec((1, IMAGE_DIM)),                 # bn2 beta
            _full_spec((IMAGE_DIM, 2 * HIDDEN)),        # actor||critic layer-1
            _full_spec((1, 2 * HIDDEN)),                # layer-1 bias
            _full_spec((2 * HIDDEN, OUT_SLAB)),         # block-diag layer-2
            _full_spec((1, OUT_SLAB)),                  # layer-2 bias
        ],
        out_specs=_full_spec((B, OUT_SLAB)),
        scratch_shapes=[pltpu.VMEM((M_PAD, 9 * IMAGE_DIM), jnp.bfloat16)],
        compiler_params=pltpu.CompilerParams(
            dimension_semantics=("arbitrary",)),
    )(idx, tap_masks, params['emb'],
      params['w1'], params['g1'], params['beta1'],
      params['w2'], params['g2'], params['beta2'],
      params['wh1'], params['bh1'], params['wh2'], params['bh2'])

    return {
        'dist_logits': out[:, :N_ACTIONS],   # Categorical(logits=...).logits
        'value': out[:, N_ACTIONS],          # critic output, squeezed
        'memory': actor_memory,              # use_memory=False -> passthrough
        'manager_memory': manager_memory,    # passthrough
        'manager_dist': None,                # see TODO(synk) in header
        'extra_predictions': {},             # aux_info=None
    }


# ---------------- deterministic parameter construction ----------------
def make_linear(key, in_dim, out_dim):
    """initialize_parameters: rows ~ N(0,1), scaled to unit L2 over the fan-in;
    bias = 0.  Stored [in, out]."""
    w = jax.random.normal(key, (in_dim, out_dim), jnp.float32)
    return w / jnp.sqrt(jnp.sum(w * w, axis=0, keepdims=True))


def make_params(key):
    ks = jax.random.split(key, 7)
    p = {}
    # ImageBOWEmbedding table (nn.Embedding default init: N(0,1)), padded to a
    # full 128-lane vocab so the one-hot matmul uses clean bf16 tiles.
    emb = jax.random.normal(ks[0], (N_VOCAB, IMAGE_DIM), jnp.float32)
    p['emb'] = (jnp.zeros((VOCAB_PAD, IMAGE_DIM), jnp.float32)
                .at[:N_VOCAB].set(emb).astype(jnp.bfloat16))
    # Conv weights: 9 per-tap [Cin, Cout] matrices (fan-in scaled), stacked to a
    # single [9*128, 128] block so each conv is one deep-K matmul.
    # (Conv bias omitted: exactly cancelled by train-mode BatchNorm.)
    fan_in = 9 * IMAGE_DIM
    p['w1'] = (jax.random.normal(ks[1], (9, IMAGE_DIM, IMAGE_DIM), jnp.float32)
               / np.sqrt(fan_in)).reshape(9 * IMAGE_DIM, IMAGE_DIM).astype(jnp.bfloat16)
    p['w2'] = (jax.random.normal(ks[2], (9, IMAGE_DIM, IMAGE_DIM), jnp.float32)
               / np.sqrt(fan_in)).reshape(9 * IMAGE_DIM, IMAGE_DIM).astype(jnp.bfloat16)
    p['g1'] = jnp.ones((1, IMAGE_DIM), jnp.float32)
    p['beta1'] = jnp.zeros((1, IMAGE_DIM), jnp.float32)
    p['g2'] = jnp.ones((1, IMAGE_DIM), jnp.float32)
    p['beta2'] = jnp.zeros((1, IMAGE_DIM), jnp.float32)
    # Actor / critic heads (custom Linear init), concatenated so each head
    # matmul fills the 128-lane MXU dimension.
    wa1 = make_linear(ks[3], IMAGE_DIM, HIDDEN)
    wa2 = make_linear(ks[4], HIDDEN, N_ACTIONS)
    wc1 = make_linear(ks[5], IMAGE_DIM, HIDDEN)
    wc2 = make_linear(ks[6], HIDDEN, 1)
    p['wh1'] = jnp.concatenate([wa1, wc1], axis=1).astype(jnp.bfloat16)
    p['bh1'] = jnp.zeros((1, 2 * HIDDEN), jnp.float32)
    wh2 = jnp.zeros((2 * HIDDEN, OUT_SLAB), jnp.float32)
    wh2 = wh2.at[:HIDDEN, :N_ACTIONS].set(wa2)
    wh2 = wh2.at[HIDDEN:, N_ACTIONS].set(wc2[:, 0])
    p['wh2'] = wh2.astype(jnp.bfloat16)
    p['bh2'] = jnp.zeros((1, OUT_SLAB), jnp.float32)
    return p


if __name__ == "__main__":
    key = jax.random.PRNGKey(0)
    pkey, ikey = jax.random.split(key)
    params = make_params(pkey)

    # obs.image: integer grid observation, values in [0, MAX_VALUE)
    image = jax.random.randint(ikey, (B, H, W, C_IN), 0, MAX_VALUE,
                               dtype=jnp.int32)
    actor_memory = jnp.zeros((B, 2 * MEMORY_DIM), jnp.float32)
    manager_memory = jnp.zeros((B, 2 * MEMORY_DIM), jnp.float32)

    out = acmodel_forward(params, image, actor_memory, manager_memory)
    jax.block_until_ready((out['dist_logits'], out['value'], out['memory']))

    assert out['dist_logits'].shape == (B, N_ACTIONS)
    assert out['value'].shape == (B,)
    assert out['memory'].shape == (B, 2 * MEMORY_DIM)
    assert bool(jnp.all(jnp.isfinite(out['dist_logits'])))
    assert bool(jnp.all(jnp.isfinite(out['value'])))
    # log-softmax rows must normalize (exp sums to 1)
    assert bool(jnp.all(
        jnp.abs(jnp.sum(jnp.exp(out['dist_logits']), axis=1) - 1.0) < 1e-3))
    print("KERNEL_OK")
</pallas_src>

<mosaic_0001>
module attributes {stable_mosaic.version = 11 : i64} {
  func.func @fused_forward_kernel(%arg0: i32, %arg1: memref<3x128x1xi32, #tpu.memory_space<vmem>>, %arg2: memref<9x128x1xf32, #tpu.memory_space<vmem>>, %arg3: memref<128x128xbf16, #tpu.memory_space<vmem>>, %arg4: memref<1152x128xbf16, #tpu.memory_space<vmem>>, %arg5: memref<1x128xf32, #tpu.memory_space<vmem>>, %arg6: memref<1x128xf32, #tpu.memory_space<vmem>>, %arg7: memref<1152x128xbf16, #tpu.memory_space<vmem>>, %arg8: memref<1x128xf32, #tpu.memory_space<vmem>>, %arg9: memref<1x128xf32, #tpu.memory_space<vmem>>, %arg10: memref<128x128xbf16, #tpu.memory_space<vmem>>, %arg11: memref<1x128xf32, #tpu.memory_space<vmem>>, %arg12: memref<128x128xbf16, #tpu.memory_space<vmem>>, %arg13: memref<1x128xf32, #tpu.memory_space<vmem>>, %arg14: memref<2x128xf32, #tpu.memory_space<vmem>>, %arg15: memref<128x1152xbf16, #tpu.memory_space<vmem>>) attributes {dimension_semantics = [#tpu.dimension_semantics<arbitrary>], iteration_bounds = array<i64: 1>, scalar_prefetch = 0 : i64, scratch_operands = 1 : i64, tpu.core_type = #tpu.core_type<tc>, window_params = [{pipeline_mode = #tpu.pipeline_mode<synchronous>, transform_indices = @transform_0, window_bounds = array<i64: 3, 128, 1>}, {pipeline_mode = #tpu.pipeline_mode<synchronous>, transform_indices = @transform_1, window_bounds = array<i64: 9, 128, 1>}, {pipeline_mode = #tpu.pipeline_mode<synchronous>, transform_indices = @transform_2, window_bounds = array<i64: 128, 128>}, {pipeline_mode = #tpu.pipeline_mode<synchronous>, transform_indices = @transform_3, window_bounds = array<i64: 1152, 128>}, {pipeline_mode = #tpu.pipeline_mode<synchronous>, transform_indices = @transform_4, window_bounds = array<i64: 1, 128>}, {pipeline_mode = #tpu.pipeline_mode<synchronous>, transform_indices = @transform_5, window_bounds = array<i64: 1, 128>}, {pipeline_mode = #tpu.pipeline_mode<synchronous>, transform_indices = @transform_6, window_bounds = array<i64: 1152, 128>}, {pipeline_mode = #tpu.pipeline_mode<synchronous>, transform_indices = @transform_7, window_bounds = array<i64: 1, 128>}, {pipeline_mode = #tpu.pipeline_mode<synchronous>, transform_indices = @transform_8, window_bounds = array<i64: 1, 128>}, {pipeline_mode = #tpu.pipeline_mode<synchronous>, transform_indices = @transform_9, window_bounds = array<i64: 128, 128>}, {pipeline_mode = #tpu.pipeline_mode<synchronous>, transform_indices = @transform_10, window_bounds = array<i64: 1, 128>}, {pipeline_mode = #tpu.pipeline_mode<synchronous>, transform_indices = @transform_11, window_bounds = array<i64: 128, 128>}, {pipeline_mode = #tpu.pipeline_mode<synchronous>, transform_indices = @transform_12, window_bounds = array<i64: 1, 128>}, {pipeline_mode = #tpu.pipeline_mode<synchronous>, transform_indices = @transform_13, window_bounds = array<i64: 2, 128>}]} {
    %0 = tpu.iota {dimensions = array<i32: 1>} : vector<128x128xi32>
    %cst = arith.constant 0.000000e+00 : f32
    %1 = vector.broadcast %cst : f32 to vector<128x128xf32>
    %c0 = arith.constant 0 : index
    %c0_0 = arith.constant 0 : index
    %c0_1 = arith.constant 0 : index
    %2 = vector.load %arg1[%c0, %c0_0, %c0_1] : memref<3x128x1xi32, #tpu.memory_space<vmem>>, vector<1x128x1xi32>
    %3 = vector.shape_cast %2 : vector<1x128x1xi32> to vector<128x1xi32>
    %c0_i32 = arith.constant 0 : i32
    %4 = vector.broadcast %c0_i32 : i32 to vector<128x1xi32>
    %5 = arith.addi %3, %4 : vector<128x1xi32>
    %6 = vector.broadcast %5 : vector<128x1xi32> to vector<128x128xi32>
    %7 = arith.cmpi eq, %6, %0 : vector<128x128xi32>
    %8 = arith.extui %7 : vector<128x128xi1> to vector<128x128xi32>
    %9 = arith.sitofp %8 : vector<128x128xi32> to vector<128x128xf32>
    %10 = arith.addf %1, %9 : vector<128x128xf32>
    %c1 = arith.constant 1 : index
    %c0_2 = arith.constant 0 : index
    %c0_3 = arith.constant 0 : index
    %11 = vector.load %arg1[%c1, %c0_2, %c0_3] : memref<3x128x1xi32, #tpu.memory_space<vmem>>, vector<1x128x1xi32>
    %12 = vector.shape_cast %11 : vector<1x128x1xi32> to vector<128x1xi32>
    %c8_i32 = arith.constant 8 : i32
    %13 = vector.broadcast %c8_i32 : i32 to vector<128x1xi32>
    %14 = arith.addi %12, %13 : vector<128x1xi32>
    %15 = vector.broadcast %14 : vector<128x1xi32> to vector<128x128xi32>
    %16 = arith.cmpi eq, %15, %0 : vector<128x128xi32>
    %17 = arith.extui %16 : vector<128x128xi1> to vector<128x128xi32>
    %18 = arith.sitofp %17 : vector<128x128xi32> to vector<128x128xf32>
    %19 = arith.addf %10, %18 : vector<128x128xf32>
    %c2 = arith.constant 2 : index
    %c0_4 = arith.constant 0 : index
    %c0_5 = arith.constant 0 : index
    %20 = vector.load %arg1[%c2, %c0_4, %c0_5] : memref<3x128x1xi32, #tpu.memory_space<vmem>>, vector<1x128x1xi32>
    %21 = vector.shape_cast %20 : vector<1x128x1xi32> to vector<128x1xi32>
    %c16_i32 = arith.constant 16 : i32
    %22 = vector.broadcast %c16_i32 : i32 to vector<128x1xi32>
    %23 = arith.addi %21, %22 : vector<128x1xi32>
    %24 = vector.broadcast %23 : vector<128x1xi32> to vector<128x128xi32>
    %25 = arith.cmpi eq, %24, %0 : vector<128x128xi32>
    %26 = arith.extui %25 : vector<128x128xi1> to vector<128x128xi32>
    %27 = arith.sitofp %26 : vector<128x128xi32> to vector<128x128xf32>
    %28 = arith.addf %19, %27 : vector<128x128xf32>
    %29 = arith.truncf %28 : vector<128x128xf32> to vector<128x128xbf16>
    %c0_6 = arith.constant 0 : index
    %c0_7 = arith.constant 0 : index
    %30 = vector.load %arg3[%c0_6, %c0_7] : memref<128x128xbf16, #tpu.memory_space<vmem>>, vector<128x128xbf16>
    %cst_8 = arith.constant dense<0.000000e+00> : vector<128x128xf32>
    %31 = tpu.matmul %29, %30, %cst_8 {dimension_numbers = #tpu.dot_dimension_numbers<[1], [0], [0], [1], [0, 0, 1, 1], [], []>} : vector<128x128xbf16>, vector<128x128xbf16>, vector<128x128xf32> -> vector<128x128xf32>
    %c0_9 = arith.constant 0 : index
    %c0_10 = arith.constant 0 : index
    %32 = vector.load %arg5[%c0_9, %c0_10] : memref<1x128xf32, #tpu.memory_space<vmem>>, vector<1x128xf32>
    %c0_11 = arith.constant 0 : index
    %c0_12 = arith.constant 0 : index
    %33 = vector.load %arg6[%c0_11, %c0_12] : memref<1x128xf32, #tpu.memory_space<vmem>>, vector<1x128xf32>
    %c4 = arith.constant 4 : index
    %c0_13 = arith.constant 0 : index
    %c0_14 = arith.constant 0 : index
    %34 = vector.load %arg2[%c4, %c0_13, %c0_14] : memref<9x128x1xf32, #tpu.memory_space<vmem>>, vector<1x128x1xf32>
    %35 = vector.shape_cast %34 : vector<1x128x1xf32> to vector<128x1xf32>
    %c8_i32_15 = arith.constant 8 : i32
    %36 = tpu.dynamic_rotate %31 by %c8_i32_15 dim 0 : vector<128x128xf32>, i32 -> vector<128x128xf32>
    %c0_16 = arith.constant 0 : index
    %c0_17 = arith.constant 0 : index
    %c0_18 = arith.constant 0 : index
    %37 = vector.load %arg2[%c0_16, %c0_17, %c0_18] : memref<9x128x1xf32, #tpu.memory_space<vmem>>, vector<1x128x1xf32>
    %38 = vector.shape_cast %37 : vector<1x128x1xf32> to vector<128x1xf32>
    %39 = vector.broadcast %38 : vector<128x1xf32> to vector<128x128xf32>
    %40 = arith.mulf %36, %39 : vector<128x128xf32>
    %41 = arith.truncf %40 : vector<128x128xf32> to vector<128x128xbf16>
    %c0_19 = arith.constant 0 : index
    %c0_20 = arith.constant 0 : index
    %42 = vector.load %arg15[%c0_19, %c0_20] : memref<128x1152xbf16, #tpu.memory_space<vmem>>, vector<128x128xbf16>
    tpu.vector_store %arg15[%c0_19, %c0_20], %41 {strides = array<i32>} : memref<128x1152xbf16, #tpu.memory_space<vmem>>, vector<128x128xbf16>,
    %c7_i32 = arith.constant 7 : i32
    %43 = tpu.dynamic_rotate %31 by %c7_i32 dim 0 : vector<128x128xf32>, i32 -> vector<128x128xf32>
    %c1_21 = arith.constant 1 : index
    %c0_22 = arith.constant 0 : index
    %c0_23 = arith.constant 0 : index
    %44 = vector.load %arg2[%c1_21, %c0_22, %c0_23] : memref<9x128x1xf32, #tpu.memory_space<vmem>>, vector<1x128x1xf32>
    %45 = vector.shape_cast %44 : vector<1x128x1xf32> to vector<128x1xf32>
    %46 = vector.broadcast %45 : vector<128x1xf32> to vector<128x128xf32>
    %47 = arith.mulf %43, %46 : vector<128x128xf32>
    %48 = arith.truncf %47 : vector<128x128xf32> to vector<128x128xbf16>
    %c0_24 = arith.constant 0 : index
    %c128 = arith.constant 128 : index
    %49 = vector.load %arg15[%c0_24, %c128] : memref<128x1152xbf16, #tpu.memory_space<vmem>>, vector<128x128xbf16>
    tpu.vector_store %arg15[%c0_24, %c128], %48 {strides = array<i32>} : memref<128x1152xbf16, #tpu.memory_space<vmem>>, vector<128x128xbf16>,
    %c6_i32 = arith.constant 6 : i32
    %50 = tpu.dynamic_rotate %31 by %c6_i32 dim 0 : vector<128x128xf32>, i32 -> vector<128x128xf32>
    %c2_25 = arith.constant 2 : index
    %c0_26 = arith.constant 0 : index
    %c0_27 = arith.constant 0 : index
    %51 = vector.load %arg2[%c2_25, %c0_26, %c0_27] : memref<9x128x1xf32, #tpu.memory_space<vmem>>, vector<1x128x1xf32>
    %52 = vector.shape_cast %51 : vector<1x128x1xf32> to vector<128x1xf32>
    %53 = vector.broadcast %52 : vector<128x1xf32> to vector<128x128xf32>
    %54 = arith.mulf %50, %53 : vector<128x128xf32>
    %55 = arith.truncf %54 : vector<128x128xf32> to vector<128x128xbf16>
    %c0_28 = arith.constant 0 : index
    %c256 = arith.constant 256 : index
    %56 = vector.load %arg15[%c0_28, %c256] : memref<128x1152xbf16, #tpu.memory_space<vmem>>, vector<128x128xbf16>
    tpu.vector_store %arg15[%c0_28, %c256], %55 {strides = array<i32>} : memref<128x1152xbf16, #tpu.memory_space<vmem>>, vector<128x128xbf16>,
    %c1_i32 = arith.constant 1 : i32
    %57 = tpu.dynamic_rotate %31 by %c1_i32 dim 0 : vector<128x128xf32>, i32 -> vector<128x128xf32>
    %c3 = arith.constant 3 : index
    %c0_29 = arith.constant 0 : index
    %c0_30 = arith.constant 0 : index
    %58 = vector.load %arg2[%c3, %c0_29, %c0_30] : memref<9x128x1xf32, #tpu.memory_space<vmem>>, vector<1x128x1xf32>
    %59 = vector.shape_cast %58 : vector<1x128x1xf32> to vector<128x1xf32>
    %60 = vector.broadcast %59 : vector<128x1xf32> to vector<128x128xf32>
    %61 = arith.mulf %57, %60 : vector<128x128xf32>
    %62 = arith.truncf %61 : vector<128x128xf32> to vector<128x128xbf16>
    %c0_31 = arith.constant 0 : index
    %c384 = arith.constant 384 : index
    %63 = vector.load %arg15[%c0_31, %c384] : memref<128x1152xbf16, #tpu.memory_space<vmem>>, vector<128x128xbf16>
    tpu.vector_store %arg15[%c0_31, %c384], %62 {strides = array<i32>} : memref<128x1152xbf16, #tpu.memory_space<vmem>>, vector<128x128xbf16>,
    %c4_32 = arith.constant 4 : index
    %c0_33 = arith.constant 0 : index
    %c0_34 = arith.constant 0 : index
    %64 = vector.load %arg2[%c4_32, %c0_33, %c0_34] : memref<9x128x1xf32, #tpu.memory_space<vmem>>, vector<1x128x1xf32>
    %65 = vector.shape_cast %64 : vector<1x128x1xf32> to vector<128x1xf32>
    %66 = vector.broadcast %65 : vector<128x1xf32> to vector<128x128xf32>
    %67 = arith.mulf %31, %66 : vector<128x128xf32>
    %68 = arith.truncf %67 : vector<128x128xf32> to vector<128x128xbf16>
    %c0_35 = arith.constant 0 : index
    %c512 = arith.constant 512 : index
    %69 = vector.load %arg15[%c0_35, %c512] : memref<128x1152xbf16, #tpu.memory_space<vmem>>, vector<128x128xbf16>
    tpu.vector_store %arg15[%c0_35, %c512], %68 {strides = array<i32>} : memref<128x1152xbf16, #tpu.memory_space<vmem>>, vector<128x128xbf16>,
    %c127_i32 = arith.constant 127 : i32
    %70 = tpu.dynamic_rotate %31 by %c127_i32 dim 0 : vector<128x128xf32>, i32 -> vector<128x128xf32>
    %c5 = arith.constant 5 : index
    %c0_36 = arith.constant 0 : index
    %c0_37 = arith.constant 0 : index
    %71 = vector.load %arg2[%c5, %c0_36, %c0_37] : memref<9x128x1xf32, #tpu.memory_space<vmem>>, vector<1x128x1xf32>
    %72 = vector.shape_cast %71 : vector<1x128x1xf32> to vector<128x1xf32>
    %73 = vector.broadcast %72 : vector<128x1xf32> to vector<128x128xf32>
    %74 = arith.mulf %70, %73 : vector<128x128xf32>
    %75 = arith.truncf %74 : vector<128x128xf32> to vector<128x128xbf16>
    %c0_38 = arith.constant 0 : index
    %c640 = arith.constant 640 : index
    %76 = vector.load %arg15[%c0_38, %c640] : memref<128x1152xbf16, #tpu.memory_space<vmem>>, vector<128x128xbf16>
    tpu.vector_store %arg15[%c0_38, %c640], %75 {strides = array<i32>} : memref<128x1152xbf16, #tpu.memory_space<vmem>>, vector<128x128xbf16>,
    %c122_i32 = arith.constant 122 : i32
    %77 = tpu.dynamic_rotate %31 by %c122_i32 dim 0 : vector<128x128xf32>, i32 -> vector<128x128xf32>
    %c6 = arith.constant 6 : index
    %c0_39 = arith.constant 0 : index
    %c0_40 = arith.constant 0 : index
    %78 = vector.load %arg2[%c6, %c0_39, %c0_40] : memref<9x128x1xf32, #tpu.memory_space<vmem>>, vector<1x128x1xf32>
    %79 = vector.shape_cast %78 : vector<1x128x1xf32> to vector<128x1xf32>
    %80 = vector.broadcast %79 : vector<128x1xf32> to vector<128x128xf32>
    %81 = arith.mulf %77, %80 : vector<128x128xf32>
    %82 = arith.truncf %81 : vector<128x128xf32> to vector<128x128xbf16>
    %c0_41 = arith.constant 0 : index
    %c768 = arith.constant 768 : index
    %83 = vector.load %arg15[%c0_41, %c768] : memref<128x1152xbf16, #tpu.memory_space<vmem>>, vector<128x128xbf16>
    tpu.vector_store %arg15[%c0_41, %c768], %82 {strides = array<i32>} : memref<128x1152xbf16, #tpu.memory_space<vmem>>, vector<128x128xbf16>,
    %c121_i32 = arith.constant 121 : i32
    %84 = tpu.dynamic_rotate %31 by %c121_i32 dim 0 : vector<128x128xf32>, i32 -> vector<128x128xf32>
    %c7 = arith.constant 7 : index
    %c0_42 = arith.constant 0 : index
    %c0_43 = arith.constant 0 : index
    %85 = vector.load %arg2[%c7, %c0_42, %c0_43] : memref<9x128x1xf32, #tpu.memory_space<vmem>>, vector<1x128x1xf32>
    %86 = vector.shape_cast %85 : vector<1x128x1xf32> to vector<128x1xf32>
    %87 = vector.broadcast %86 : vector<128x1xf32> to vector<128x128xf32>
    %88 = arith.mulf %84, %87 : vector<128x128xf32>
    %89 = arith.truncf %88 : vector<128x128xf32> to vector<128x128xbf16>
    %c0_44 = arith.constant 0 : index
    %c896 = arith.constant 896 : index
    %90 = vector.load %arg15[%c0_44, %c896] : memref<128x1152xbf16, #tpu.memory_space<vmem>>, vector<128x128xbf16>
    tpu.vector_store %arg15[%c0_44, %c896], %89 {strides = array<i32>} : memref<128x1152xbf16, #tpu.memory_space<vmem>>, vector<128x128xbf16>,
    %c120_i32 = arith.constant 120 : i32
    %91 = tpu.dynamic_rotate %31 by %c120_i32 dim 0 : vector<128x128xf32>, i32 -> vector<128x128xf32>
    %c8 = arith.constant 8 : index
    %c0_45 = arith.constant 0 : index
    %c0_46 = arith.constant 0 : index
    %92 = vector.load %arg2[%c8, %c0_45, %c0_46] : memref<9x128x1xf32, #tpu.memory_space<vmem>>, vector<1x128x1xf32>
    %93 = vector.shape_cast %92 : vector<1x128x1xf32> to vector<128x1xf32>
    %94 = vector.broadcast %93 : vector<128x1xf32> to vector<128x128xf32>
    %95 = arith.mulf %91, %94 : vector<128x128xf32>
    %96 = arith.truncf %95 : vector<128x128xf32> to vector<128x128xbf16>
    %c0_47 = arith.constant 0 : index
    %c1024 = arith.constant 1024 : index
    %97 = vector.load %arg15[%c0_47, %c1024] : memref<128x1152xbf16, #tpu.memory_space<vmem>>, vector<128x128xbf16>
    tpu.vector_store %arg15[%c0_47, %c1024], %96 {strides = array<i32>} : memref<128x1152xbf16, #tpu.memory_space<vmem>>, vector<128x128xbf16>,
    %c0_48 = arith.constant 0 : index
    %c0_49 = arith.constant 0 : index
    %98 = vector.load %arg15[%c0_48, %c0_49] : memref<128x1152xbf16, #tpu.memory_space<vmem>>, vector<128x1152xbf16>
    %c0_50 = arith.constant 0 : index
    %c0_51 = arith.constant 0 : index
    %99 = vector.load %arg4[%c0_50, %c0_51] : memref<1152x128xbf16, #tpu.memory_space<vmem>>, vector<1152x128xbf16>
    %cst_52 = arith.constant dense<0.000000e+00> : vector<128x128xf32>
    %100 = tpu.matmul %98, %99, %cst_52 {dimension_numbers = #tpu.dot_dimension_numbers<[1], [0], [0], [1], [0, 0, 1, 1], [], []>} : vector<128x1152xbf16>, vector<1152x128xbf16>, vector<128x128xf32> -> vector<128x128xf32>
    %cst_53 = arith.constant dense<0.000000e+00> : vector<128xf32>
    %101 = vector.multi_reduction <add>, %100, %cst_53 [0] : vector<128x128xf32> to vector<128xf32>
    %102 = vector.shape_cast %101 : vector<128xf32> to vector<1x128xf32>
    %cst_54 = arith.constant 0.0102040814 : f32
    %103 = vector.broadcast %cst_54 : f32 to vector<1x128xf32>
    %104 = arith.mulf %102, %103 : vector<1x128xf32>
    %105 = arith.mulf %100, %100 : vector<128x128xf32>
    %cst_55 = arith.constant dense<0.000000e+00> : vector<128xf32>
    %106 = vector.multi_reduction <add>, %105, %cst_55 [0] : vector<128x128xf32> to vector<128xf32>
    %107 = vector.shape_cast %106 : vector<128xf32> to vector<1x128xf32>
    %cst_56 = arith.constant 0.0102040814 : f32
    %108 = vector.broadcast %cst_56 : f32 to vector<1x128xf32>
    %109 = arith.mulf %107, %108 : vector<1x128xf32>
    %110 = arith.mulf %104, %104 : vector<1x128xf32>
    %111 = arith.subf %109, %110 : vector<1x128xf32>
    %cst_57 = arith.constant 0.000000e+00 : f32
    %112 = vector.broadcast %cst_57 : f32 to vector<1x128xf32>
    %113 = arith.maximumf %111, %112 : vector<1x128xf32>
    %114 = vector.broadcast %104 : vector<1x128xf32> to vector<128x128xf32>
    %115 = arith.subf %100, %114 : vector<128x128xf32>
    %cst_58 = arith.constant 9.99999974E-6 : f32
    %116 = vector.broadcast %cst_58 : f32 to vector<1x128xf32>
    %117 = arith.addf %113, %116 : vector<1x128xf32>
    %118 = math.rsqrt %117 : vector<1x128xf32>
    %119 = vector.broadcast %118 : vector<1x128xf32> to vector<128x128xf32>
    %120 = arith.mulf %115, %119 : vector<128x128xf32>
    %121 = vector.broadcast %32 : vector<1x128xf32> to vector<128x128xf32>
    %122 = arith.mulf %120, %121 : vector<128x128xf32>
    %123 = vector.broadcast %33 : vector<1x128xf32> to vector<128x128xf32>
    %124 = arith.addf %122, %123 : vector<128x128xf32>
    %cst_59 = arith.constant 0.000000e+00 : f32
    %125 = vector.broadcast %cst_59 : f32 to vector<128x128xf32>
    %126 = arith.maximumf %124, %125 : vector<128x128xf32>
    %127 = vector.broadcast %35 : vector<128x1xf32> to vector<128x128xf32>
    %128 = arith.mulf %126, %127 : vector<128x128xf32>
    %c0_60 = arith.constant 0 : index
    %c0_61 = arith.constant 0 : index
    %129 = vector.load %arg8[%c0_60, %c0_61] : memref<1x128xf32, #tpu.memory_space<vmem>>, vector<1x128xf32>
    %c0_62 = arith.constant 0 : index
    %c0_63 = arith.constant 0 : index
    %130 = vector.load %arg9[%c0_62, %c0_63] : memref<1x128xf32, #tpu.memory_space<vmem>>, vector<1x128xf32>
    %c4_64 = arith.constant 4 : index
    %c0_65 = arith.constant 0 : index
    %c0_66 = arith.constant 0 : index
    %131 = vector.load %arg2[%c4_64, %c0_65, %c0_66] : memref<9x128x1xf32, #tpu.memory_space<vmem>>, vector<1x128x1xf32>
    %132 = vector.shape_cast %131 : vector<1x128x1xf32> to vector<128x1xf32>
    %c8_i32_67 = arith.constant 8 : i32
    %133 = tpu.dynamic_rotate %128 by %c8_i32_67 dim 0 : vector<128x128xf32>, i32 -> vector<128x128xf32>
    %c0_68 = arith.constant 0 : index
    %c0_69 = arith.constant 0 : index
    %c0_70 = arith.constant 0 : index
    %134 = vector.load %arg2[%c0_68, %c0_69, %c0_70] : memref<9x128x1xf32, #tpu.memory_space<vmem>>, vector<1x128x1xf32>
    %135 = vector.shape_cast %134 : vector<1x128x1xf32> to vector<128x1xf32>
    %136 = vector.broadcast %135 : vector<128x1xf32> to vector<128x128xf32>
    %137 = arith.mulf %133, %136 : vector<128x128xf32>
    %138 = arith.truncf %137 : vector<128x128xf32> to vector<128x128xbf16>
    %c0_71 = arith.constant 0 : index
    %c0_72 = arith.constant 0 : index
    %139 = vector.load %arg15[%c0_71, %c0_72] : memref<128x1152xbf16, #tpu.memory_space<vmem>>, vector<128x128xbf16>
    tpu.vector_store %arg15[%c0_71, %c0_72], %138 {strides = array<i32>} : memref<128x1152xbf16, #tpu.memory_space<vmem>>, vector<128x128xbf16>,
    %c7_i32_73 = arith.constant 7 : i32
    %140 = tpu.dynamic_rotate %128 by %c7_i32_73 dim 0 : vector<128x128xf32>, i32 -> vector<128x128xf32>
    %c1_74 = arith.constant 1 : index
    %c0_75 = arith.constant 0 : index
    %c0_76 = arith.constant 0 : index
    %141 = vector.load %arg2[%c1_74, %c0_75, %c0_76] : memref<9x128x1xf32, #tpu.memory_space<vmem>>, vector<1x128x1xf32>
    %142 = vector.shape_cast %141 : vector<1x128x1xf32> to vector<128x1xf32>
    %143 = vector.broadcast %142 : vector<128x1xf32> to vector<128x128xf32>
    %144 = arith.mulf %140, %143 : vector<128x128xf32>
    %145 = arith.truncf %144 : vector<128x128xf32> to vector<128x128xbf16>
    %c0_77 = arith.constant 0 : index
    %c128_78 = arith.constant 128 : index
    %146 = vector.load %arg15[%c0_77, %c128_78] : memref<128x1152xbf16, #tpu.memory_space<vmem>>, vector<128x128xbf16>
    tpu.vector_store %arg15[%c0_77, %c128_78], %145 {strides = array<i32>} : memref<128x1152xbf16, #tpu.memory_space<vmem>>, vector<128x128xbf16>,
    %c6_i32_79 = arith.constant 6 : i32
    %147 = tpu.dynamic_rotate %128 by %c6_i32_79 dim 0 : vector<128x128xf32>, i32 -> vector<128x128xf32>
    %c2_80 = arith.constant 2 : index
    %c0_81 = arith.constant 0 : index
    %c0_82 = arith.constant 0 : index
    %148 = vector.load %arg2[%c2_80, %c0_81, %c0_82] : memref<9x128x1xf32, #tpu.memory_space<vmem>>, vector<1x128x1xf32>
    %149 = vector.shape_cast %148 : vector<1x128x1xf32> to vector<128x1xf32>
    %150 = vector.broadcast %149 : vector<128x1xf32> to vector<128x128xf32>
    %151 = arith.mulf %147, %150 : vector<128x128xf32>
    %152 = arith.truncf %151 : vector<128x128xf32> to vector<128x128xbf16>
    %c0_83 = arith.constant 0 : index
    %c256_84 = arith.constant 256 : index
    %153 = vector.load %arg15[%c0_83, %c256_84] : memref<128x1152xbf16, #tpu.memory_space<vmem>>, vector<128x128xbf16>
    tpu.vector_store %arg15[%c0_83, %c256_84], %152 {strides = array<i32>} : memref<128x1152xbf16, #tpu.memory_space<vmem>>, vector<128x128xbf16>,
    %c1_i32_85 = arith.constant 1 : i32
    %154 = tpu.dynamic_rotate %128 by %c1_i32_85 dim 0 : vector<128x128xf32>, i32 -> vector<128x128xf32>
    %c3_86 = arith.constant 3 : index
    %c0_87 = arith.constant 0 : index
    %c0_88 = arith.constant 0 : index
    %155 = vector.load %arg2[%c3_86, %c0_87, %c0_88] : memref<9x128x1xf32, #tpu.memory_space<vmem>>, vector<1x128x1xf32>
    %156 = vector.shape_cast %155 : vector<1x128x1xf32> to vector<128x1xf32>
    %157 = vector.broadcast %156 : vector<128x1xf32> to vector<128x128xf32>
    %158 = arith.mulf %154, %157 : vector<128x128xf32>
    %159 = arith.truncf %158 : vector<128x128xf32> to vector<128x128xbf16>
    %c0_89 = arith.constant 0 : index
    %c384_90 = arith.constant 384 : index
    %160 = vector.load %arg15[%c0_89, %c384_90] : memref<128x1152xbf16, #tpu.memory_space<vmem>>, vector<128x128xbf16>
    tpu.vector_store %arg15[%c0_89, %c384_90], %159 {strides = array<i32>} : memref<128x1152xbf16, #tpu.memory_space<vmem>>, vector<128x128xbf16>,
    %c4_91 = arith.constant 4 : index
    %c0_92 = arith.constant 0 : index
    %c0_93 = arith.constant 0 : index
    %161 = vector.load %arg2[%c4_91, %c0_92, %c0_93] : memref<9x128x1xf32, #tpu.memory_space<vmem>>, vector<1x128x1xf32>
    %162 = vector.shape_cast %161 : vector<1x128x1xf32> to vector<128x1xf32>
    %163 = vector.broadcast %162 : vector<128x1xf32> to vector<128x128xf32>
    %164 = arith.mulf %128, %163 : vector<128x128xf32>
    %165 = arith.truncf %164 : vector<128x128xf32> to vector<128x128xbf16>
    %c0_94 = arith.constant 0 : index
    %c512_95 = arith.constant 512 : index
    %166 = vector.load %arg15[%c0_94, %c512_95] : memref<128x1152xbf16, #tpu.memory_space<vmem>>, vector<128x128xbf16>
    tpu.vector_store %arg15[%c0_94, %c512_95], %165 {strides = array<i32>} : memref<128x1152xbf16, #tpu.memory_space<vmem>>, vector<128x128xbf16>,
    %c127_i32_96 = arith.constant 127 : i32
    %167 = tpu.dynamic_rotate %128 by %c127_i32_96 dim 0 : vector<128x128xf32>, i32 -> vector<128x128xf32>
    %c5_97 = arith.constant 5 : index
    %c0_98 = arith.constant 0 : index
    %c0_99 = arith.constant 0 : index
    %168 = vector.load %arg2[%c5_97, %c0_98, %c0_99] : memref<9x128x1xf32, #tpu.memory_space<vmem>>, vector<1x128x1xf32>
    %169 = vector.shape_cast %168 : vector<1x128x1xf32> to vector<128x1xf32>
    %170 = vector.broadcast %169 : vector<128x1xf32> to vector<128x128xf32>
    %171 = arith.mulf %167, %170 : vector<128x128xf32>
    %172 = arith.truncf %171 : vector<128x128xf32> to vector<128x128xbf16>
    %c0_100 = arith.constant 0 : index
    %c640_101 = arith.constant 640 : index
    %173 = vector.load %arg15[%c0_100, %c640_101] : memref<128x1152xbf16, #tpu.memory_space<vmem>>, vector<128x128xbf16>
    tpu.vector_store %arg15[%c0_100, %c640_101], %172 {strides = array<i32>} : memref<128x1152xbf16, #tpu.memory_space<vmem>>, vector<128x128xbf16>,
    %c122_i32_102 = arith.constant 122 : i32
    %174 = tpu.dynamic_rotate %128 by %c122_i32_102 dim 0 : vector<128x128xf32>, i32 -> vector<128x128xf32>
    %c6_103 = arith.constant 6 : index
    %c0_104 = arith.constant 0 : index
    %c0_105 = arith.constant 0 : index
    %175 = vector.load %arg2[%c6_103, %c0_104, %c0_105] : memref<9x128x1xf32, #tpu.memory_space<vmem>>, vector<1x128x1xf32>
    %176 = vector.shape_cast %175 : vector<1x128x1xf32> to vector<128x1xf32>
    %177 = vector.broadcast %176 : vector<128x1xf32> to vector<128x128xf32>
    %178 = arith.mulf %174, %177 : vector<128x128xf32>
    %179 = arith.truncf %178 : vector<128x128xf32> to vector<128x128xbf16>
    %c0_106 = arith.constant 0 : index
    %c768_107 = arith.constant 768 : index
    %180 = vector.load %arg15[%c0_106, %c768_107] : memref<128x1152xbf16, #tpu.memory_space<vmem>>, vector<128x128xbf16>
    tpu.vector_store %arg15[%c0_106, %c768_107], %179 {strides = array<i32>} : memref<128x1152xbf16, #tpu.memory_space<vmem>>, vector<128x128xbf16>,
    %c121_i32_108 = arith.constant 121 : i32
    %181 = tpu.dynamic_rotate %128 by %c121_i32_108 dim 0 : vector<128x128xf32>, i32 -> vector<128x128xf32>
    %c7_109 = arith.constant 7 : index
    %c0_110 = arith.constant 0 : index
    %c0_111 = arith.constant 0 : index
    %182 = vector.load %arg2[%c7_109, %c0_110, %c0_111] : memref<9x128x1xf32, #tpu.memory_space<vmem>>, vector<1x128x1xf32>
    %183 = vector.shape_cast %182 : vector<1x128x1xf32> to vector<128x1xf32>
    %184 = vector.broadcast %183 : vector<128x1xf32> to vector<128x128xf32>
    %185 = arith.mulf %181, %184 : vector<128x128xf32>
    %186 = arith.truncf %185 : vector<128x128xf32> to vector<128x128xbf16>
    %c0_112 = arith.constant 0 : index
    %c896_113 = arith.constant 896 : index
    %187 = vector.load %arg15[%c0_112, %c896_113] : memref<128x1152xbf16, #tpu.memory_space<vmem>>, vector<128x128xbf16>
    tpu.vector_store %arg15[%c0_112, %c896_113], %186 {strides = array<i32>} : memref<128x1152xbf16, #tpu.memory_space<vmem>>, vector<128x128xbf16>,
    %c120_i32_114 = arith.constant 120 : i32
    %188 = tpu.dynamic_rotate %128 by %c120_i32_114 dim 0 : vector<128x128xf32>, i32 -> vector<128x128xf32>
    %c8_115 = arith.constant 8 : index
    %c0_116 = arith.constant 0 : index
    %c0_117 = arith.constant 0 : index
    %189 = vector.load %arg2[%c8_115, %c0_116, %c0_117] : memref<9x128x1xf32, #tpu.memory_space<vmem>>, vector<1x128x1xf32>
    %190 = vector.shape_cast %189 : vector<1x128x1xf32> to vector<128x1xf32>
    %191 = vector.broadcast %190 : vector<128x1xf32> to vector<128x128xf32>
    %192 = arith.mulf %188, %191 : vector<128x128xf32>
    %193 = arith.truncf %192 : vector<128x128xf32> to vector<128x128xbf16>
    %c0_118 = arith.constant 0 : index
    %c1024_119 = arith.constant 1024 : index
    %194 = vector.load %arg15[%c0_118, %c1024_119] : memref<128x1152xbf16, #tpu.memory_space<vmem>>, vector<128x128xbf16>
    tpu.vector_store %arg15[%c0_118, %c1024_119], %193 {strides = array<i32>} : memref<128x1152xbf16, #tpu.memory_space<vmem>>, vector<128x128xbf16>,
    %c0_120 = arith.constant 0 : index
    %c0_121 = arith.constant 0 : index
    %195 = vector.load %arg15[%c0_120, %c0_121] : memref<128x1152xbf16, #tpu.memory_space<vmem>>, vector<128x1152xbf16>
    %c0_122 = arith.constant 0 : index
    %c0_123 = arith.constant 0 : index
    %196 = vector.load %arg7[%c0_122, %c0_123] : memref<1152x128xbf16, #tpu.memory_space<vmem>>, vector<1152x128xbf16>
    %cst_124 = arith.constant dense<0.000000e+00> : vector<128x128xf32>
    %197 = tpu.matmul %195, %196, %cst_124 {dimension_numbers = #tpu.dot_dimension_numbers<[1], [0], [0], [1], [0, 0, 1, 1], [], []>} : vector<128x1152xbf16>, vector<1152x128xbf16>, vector<128x128xf32> -> vector<128x128xf32>
    %cst_125 = arith.constant dense<0.000000e+00> : vector<128xf32>
    %198 = vector.multi_reduction <add>, %197, %cst_125 [0] : vector<128x128xf32> to vector<128xf32>
    %199 = vector.shape_cast %198 : vector<128xf32> to vector<1x128xf32>
    %cst_126 = arith.constant 0.0102040814 : f32
    %200 = vector.broadcast %cst_126 : f32 to vector<1x128xf32>
    %201 = arith.mulf %199, %200 : vector<1x128xf32>
    %202 = arith.mulf %197, %197 : vector<128x128xf32>
    %cst_127 = arith.constant dense<0.000000e+00> : vector<128xf32>
    %203 = vector.multi_reduction <add>, %202, %cst_127 [0] : vector<128x128xf32> to vector<128xf32>
    %204 = vector.shape_cast %203 : vector<128xf32> to vector<1x128xf32>
    %cst_128 = arith.constant 0.0102040814 : f32
    %205 = vector.broadcast %cst_128 : f32 to vector<1x128xf32>
    %206 = arith.mulf %204, %205 : vector<1x128xf32>
    %207 = arith.mulf %201, %201 : vector<1x128xf32>
    %208 = arith.subf %206, %207 : vector<1x128xf32>
    %cst_129 = arith.constant 0.000000e+00 : f32
    %209 = vector.broadcast %cst_129 : f32 to vector<1x128xf32>
    %210 = arith.maximumf %208, %209 : vector<1x128xf32>
    %211 = vector.broadcast %201 : vector<1x128xf32> to vector<128x128xf32>
    %212 = arith.subf %197, %211 : vector<128x128xf32>
    %cst_130 = arith.constant 9.99999974E-6 : f32
    %213 = vector.broadcast %cst_130 : f32 to vector<1x128xf32>
    %214 = arith.addf %210, %213 : vector<1x128xf32>
    %215 = math.rsqrt %214 : vector<1x128xf32>
    %216 = vector.broadcast %215 : vector<1x128xf32> to vector<128x128xf32>
    %217 = arith.mulf %212, %216 : vector<128x128xf32>
    %218 = vector.broadcast %129 : vector<1x128xf32> to vector<128x128xf32>
    %219 = arith.mulf %217, %218 : vector<128x128xf32>
    %220 = vector.broadcast %130 : vector<1x128xf32> to vector<128x128xf32>
    %221 = arith.addf %219, %220 : vector<128x128xf32>
    %cst_131 = arith.constant 0.000000e+00 : f32
    %222 = vector.broadcast %cst_131 : f32 to vector<128x128xf32>
    %223 = arith.maximumf %221, %222 : vector<128x128xf32>
    %224 = vector.broadcast %132 : vector<128x1xf32> to vector<128x128xf32>
    %225 = arith.mulf %223, %224 : vector<128x128xf32>
    %226 = vector.extract_strided_slice %225 {offsets = [0, 0], sizes = [64, 128], strides = [1, 1]} : vector<128x128xf32> to vector<64x128xf32>
    %cst_132 = arith.constant dense<0xFF800000> : vector<128xf32>
    %227 = vector.multi_reduction <maximumf>, %226, %cst_132 [0] : vector<64x128xf32> to vector<128xf32>
    %228 = vector.shape_cast %227 : vector<128xf32> to vector<1x128xf32>
    %229 = vector.extract_strided_slice %225 {offsets = [64, 0], sizes = [64, 128], strides = [1, 1]} : vector<128x128xf32> to vector<64x128xf32>
    %cst_133 = arith.constant dense<0xFF800000> : vector<128xf32>
    %230 = vector.multi_reduction <maximumf>, %229, %cst_133 [0] : vector<64x128xf32> to vector<128xf32>
    %231 = vector.shape_cast %230 : vector<128xf32> to vector<1x128xf32>
    %232 = tpu.concatenate %228, %231 in 0 : vector<1x128xf32>, vector<1x128xf32> -> vector<2x128xf32>
    %cst_134 = arith.constant 0.000000e+00 : f32
    %233 = vector.broadcast %cst_134 : f32 to vector<2x128xf32>
    %234 = arith.maximumf %232, %233 : vector<2x128xf32>
    %235 = arith.truncf %234 : vector<2x128xf32> to vector<2x128xbf16>
    %c0_135 = arith.constant 0 : index
    %c0_136 = arith.constant 0 : index
    %236 = vector.load %arg10[%c0_135, %c0_136] : memref<128x128xbf16, #tpu.memory_space<vmem>>, vector<128x128xbf16>
    %cst_137 = arith.constant dense<0.000000e+00> : vector<2x128xf32>
    %237 = tpu.matmul %235, %236, %cst_137 {dimension_numbers = #tpu.dot_dimension_numbers<[1], [0], [0], [1], [0, 0, 1, 1], [], []>} : vector<2x128xbf16>, vector<128x128xbf16>, vector<2x128xf32> -> vector<2x128xf32>
    %c0_138 = arith.constant 0 : index
    %c0_139 = arith.constant 0 : index
    %238 = vector.load %arg11[%c0_138, %c0_139] : memref<1x128xf32, #tpu.memory_space<vmem>>, vector<1x128xf32>
    %239 = vector.broadcast %238 : vector<1x128xf32> to vector<2x128xf32>
    %240 = arith.addf %237, %239 : vector<2x128xf32>
    %241 = math.tanh %240 : vector<2x128xf32>
    %242 = arith.truncf %241 : vector<2x128xf32> to vector<2x128xbf16>
    %c0_140 = arith.constant 0 : index
    %c0_141 = arith.constant 0 : index
    %243 = vector.load %arg12[%c0_140, %c0_141] : memref<128x128xbf16, #tpu.memory_space<vmem>>, vector<128x128xbf16>
    %cst_142 = arith.constant dense<0.000000e+00> : vector<2x128xf32>
    %244 = tpu.matmul %242, %243, %cst_142 {dimension_numbers = #tpu.dot_dimension_numbers<[1], [0], [0], [1], [0, 0, 1, 1], [], []>} : vector<2x128xbf16>, vector<128x128xbf16>, vector<2x128xf32> -> vector<2x128xf32>
    %c0_143 = arith.constant 0 : index
    %c0_144 = arith.constant 0 : index
    %245 = vector.load %arg13[%c0_143, %c0_144] : memref<1x128xf32, #tpu.memory_space<vmem>>, vector<1x128xf32>
    %246 = vector.broadcast %245 : vector<1x128xf32> to vector<2x128xf32>
    %247 = arith.addf %244, %246 : vector<2x128xf32>
    %248 = tpu.iota {dimensions = array<i32: 1>} : vector<2x128xi32>
    %c7_i32_145 = arith.constant 7 : i32
    %249 = vector.broadcast %c7_i32_145 : i32 to vector<2x128xi32>
    %250 = arith.cmpi slt, %248, %249 : vector<2x128xi32>
    %cst_146 = arith.constant -1.000000e+30 : f32
    %251 = vector.broadcast %cst_146 : f32 to vector<2x128xf32>
    %252 = arith.select %250, %247, %251 : vector<2x128xi1>, vector<2x128xf32>
    %cst_147 = arith.constant dense<0xFF800000> : vector<2xf32>
    %253 = vector.multi_reduction <maximumf>, %252, %cst_147 [1] : vector<2x128xf32> to vector<2xf32>
    %254 = vector.shape_cast %253 : vector<2xf32> to vector<2x1xf32>
    %255 = vector.broadcast %254 : vector<2x1xf32> to vector<2x128xf32>
    %256 = arith.subf %252, %255 : vector<2x128xf32>
    %257 = math.exp %256 : vector<2x128xf32>
    %cst_148 = arith.constant 0.000000e+00 : f32
    %258 = vector.broadcast %cst_148 : f32 to vector<2x128xf32>
    %259 = arith.select %250, %257, %258 : vector<2x128xi1>, vector<2x128xf32>
    %cst_149 = arith.constant dense<0.000000e+00> : vector<2xf32>
    %260 = vector.multi_reduction <add>, %259, %cst_149 [1] : vector<2x128xf32> to vector<2xf32>
    %261 = vector.shape_cast %260 : vector<2xf32> to vector<2x1xf32>
    %262 = math.log %261 : vector<2x1xf32>
    %263 = vector.broadcast %262 : vector<2x1xf32> to vector<2x128xf32>
    %264 = arith.subf %256, %263 : vector<2x128xf32>
    %c7_i32_150 = arith.constant 7 : i32
    %265 = vector.broadcast %c7_i32_150 : i32 to vector<2x128xi32>
    %266 = arith.cmpi eq, %248, %265 : vector<2x128xi32>
    %cst_151 = arith.constant 0.000000e+00 : f32
    %267 = vector.broadcast %cst_151 : f32 to vector<2x128xf32>
    %268 = arith.select %266, %247, %267 : vector<2x128xi1>, vector<2x128xf32>
    %269 = arith.select %250, %264, %268 : vector<2x128xi1>, vector<2x128xf32>
    %c0_152 = arith.constant 0 : index
    %c0_153 = arith.constant 0 : index
    %270 = vector.load %arg14[%c0_152, %c0_153] : memref<2x128xf32, #tpu.memory_space<vmem>>, vector<2x128xf32>
    tpu.vector_store %arg14[%c0_152, %c0_153], %269 {strides = array<i32>} : memref<2x128xf32, #tpu.memory_space<vmem>>, vector<2x128xf32>,
    return
  }
  func.func @transform_0(%arg0: i32) -> (i32, i32, i32) {
    %c0_i32 = arith.constant 0 : i32
    %c0_i32_0 = arith.constant 0 : i32
    %c0_i32_1 = arith.constant 0 : i32
    %c0_i32_2 = arith.constant 0 : i32
    return %c0_i32, %c0_i32_0, %c0_i32_1 : i32, i32, i32
  }
  func.func @transform_1(%arg0: i32) -> (i32, i32, i32) {
    %c0_i32 = arith.constant 0 : i32
    %c0_i32_0 = arith.constant 0 : i32
    %c0_i32_1 = arith.constant 0 : i32
    %c0_i32_2 = arith.constant 0 : i32
    return %c0_i32, %c0_i32_0, %c0_i32_1 : i32, i32, i32
  }
  func.func @transform_2(%arg0: i32) -> (i32, i32) {
    %c0_i32 = arith.constant 0 : i32
    %c0_i32_0 = arith.constant 0 : i32
    %c0_i32_1 = arith.constant 0 : i32
    return %c0_i32, %c0_i32_0 : i32, i32
  }
  func.func @transform_3(%arg0: i32) -> (i32, i32) {
    %c0_i32 = arith.constant 0 : i32
    %c0_i32_0 = arith.constant 0 : i32
    %c0_i32_1 = arith.constant 0 : i32
    return %c0_i32, %c0_i32_0 : i32, i32
  }
  func.func @transform_4(%arg0: i32) -> (i32, i32) {
    %c0_i32 = arith.constant 0 : i32
    %c0_i32_0 = arith.constant 0 : i32
    %c0_i32_1 = arith.constant 0 : i32
    return %c0_i32, %c0_i32_0 : i32, i32
  }
  func.func @transform_5(%arg0: i32) -> (i32, i32) {
    %c0_i32 = arith.constant 0 : i32
    %c0_i32_0 = arith.constant 0 : i32
    %c0_i32_1 = arith.constant 0 : i32
    return %c0_i32, %c0_i32_0 : i32, i32
  }
  func.func @transform_6(%arg0: i32) -> (i32, i32) {
    %c0_i32 = arith.constant 0 : i32
    %c0_i32_0 = arith.constant 0 : i32
    %c0_i32_1 = arith.constant 0 : i32
    return %c0_i32, %c0_i32_0 : i32, i32
  }
  func.func @transform_7(%arg0: i32) -> (i32, i32) {
    %c0_i32 = arith.constant 0 : i32
    %c0_i32_0 = arith.constant 0 : i32
    %c0_i32_1 = arith.constant 0 : i32
    return %c0_i32, %c0_i32_0 : i32, i32
  }
  func.func @transform_8(%arg0: i32) -> (i32, i32) {
    %c0_i32 = arith.constant 0 : i32
    %c0_i32_0 = arith.constant 0 : i32
    %c0_i32_1 = arith.constant 0 : i32
    return %c0_i32, %c0_i32_0 : i32, i32
  }
  func.func @transform_9(%arg0: i32) -> (i32, i32) {
    %c0_i32 = arith.constant 0 : i32
    %c0_i32_0 = arith.constant 0 : i32
    %c0_i32_1 = arith.constant 0 : i32
    return %c0_i32, %c0_i32_0 : i32, i32
  }
  func.func @transform_10(%arg0: i32) -> (i32, i32) {
    %c0_i32 = arith.constant 0 : i32
    %c0_i32_0 = arith.constant 0 : i32
    %c0_i32_1 = arith.constant 0 : i32
    return %c0_i32, %c0_i32_0 : i32, i32
  }
  func.func @transform_11(%arg0: i32) -> (i32, i32) {
    %c0_i32 = arith.constant 0 : i32
    %c0_i32_0 = arith.constant 0 : i32
    %c0_i32_1 = arith.constant 0 : i32
    return %c0_i32, %c0_i32_0 : i32, i32
  }
  func.func @transform_12(%arg0: i32) -> (i32, i32) {
    %c0_i32 = arith.constant 0 : i32
    %c0_i32_0 = arith.constant 0 : i32
    %c0_i32_1 = arith.constant 0 : i32
    return %c0_i32, %c0_i32_0 : i32, i32
  }
  func.func @transform_13(%arg0: i32) -> (i32, i32) {
    %c0_i32 = arith.constant 0 : i32
    %c0_i32_0 = arith.constant 0 : i32
    %c0_i32_1 = arith.constant 0 : i32
    return %c0_i32, %c0_i32_0 : i32, i32
  }
}

</mosaic_0001>

<llo_original>
// kernel: acmodel_forward.1
$region0: #{acmodel_forward.1}
  #allocation0 [shape = 'u32[]', space=smem, size = 0x4, offset = 0x4, fixed_abs, tag = 'smem constant byte address 0x4 - core index']
  #allocation1 [shape = 'u32[72,128]{1,0:T(1,128)}', space=vmem, size = 0x9000, scoped, tag = 'internal scratch']
  #allocation2 [shape = 'bf16[128,1152]{1,0:T(8,128)(2,1)}', space=vmem, size = 0x48000, scoped, tag = 'scratch operand']
  %s0 = inlined_call_operand.vmem [shape: s32[3,128,1], index: 0, kind: input, shape index: {}]
  %s1 = inlined_call_operand.hbm [shape: f32[9,128,1], index: 1, kind: input, shape index: {}]
  %s2 = inlined_call_operand.vmem [shape: bf16[128,128], index: 2, kind: input, shape index: {}]
  %s3 = inlined_call_operand.hbm [shape: bf16[1152,128], index: 3, kind: input, shape index: {}]
  %s4 = inlined_call_operand.vmem [shape: f32[1,128], index: 4, kind: input, shape index: {}]
  %s5 = inlined_call_operand.vmem [shape: f32[1,128], index: 5, kind: input, shape index: {}]
  %s6 = inlined_call_operand.hbm [shape: bf16[1152,128], index: 6, kind: input, shape index: {}]
  %s7 = inlined_call_operand.vmem [shape: f32[1,128], index: 7, kind: input, shape index: {}]
  %s8 = inlined_call_operand.vmem [shape: f32[1,128], index: 8, kind: input, shape index: {}]
  %s9 = inlined_call_operand.vmem [shape: bf16[128,128], index: 9, kind: input, shape index: {}]
  %s10 = inlined_call_operand.vmem [shape: f32[1,128], index: 10, kind: input, shape index: {}]
  %s11 = inlined_call_operand.vmem [shape: bf16[128,128], index: 11, kind: input, shape index: {}]
  %s12 = inlined_call_operand.vmem [shape: f32[1,128], index: 12, kind: input, shape index: {}]
  %s13 = inlined_call_operand.vmem [shape: f32[2,128], index: 13, kind: output, shape index: {}]
  %s14 = sld [smem:[#allocation0]]
  $region74: #{acmodel_forward.1} parent=0
    _
  %s16 = ssub.s32 1, %s14
  %s17 = scalar_select 0, %s16, %s14
  $region1: #{acmodel_forward.1} parent=0
    #allocation3 [shape = 'u8[589824]{0}', space=vmem, size = 0x90000, scoped, tag = 'input window, operand 1, single buffered']
    #allocation4 [shape = 's32[1]{0}', space=sflag, size = 0x4, scoped, tag = 'scoped memory for acmodel_forward.1']
    #allocation5 [shape = 'u8[294912]{0}', space=vmem, size = 0x48000, scoped, tag = 'input window, operand 3, single buffered']
    #allocation6 [shape = 's32[1]{0}', space=sflag, size = 0x4, scoped, tag = 'scoped memory for acmodel_forward.1']
    #allocation7 [shape = 'u8[294912]{0}', space=vmem, size = 0x48000, scoped, tag = 'input window, operand 6, single buffered']
    %18 = vsyncpa [#allocation4], 0
    %19 = vsyncpa [#allocation6], 0
    // Predicated region
    $region2: #{acmodel_forward.1} parent=1 // pred_check
      _
    $region3: #{acmodel_forward.1} parent=1 // pred_check_branch
      %21 = sbr.rel (0) target = $region5
    $region4: #{acmodel_forward.1} parent=1 // pred_region
      _
    $region5: #{acmodel_forward.1} parent=1 // pred_fallthru
      _
    // Predicated region
    $region6: #{acmodel_forward.1} parent=1 // pred_check
      _
    $region7: #{acmodel_forward.1} parent=1 // pred_check_branch
      %23 = sbr.rel (0) target = $region9
    $region8: #{acmodel_forward.1} parent=1 // pred_region
      %25 = vsyncadd [#allocation4], 0
      %s26 = sshll.u32 %s1, 4
      %s27 = int_to_ptr.hbm [resolvable:$true] %s26
      %s28 = sshll.u32 [#allocation3], 4
      %s29 = int_to_ptr.vmem [resolvable:$true] %s28
      %34 = dma.hbm_to_vmem [thread:$0]  %s27, 18432, %s29, [#allocation4], 128, 128, 8
    $region9: #{acmodel_forward.1} parent=1 // pred_fallthru
      _
    // Predicated region
    $region10: #{acmodel_forward.1} parent=1 // pred_check
      _
    $region11: #{acmodel_forward.1} parent=1 // pred_check_branch
      %36 = sbr.rel (0) target = $region13
    $region12: #{acmodel_forward.1} parent=1 // pred_region
      _
    $region13: #{acmodel_forward.1} parent=1 // pred_fallthru
      _
    // Predicated region
    $region14: #{acmodel_forward.1} parent=1 // pred_check
      _
    $region15: #{acmodel_forward.1} parent=1 // pred_check_branch
      %38 = sbr.rel (0) target = $region17
    $region16: #{acmodel_forward.1} parent=1 // pred_region
      %40 = vsyncadd [#allocation6], 0
      %s41 = sshll.u32 %s3, 4
      %s42 = int_to_ptr.hbm [resolvable:$true] %s41
      %s43 = sshll.u32 [#allocation5], 4
      %s44 = int_to_ptr.vmem [resolvable:$true] %s43
      %49 = dma.hbm_to_vmem [thread:$0]  %s42, 9216, %s44, [#allocation6], 64, 64, 4
    $region17: #{acmodel_forward.1} parent=1 // pred_fallthru
      _
    // Predicated region
    $region18: #{acmodel_forward.1} parent=1 // pred_check
      _
    $region19: #{acmodel_forward.1} parent=1 // pred_check_branch
      %51 = sbr.rel (0) target = $region21
    $region20: #{acmodel_forward.1} parent=1 // pred_region
      _
    $region21: #{acmodel_forward.1} parent=1 // pred_fallthru
      _
    // Predicated region
    $region22: #{acmodel_forward.1} parent=1 // pred_check
      _
    $region23: #{acmodel_forward.1} parent=1 // pred_check_branch
      %53 = sbr.rel (0) target = $region25
    $region24: #{acmodel_forward.1} parent=1 // pred_region
      _
    $region25: #{acmodel_forward.1} parent=1 // pred_fallthru
      _
    // Predicated region
    $region26: #{acmodel_forward.1} parent=1 // pred_check
      _
    $region27: #{acmodel_forward.1} parent=1 // pred_check_branch
      %55 = sbr.rel (0) target = $region29
    $region28: #{acmodel_forward.1} parent=1 // pred_region
      %57 = vsyncadd [#allocation6], 0
      %s58 = sshll.u32 %s6, 4
      %s59 = int_to_ptr.hbm [resolvable:$true] %s58
      %s60 = sshll.u32 [#allocation7], 4
      %s61 = int_to_ptr.vmem [resolvable:$true] %s60
      %66 = dma.hbm_to_vmem [thread:$0]  %s59, 9216, %s61, [#allocation6], 64, 64, 4
    $region29: #{acmodel_forward.1} parent=1 // pred_fallthru
      _
    // Predicated region
    $region30: #{acmodel_forward.1} parent=1 // pred_check
      _
    $region31: #{acmodel_forward.1} parent=1 // pred_check_branch
      %68 = sbr.rel (0) target = $region33
    $region32: #{acmodel_forward.1} parent=1 // pred_region
      _
    $region33: #{acmodel_forward.1} parent=1 // pred_fallthru
      _
    // Predicated region
    $region34: #{acmodel_forward.1} parent=1 // pred_check
      _
    $region35: #{acmodel_forward.1} parent=1 // pred_check_branch
      %70 = sbr.rel (0) target = $region37
    $region36: #{acmodel_forward.1} parent=1 // pred_region
      _
    $region37: #{acmodel_forward.1} parent=1 // pred_fallthru
      _
    // Predicated region
    $region38: #{acmodel_forward.1} parent=1 // pred_check
      _
    $region39: #{acmodel_forward.1} parent=1 // pred_check_branch
      %72 = sbr.rel (0) target = $region41
    $region40: #{acmodel_forward.1} parent=1 // pred_region
      _
    $region41: #{acmodel_forward.1} parent=1 // pred_fallthru
      _
    // Predicated region
    $region42: #{acmodel_forward.1} parent=1 // pred_check
      _
    $region43: #{acmodel_forward.1} parent=1 // pred_check_branch
      %74 = sbr.rel (0) target = $region45
    $region44: #{acmodel_forward.1} parent=1 // pred_region
      _
    $region45: #{acmodel_forward.1} parent=1 // pred_fallthru
      _
    // Predicated region
    $region46: #{acmodel_forward.1} parent=1 // pred_check
      _
    $region47: #{acmodel_forward.1} parent=1 // pred_check_branch
      %76 = sbr.rel (0) target = $region49
    $region48: #{acmodel_forward.1} parent=1 // pred_region
      _
    $region49: #{acmodel_forward.1} parent=1 // pred_fallthru
      _
    // Predicated region
    $region50: #{acmodel_forward.1} parent=1 // pred_check
      _
    $region51: #{acmodel_forward.1} parent=1 // pred_check_branch
      %78 = sbr.rel (0) target = $region53
    $region52: #{acmodel_forward.1} parent=1 // pred_region
      _
    $region53: #{acmodel_forward.1} parent=1 // pred_fallthru
      _
    // Predicated region
    $region54: #{acmodel_forward.1} parent=1 // pred_check
      _
    $region55: #{acmodel_forward.1} parent=1 // pred_check_branch
      %80 = sbr.rel (0) target = $region57
    $region56: #{acmodel_forward.1} parent=1 // pred_region
      %82 = dma.done [#allocation4], 18432
    $region57: #{acmodel_forward.1} parent=1 // pred_fallthru
      _
    // Predicated region
    $region58: #{acmodel_forward.1} parent=1 // pred_check
      _
    $region59: #{acmodel_forward.1} parent=1 // pred_check_branch
      %84 = sbr.rel (0) target = $region61
    $region60: #{acmodel_forward.1} parent=1 // pred_region
      %86 = dma.done [#allocation6], 9216
    $region61: #{acmodel_forward.1} parent=1 // pred_fallthru
      _
    // Predicated region
    $region62: #{acmodel_forward.1} parent=1 // pred_check
      _
    $region63: #{acmodel_forward.1} parent=1 // pred_check_branch
      %88 = sbr.rel (0) target = $region65
    $region64: #{acmodel_forward.1} parent=1 // pred_region
      %90 = dma.done [#allocation6], 9216
    $region65: #{acmodel_forward.1} parent=1 // pred_fallthru
      _
    %v91 = vlaneseq
    %v92 = vand.u32 %v91, 127
    %v93 = vld [vmem:[%s0] sm:$0xff]
    %v94 = vld [vmem:[%s0 + $0x8] sm:$0xff]
    %v95 = vld [vmem:[%s0 + $0x10] sm:$0xff]
    %v96 = vld [vmem:[%s0 + $0x18] sm:$0xff]
    %v97 = vld [vmem:[%s0 + $0x20] sm:$0xff]
    %v98 = vld [vmem:[%s0 + $0x28] sm:$0xff]
    %v99 = vld [vmem:[%s0 + $0x30] sm:$0xff]
    %v100 = vld [vmem:[%s0 + $0x38] sm:$0xff]
    %v101 = vld [vmem:[%s0 + $0x40] sm:$0xff]
    %v102 = vld [vmem:[%s0 + $0x48] sm:$0xff]
    %v103 = vld [vmem:[%s0 + $0x50] sm:$0xff]
    %v104 = vld [vmem:[%s0 + $0x58] sm:$0xff]
    %v105 = vld [vmem:[%s0 + $0x60] sm:$0xff]
    %v106 = vld [vmem:[%s0 + $0x68] sm:$0xff]
    %v107 = vld [vmem:[%s0 + $0x70] sm:$0xff]
    %v108 = vld [vmem:[%s0 + $0x78] sm:$0xff]
    %109 = vset.pattern.permute.xlu0 0
    %110 = vperm.xlu0 %109, %v93
    %v111 = vpop.permute.xlu0 %110
    %112 = vset.pattern.permute.xlu0 0
    %113 = vperm.xlu0 %112, %v94
    %v114 = vpop.permute.xlu0 %113
    %115 = vset.pattern.permute.xlu0 0
    %116 = vperm.xlu0 %115, %v95
    %v117 = vpop.permute.xlu0 %116
    %118 = vset.pattern.permute.xlu0 0
    %119 = vperm.xlu0 %118, %v96
    %v120 = vpop.permute.xlu0 %119
    %121 = vset.pattern.permute.xlu0 0
    %122 = vperm.xlu0 %121, %v97
    %v123 = vpop.permute.xlu0 %122
    %124 = vset.pattern.permute.xlu0 0
    %125 = vperm.xlu0 %124, %v98
    %v126 = vpop.permute.xlu0 %125
    %127 = vset.pattern.permute.xlu0 0
    %128 = vperm.xlu0 %127, %v99
    %v129 = vpop.permute.xlu0 %128
    %130 = vset.pattern.permute.xlu0 0
    %131 = vperm.xlu0 %130, %v100
    %v132 = vpop.permute.xlu0 %131
    %133 = vset.pattern.permute.xlu0 0
    %134 = vperm.xlu0 %133, %v101
    %v135 = vpop.permute.xlu0 %134
    %136 = vset.pattern.permute.xlu0 0
    %137 = vperm.xlu0 %136, %v102
    %v138 = vpop.permute.xlu0 %137
    %139 = vset.pattern.permute.xlu0 0
    %140 = vperm.xlu0 %139, %v103
    %v141 = vpop.permute.xlu0 %140
    %142 = vset.pattern.permute.xlu0 0
    %143 = vperm.xlu0 %142, %v104
    %v144 = vpop.permute.xlu0 %143
    %145 = vset.pattern.permute.xlu0 0
    %146 = vperm.xlu0 %145, %v105
    %v147 = vpop.permute.xlu0 %146
    %148 = vset.pattern.permute.xlu0 0
    %149 = vperm.xlu0 %148, %v106
    %v150 = vpop.permute.xlu0 %149
    %151 = vset.pattern.permute.xlu0 0
    %152 = vperm.xlu0 %151, %v107
    %v153 = vpop.permute.xlu0 %152
    %154 = vset.pattern.permute.xlu0 0
    %155 = vperm.xlu0 %154, %v108
    %v156 = vpop.permute.xlu0 %155
    %vm157 = vcmp.eq.s32.totalorder %v111, %v92
    %vm158 = vcmp.eq.s32.totalorder %v114, %v92
    %vm159 = vcmp.eq.s32.totalorder %v117, %v92
    %vm160 = vcmp.eq.s32.totalorder %v120, %v92
    %vm161 = vcmp.eq.s32.totalorder %v123, %v92
    %vm162 = vcmp.eq.s32.totalorder %v126, %v92
    %vm163 = vcmp.eq.s32.totalorder %v129, %v92
    %vm164 = vcmp.eq.s32.totalorder %v132, %v92
    %vm165 = vcmp.eq.s32.totalorder %v135, %v92
    %vm166 = vcmp.eq.s32.totalorder %v138, %v92
    %vm167 = vcmp.eq.s32.totalorder %v141, %v92
    %vm168 = vcmp.eq.s32.totalorder %v144, %v92
    %vm169 = vcmp.eq.s32.totalorder %v147, %v92
    %vm170 = vcmp.eq.s32.totalorder %v150, %v92
    %vm171 = vcmp.eq.s32.totalorder %v153, %v92
    %vm172 = vcmp.eq.s32.totalorder %v156, %v92
    %v173 = vsel %vm157, 1, 0
    %v174 = vsel %vm158, 1, 0
    %v175 = vsel %vm159, 1, 0
    %v176 = vsel %vm160, 1, 0
    %v177 = vsel %vm161, 1, 0
    %v178 = vsel %vm162, 1, 0
    %v179 = vsel %vm163, 1, 0
    %v180 = vsel %vm164, 1, 0
    %v181 = vsel %vm165, 1, 0
    %v182 = vsel %vm166, 1, 0
    %v183 = vsel %vm167, 1, 0
    %v184 = vsel %vm168, 1, 0
    %v185 = vsel %vm169, 1, 0
    %v186 = vsel %vm170, 1, 0
    %v187 = vsel %vm171, 1, 0
    %v188 = vsel %vm172, 1, 0
    %v189 = vcvt.s32.f32 %v173
    %v190 = vcvt.s32.f32 %v174
    %v191 = vcvt.s32.f32 %v175
    %v192 = vcvt.s32.f32 %v176
    %v193 = vcvt.s32.f32 %v177
    %v194 = vcvt.s32.f32 %v178
    %v195 = vcvt.s32.f32 %v179
    %v196 = vcvt.s32.f32 %v180
    %v197 = vcvt.s32.f32 %v181
    %v198 = vcvt.s32.f32 %v182
    %v199 = vcvt.s32.f32 %v183
    %v200 = vcvt.s32.f32 %v184
    %v201 = vcvt.s32.f32 %v185
    %v202 = vcvt.s32.f32 %v186
    %v203 = vcvt.s32.f32 %v187
    %v204 = vcvt.s32.f32 %v188
    %v205 = vadd.f32 %v189, 0.0
    %v206 = vadd.f32 %v190, 0.0
    %v207 = vadd.f32 %v191, 0.0
    %v208 = vadd.f32 %v192, 0.0
    %v209 = vadd.f32 %v193, 0.0
    %v210 = vadd.f32 %v194, 0.0
    %v211 = vadd.f32 %v195, 0.0
    %v212 = vadd.f32 %v196, 0.0
    %v213 = vadd.f32 %v197, 0.0
    %v214 = vadd.f32 %v198, 0.0
    %v215 = vadd.f32 %v199, 0.0
    %v216 = vadd.f32 %v200, 0.0
    %v217 = vadd.f32 %v201, 0.0
    %v218 = vadd.f32 %v202, 0.0
    %v219 = vadd.f32 %v203, 0.0
    %v220 = vadd.f32 %v204, 0.0
    %s221 = scalar_lea.vmem %s0, 128
    %v222 = vld [vmem:[%s221] sm:$0xff]
    %v223 = vld [vmem:[%s221 + $0x8] sm:$0xff]
    %v224 = vld [vmem:[%s221 + $0x10] sm:$0xff]
    %v225 = vld [vmem:[%s221 + $0x18] sm:$0xff]
    %v226 = vld [vmem:[%s221 + $0x20] sm:$0xff]
    %v227 = vld [vmem:[%s221 + $0x28] sm:$0xff]
    %v228 = vld [vmem:[%s221 + $0x30] sm:$0xff]
    %v229 = vld [vmem:[%s221 + $0x38] sm:$0xff]
    %v230 = vld [vmem:[%s221 + $0x40] sm:$0xff]
    %v231 = vld [vmem:[%s221 + $0x48] sm:$0xff]
    %v232 = vld [vmem:[%s221 + $0x50] sm:$0xff]
    %v233 = vld [vmem:[%s221 + $0x58] sm:$0xff]
    %v234 = vld [vmem:[%s221 + $0x60] sm:$0xff]
    %v235 = vld [vmem:[%s221 + $0x68] sm:$0xff]
    %v236 = vld [vmem:[%s221 + $0x70] sm:$0xff]
    %v237 = vld [vmem:[%s221 + $0x78] sm:$0xff]
    %v238 = vadd.s32 %v222, 8
    %v239 = vadd.s32 %v223, 8
    %v240 = vadd.s32 %v224, 8
    %v241 = vadd.s32 %v225, 8
    %v242 = vadd.s32 %v226, 8
    %v243 = vadd.s32 %v227, 8
    %v244 = vadd.s32 %v228, 8
    %v245 = vadd.s32 %v229, 8
    %v246 = vadd.s32 %v230, 8
    %v247 = vadd.s32 %v231, 8
    %v248 = vadd.s32 %v232, 8
    %v249 = vadd.s32 %v233, 8
    %v250 = vadd.s32 %v234, 8
    %v251 = vadd.s32 %v235, 8
    %v252 = vadd.s32 %v236, 8
    %v253 = vadd.s32 %v237, 8
    %254 = vset.pattern.permute.xlu0 0
    %255 = vperm.xlu0 %254, %v238
    %v256 = vpop.permute.xlu0 %255
    %257 = vset.pattern.permute.xlu0 0
    %258 = vperm.xlu0 %257, %v239
    %v259 = vpop.permute.xlu0 %258
    %260 = vset.pattern.permute.xlu0 0
    %261 = vperm.xlu0 %260, %v240
    %v262 = vpop.permute.xlu0 %261
    %263 = vset.pattern.permute.xlu0 0
    %264 = vperm.xlu0 %263, %v241
    %v265 = vpop.permute.xlu0 %264
    %266 = vset.pattern.permute.xlu0 0
    %267 = vperm.xlu0 %266, %v242
    %v268 = vpop.permute.xlu0 %267
    %269 = vset.pattern.permute.xlu0 0
    %270 = vperm.xlu0 %269, %v243
    %v271 = vpop.permute.xlu0 %270
    %272 = vset.pattern.permute.xlu0 0
    %273 = vperm.xlu0 %272, %v244
    %v274 = vpop.permute.xlu0 %273
    %275 = vset.pattern.permute.xlu0 0
    %276 = vperm.xlu0 %275, %v245
    %v277 = vpop.permute.xlu0 %276
    %278 = vset.pattern.permute.xlu0 0
    %279 = vperm.xlu0 %278, %v246
    %v280 = vpop.permute.xlu0 %279
    %281 = vset.pattern.permute.xlu0 0
    %282 = vperm.xlu0 %281, %v247
    %v283 = vpop.permute.xlu0 %282
    %284 = vset.pattern.permute.xlu0 0
    %285 = vperm.xlu0 %284, %v248
    %v286 = vpop.permute.xlu0 %285
    %287 = vset.pattern.permute.xlu0 0
    %288 = vperm.xlu0 %287, %v249
    %v289 = vpop.permute.xlu0 %288
    %290 = vset.pattern.permute.xlu0 0
    %291 = vperm.xlu0 %290, %v250
    %v292 = vpop.permute.xlu0 %291
    %293 = vset.pattern.permute.xlu0 0
    %294 = vperm.xlu0 %293, %v251
    %v295 = vpop.permute.xlu0 %294
    %296 = vset.pattern.permute.xlu0 0
    %297 = vperm.xlu0 %296, %v252
    %v298 = vpop.permute.xlu0 %297
    %299 = vset.pattern.permute.xlu0 0
    %300 = vperm.xlu0 %299, %v253
    %v301 = vpop.permute.xlu0 %300
    %vm302 = vcmp.eq.s32.totalorder %v256, %v92
    %vm303 = vcmp.eq.s32.totalorder %v259, %v92
    %vm304 = vcmp.eq.s32.totalorder %v262, %v92
    %vm305 = vcmp.eq.s32.totalorder %v265, %v92
    %vm306 = vcmp.eq.s32.totalorder %v268, %v92
    %vm307 = vcmp.eq.s32.totalorder %v271, %v92
    %vm308 = vcmp.eq.s32.totalorder %v274, %v92
    %vm309 = vcmp.eq.s32.totalorder %v277, %v92
    %vm310 = vcmp.eq.s32.totalorder %v280, %v92
    %vm311 = vcmp.eq.s32.totalorder %v283, %v92
    %vm312 = vcmp.eq.s32.totalorder %v286, %v92
    %vm313 = vcmp.eq.s32.totalorder %v289, %v92
    %vm314 = vcmp.eq.s32.totalorder %v292, %v92
    %vm315 = vcmp.eq.s32.totalorder %v295, %v92
    %vm316 = vcmp.eq.s32.totalorder %v298, %v92
    %vm317 = vcmp.eq.s32.totalorder %v301, %v92
    %v318 = vsel %vm302, 1, 0
    %v319 = vsel %vm303, 1, 0
    %v320 = vsel %vm304, 1, 0
    %v321 = vsel %vm305, 1, 0
    %v322 = vsel %vm306, 1, 0
    %v323 = vsel %vm307, 1, 0
    %v324 = vsel %vm308, 1, 0
    %v325 = vsel %vm309, 1, 0
    %v326 = vsel %vm310, 1, 0
    %v327 = vsel %vm311, 1, 0
    %v328 = vsel %vm312, 1, 0
    %v329 = vsel %vm313, 1, 0
    %v330 = vsel %vm314, 1, 0
    %v331 = vsel %vm315, 1, 0
    %v332 = vsel %vm316, 1, 0
    %v333 = vsel %vm317, 1, 0
    %v334 = vcvt.s32.f32 %v318
    %v335 = vcvt.s32.f32 %v319
    %v336 = vcvt.s32.f32 %v320
    %v337 = vcvt.s32.f32 %v321
    %v338 = vcvt.s32.f32 %v322
    %v339 = vcvt.s32.f32 %v323
    %v340 = vcvt.s32.f32 %v324
    %v341 = vcvt.s32.f32 %v325
    %v342 = vcvt.s32.f32 %v326
    %v343 = vcvt.s32.f32 %v327
    %v344 = vcvt.s32.f32 %v328
    %v345 = vcvt.s32.f32 %v329
    %v346 = vcvt.s32.f32 %v330
    %v347 = vcvt.s32.f32 %v331
    %v348 = vcvt.s32.f32 %v332
    %v349 = vcvt.s32.f32 %v333
    %v350 = vadd.f32 %v205, %v334
    %v351 = vadd.f32 %v206, %v335
    %v352 = vadd.f32 %v207, %v336
    %v353 = vadd.f32 %v208, %v337
    %v354 = vadd.f32 %v209, %v338
    %v355 = vadd.f32 %v210, %v339
    %v356 = vadd.f32 %v211, %v340
    %v357 = vadd.f32 %v212, %v341
    %v358 = vadd.f32 %v213, %v342
    %v359 = vadd.f32 %v214, %v343
    %v360 = vadd.f32 %v215, %v344
    %v361 = vadd.f32 %v216, %v345
    %v362 = vadd.f32 %v217, %v346
    %v363 = vadd.f32 %v218, %v347
    %v364 = vadd.f32 %v219, %v348
    %v365 = vadd.f32 %v220, %v349
    %s366 = scalar_lea.vmem %s0, 256
    %v367 = vld [vmem:[%s366] sm:$0xff]
    %v368 = vld [vmem:[%s366 + $0x8] sm:$0xff]
    %v369 = vld [vmem:[%s366 + $0x10] sm:$0xff]
    %v370 = vld [vmem:[%s366 + $0x18] sm:$0xff]
    %v371 = vld [vmem:[%s366 + $0x20] sm:$0xff]
    %v372 = vld [vmem:[%s366 + $0x28] sm:$0xff]
    %v373 = vld [vmem:[%s366 + $0x30] sm:$0xff]
    %v374 = vld [vmem:[%s366 + $0x38] sm:$0xff]
    %v375 = vld [vmem:[%s366 + $0x40] sm:$0xff]
    %v376 = vld [vmem:[%s366 + $0x48] sm:$0xff]
    %v377 = vld [vmem:[%s366 + $0x50] sm:$0xff]
    %v378 = vld [vmem:[%s366 + $0x58] sm:$0xff]
    %v379 = vld [vmem:[%s366 + $0x60] sm:$0xff]
    %v380 = vld [vmem:[%s366 + $0x68] sm:$0xff]
    %v381 = vld [vmem:[%s366 + $0x70] sm:$0xff]
    %v382 = vld [vmem:[%s366 + $0x78] sm:$0xff]
    %v383 = vadd.s32 %v367, 16
    %v384 = vadd.s32 %v368, 16
    %v385 = vadd.s32 %v369, 16
    %v386 = vadd.s32 %v370, 16
    %v387 = vadd.s32 %v371, 16
    %v388 = vadd.s32 %v372, 16
    %v389 = vadd.s32 %v373, 16
    %v390 = vadd.s32 %v374, 16
    %v391 = vadd.s32 %v375, 16
    %v392 = vadd.s32 %v376, 16
    %v393 = vadd.s32 %v377, 16
    %v394 = vadd.s32 %v378, 16
    %v395 = vadd.s32 %v379, 16
    %v396 = vadd.s32 %v380, 16
    %v397 = vadd.s32 %v381, 16
    %v398 = vadd.s32 %v382, 16
    %399 = vset.pattern.permute.xlu0 0
    %400 = vperm.xlu0 %399, %v383
    %v401 = vpop.permute.xlu0 %400
    %402 = vset.pattern.permute.xlu0 0
    %403 = vperm.xlu0 %402, %v384
    %v404 = vpop.permute.xlu0 %403
    %405 = vset.pattern.permute.xlu0 0
    %406 = vperm.xlu0 %405, %v385
    %v407 = vpop.permute.xlu0 %406
    %408 = vset.pattern.permute.xlu0 0
    %409 = vperm.xlu0 %408, %v386
    %v410 = vpop.permute.xlu0 %409
    %411 = vset.pattern.permute.xlu0 0
    %412 = vperm.xlu0 %411, %v387
    %v413 = vpop.permute.xlu0 %412
    %414 = vset.pattern.permute.xlu0 0
    %415 = vperm.xlu0 %414, %v388
    %v416 = vpop.permute.xlu0 %415
    %417 = vset.pattern.permute.xlu0 0
    %418 = vperm.xlu0 %417, %v389
    %v419 = vpop.permute.xlu0 %418
    %420 = vset.pattern.permute.xlu0 0
    %421 = vperm.xlu0 %420, %v390
    %v422 = vpop.permute.xlu0 %421
    %423 = vset.pattern.permute.xlu0 0
    %424 = vperm.xlu0 %423, %v391
    %v425 = vpop.permute.xlu0 %424
    %426 = vset.pattern.permute.xlu0 0
    %427 = vperm.xlu0 %426, %v392
    %v428 = vpop.permute.xlu0 %427
    %429 = vset.pattern.permute.xlu0 0
    %430 = vperm.xlu0 %429, %v393
    %v431 = vpop.permute.xlu0 %430
    %432 = vset.pattern.permute.xlu0 0
    %433 = vperm.xlu0 %432, %v394
    %v434 = vpop.permute.xlu0 %433
    %435 = vset.pattern.permute.xlu0 0
    %436 = vperm.xlu0 %435, %v395
    %v437 = vpop.permute.xlu0 %436
    %438 = vset.pattern.permute.xlu0 0
    %439 = vperm.xlu0 %438, %v396
    %v440 = vpop.permute.xlu0 %439
    %441 = vset.pattern.permute.xlu0 0
    %442 = vperm.xlu0 %441, %v397
    %v443 = vpop.permute.xlu0 %442
    %444 = vset.pattern.permute.xlu0 0
    %445 = vperm.xlu0 %444, %v398
    %v446 = vpop.permute.xlu0 %445
    %vm447 = vcmp.eq.s32.totalorder %v401, %v92
    %vm448 = vcmp.eq.s32.totalorder %v404, %v92
    %vm449 = vcmp.eq.s32.totalorder %v407, %v92
    %vm450 = vcmp.eq.s32.totalorder %v410, %v92
    %vm451 = vcmp.eq.s32.totalorder %v413, %v92
    %vm452 = vcmp.eq.s32.totalorder %v416, %v92
    %vm453 = vcmp.eq.s32.totalorder %v419, %v92
    %vm454 = vcmp.eq.s32.totalorder %v422, %v92
    %vm455 = vcmp.eq.s32.totalorder %v425, %v92
    %vm456 = vcmp.eq.s32.totalorder %v428, %v92
    %vm457 = vcmp.eq.s32.totalorder %v431, %v92
    %vm458 = vcmp.eq.s32.totalorder %v434, %v92
    %vm459 = vcmp.eq.s32.totalorder %v437, %v92
    %vm460 = vcmp.eq.s32.totalorder %v440, %v92
    %vm461 = vcmp.eq.s32.totalorder %v443, %v92
    %vm462 = vcmp.eq.s32.totalorder %v446, %v92
    %v463 = vsel %vm447, 1, 0
    %v464 = vsel %vm448, 1, 0
    %v465 = vsel %vm449, 1, 0
    %v466 = vsel %vm450, 1, 0
    %v467 = vsel %vm451, 1, 0
    %v468 = vsel %vm452, 1, 0
    %v469 = vsel %vm453, 1, 0
    %v470 = vsel %vm454, 1, 0
    %v471 = vsel %vm455, 1, 0
    %v472 = vsel %vm456, 1, 0
    %v473 = vsel %vm457, 1, 0
    %v474 = vsel %vm458, 1, 0
    %v475 = vsel %vm459, 1, 0
    %v476 = vsel %vm460, 1, 0
    %v477 = vsel %vm461, 1, 0
    %v478 = vsel %vm462, 1, 0
    %v479 = vcvt.s32.f32 %v463
    %v480 = vcvt.s32.f32 %v464
    %v481 = vcvt.s32.f32 %v465
    %v482 = vcvt.s32.f32 %v466
    %v483 = vcvt.s32.f32 %v467
    %v484 = vcvt.s32.f32 %v468
    %v485 = vcvt.s32.f32 %v469
    %v486 = vcvt.s32.f32 %v470
    %v487 = vcvt.s32.f32 %v471
    %v488 = vcvt.s32.f32 %v472
    %v489 = vcvt.s32.f32 %v473
    %v490 = vcvt.s32.f32 %v474
    %v491 = vcvt.s32.f32 %v475
    %v492 = vcvt.s32.f32 %v476
    %v493 = vcvt.s32.f32 %v477
    %v494 = vcvt.s32.f32 %v478
    %v495 = vadd.f32 %v350, %v479
    %v496 = vadd.f32 %v351, %v480
    %v497 = vadd.f32 %v352, %v481
    %v498 = vadd.f32 %v353, %v482
    %v499 = vadd.f32 %v354, %v483
    %v500 = vadd.f32 %v355, %v484
    %v501 = vadd.f32 %v356, %v485
    %v502 = vadd.f32 %v357, %v486
    %v503 = vadd.f32 %v358, %v487
    %v504 = vadd.f32 %v359, %v488
    %v505 = vadd.f32 %v360, %v489
    %v506 = vadd.f32 %v361, %v490
    %v507 = vadd.f32 %v362, %v491
    %v508 = vadd.f32 %v363, %v492
    %v509 = vadd.f32 %v364, %v493
    %v510 = vadd.f32 %v365, %v494
    %v511 = vpack.c.bf16 %v496, %v495
    %v512 = vpack.c.bf16 %v498, %v497
    %v513 = vpack.c.bf16 %v500, %v499
    %v514 = vpack.c.bf16 %v502, %v501
    %v515 = vpack.c.bf16 %v504, %v503
    %v516 = vpack.c.bf16 %v506, %v505
    %v517 = vpack.c.bf16 %v508, %v507
    %v518 = vpack.c.bf16 %v510, %v509
    %v519 = vld [vmem:[%s2] sm:$0xf]
    %v520 = vld [vmem:[%s2 + $0x4] sm:$0xf]
    %v521 = vld [vmem:[%s2 + $0x8] sm:$0xf]
    %v522 = vld [vmem:[%s2 + $0xc] sm:$0xf]
    %v523 = vld [vmem:[%s2 + $0x10] sm:$0xf]
    %v524 = vld [vmem:[%s2 + $0x14] sm:$0xf]
    %v525 = vld [vmem:[%s2 + $0x18] sm:$0xf]
    %v526 = vld [vmem:[%s2 + $0x1c] sm:$0xf]
    %v527 = vld [vmem:[%s2 + $0x20] sm:$0xf]
    %v528 = vld [vmem:[%s2 + $0x24] sm:$0xf]
    %v529 = vld [vmem:[%s2 + $0x28] sm:$0xf]
    %v530 = vld [vmem:[%s2 + $0x2c] sm:$0xf]
    %v531 = vld [vmem:[%s2 + $0x30] sm:$0xf]
    %v532 = vld [vmem:[%s2 + $0x34] sm:$0xf]
    %v533 = vld [vmem:[%s2 + $0x38] sm:$0xf]
    %v534 = vld [vmem:[%s2 + $0x3c] sm:$0xf]
    %v551 = vunpack.c.l.b16 %v519
    %v552 = vunpack.c.l.b16 %v520
    %v553 = vunpack.c.l.b16 %v521
    %v554 = vunpack.c.l.b16 %v522
    %v555 = vunpack.c.l.b16 %v523
    %v556 = vunpack.c.l.b16 %v524
    %v557 = vunpack.c.l.b16 %v525
    %v558 = vunpack.c.l.b16 %v526
    %v559 = vunpack.c.l.b16 %v527
    %v560 = vunpack.c.l.b16 %v528
    %v561 = vunpack.c.l.b16 %v529
    %v562 = vunpack.c.l.b16 %v530
    %v563 = vunpack.c.l.b16 %v531
    %v564 = vunpack.c.l.b16 %v532
    %v565 = vunpack.c.l.b16 %v533
    %v566 = vunpack.c.l.b16 %v534
    %v567 = vpack.c.b16 %v552, %v551
    %v568 = vpack.c.b16 %v554, %v553
    %v569 = vpack.c.b16 %v556, %v555
    %v570 = vpack.c.b16 %v558, %v557
    %v571 = vpack.c.b16 %v560, %v559
    %v572 = vpack.c.b16 %v562, %v561
    %v573 = vpack.c.b16 %v564, %v563
    %v574 = vpack.c.b16 %v566, %v565
    %583 = vmatpush.bf16.msra.mxu0 %v574
    %584 = vmatpush.bf16.msra.mxu0 %v573
    %585 = vmatpush.bf16.msra.mxu0 %v572
    %586 = vmatpush.bf16.msra.mxu0 %v571
    %587 = vmatpush.bf16.msra.mxu0 %v570
    %588 = vmatpush.bf16.msra.mxu0 %v569
    %589 = vmatpush.bf16.msra.mxu0 %v568
    %590 = vmatpush.bf16.msra.mxu0 %v567
    %591 = vmatmul.bf16.gmra.mxu0 %v511
    %v592 = vpop.f32.mrf.mxu0
    %v593 = vadd.f32 0.0, %v592
    %v594 = vpop.f32.mrf.mxu0
    %v595 = vadd.f32 0.0, %v594
    %596 = vmatmul.bf16.gmra.mxu0 %v512
    %v597 = vpop.f32.mrf.mxu0
    %v598 = vadd.f32 0.0, %v597
    %v599 = vpop.f32.mrf.mxu0
    %v600 = vadd.f32 0.0, %v599
    %601 = vmatmul.bf16.gmra.mxu0 %v513
    %v602 = vpop.f32.mrf.mxu0
    %v603 = vadd.f32 0.0, %v602
    %v604 = vpop.f32.mrf.mxu0
    %v605 = vadd.f32 0.0, %v604
    %606 = vmatmul.bf16.gmra.mxu0 %v514
    %v607 = vpop.f32.mrf.mxu0
    %v608 = vadd.f32 0.0, %v607
    %v609 = vpop.f32.mrf.mxu0
    %v610 = vadd.f32 0.0, %v609
    %611 = vmatmul.bf16.gmra.mxu0 %v515
    %v612 = vpop.f32.mrf.mxu0
    %v613 = vadd.f32 0.0, %v612
    %v614 = vpop.f32.mrf.mxu0
    %v615 = vadd.f32 0.0, %v614
    %616 = vmatmul.bf16.gmra.mxu0 %v516
    %v617 = vpop.f32.mrf.mxu0
    %v618 = vadd.f32 0.0, %v617
    %v619 = vpop.f32.mrf.mxu0
    %v620 = vadd.f32 0.0, %v619
    %621 = vmatmul.bf16.gmra.mxu0 %v517
    %v622 = vpop.f32.mrf.mxu0
    %v623 = vadd.f32 0.0, %v622
    %v624 = vpop.f32.mrf.mxu0
    %v625 = vadd.f32 0.0, %v624
    %626 = vmatmul.bf16.gmra.mxu0 %v518
    %v627 = vpop.f32.mrf.mxu0
    %v628 = vadd.f32 0.0, %v627
    %v629 = vpop.f32.mrf.mxu0
    %v630 = vadd.f32 0.0, %v629
    %631 = vdwg.mxu0
    %v632 = vld [vmem:[%s4] sm:$0x1]
    %v633 = vld [vmem:[%s5] sm:$0x1]
    %s634 = scalar_lea.vmem [#allocation3], 512
    %v635 = vld [vmem:[%s634] sm:$0xff]
    %v636 = vld [vmem:[%s634 + $0x8] sm:$0xff]
    %v637 = vld [vmem:[%s634 + $0x10] sm:$0xff]
    %v638 = vld [vmem:[%s634 + $0x18] sm:$0xff]
    %v639 = vld [vmem:[%s634 + $0x20] sm:$0xff]
    %v640 = vld [vmem:[%s634 + $0x28] sm:$0xff]
    %v641 = vld [vmem:[%s634 + $0x30] sm:$0xff]
    %v642 = vld [vmem:[%s634 + $0x38] sm:$0xff]
    %v643 = vld [vmem:[%s634 + $0x40] sm:$0xff]
    %v644 = vld [vmem:[%s634 + $0x48] sm:$0xff]
    %v645 = vld [vmem:[%s634 + $0x50] sm:$0xff]
    %v646 = vld [vmem:[%s634 + $0x58] sm:$0xff]
    %v647 = vld [vmem:[%s634 + $0x60] sm:$0xff]
    %v648 = vld [vmem:[%s634 + $0x68] sm:$0xff]
    %v649 = vld [vmem:[%s634 + $0x70] sm:$0xff]
    %v650 = vld [vmem:[%s634 + $0x78] sm:$0xff]
    %v651 = vld [vmem:[#allocation3] sm:$0xff]
    %v652 = vld [vmem:[#allocation3 + $0x8] sm:$0xff]
    %v653 = vld [vmem:[#allocation3 + $0x10] sm:$0xff]
    %v654 = vld [vmem:[#allocation3 + $0x18] sm:$0xff]
    %v655 = vld [vmem:[#allocation3 + $0x20] sm:$0xff]
    %v656 = vld [vmem:[#allocation3 + $0x28] sm:$0xff]
    %v657 = vld [vmem:[#allocation3 + $0x30] sm:$0xff]
    %v658 = vld [vmem:[#allocation3 + $0x38] sm:$0xff]
    %v659 = vld [vmem:[#allocation3 + $0x40] sm:$0xff]
    %v660 = vld [vmem:[#allocation3 + $0x48] sm:$0xff]
    %v661 = vld [vmem:[#allocation3 + $0x50] sm:$0xff]
    %v662 = vld [vmem:[#allocation3 + $0x58] sm:$0xff]
    %v663 = vld [vmem:[#allocation3 + $0x60] sm:$0xff]
    %v664 = vld [vmem:[#allocation3 + $0x68] sm:$0xff]
    %v665 = vld [vmem:[#allocation3 + $0x70] sm:$0xff]
    %v666 = vld [vmem:[#allocation3 + $0x78] sm:$0xff]
    %668 = vset.pattern.permute.xlu0 0
    %669 = vperm.xlu0 %668, %v651
    %v670 = vpop.permute.xlu0 %669
    %673 = vset.pattern.permute.xlu0 0
    %674 = vperm.xlu0 %673, %v652
    %v675 = vpop.permute.xlu0 %674
    %678 = vset.pattern.permute.xlu0 0
    %679 = vperm.xlu0 %678, %v653
    %v680 = vpop.permute.xlu0 %679
    %683 = vset.pattern.permute.xlu0 0
    %684 = vperm.xlu0 %683, %v654
    %v685 = vpop.permute.xlu0 %684
    %688 = vset.pattern.permute.xlu0 0
    %689 = vperm.xlu0 %688, %v655
    %v690 = vpop.permute.xlu0 %689
    %693 = vset.pattern.permute.xlu0 0
    %694 = vperm.xlu0 %693, %v656
    %v695 = vpop.permute.xlu0 %694
    %698 = vset.pattern.permute.xlu0 0
    %699 = vperm.xlu0 %698, %v657
    %v700 = vpop.permute.xlu0 %699
    %703 = vset.pattern.permute.xlu0 0
    %704 = vperm.xlu0 %703, %v658
    %v705 = vpop.permute.xlu0 %704
    %708 = vset.pattern.permute.xlu0 0
    %709 = vperm.xlu0 %708, %v659
    %v710 = vpop.permute.xlu0 %709
    %713 = vset.pattern.permute.xlu0 0
    %714 = vperm.xlu0 %713, %v660
    %v715 = vpop.permute.xlu0 %714
    %718 = vset.pattern.permute.xlu0 0
    %719 = vperm.xlu0 %718, %v661
    %v720 = vpop.permute.xlu0 %719
    %723 = vset.pattern.permute.xlu0 0
    %724 = vperm.xlu0 %723, %v662
    %v725 = vpop.permute.xlu0 %724
    %728 = vset.pattern.permute.xlu0 0
    %729 = vperm.xlu0 %728, %v663
    %v730 = vpop.permute.xlu0 %729
    %733 = vset.pattern.permute.xlu0 0
    %734 = vperm.xlu0 %733, %v664
    %v735 = vpop.permute.xlu0 %734
    %738 = vset.pattern.permute.xlu0 0
    %739 = vperm.xlu0 %738, %v665
    %v740 = vpop.permute.xlu0 %739
    %743 = vset.pattern.permute.xlu0 0
    %744 = vperm.xlu0 %743, %v666
    %v745 = vpop.permute.xlu0 %744
    %v747 = vmul.f32 %v630, %v670
    %v748 = vmul.f32 %v593, %v675
    %v749 = vmul.f32 %v595, %v680
    %v750 = vmul.f32 %v598, %v685
    %v751 = vmul.f32 %v600, %v690
    %v752 = vmul.f32 %v603, %v695
    %v753 = vmul.f32 %v605, %v700
    %v754 = vmul.f32 %v608, %v705
    %v755 = vmul.f32 %v610, %v710
    %v756 = vmul.f32 %v613, %v715
    %v757 = vmul.f32 %v615, %v720
    %v758 = vmul.f32 %v618, %v725
    %v759 = vmul.f32 %v620, %v730
    %v760 = vmul.f32 %v623, %v735
    %v761 = vmul.f32 %v625, %v740
    %v762 = vmul.f32 %v628, %v745
    %v763 = vpack.c.bf16 %v747, %v747
    %v764 = vpack.c.bf16 %v748, %v748
    %v765 = vpack.c.bf16 %v749, %v749
    %v766 = vpack.c.bf16 %v750, %v750
    %v767 = vpack.c.bf16 %v751, %v751
    %v768 = vpack.c.bf16 %v752, %v752
    %v769 = vpack.c.bf16 %v753, %v753
    %v770 = vpack.c.bf16 %v754, %v754
    %v771 = vpack.c.bf16 %v755, %v755
    %v772 = vpack.c.bf16 %v756, %v756
    %v773 = vpack.c.bf16 %v757, %v757
    %v774 = vpack.c.bf16 %v758, %v758
    %v775 = vpack.c.bf16 %v759, %v759
    %v776 = vpack.c.bf16 %v760, %v760
    %v777 = vpack.c.bf16 %v761, %v761
    %v778 = vpack.c.bf16 %v762, %v762
    %779 = vst [vmem:[#allocation2] sm:$0xf] %v763
    %780 = vst [vmem:[#allocation2 + $0x24] sm:$0xf] %v764
    %781 = vst [vmem:[#allocation2 + $0x48] sm:$0xf] %v765
    %782 = vst [vmem:[#allocation2 + $0x6c] sm:$0xf] %v766
    %783 = vst [vmem:[#allocation2 + $0x90] sm:$0xf] %v767
    %784 = vst [vmem:[#allocation2 + $0xb4] sm:$0xf] %v768
    %785 = vst [vmem:[#allocation2 + $0xd8] sm:$0xf] %v769
    %786 = vst [vmem:[#allocation2 + $0xfc] sm:$0xf] %v770
    %787 = vst [vmem:[#allocation2 + $0x120] sm:$0xf] %v771
    %788 = vst [vmem:[#allocation2 + $0x144] sm:$0xf] %v772
    %789 = vst [vmem:[#allocation2 + $0x168] sm:$0xf] %v773
    %790 = vst [vmem:[#allocation2 + $0x18c] sm:$0xf] %v774
    %791 = vst [vmem:[#allocation2 + $0x1b0] sm:$0xf] %v775
    %792 = vst [vmem:[#allocation2 + $0x1d4] sm:$0xf] %v776
    %793 = vst [vmem:[#allocation2 + $0x1f8] sm:$0xf] %v777
    %794 = vst [vmem:[#allocation2 + $0x21c] sm:$0xf] %v778
    %v795 = vrot.slane %v593, 1
    %v796 = vrot.slane %v595, 1
    %v797 = vrot.slane %v598, 1
    %v798 = vrot.slane %v600, 1
    %v799 = vrot.slane %v603, 1
    %v800 = vrot.slane %v605, 1
    %v801 = vrot.slane %v608, 1
    %v802 = vrot.slane %v610, 1
    %v803 = vrot.slane %v613, 1
    %v804 = vrot.slane %v615, 1
    %v805 = vrot.slane %v618, 1
    %v806 = vrot.slane %v620, 1
    %v807 = vrot.slane %v623, 1
    %v808 = vrot.slane %v625, 1
    %v809 = vrot.slane %v628, 1
    %v810 = vrot.slane %v630, 1
    %v811 = vlaneseq
    %v812 = vshrl.u32 %v811, 7
    %vm813 = vcmp.lt.s32.totalorder %v812, 7
    %v814 = vsel %vm813, %v809, %v810
    %v815 = vsel %vm813, %v808, %v809
    %v816 = vsel %vm813, %v807, %v808
    %v817 = vsel %vm813, %v806, %v807
    %v818 = vsel %vm813, %v805, %v806
    %v819 = vsel %vm813, %v804, %v805
    %v820 = vsel %vm813, %v803, %v804
    %v821 = vsel %vm813, %v802, %v803
    %v822 = vsel %vm813, %v801, %v802
    %v823 = vsel %vm813, %v800, %v801
    %v824 = vsel %vm813, %v799, %v800
    %v825 = vsel %vm813, %v798, %v799
    %v826 = vsel %vm813, %v797, %v798
    %v827 = vsel %vm813, %v796, %v797
    %v828 = vsel %vm813, %v795, %v796
    %v829 = vsel %vm813, %v810, %v795
    %s830 = scalar_lea.vmem [#allocation3], 128
    %v831 = vld [vmem:[%s830] sm:$0xff]
    %v832 = vld [vmem:[%s830 + $0x8] sm:$0xff]
    %v833 = vld [vmem:[%s830 + $0x10] sm:$0xff]
    %v834 = vld [vmem:[%s830 + $0x18] sm:$0xff]
    %v835 = vld [vmem:[%s830 + $0x20] sm:$0xff]
    %v836 = vld [vmem:[%s830 + $0x28] sm:$0xff]
    %v837 = vld [vmem:[%s830 + $0x30] sm:$0xff]
    %v838 = vld [vmem:[%s830 + $0x38] sm:$0xff]
    %v839 = vld [vmem:[%s830 + $0x40] sm:$0xff]
    %v840 = vld [vmem:[%s830 + $0x48] sm:$0xff]
    %v841 = vld [vmem:[%s830 + $0x50] sm:$0xff]
    %v842 = vld [vmem:[%s830 + $0x58] sm:$0xff]
    %v843 = vld [vmem:[%s830 + $0x60] sm:$0xff]
    %v844 = vld [vmem:[%s830 + $0x68] sm:$0xff]
    %v845 = vld [vmem:[%s830 + $0x70] sm:$0xff]
    %v846 = vld [vmem:[%s830 + $0x78] sm:$0xff]
    %848 = vset.pattern.permute.xlu0 0
    %849 = vperm.xlu0 %848, %v831
    %v850 = vpop.permute.xlu0 %849
    %853 = vset.pattern.permute.xlu0 0
    %854 = vperm.xlu0 %853, %v832
    %v855 = vpop.permute.xlu0 %854
    %858 = vset.pattern.permute.xlu0 0
    %859 = vperm.xlu0 %858, %v833
    %v860 = vpop.permute.xlu0 %859
    %863 = vset.pattern.permute.xlu0 0
    %864 = vperm.xlu0 %863, %v834
    %v865 = vpop.permute.xlu0 %864
    %868 = vset.pattern.permute.xlu0 0
    %869 = vperm.xlu0 %868, %v835
    %v870 = vpop.permute.xlu0 %869
    %873 = vset.pattern.permute.xlu0 0
    %874 = vperm.xlu0 %873, %v836
    %v875 = vpop.permute.xlu0 %874
    %878 = vset.pattern.permute.xlu0 0
    %879 = vperm.xlu0 %878, %v837
    %v880 = vpop.permute.xlu0 %879
    %883 = vset.pattern.permute.xlu0 0
    %884 = vperm.xlu0 %883, %v838
    %v885 = vpop.permute.xlu0 %884
    %888 = vset.pattern.permute.xlu0 0
    %889 = vperm.xlu0 %888, %v839
    %v890 = vpop.permute.xlu0 %889
    %893 = vset.pattern.permute.xlu0 0
    %894 = vperm.xlu0 %893, %v840
    %v895 = vpop.permute.xlu0 %894
    %898 = vset.pattern.permute.xlu0 0
    %899 = vperm.xlu0 %898, %v841
    %v900 = vpop.permute.xlu0 %899
    %903 = vset.pattern.permute.xlu0 0
    %904 = vperm.xlu0 %903, %v842
    %v905 = vpop.permute.xlu0 %904
    %908 = vset.pattern.permute.xlu0 0
    %909 = vperm.xlu0 %908, %v843
    %v910 = vpop.permute.xlu0 %909
    %913 = vset.pattern.permute.xlu0 0
    %914 = vperm.xlu0 %913, %v844
    %v915 = vpop.permute.xlu0 %914
    %918 = vset.pattern.permute.xlu0 0
    %919 = vperm.xlu0 %918, %v845
    %v920 = vpop.permute.xlu0 %919
    %923 = vset.pattern.permute.xlu0 0
    %924 = vperm.xlu0 %923, %v846
    %v925 = vpop.permute.xlu0 %924
    %v927 = vmul.f32 %v829, %v850
    %v928 = vmul.f32 %v828, %v855
    %v929 = vmul.f32 %v827, %v860
    %v930 = vmul.f32 %v826, %v865
    %v931 = vmul.f32 %v825, %v870
    %v932 = vmul.f32 %v824, %v875
    %v933 = vmul.f32 %v823, %v880
    %v934 = vmul.f32 %v822, %v885
    %v935 = vmul.f32 %v821, %v890
    %v936 = vmul.f32 %v820, %v895
    %v937 = vmul.f32 %v819, %v900
    %v938 = vmul.f32 %v818, %v905
    %v939 = vmul.f32 %v817, %v910
    %v940 = vmul.f32 %v816, %v915
    %v941 = vmul.f32 %v815, %v920
    %v942 = vmul.f32 %v814, %v925
    %v943 = vpack.c.bf16 %v927, %v927
    %v944 = vpack.c.bf16 %v928, %v928
    %v945 = vpack.c.bf16 %v929, %v929
    %v946 = vpack.c.bf16 %v930, %v930
    %v947 = vpack.c.bf16 %v931, %v931
    %v948 = vpack.c.bf16 %v932, %v932
    %v949 = vpack.c.bf16 %v933, %v933
    %v950 = vpack.c.bf16 %v934, %v934
    %v951 = vpack.c.bf16 %v935, %v935
    %v952 = vpack.c.bf16 %v936, %v936
    %v953 = vpack.c.bf16 %v937, %v937
    %v954 = vpack.c.bf16 %v938, %v938
    %v955 = vpack.c.bf16 %v939, %v939
    %v956 = vpack.c.bf16 %v940, %v940
    %v957 = vpack.c.bf16 %v941, %v941
    %v958 = vpack.c.bf16 %v942, %v942
    %959 = vst [vmem:[#allocation2 + $0x4] sm:$0xf] %v943
    %960 = vst [vmem:[#allocation2 + $0x28] sm:$0xf] %v944
    %961 = vst [vmem:[#allocation2 + $0x4c] sm:$0xf] %v945
    %962 = vst [vmem:[#allocation2 + $0x70] sm:$0xf] %v946
    %963 = vst [vmem:[#allocation2 + $0x94] sm:$0xf] %v947
    %964 = vst [vmem:[#allocation2 + $0xb8] sm:$0xf] %v948
    %965 = vst [vmem:[#allocation2 + $0xdc] sm:$0xf] %v949
    %966 = vst [vmem:[#allocation2 + $0x100] sm:$0xf] %v950
    %967 = vst [vmem:[#allocation2 + $0x124] sm:$0xf] %v951
    %968 = vst [vmem:[#allocation2 + $0x148] sm:$0xf] %v952
    %969 = vst [vmem:[#allocation2 + $0x16c] sm:$0xf] %v953
    %970 = vst [vmem:[#allocation2 + $0x190] sm:$0xf] %v954
    %971 = vst [vmem:[#allocation2 + $0x1b4] sm:$0xf] %v955
    %972 = vst [vmem:[#allocation2 + $0x1d8] sm:$0xf] %v956
    %973 = vst [vmem:[#allocation2 + $0x1fc] sm:$0xf] %v957
    %974 = vst [vmem:[#allocation2 + $0x220] sm:$0xf] %v958
    %v975 = vrot.slane %v593, 2
    %v976 = vrot.slane %v595, 2
    %v977 = vrot.slane %v598, 2
    %v978 = vrot.slane %v600, 2
    %v979 = vrot.slane %v603, 2
    %v980 = vrot.slane %v605, 2
    %v981 = vrot.slane %v608, 2
    %v982 = vrot.slane %v610, 2
    %v983 = vrot.slane %v613, 2
    %v984 = vrot.slane %v615, 2
    %v985 = vrot.slane %v618, 2
    %v986 = vrot.slane %v620, 2
    %v987 = vrot.slane %v623, 2
    %v988 = vrot.slane %v625, 2
    %v989 = vrot.slane %v628, 2
    %v990 = vrot.slane %v630, 2
    %vm991 = vcmp.lt.s32.totalorder %v812, 6
    %v992 = vsel %vm991, %v989, %v990
    %v993 = vsel %vm991, %v988, %v989
    %v994 = vsel %vm991, %v987, %v988
    %v995 = vsel %vm991, %v986, %v987
    %v996 = vsel %vm991, %v985, %v986
    %v997 = vsel %vm991, %v984, %v985
    %v998 = vsel %vm991, %v983, %v984
    %v999 = vsel %vm991, %v982, %v983
    %v1000 = vsel %vm991, %v981, %v982
    %v1001 = vsel %vm991, %v980, %v981
    %v1002 = vsel %vm991, %v979, %v980
    %v1003 = vsel %vm991, %v978, %v979
    %v1004 = vsel %vm991, %v977, %v978
    %v1005 = vsel %vm991, %v976, %v977
    %v1006 = vsel %vm991, %v975, %v976
    %v1007 = vsel %vm991, %v990, %v975
    %s1008 = scalar_lea.vmem [#allocation3], 256
    %v1009 = vld [vmem:[%s1008] sm:$0xff]
    %v1010 = vld [vmem:[%s1008 + $0x8] sm:$0xff]
    %v1011 = vld [vmem:[%s1008 + $0x10] sm:$0xff]
    %v1012 = vld [vmem:[%s1008 + $0x18] sm:$0xff]
    %v1013 = vld [vmem:[%s1008 + $0x20] sm:$0xff]
    %v1014 = vld [vmem:[%s1008 + $0x28] sm:$0xff]
    %v1015 = vld [vmem:[%s1008 + $0x30] sm:$0xff]
    %v1016 = vld [vmem:[%s1008 + $0x38] sm:$0xff]
    %v1017 = vld [vmem:[%s1008 + $0x40] sm:$0xff]
    %v1018 = vld [vmem:[%s1008 + $0x48] sm:$0xff]
    %v1019 = vld [vmem:[%s1008 + $0x50] sm:$0xff]
    %v1020 = vld [vmem:[%s1008 + $0x58] sm:$0xff]
    %v1021 = vld [vmem:[%s1008 + $0x60] sm:$0xff]
    %v1022 = vld [vmem:[%s1008 + $0x68] sm:$0xff]
    %v1023 = vld [vmem:[%s1008 + $0x70] sm:$0xff]
    %v1024 = vld [vmem:[%s1008 + $0x78] sm:$0xff]
    %1026 = vset.pattern.permute.xlu0 0
    %1027 = vperm.xlu0 %1026, %v1009
    %v1028 = vpop.permute.xlu0 %1027
    %1031 = vset.pattern.permute.xlu0 0
    %1032 = vperm.xlu0 %1031, %v1010
    %v1033 = vpop.permute.xlu0 %1032
    %1036 = vset.pattern.permute.xlu0 0
    %1037 = vperm.xlu0 %1036, %v1011
    %v1038 = vpop.permute.xlu0 %1037
    %1041 = vset.pattern.permute.xlu0 0
    %1042 = vperm.xlu0 %1041, %v1012
    %v1043 = vpop.permute.xlu0 %1042
    %1046 = vset.pattern.permute.xlu0 0
    %1047 = vperm.xlu0 %1046, %v1013
    %v1048 = vpop.permute.xlu0 %1047
    %1051 = vset.pattern.permute.xlu0 0
    %1052 = vperm.xlu0 %1051, %v1014
    %v1053 = vpop.permute.xlu0 %1052
    %1056 = vset.pattern.permute.xlu0 0
    %1057 = vperm.xlu0 %1056, %v1015
    %v1058 = vpop.permute.xlu0 %1057
    %1061 = vset.pattern.permute.xlu0 0
    %1062 = vperm.xlu0 %1061, %v1016
    %v1063 = vpop.permute.xlu0 %1062
    %1066 = vset.pattern.permute.xlu0 0
    %1067 = vperm.xlu0 %1066, %v1017
    %v1068 = vpop.permute.xlu0 %1067
    %1071 = vset.pattern.permute.xlu0 0
    %1072 = vperm.xlu0 %1071, %v1018
    %v1073 = vpop.permute.xlu0 %1072
    %1076 = vset.pattern.permute.xlu0 0
    %1077 = vperm.xlu0 %1076, %v1019
    %v1078 = vpop.permute.xlu0 %1077
    %1081 = vset.pattern.permute.xlu0 0
    %1082 = vperm.xlu0 %1081, %v1020
    %v1083 = vpop.permute.xlu0 %1082
    %1086 = vset.pattern.permute.xlu0 0
    %1087 = vperm.xlu0 %1086, %v1021
    %v1088 = vpop.permute.xlu0 %1087
    %1091 = vset.pattern.permute.xlu0 0
    %1092 = vperm.xlu0 %1091, %v1022
    %v1093 = vpop.permute.xlu0 %1092
    %1096 = vset.pattern.permute.xlu0 0
    %1097 = vperm.xlu0 %1096, %v1023
    %v1098 = vpop.permute.xlu0 %1097
    %1101 = vset.pattern.permute.xlu0 0
    %1102 = vperm.xlu0 %1101, %v1024
    %v1103 = vpop.permute.xlu0 %1102
    %v1105 = vmul.f32 %v1007, %v1028
    %v1106 = vmul.f32 %v1006, %v1033
    %v1107 = vmul.f32 %v1005, %v1038
    %v1108 = vmul.f32 %v1004, %v1043
    %v1109 = vmul.f32 %v1003, %v1048
    %v1110 = vmul.f32 %v1002, %v1053
    %v1111 = vmul.f32 %v1001, %v1058
    %v1112 = vmul.f32 %v1000, %v1063
    %v1113 = vmul.f32 %v999, %v1068
    %v1114 = vmul.f32 %v998, %v1073
    %v1115 = vmul.f32 %v997, %v1078
    %v1116 = vmul.f32 %v996, %v1083
    %v1117 = vmul.f32 %v995, %v1088
    %v1118 = vmul.f32 %v994, %v1093
    %v1119 = vmul.f32 %v993, %v1098
    %v1120 = vmul.f32 %v992, %v1103
    %v1121 = vpack.c.bf16 %v1105, %v1105
    %v1122 = vpack.c.bf16 %v1106, %v1106
    %v1123 = vpack.c.bf16 %v1107, %v1107
    %v1124 = vpack.c.bf16 %v1108, %v1108
    %v1125 = vpack.c.bf16 %v1109, %v1109
    %v1126 = vpack.c.bf16 %v1110, %v1110
    %v1127 = vpack.c.bf16 %v1111, %v1111
    %v1128 = vpack.c.bf16 %v1112, %v1112
    %v1129 = vpack.c.bf16 %v1113, %v1113
    %v1130 = vpack.c.bf16 %v1114, %v1114
    %v1131 = vpack.c.bf16 %v1115, %v1115
    %v1132 = vpack.c.bf16 %v1116, %v1116
    %v1133 = vpack.c.bf16 %v1117, %v1117
    %v1134 = vpack.c.bf16 %v1118, %v1118
    %v1135 = vpack.c.bf16 %v1119, %v1119
    %v1136 = vpack.c.bf16 %v1120, %v1120
    %1137 = vst [vmem:[#allocation2 + $0x8] sm:$0xf] %v1121
    %1138 = vst [vmem:[#allocation2 + $0x2c] sm:$0xf] %v1122
    %1139 = vst [vmem:[#allocation2 + $0x50] sm:$0xf] %v1123
    %1140 = vst [vmem:[#allocation2 + $0x74] sm:$0xf] %v1124
    %1141 = vst [vmem:[#allocation2 + $0x98] sm:$0xf] %v1125
    %1142 = vst [vmem:[#allocation2 + $0xbc] sm:$0xf] %v1126
    %1143 = vst [vmem:[#allocation2 + $0xe0] sm:$0xf] %v1127
    %1144 = vst [vmem:[#allocation2 + $0x104] sm:$0xf] %v1128
    %1145 = vst [vmem:[#allocation2 + $0x128] sm:$0xf] %v1129
    %1146 = vst [vmem:[#allocation2 + $0x14c] sm:$0xf] %v1130
    %1147 = vst [vmem:[#allocation2 + $0x170] sm:$0xf] %v1131
    %1148 = vst [vmem:[#allocation2 + $0x194] sm:$0xf] %v1132
    %1149 = vst [vmem:[#allocation2 + $0x1b8] sm:$0xf] %v1133
    %1150 = vst [vmem:[#allocation2 + $0x1dc] sm:$0xf] %v1134
    %1151 = vst [vmem:[#allocation2 + $0x200] sm:$0xf] %v1135
    %1152 = vst [vmem:[#allocation2 + $0x224] sm:$0xf] %v1136
    %v1153 = vrot.slane %v593, 7
    %v1154 = vrot.slane %v595, 7
    %v1155 = vrot.slane %v598, 7
    %v1156 = vrot.slane %v600, 7
    %v1157 = vrot.slane %v603, 7
    %v1158 = vrot.slane %v605, 7
    %v1159 = vrot.slane %v608, 7
    %v1160 = vrot.slane %v610, 7
    %v1161 = vrot.slane %v613, 7
    %v1162 = vrot.slane %v615, 7
    %v1163 = vrot.slane %v618, 7
    %v1164 = vrot.slane %v620, 7
    %v1165 = vrot.slane %v623, 7
    %v1166 = vrot.slane %v625, 7
    %v1167 = vrot.slane %v628, 7
    %v1168 = vrot.slane %v630, 7
    %vm1169 = vcmp.lt.s32.totalorder %v812, 1
    %v1170 = vsel %vm1169, %v1167, %v1168
    %v1171 = vsel %vm1169, %v1166, %v1167
    %v1172 = vsel %vm1169, %v1165, %v1166
    %v1173 = vsel %vm1169, %v1164, %v1165
    %v1174 = vsel %vm1169, %v1163, %v1164
    %v1175 = vsel %vm1169, %v1162, %v1163
    %v1176 = vsel %vm1169, %v1161, %v1162
    %v1177 = vsel %vm1169, %v1160, %v1161
    %v1178 = vsel %vm1169, %v1159, %v1160
    %v1179 = vsel %vm1169, %v1158, %v1159
    %v1180 = vsel %vm1169, %v1157, %v1158
    %v1181 = vsel %vm1169, %v1156, %v1157
    %v1182 = vsel %vm1169, %v1155, %v1156
    %v1183 = vsel %vm1169, %v1154, %v1155
    %v1184 = vsel %vm1169, %v1153, %v1154
    %v1185 = vsel %vm1169, %v1168, %v1153
    %s1186 = scalar_lea.vmem [#allocation3], 384
    %v1187 = vld [vmem:[%s1186] sm:$0xff]
    %v1188 = vld [vmem:[%s1186 + $0x8] sm:$0xff]
    %v1189 = vld [vmem:[%s1186 + $0x10] sm:$0xff]
    %v1190 = vld [vmem:[%s1186 + $0x18] sm:$0xff]
    %v1191 = vld [vmem:[%s1186 + $0x20] sm:$0xff]
    %v1192 = vld [vmem:[%s1186 + $0x28] sm:$0xff]
    %v1193 = vld [vmem:[%s1186 + $0x30] sm:$0xff]
    %v1194 = vld [vmem:[%s1186 + $0x38] sm:$0xff]
    %v1195 = vld [vmem:[%s1186 + $0x40] sm:$0xff]
    %v1196 = vld [vmem:[%s1186 + $0x48] sm:$0xff]
    %v1197 = vld [vmem:[%s1186 + $0x50] sm:$0xff]
    %v1198 = vld [vmem:[%s1186 + $0x58] sm:$0xff]
    %v1199 = vld [vmem:[%s1186 + $0x60] sm:$0xff]
    %v1200 = vld [vmem:[%s1186 + $0x68] sm:$0xff]
    %v1201 = vld [vmem:[%s1186 + $0x70] sm:$0xff]
    %v1202 = vld [vmem:[%s1186 + $0x78] sm:$0xff]
    %1204 = vset.pattern.permute.xlu0 0
    %1205 = vperm.xlu0 %1204, %v1187
    %v1206 = vpop.permute.xlu0 %1205
    %1209 = vset.pattern.permute.xlu0 0
    %1210 = vperm.xlu0 %1209, %v1188
    %v1211 = vpop.permute.xlu0 %1210
    %1214 = vset.pattern.permute.xlu0 0
    %1215 = vperm.xlu0 %1214, %v1189
    %v1216 = vpop.permute.xlu0 %1215
    %1219 = vset.pattern.permute.xlu0 0
    %1220 = vperm.xlu0 %1219, %v1190
    %v1221 = vpop.permute.xlu0 %1220
    %1224 = vset.pattern.permute.xlu0 0
    %1225 = vperm.xlu0 %1224, %v1191
    %v1226 = vpop.permute.xlu0 %1225
    %1229 = vset.pattern.permute.xlu0 0
    %1230 = vperm.xlu0 %1229, %v1192
    %v1231 = vpop.permute.xlu0 %1230
    %1234 = vset.pattern.permute.xlu0 0
    %1235 = vperm.xlu0 %1234, %v1193
    %v1236 = vpop.permute.xlu0 %1235
    %1239 = vset.pattern.permute.xlu0 0
    %1240 = vperm.xlu0 %1239, %v1194
    %v1241 = vpop.permute.xlu0 %1240
    %1244 = vset.pattern.permute.xlu0 0
    %1245 = vperm.xlu0 %1244, %v1195
    %v1246 = vpop.permute.xlu0 %1245
    %1249 = vset.pattern.permute.xlu0 0
    %1250 = vperm.xlu0 %1249, %v1196
    %v1251 = vpop.permute.xlu0 %1250
    %1254 = vset.pattern.permute.xlu0 0
    %1255 = vperm.xlu0 %1254, %v1197
    %v1256 = vpop.permute.xlu0 %1255
    %1259 = vset.pattern.permute.xlu0 0
    %1260 = vperm.xlu0 %1259, %v1198
    %v1261 = vpop.permute.xlu0 %1260
    %1264 = vset.pattern.permute.xlu0 0
    %1265 = vperm.xlu0 %1264, %v1199
    %v1266 = vpop.permute.xlu0 %1265
    %1269 = vset.pattern.permute.xlu0 0
    %1270 = vperm.xlu0 %1269, %v1200
    %v1271 = vpop.permute.xlu0 %1270
    %1274 = vset.pattern.permute.xlu0 0
    %1275 = vperm.xlu0 %1274, %v1201
    %v1276 = vpop.permute.xlu0 %1275
    %1279 = vset.pattern.permute.xlu0 0
    %1280 = vperm.xlu0 %1279, %v1202
    %v1281 = vpop.permute.xlu0 %1280
    %v1283 = vmul.f32 %v1185, %v1206
    %v1284 = vmul.f32 %v1184, %v1211
    %v1285 = vmul.f32 %v1183, %v1216
    %v1286 = vmul.f32 %v1182, %v1221
    %v1287 = vmul.f32 %v1181, %v1226
    %v1288 = vmul.f32 %v1180, %v1231
    %v1289 = vmul.f32 %v1179, %v1236
    %v1290 = vmul.f32 %v1178, %v1241
    %v1291 = vmul.f32 %v1177, %v1246
    %v1292 = vmul.f32 %v1176, %v1251
    %v1293 = vmul.f32 %v1175, %v1256
    %v1294 = vmul.f32 %v1174, %v1261
    %v1295 = vmul.f32 %v1173, %v1266
    %v1296 = vmul.f32 %v1172, %v1271
    %v1297 = vmul.f32 %v1171, %v1276
    %v1298 = vmul.f32 %v1170, %v1281
    %v1299 = vpack.c.bf16 %v1283, %v1283
    %v1300 = vpack.c.bf16 %v1284, %v1284
    %v1301 = vpack.c.bf16 %v1285, %v1285
    %v1302 = vpack.c.bf16 %v1286, %v1286
    %v1303 = vpack.c.bf16 %v1287, %v1287
    %v1304 = vpack.c.bf16 %v1288, %v1288
    %v1305 = vpack.c.bf16 %v1289, %v1289
    %v1306 = vpack.c.bf16 %v1290, %v1290
    %v1307 = vpack.c.bf16 %v1291, %v1291
    %v1308 = vpack.c.bf16 %v1292, %v1292
    %v1309 = vpack.c.bf16 %v1293, %v1293
    %v1310 = vpack.c.bf16 %v1294, %v1294
    %v1311 = vpack.c.bf16 %v1295, %v1295
    %v1312 = vpack.c.bf16 %v1296, %v1296
    %v1313 = vpack.c.bf16 %v1297, %v1297
    %v1314 = vpack.c.bf16 %v1298, %v1298
    %1315 = vst [vmem:[#allocation2 + $0xc] sm:$0xf] %v1299
    %1316 = vst [vmem:[#allocation2 + $0x30] sm:$0xf] %v1300
    %1317 = vst [vmem:[#allocation2 + $0x54] sm:$0xf] %v1301
    %1318 = vst [vmem:[#allocation2 + $0x78] sm:$0xf] %v1302
    %1319 = vst [vmem:[#allocation2 + $0x9c] sm:$0xf] %v1303
    %1320 = vst [vmem:[#allocation2 + $0xc0] sm:$0xf] %v1304
    %1321 = vst [vmem:[#allocation2 + $0xe4] sm:$0xf] %v1305
    %1322 = vst [vmem:[#allocation2 + $0x108] sm:$0xf] %v1306
    %1323 = vst [vmem:[#allocation2 + $0x12c] sm:$0xf] %v1307
    %1324 = vst [vmem:[#allocation2 + $0x150] sm:$0xf] %v1308
    %1325 = vst [vmem:[#allocation2 + $0x174] sm:$0xf] %v1309
    %1326 = vst [vmem:[#allocation2 + $0x198] sm:$0xf] %v1310
    %1327 = vst [vmem:[#allocation2 + $0x1bc] sm:$0xf] %v1311
    %1328 = vst [vmem:[#allocation2 + $0x1e0] sm:$0xf] %v1312
    %1329 = vst [vmem:[#allocation2 + $0x204] sm:$0xf] %v1313
    %1330 = vst [vmem:[#allocation2 + $0x228] sm:$0xf] %v1314
    %v1331 = vld [vmem:[%s634] sm:$0xff]
    %v1332 = vld [vmem:[%s634 + $0x8] sm:$0xff]
    %v1333 = vld [vmem:[%s634 + $0x10] sm:$0xff]
    %v1334 = vld [vmem:[%s634 + $0x18] sm:$0xff]
    %v1335 = vld [vmem:[%s634 + $0x20] sm:$0xff]
    %v1336 = vld [vmem:[%s634 + $0x28] sm:$0xff]
    %v1337 = vld [vmem:[%s634 + $0x30] sm:$0xff]
    %v1338 = vld [vmem:[%s634 + $0x38] sm:$0xff]
    %v1339 = vld [vmem:[%s634 + $0x40] sm:$0xff]
    %v1340 = vld [vmem:[%s634 + $0x48] sm:$0xff]
    %v1341 = vld [vmem:[%s634 + $0x50] sm:$0xff]
    %v1342 = vld [vmem:[%s634 + $0x58] sm:$0xff]
    %v1343 = vld [vmem:[%s634 + $0x60] sm:$0xff]
    %v1344 = vld [vmem:[%s634 + $0x68] sm:$0xff]
    %v1345 = vld [vmem:[%s634 + $0x70] sm:$0xff]
    %v1346 = vld [vmem:[%s634 + $0x78] sm:$0xff]
    %1348 = vset.pattern.permute.xlu0 0
    %1349 = vperm.xlu0 %1348, %v1331
    %v1350 = vpop.permute.xlu0 %1349
    %1353 = vset.pattern.permute.xlu0 0
    %1354 = vperm.xlu0 %1353, %v1332
    %v1355 = vpop.permute.xlu0 %1354
    %1358 = vset.pattern.permute.xlu0 0
    %1359 = vperm.xlu0 %1358, %v1333
    %v1360 = vpop.permute.xlu0 %1359
    %1363 = vset.pattern.permute.xlu0 0
    %1364 = vperm.xlu0 %1363, %v1334
    %v1365 = vpop.permute.xlu0 %1364
    %1368 = vset.pattern.permute.xlu0 0
    %1369 = vperm.xlu0 %1368, %v1335
    %v1370 = vpop.permute.xlu0 %1369
    %1373 = vset.pattern.permute.xlu0 0
    %1374 = vperm.xlu0 %1373, %v1336
    %v1375 = vpop.permute.xlu0 %1374
    %1378 = vset.pattern.permute.xlu0 0
    %1379 = vperm.xlu0 %1378, %v1337
    %v1380 = vpop.permute.xlu0 %1379
    %1383 = vset.pattern.permute.xlu0 0
    %1384 = vperm.xlu0 %1383, %v1338
    %v1385 = vpop.permute.xlu0 %1384
    %1388 = vset.pattern.permute.xlu0 0
    %1389 = vperm.xlu0 %1388, %v1339
    %v1390 = vpop.permute.xlu0 %1389
    %1393 = vset.pattern.permute.xlu0 0
    %1394 = vperm.xlu0 %1393, %v1340
    %v1395 = vpop.permute.xlu0 %1394
    %1398 = vset.pattern.permute.xlu0 0
    %1399 = vperm.xlu0 %1398, %v1341
    %v1400 = vpop.permute.xlu0 %1399
    %1403 = vset.pattern.permute.xlu0 0
    %1404 = vperm.xlu0 %1403, %v1342
    %v1405 = vpop.permute.xlu0 %1404
    %1408 = vset.pattern.permute.xlu0 0
    %1409 = vperm.xlu0 %1408, %v1343
    %v1410 = vpop.permute.xlu0 %1409
    %1413 = vset.pattern.permute.xlu0 0
    %1414 = vperm.xlu0 %1413, %v1344
    %v1415 = vpop.permute.xlu0 %1414
    %1418 = vset.pattern.permute.xlu0 0
    %1419 = vperm.xlu0 %1418, %v1345
    %v1420 = vpop.permute.xlu0 %1419
    %1423 = vset.pattern.permute.xlu0 0
    %1424 = vperm.xlu0 %1423, %v1346
    %v1425 = vpop.permute.xlu0 %1424
    %v1427 = vmul.f32 %v593, %v1350
    %v1428 = vmul.f32 %v595, %v1355
    %v1429 = vmul.f32 %v598, %v1360
    %v1430 = vmul.f32 %v600, %v1365
    %v1431 = vmul.f32 %v603, %v1370
    %v1432 = vmul.f32 %v605, %v1375
    %v1433 = vmul.f32 %v608, %v1380
    %v1434 = vmul.f32 %v610, %v1385
    %v1435 = vmul.f32 %v613, %v1390
    %v1436 = vmul.f32 %v615, %v1395
    %v1437 = vmul.f32 %v618, %v1400
    %v1438 = vmul.f32 %v620, %v1405
    %v1439 = vmul.f32 %v623, %v1410
    %v1440 = vmul.f32 %v625, %v1415
    %v1441 = vmul.f32 %v628, %v1420
    %v1442 = vmul.f32 %v630, %v1425
    %v1443 = vpack.c.bf16 %v1427, %v1427
    %v1444 = vpack.c.bf16 %v1428, %v1428
    %v1445 = vpack.c.bf16 %v1429, %v1429
    %v1446 = vpack.c.bf16 %v1430, %v1430
    %v1447 = vpack.c.bf16 %v1431, %v1431
    %v1448 = vpack.c.bf16 %v1432, %v1432
    %v1449 = vpack.c.bf16 %v1433, %v1433
    %v1450 = vpack.c.bf16 %v1434, %v1434
    %v1451 = vpack.c.bf16 %v1435, %v1435
    %v1452 = vpack.c.bf16 %v1436, %v1436
    %v1453 = vpack.c.bf16 %v1437, %v1437
    %v1454 = vpack.c.bf16 %v1438, %v1438
    %v1455 = vpack.c.bf16 %v1439, %v1439
    %v1456 = vpack.c.bf16 %v1440, %v1440
    %v1457 = vpack.c.bf16 %v1441, %v1441
    %v1458 = vpack.c.bf16 %v1442, %v1442
    %1459 = vst [vmem:[#allocation2 + $0x10] sm:$0xf] %v1443
    %1460 = vst [vmem:[#allocation2 + $0x34] sm:$0xf] %v1444
    %1461 = vst [vmem:[#allocation2 + $0x58] sm:$0xf] %v1445
    %1462 = vst [vmem:[#allocation2 + $0x7c] sm:$0xf] %v1446
    %1463 = vst [vmem:[#allocation2 + $0xa0] sm:$0xf] %v1447
    %1464 = vst [vmem:[#allocation2 + $0xc4] sm:$0xf] %v1448
    %1465 = vst [vmem:[#allocation2 + $0xe8] sm:$0xf] %v1449
    %1466 = vst [vmem:[#allocation2 + $0x10c] sm:$0xf] %v1450
    %1467 = vst [vmem:[#allocation2 + $0x130] sm:$0xf] %v1451
    %1468 = vst [vmem:[#allocation2 + $0x154] sm:$0xf] %v1452
    %1469 = vst [vmem:[#allocation2 + $0x178] sm:$0xf] %v1453
    %1470 = vst [vmem:[#allocation2 + $0x19c] sm:$0xf] %v1454
    %1471 = vst [vmem:[#allocation2 + $0x1c0] sm:$0xf] %v1455
    %1472 = vst [vmem:[#allocation2 + $0x1e4] sm:$0xf] %v1456
    %1473 = vst [vmem:[#allocation2 + $0x208] sm:$0xf] %v1457
    %1474 = vst [vmem:[#allocation2 + $0x22c] sm:$0xf] %v1458
    %s1475 = scalar_lea.vmem [#allocation3], 640
    %v1476 = vld [vmem:[%s1475] sm:$0xff]
    %v1477 = vld [vmem:[%s1475 + $0x8] sm:$0xff]
    %v1478 = vld [vmem:[%s1475 + $0x10] sm:$0xff]
    %v1479 = vld [vmem:[%s1475 + $0x18] sm:$0xff]
    %v1480 = vld [vmem:[%s1475 + $0x20] sm:$0xff]
    %v1481 = vld [vmem:[%s1475 + $0x28] sm:$0xff]
    %v1482 = vld [vmem:[%s1475 + $0x30] sm:$0xff]
    %v1483 = vld [vmem:[%s1475 + $0x38] sm:$0xff]
    %v1484 = vld [vmem:[%s1475 + $0x40] sm:$0xff]
    %v1485 = vld [vmem:[%s1475 + $0x48] sm:$0xff]
    %v1486 = vld [vmem:[%s1475 + $0x50] sm:$0xff]
    %v1487 = vld [vmem:[%s1475 + $0x58] sm:$0xff]
    %v1488 = vld [vmem:[%s1475 + $0x60] sm:$0xff]
    %v1489 = vld [vmem:[%s1475 + $0x68] sm:$0xff]
    %v1490 = vld [vmem:[%s1475 + $0x70] sm:$0xff]
    %v1491 = vld [vmem:[%s1475 + $0x78] sm:$0xff]
    %1493 = vset.pattern.permute.xlu0 0
    %1494 = vperm.xlu0 %1493, %v1476
    %v1495 = vpop.permute.xlu0 %1494
    %1498 = vset.pattern.permute.xlu0 0
    %1499 = vperm.xlu0 %1498, %v1477
    %v1500 = vpop.permute.xlu0 %1499
    %1503 = vset.pattern.permute.xlu0 0
    %1504 = vperm.xlu0 %1503, %v1478
    %v1505 = vpop.permute.xlu0 %1504
    %1508 = vset.pattern.permute.xlu0 0
    %1509 = vperm.xlu0 %1508, %v1479
    %v1510 = vpop.permute.xlu0 %1509
    %1513 = vset.pattern.permute.xlu0 0
    %1514 = vperm.xlu0 %1513, %v1480
    %v1515 = vpop.permute.xlu0 %1514
    %1518 = vset.pattern.permute.xlu0 0
    %1519 = vperm.xlu0 %1518, %v1481
    %v1520 = vpop.permute.xlu0 %1519
    %1523 = vset.pattern.permute.xlu0 0
    %1524 = vperm.xlu0 %1523, %v1482
    %v1525 = vpop.permute.xlu0 %1524
    %1528 = vset.pattern.permute.xlu0 0
    %1529 = vperm.xlu0 %1528, %v1483
    %v1530 = vpop.permute.xlu0 %1529
    %1533 = vset.pattern.permute.xlu0 0
    %1534 = vperm.xlu0 %1533, %v1484
    %v1535 = vpop.permute.xlu0 %1534
    %1538 = vset.pattern.permute.xlu0 0
    %1539 = vperm.xlu0 %1538, %v1485
    %v1540 = vpop.permute.xlu0 %1539
    %1543 = vset.pattern.permute.xlu0 0
    %1544 = vperm.xlu0 %1543, %v1486
    %v1545 = vpop.permute.xlu0 %1544
    %1548 = vset.pattern.permute.xlu0 0
    %1549 = vperm.xlu0 %1548, %v1487
    %v1550 = vpop.permute.xlu0 %1549
    %1553 = vset.pattern.permute.xlu0 0
    %1554 = vperm.xlu0 %1553, %v1488
    %v1555 = vpop.permute.xlu0 %1554
    %1558 = vset.pattern.permute.xlu0 0
    %1559 = vperm.xlu0 %1558, %v1489
    %v1560 = vpop.permute.xlu0 %1559
    %1563 = vset.pattern.permute.xlu0 0
    %1564 = vperm.xlu0 %1563, %v1490
    %v1565 = vpop.permute.xlu0 %1564
    %1568 = vset.pattern.permute.xlu0 0
    %1569 = vperm.xlu0 %1568, %v1491
    %v1570 = vpop.permute.xlu0 %1569
    %v1572 = vmul.f32 %v828, %v1495
    %v1573 = vmul.f32 %v827, %v1500
    %v1574 = vmul.f32 %v826, %v1505
    %v1575 = vmul.f32 %v825, %v1510
    %v1576 = vmul.f32 %v824, %v1515
    %v1577 = vmul.f32 %v823, %v1520
    %v1578 = vmul.f32 %v822, %v1525
    %v1579 = vmul.f32 %v821, %v1530
    %v1580 = vmul.f32 %v820, %v1535
    %v1581 = vmul.f32 %v819, %v1540
    %v1582 = vmul.f32 %v818, %v1545
    %v1583 = vmul.f32 %v817, %v1550
    %v1584 = vmul.f32 %v816, %v1555
    %v1585 = vmul.f32 %v815, %v1560
    %v1586 = vmul.f32 %v814, %v1565
    %v1587 = vmul.f32 %v829, %v1570
    %v1588 = vpack.c.bf16 %v1572, %v1572
    %v1589 = vpack.c.bf16 %v1573, %v1573
    %v1590 = vpack.c.bf16 %v1574, %v1574
    %v1591 = vpack.c.bf16 %v1575, %v1575
    %v1592 = vpack.c.bf16 %v1576, %v1576
    %v1593 = vpack.c.bf16 %v1577, %v1577
    %v1594 = vpack.c.bf16 %v1578, %v1578
    %v1595 = vpack.c.bf16 %v1579, %v1579
    %v1596 = vpack.c.bf16 %v1580, %v1580
    %v1597 = vpack.c.bf16 %v1581, %v1581
    %v1598 = vpack.c.bf16 %v1582, %v1582
    %v1599 = vpack.c.bf16 %v1583, %v1583
    %v1600 = vpack.c.bf16 %v1584, %v1584
    %v1601 = vpack.c.bf16 %v1585, %v1585
    %v1602 = vpack.c.bf16 %v1586, %v1586
    %v1603 = vpack.c.bf16 %v1587, %v1587
    %1604 = vst [vmem:[#allocation2 + $0x14] sm:$0xf] %v1588
    %1605 = vst [vmem:[#allocation2 + $0x38] sm:$0xf] %v1589
    %1606 = vst [vmem:[#allocation2 + $0x5c] sm:$0xf] %v1590
    %1607 = vst [vmem:[#allocation2 + $0x80] sm:$0xf] %v1591
    %1608 = vst [vmem:[#allocation2 + $0xa4] sm:$0xf] %v1592
    %1609 = vst [vmem:[#allocation2 + $0xc8] sm:$0xf] %v1593
    %1610 = vst [vmem:[#allocation2 + $0xec] sm:$0xf] %v1594
    %1611 = vst [vmem:[#allocation2 + $0x110] sm:$0xf] %v1595
    %1612 = vst [vmem:[#allocation2 + $0x134] sm:$0xf] %v1596
    %1613 = vst [vmem:[#allocation2 + $0x158] sm:$0xf] %v1597
    %1614 = vst [vmem:[#allocation2 + $0x17c] sm:$0xf] %v1598
    %1615 = vst [vmem:[#allocation2 + $0x1a0] sm:$0xf] %v1599
    %1616 = vst [vmem:[#allocation2 + $0x1c4] sm:$0xf] %v1600
    %1617 = vst [vmem:[#allocation2 + $0x1e8] sm:$0xf] %v1601
    %1618 = vst [vmem:[#allocation2 + $0x20c] sm:$0xf] %v1602
    %1619 = vst [vmem:[#allocation2 + $0x230] sm:$0xf] %v1603
    %v1620 = vrot.slane %v593, 6
    %v1621 = vrot.slane %v595, 6
    %v1622 = vrot.slane %v598, 6
    %v1623 = vrot.slane %v600, 6
    %v1624 = vrot.slane %v603, 6
    %v1625 = vrot.slane %v605, 6
    %v1626 = vrot.slane %v608, 6
    %v1627 = vrot.slane %v610, 6
    %v1628 = vrot.slane %v613, 6
    %v1629 = vrot.slane %v615, 6
    %v1630 = vrot.slane %v618, 6
    %v1631 = vrot.slane %v620, 6
    %v1632 = vrot.slane %v623, 6
    %v1633 = vrot.slane %v625, 6
    %v1634 = vrot.slane %v628, 6
    %v1635 = vrot.slane %v630, 6
    %vm1636 = vcmp.lt.s32.totalorder %v812, 2
    %v1637 = vsel %vm1636, %v1634, %v1635
    %v1638 = vsel %vm1636, %v1633, %v1634
    %v1639 = vsel %vm1636, %v1632, %v1633
    %v1640 = vsel %vm1636, %v1631, %v1632
    %v1641 = vsel %vm1636, %v1630, %v1631
    %v1642 = vsel %vm1636, %v1629, %v1630
    %v1643 = vsel %vm1636, %v1628, %v1629
    %v1644 = vsel %vm1636, %v1627, %v1628
    %v1645 = vsel %vm1636, %v1626, %v1627
    %v1646 = vsel %vm1636, %v1625, %v1626
    %v1647 = vsel %vm1636, %v1624, %v1625
    %v1648 = vsel %vm1636, %v1623, %v1624
    %v1649 = vsel %vm1636, %v1622, %v1623
    %v1650 = vsel %vm1636, %v1621, %v1622
    %v1651 = vsel %vm1636, %v1620, %v1621
    %v1652 = vsel %vm1636, %v1635, %v1620
    %s1653 = scalar_lea.vmem [#allocation3], 768
    %v1654 = vld [vmem:[%s1653] sm:$0xff]
    %v1655 = vld [vmem:[%s1653 + $0x8] sm:$0xff]
    %v1656 = vld [vmem:[%s1653 + $0x10] sm:$0xff]
    %v1657 = vld [vmem:[%s1653 + $0x18] sm:$0xff]
    %v1658 = vld [vmem:[%s1653 + $0x20] sm:$0xff]
    %v1659 = vld [vmem:[%s1653 + $0x28] sm:$0xff]
    %v1660 = vld [vmem:[%s1653 + $0x30] sm:$0xff]
    %v1661 = vld [vmem:[%s1653 + $0x38] sm:$0xff]
    %v1662 = vld [vmem:[%s1653 + $0x40] sm:$0xff]
    %v1663 = vld [vmem:[%s1653 + $0x48] sm:$0xff]
    %v1664 = vld [vmem:[%s1653 + $0x50] sm:$0xff]
    %v1665 = vld [vmem:[%s1653 + $0x58] sm:$0xff]
    %v1666 = vld [vmem:[%s1653 + $0x60] sm:$0xff]
    %v1667 = vld [vmem:[%s1653 + $0x68] sm:$0xff]
    %v1668 = vld [vmem:[%s1653 + $0x70] sm:$0xff]
    %v1669 = vld [vmem:[%s1653 + $0x78] sm:$0xff]
    %1671 = vset.pattern.permute.xlu0 0
    %1672 = vperm.xlu0 %1671, %v1654
    %v1673 = vpop.permute.xlu0 %1672
    %1676 = vset.pattern.permute.xlu0 0
    %1677 = vperm.xlu0 %1676, %v1655
    %v1678 = vpop.permute.xlu0 %1677
    %1681 = vset.pattern.permute.xlu0 0
    %1682 = vperm.xlu0 %1681, %v1656
    %v1683 = vpop.permute.xlu0 %1682
    %1686 = vset.pattern.permute.xlu0 0
    %1687 = vperm.xlu0 %1686, %v1657
    %v1688 = vpop.permute.xlu0 %1687
    %1691 = vset.pattern.permute.xlu0 0
    %1692 = vperm.xlu0 %1691, %v1658
    %v1693 = vpop.permute.xlu0 %1692
    %1696 = vset.pattern.permute.xlu0 0
    %1697 = vperm.xlu0 %1696, %v1659
    %v1698 = vpop.permute.xlu0 %1697
    %1701 = vset.pattern.permute.xlu0 0
    %1702 = vperm.xlu0 %1701, %v1660
    %v1703 = vpop.permute.xlu0 %1702
    %1706 = vset.pattern.permute.xlu0 0
    %1707 = vperm.xlu0 %1706, %v1661
    %v1708 = vpop.permute.xlu0 %1707
    %1711 = vset.pattern.permute.xlu0 0
    %1712 = vperm.xlu0 %1711, %v1662
    %v1713 = vpop.permute.xlu0 %1712
    %1716 = vset.pattern.permute.xlu0 0
    %1717 = vperm.xlu0 %1716, %v1663
    %v1718 = vpop.permute.xlu0 %1717
    %1721 = vset.pattern.permute.xlu0 0
    %1722 = vperm.xlu0 %1721, %v1664
    %v1723 = vpop.permute.xlu0 %1722
    %1726 = vset.pattern.permute.xlu0 0
    %1727 = vperm.xlu0 %1726, %v1665
    %v1728 = vpop.permute.xlu0 %1727
    %1731 = vset.pattern.permute.xlu0 0
    %1732 = vperm.xlu0 %1731, %v1666
    %v1733 = vpop.permute.xlu0 %1732
    %1736 = vset.pattern.permute.xlu0 0
    %1737 = vperm.xlu0 %1736, %v1667
    %v1738 = vpop.permute.xlu0 %1737
    %1741 = vset.pattern.permute.xlu0 0
    %1742 = vperm.xlu0 %1741, %v1668
    %v1743 = vpop.permute.xlu0 %1742
    %1746 = vset.pattern.permute.xlu0 0
    %1747 = vperm.xlu0 %1746, %v1669
    %v1748 = vpop.permute.xlu0 %1747
    %v1750 = vmul.f32 %v1651, %v1673
    %v1751 = vmul.f32 %v1650, %v1678
    %v1752 = vmul.f32 %v1649, %v1683
    %v1753 = vmul.f32 %v1648, %v1688
    %v1754 = vmul.f32 %v1647, %v1693
    %v1755 = vmul.f32 %v1646, %v1698
    %v1756 = vmul.f32 %v1645, %v1703
    %v1757 = vmul.f32 %v1644, %v1708
    %v1758 = vmul.f32 %v1643, %v1713
    %v1759 = vmul.f32 %v1642, %v1718
    %v1760 = vmul.f32 %v1641, %v1723
    %v1761 = vmul.f32 %v1640, %v1728
    %v1762 = vmul.f32 %v1639, %v1733
    %v1763 = vmul.f32 %v1638, %v1738
    %v1764 = vmul.f32 %v1637, %v1743
    %v1765 = vmul.f32 %v1652, %v1748
    %v1766 = vpack.c.bf16 %v1750, %v1750
    %v1767 = vpack.c.bf16 %v1751, %v1751
    %v1768 = vpack.c.bf16 %v1752, %v1752
    %v1769 = vpack.c.bf16 %v1753, %v1753
    %v1770 = vpack.c.bf16 %v1754, %v1754
    %v1771 = vpack.c.bf16 %v1755, %v1755
    %v1772 = vpack.c.bf16 %v1756, %v1756
    %v1773 = vpack.c.bf16 %v1757, %v1757
    %v1774 = vpack.c.bf16 %v1758, %v1758
    %v1775 = vpack.c.bf16 %v1759, %v1759
    %v1776 = vpack.c.bf16 %v1760, %v1760
    %v1777 = vpack.c.bf16 %v1761, %v1761
    %v1778 = vpack.c.bf16 %v1762, %v1762
    %v1779 = vpack.c.bf16 %v1763, %v1763
    %v1780 = vpack.c.bf16 %v1764, %v1764
    %v1781 = vpack.c.bf16 %v1765, %v1765
    %1782 = vst [vmem:[#allocation2 + $0x18] sm:$0xf] %v1766
    %1783 = vst [vmem:[#allocation2 + $0x3c] sm:$0xf] %v1767
    %1784 = vst [vmem:[#allocation2 + $0x60] sm:$0xf] %v1768
    %1785 = vst [vmem:[#allocation2 + $0x84] sm:$0xf] %v1769
    %1786 = vst [vmem:[#allocation2 + $0xa8] sm:$0xf] %v1770
    %1787 = vst [vmem:[#allocation2 + $0xcc] sm:$0xf] %v1771
    %1788 = vst [vmem:[#allocation2 + $0xf0] sm:$0xf] %v1772
    %1789 = vst [vmem:[#allocation2 + $0x114] sm:$0xf] %v1773
    %1790 = vst [vmem:[#allocation2 + $0x138] sm:$0xf] %v1774
    %1791 = vst [vmem:[#allocation2 + $0x15c] sm:$0xf] %v1775
    %1792 = vst [vmem:[#allocation2 + $0x180] sm:$0xf] %v1776
    %1793 = vst [vmem:[#allocation2 + $0x1a4] sm:$0xf] %v1777
    %1794 = vst [vmem:[#allocation2 + $0x1c8] sm:$0xf] %v1778
    %1795 = vst [vmem:[#allocation2 + $0x1ec] sm:$0xf] %v1779
    %1796 = vst [vmem:[#allocation2 + $0x210] sm:$0xf] %v1780
    %1797 = vst [vmem:[#allocation2 + $0x234] sm:$0xf] %v1781
    %s1798 = scalar_lea.vmem [#allocation3], 896
    %v1799 = vld [vmem:[%s1798] sm:$0xff]
    %v1800 = vld [vmem:[%s1798 + $0x8] sm:$0xff]
    %v1801 = vld [vmem:[%s1798 + $0x10] sm:$0xff]
    %v1802 = vld [vmem:[%s1798 + $0x18] sm:$0xff]
    %v1803 = vld [vmem:[%s1798 + $0x20] sm:$0xff]
    %v1804 = vld [vmem:[%s1798 + $0x28] sm:$0xff]
    %v1805 = vld [vmem:[%s1798 + $0x30] sm:$0xff]
    %v1806 = vld [vmem:[%s1798 + $0x38] sm:$0xff]
    %v1807 = vld [vmem:[%s1798 + $0x40] sm:$0xff]
    %v1808 = vld [vmem:[%s1798 + $0x48] sm:$0xff]
    %v1809 = vld [vmem:[%s1798 + $0x50] sm:$0xff]
    %v1810 = vld [vmem:[%s1798 + $0x58] sm:$0xff]
    %v1811 = vld [vmem:[%s1798 + $0x60] sm:$0xff]
    %v1812 = vld [vmem:[%s1798 + $0x68] sm:$0xff]
    %v1813 = vld [vmem:[%s1798 + $0x70] sm:$0xff]
    %v1814 = vld [vmem:[%s1798 + $0x78] sm:$0xff]
    %1816 = vset.pattern.permute.xlu0 0
    %1817 = vperm.xlu0 %1816, %v1799
    %v1818 = vpop.permute.xlu0 %1817
    %1821 = vset.pattern.permute.xlu0 0
    %1822 = vperm.xlu0 %1821, %v1800
    %v1823 = vpop.permute.xlu0 %1822
    %1826 = vset.pattern.permute.xlu0 0
    %1827 = vperm.xlu0 %1826, %v1801
    %v1828 = vpop.permute.xlu0 %1827
    %1831 = vset.pattern.permute.xlu0 0
    %1832 = vperm.xlu0 %1831, %v1802
    %v1833 = vpop.permute.xlu0 %1832
    %1836 = vset.pattern.permute.xlu0 0
    %1837 = vperm.xlu0 %1836, %v1803
    %v1838 = vpop.permute.xlu0 %1837
    %1841 = vset.pattern.permute.xlu0 0
    %1842 = vperm.xlu0 %1841, %v1804
    %v1843 = vpop.permute.xlu0 %1842
    %1846 = vset.pattern.permute.xlu0 0
    %1847 = vperm.xlu0 %1846, %v1805
    %v1848 = vpop.permute.xlu0 %1847
    %1851 = vset.pattern.permute.xlu0 0
    %1852 = vperm.xlu0 %1851, %v1806
    %v1853 = vpop.permute.xlu0 %1852
    %1856 = vset.pattern.permute.xlu0 0
    %1857 = vperm.xlu0 %1856, %v1807
    %v1858 = vpop.permute.xlu0 %1857
    %1861 = vset.pattern.permute.xlu0 0
    %1862 = vperm.xlu0 %1861, %v1808
    %v1863 = vpop.permute.xlu0 %1862
    %1866 = vset.pattern.permute.xlu0 0
    %1867 = vperm.xlu0 %1866, %v1809
    %v1868 = vpop.permute.xlu0 %1867
    %1871 = vset.pattern.permute.xlu0 0
    %1872 = vperm.xlu0 %1871, %v1810
    %v1873 = vpop.permute.xlu0 %1872
    %1876 = vset.pattern.permute.xlu0 0
    %1877 = vperm.xlu0 %1876, %v1811
    %v1878 = vpop.permute.xlu0 %1877
    %1881 = vset.pattern.permute.xlu0 0
    %1882 = vperm.xlu0 %1881, %v1812
    %v1883 = vpop.permute.xlu0 %1882
    %1886 = vset.pattern.permute.xlu0 0
    %1887 = vperm.xlu0 %1886, %v1813
    %v1888 = vpop.permute.xlu0 %1887
    %1891 = vset.pattern.permute.xlu0 0
    %1892 = vperm.xlu0 %1891, %v1814
    %v1893 = vpop.permute.xlu0 %1892
    %v1895 = vmul.f32 %v1184, %v1818
    %v1896 = vmul.f32 %v1183, %v1823
    %v1897 = vmul.f32 %v1182, %v1828
    %v1898 = vmul.f32 %v1181, %v1833
    %v1899 = vmul.f32 %v1180, %v1838
    %v1900 = vmul.f32 %v1179, %v1843
    %v1901 = vmul.f32 %v1178, %v1848
    %v1902 = vmul.f32 %v1177, %v1853
    %v1903 = vmul.f32 %v1176, %v1858
    %v1904 = vmul.f32 %v1175, %v1863
    %v1905 = vmul.f32 %v1174, %v1868
    %v1906 = vmul.f32 %v1173, %v1873
    %v1907 = vmul.f32 %v1172, %v1878
    %v1908 = vmul.f32 %v1171, %v1883
    %v1909 = vmul.f32 %v1170, %v1888
    %v1910 = vmul.f32 %v1185, %v1893
    %v1911 = vpack.c.bf16 %v1895, %v1895
    %v1912 = vpack.c.bf16 %v1896, %v1896
    %v1913 = vpack.c.bf16 %v1897, %v1897
    %v1914 = vpack.c.bf16 %v1898, %v1898
    %v1915 = vpack.c.bf16 %v1899, %v1899
    %v1916 = vpack.c.bf16 %v1900, %v1900
    %v1917 = vpack.c.bf16 %v1901, %v1901
    %v1918 = vpack.c.bf16 %v1902, %v1902
    %v1919 = vpack.c.bf16 %v1903, %v1903
    %v1920 = vpack.c.bf16 %v1904, %v1904
    %v1921 = vpack.c.bf16 %v1905, %v1905
    %v1922 = vpack.c.bf16 %v1906, %v1906
    %v1923 = vpack.c.bf16 %v1907, %v1907
    %v1924 = vpack.c.bf16 %v1908, %v1908
    %v1925 = vpack.c.bf16 %v1909, %v1909
    %v1926 = vpack.c.bf16 %v1910, %v1910
    %1927 = vst [vmem:[#allocation2 + $0x1c] sm:$0xf] %v1911
    %1928 = vst [vmem:[#allocation2 + $0x40] sm:$0xf] %v1912
    %1929 = vst [vmem:[#allocation2 + $0x64] sm:$0xf] %v1913
    %1930 = vst [vmem:[#allocation2 + $0x88] sm:$0xf] %v1914
    %1931 = vst [vmem:[#allocation2 + $0xac] sm:$0xf] %v1915
    %1932 = vst [vmem:[#allocation2 + $0xd0] sm:$0xf] %v1916
    %1933 = vst [vmem:[#allocation2 + $0xf4] sm:$0xf] %v1917
    %1934 = vst [vmem:[#allocation2 + $0x118] sm:$0xf] %v1918
    %1935 = vst [vmem:[#allocation2 + $0x13c] sm:$0xf] %v1919
    %1936 = vst [vmem:[#allocation2 + $0x160] sm:$0xf] %v1920
    %1937 = vst [vmem:[#allocation2 + $0x184] sm:$0xf] %v1921
    %1938 = vst [vmem:[#allocation2 + $0x1a8] sm:$0xf] %v1922
    %1939 = vst [vmem:[#allocation2 + $0x1cc] sm:$0xf] %v1923
    %1940 = vst [vmem:[#allocation2 + $0x1f0] sm:$0xf] %v1924
    %1941 = vst [vmem:[#allocation2 + $0x214] sm:$0xf] %v1925
    %1942 = vst [vmem:[#allocation2 + $0x238] sm:$0xf] %v1926
    %s1943 = scalar_lea.vmem [#allocation3], 1024
    %v1944 = vld [vmem:[%s1943] sm:$0xff]
    %v1945 = vld [vmem:[%s1943 + $0x8] sm:$0xff]
    %v1946 = vld [vmem:[%s1943 + $0x10] sm:$0xff]
    %v1947 = vld [vmem:[%s1943 + $0x18] sm:$0xff]
    %v1948 = vld [vmem:[%s1943 + $0x20] sm:$0xff]
    %v1949 = vld [vmem:[%s1943 + $0x28] sm:$0xff]
    %v1950 = vld [vmem:[%s1943 + $0x30] sm:$0xff]
    %v1951 = vld [vmem:[%s1943 + $0x38] sm:$0xff]
    %v1952 = vld [vmem:[%s1943 + $0x40] sm:$0xff]
    %v1953 = vld [vmem:[%s1943 + $0x48] sm:$0xff]
    %v1954 = vld [vmem:[%s1943 + $0x50] sm:$0xff]
    %v1955 = vld [vmem:[%s1943 + $0x58] sm:$0xff]
    %v1956 = vld [vmem:[%s1943 + $0x60] sm:$0xff]
    %v1957 = vld [vmem:[%s1943 + $0x68] sm:$0xff]
    %v1958 = vld [vmem:[%s1943 + $0x70] sm:$0xff]
    %v1959 = vld [vmem:[%s1943 + $0x78] sm:$0xff]
    %1961 = vset.pattern.permute.xlu0 0
    %1962 = vperm.xlu0 %1961, %v1944
    %v1963 = vpop.permute.xlu0 %1962
    %1966 = vset.pattern.permute.xlu0 0
    %1967 = vperm.xlu0 %1966, %v1945
    %v1968 = vpop.permute.xlu0 %1967
    %1971 = vset.pattern.permute.xlu0 0
    %1972 = vperm.xlu0 %1971, %v1946
    %v1973 = vpop.permute.xlu0 %1972
    %1976 = vset.pattern.permute.xlu0 0
    %1977 = vperm.xlu0 %1976, %v1947
    %v1978 = vpop.permute.xlu0 %1977
    %1981 = vset.pattern.permute.xlu0 0
    %1982 = vperm.xlu0 %1981, %v1948
    %v1983 = vpop.permute.xlu0 %1982
    %1986 = vset.pattern.permute.xlu0 0
    %1987 = vperm.xlu0 %1986, %v1949
    %v1988 = vpop.permute.xlu0 %1987
    %1991 = vset.pattern.permute.xlu0 0
    %1992 = vperm.xlu0 %1991, %v1950
    %v1993 = vpop.permute.xlu0 %1992
    %1996 = vset.pattern.permute.xlu0 0
    %1997 = vperm.xlu0 %1996, %v1951
    %v1998 = vpop.permute.xlu0 %1997
    %2001 = vset.pattern.permute.xlu0 0
    %2002 = vperm.xlu0 %2001, %v1952
    %v2003 = vpop.permute.xlu0 %2002
    %2006 = vset.pattern.permute.xlu0 0
    %2007 = vperm.xlu0 %2006, %v1953
    %v2008 = vpop.permute.xlu0 %2007
    %2011 = vset.pattern.permute.xlu0 0
    %2012 = vperm.xlu0 %2011, %v1954
    %v2013 = vpop.permute.xlu0 %2012
    %2016 = vset.pattern.permute.xlu0 0
    %2017 = vperm.xlu0 %2016, %v1955
    %v2018 = vpop.permute.xlu0 %2017
    %2021 = vset.pattern.permute.xlu0 0
    %2022 = vperm.xlu0 %2021, %v1956
    %v2023 = vpop.permute.xlu0 %2022
    %2026 = vset.pattern.permute.xlu0 0
    %2027 = vperm.xlu0 %2026, %v1957
    %v2028 = vpop.permute.xlu0 %2027
    %2031 = vset.pattern.permute.xlu0 0
    %2032 = vperm.xlu0 %2031, %v1958
    %v2033 = vpop.permute.xlu0 %2032
    %2036 = vset.pattern.permute.xlu0 0
    %2037 = vperm.xlu0 %2036, %v1959
    %v2038 = vpop.permute.xlu0 %2037
    %v2040 = vmul.f32 %v595, %v1963
    %v2041 = vmul.f32 %v598, %v1968
    %v2042 = vmul.f32 %v600, %v1973
    %v2043 = vmul.f32 %v603, %v1978
    %v2044 = vmul.f32 %v605, %v1983
    %v2045 = vmul.f32 %v608, %v1988
    %v2046 = vmul.f32 %v610, %v1993
    %v2047 = vmul.f32 %v613, %v1998
    %v2048 = vmul.f32 %v615, %v2003
    %v2049 = vmul.f32 %v618, %v2008
    %v2050 = vmul.f32 %v620, %v2013
    %v2051 = vmul.f32 %v623, %v2018
    %v2052 = vmul.f32 %v625, %v2023
    %v2053 = vmul.f32 %v628, %v2028
    %v2054 = vmul.f32 %v630, %v2033
    %v2055 = vmul.f32 %v593, %v2038
    %v2056 = vpack.c.bf16 %v2040, %v2040
    %v2057 = vpack.c.bf16 %v2041, %v2041
    %v2058 = vpack.c.bf16 %v2042, %v2042
    %v2059 = vpack.c.bf16 %v2043, %v2043
    %v2060 = vpack.c.bf16 %v2044, %v2044
    %v2061 = vpack.c.bf16 %v2045, %v2045
    %v2062 = vpack.c.bf16 %v2046, %v2046
    %v2063 = vpack.c.bf16 %v2047, %v2047
    %v2064 = vpack.c.bf16 %v2048, %v2048
    %v2065 = vpack.c.bf16 %v2049, %v2049
    %v2066 = vpack.c.bf16 %v2050, %v2050
    %v2067 = vpack.c.bf16 %v2051, %v2051
    %v2068 = vpack.c.bf16 %v2052, %v2052
    %v2069 = vpack.c.bf16 %v2053, %v2053
    %v2070 = vpack.c.bf16 %v2054, %v2054
    %v2071 = vpack.c.bf16 %v2055, %v2055
    %2072 = vst [vmem:[#allocation2 + $0x20] sm:$0xf] %v2056
    %2073 = vst [vmem:[#allocation2 + $0x44] sm:$0xf] %v2057
    %2074 = vst [vmem:[#allocation2 + $0x68] sm:$0xf] %v2058
    %2075 = vst [vmem:[#allocation2 + $0x8c] sm:$0xf] %v2059
    %2076 = vst [vmem:[#allocation2 + $0xb0] sm:$0xf] %v2060
    %2077 = vst [vmem:[#allocation2 + $0xd4] sm:$0xf] %v2061
    %2078 = vst [vmem:[#allocation2 + $0xf8] sm:$0xf] %v2062
    %2079 = vst [vmem:[#allocation2 + $0x11c] sm:$0xf] %v2063
    %2080 = vst [vmem:[#allocation2 + $0x140] sm:$0xf] %v2064
    %2081 = vst [vmem:[#allocation2 + $0x164] sm:$0xf] %v2065
    %2082 = vst [vmem:[#allocation2 + $0x188] sm:$0xf] %v2066
    %2083 = vst [vmem:[#allocation2 + $0x1ac] sm:$0xf] %v2067
    %2084 = vst [vmem:[#allocation2 + $0x1d0] sm:$0xf] %v2068
    %2085 = vst [vmem:[#allocation2 + $0x1f4] sm:$0xf] %v2069
    %2086 = vst [vmem:[#allocation2 + $0x218] sm:$0xf] %v2070
    %2087 = vst [vmem:[#allocation2 + $0x23c] sm:$0xf] %v2071
    %v2088 = vld [vmem:[#allocation2] sm:$0xff]
    %v2089 = vld [vmem:[#allocation2 + $0x8] sm:$0xff]
    %v2090 = vld [vmem:[#allocation2 + $0x10] sm:$0xff]
    %v2091 = vld [vmem:[#allocation2 + $0x18] sm:$0xff]
    %v2092 = vld [vmem:[#allocation2 + $0x20] sm:$0xf]
    %v2093 = vld [vmem:[#allocation2 + $0x24] sm:$0xff]
    %v2094 = vld [vmem:[#allocation2 + $0x2c] sm:$0xff]
    %v2095 = vld [vmem:[#allocation2 + $0x34] sm:$0xff]
    %v2096 = vld [vmem:[#allocation2 + $0x3c] sm:$0xff]
    %v2097 = vld [vmem:[#allocation2 + $0x44] sm:$0xf]
    %v2098 = vld [vmem:[#allocation2 + $0x48] sm:$0xff]
    %v2099 = vld [vmem:[#allocation2 + $0x50] sm:$0xff]
    %v2100 = vld [vmem:[#allocation2 + $0x58] sm:$0xff]
    %v2101 = vld [vmem:[#allocation2 + $0x60] sm:$0xff]
    %v2102 = vld [vmem:[#allocation2 + $0x68] sm:$0xf]
    %v2103 = vld [vmem:[#allocation2 + $0x6c] sm:$0xff]
    %v2104 = vld [vmem:[#allocation2 + $0x74] sm:$0xff]
    %v2105 = vld [vmem:[#allocation2 + $0x7c] sm:$0xff]
    %v2106 = vld [vmem:[#allocation2 + $0x84] sm:$0xff]
    %v2107 = vld [vmem:[#allocation2 + $0x8c] sm:$0xf]
    %v2108 = vld [vmem:[#allocation2 + $0x90] sm:$0xff]
    %v2109 = vld [vmem:[#allocation2 + $0x98] sm:$0xff]
    %v2110 = vld [vmem:[#allocation2 + $0xa0] sm:$0xff]
    %v2111 = vld [vmem:[#allocation2 + $0xa8] sm:$0xff]
    %v2112 = vld [vmem:[#allocation2 + $0xb0] sm:$0xf]
    %v2113 = vld [vmem:[#allocation2 + $0xb4] sm:$0xff]
    %v2114 = vld [vmem:[#allocation2 + $0xbc] sm:$0xff]
    %v2115 = vld [vmem:[#allocation2 + $0xc4] sm:$0xff]
    %v2116 = vld [vmem:[#allocation2 + $0xcc] sm:$0xff]
    %v2117 = vld [vmem:[#allocation2 + $0xd4] sm:$0xf]
    %v2118 = vld [vmem:[#allocation2 + $0xd8] sm:$0xff]
    %v2119 = vld [vmem:[#allocation2 + $0xe0] sm:$0xff]
    %v2120 = vld [vmem:[#allocation2 + $0xe8] sm:$0xff]
    %v2121 = vld [vmem:[#allocation2 + $0xf0] sm:$0xff]
    %v2122 = vld [vmem:[#allocation2 + $0xf8] sm:$0xf]
    %v2123 = vld [vmem:[#allocation2 + $0xfc] sm:$0xff]
    %v2124 = vld [vmem:[#allocation2 + $0x104] sm:$0xff]
    %v2125 = vld [vmem:[#allocation2 + $0x10c] sm:$0xff]
    %v2126 = vld [vmem:[#allocation2 + $0x114] sm:$0xff]
    %v2127 = vld [vmem:[#allocation2 + $0x11c] sm:$0xf]
    %v2128 = vld [vmem:[#allocation2 + $0x120] sm:$0xff]
    %v2129 = vld [vmem:[#allocation2 + $0x128] sm:$0xff]
    %v2130 = vld [vmem:[#allocation2 + $0x130] sm:$0xff]
    %v2131 = vld [vmem:[#allocation2 + $0x138] sm:$0xff]
    %v2132 = vld [vmem:[#allocation2 + $0x140] sm:$0xf]
    %v2133 = vld [vmem:[#allocation2 + $0x144] sm:$0xff]
    %v2134 = vld [vmem:[#allocation2 + $0x14c] sm:$0xff]
    %v2135 = vld [vmem:[#allocation2 + $0x154] sm:$0xff]
    %v2136 = vld [vmem:[#allocation2 + $0x15c] sm:$0xff]
    %v2137 = vld [vmem:[#allocation2 + $0x164] sm:$0xf]
    %v2138 = vld [vmem:[#allocation2 + $0x168] sm:$0xff]
    %v2139 = vld [vmem:[#allocation2 + $0x170] sm:$0xff]
    %v2140 = vld [vmem:[#allocation2 + $0x178] sm:$0xff]
    %v2141 = vld [vmem:[#allocation2 + $0x180] sm:$0xff]
    %v2142 = vld [vmem:[#allocation2 + $0x188] sm:$0xf]
    %v2143 = vld [vmem:[#allocation2 + $0x18c] sm:$0xff]
    %v2144 = vld [vmem:[#allocation2 + $0x194] sm:$0xff]
    %v2145 = vld [vmem:[#allocation2 + $0x19c] sm:$0xff]
    %v2146 = vld [vmem:[#allocation2 + $0x1a4] sm:$0xff]
    %v2147 = vld [vmem:[#allocation2 + $0x1ac] sm:$0xf]
    %v2148 = vld [vmem:[#allocation2 + $0x1b0] sm:$0xff]
    %v2149 = vld [vmem:[#allocation2 + $0x1b8] sm:$0xff]
    %v2150 = vld [vmem:[#allocation2 + $0x1c0] sm:$0xff]
    %v2151 = vld [vmem:[#allocation2 + $0x1c8] sm:$0xff]
    %v2152 = vld [vmem:[#allocation2 + $0x1d0] sm:$0xf]
    %v2153 = vld [vmem:[#allocation2 + $0x1d4] sm:$0xff]
    %v2154 = vld [vmem:[#allocation2 + $0x1dc] sm:$0xff]
    %v2155 = vld [vmem:[#allocation2 + $0x1e4] sm:$0xff]
    %v2156 = vld [vmem:[#allocation2 + $0x1ec] sm:$0xff]
    %v2157 = vld [vmem:[#allocation2 + $0x1f4] sm:$0xf]
    %v2158 = vld [vmem:[#allocation2 + $0x1f8] sm:$0xff]
    %v2159 = vld [vmem:[#allocation2 + $0x200] sm:$0xff]
    %v2160 = vld [vmem:[#allocation2 + $0x208] sm:$0xff]
    %v2161 = vld [vmem:[#allocation2 + $0x210] sm:$0xff]
    %v2162 = vld [vmem:[#allocation2 + $0x218] sm:$0xf]
    %v2163 = vld [vmem:[#allocation2 + $0x21c] sm:$0xff]
    %v2164 = vld [vmem:[#allocation2 + $0x224] sm:$0xff]
    %v2165 = vld [vmem:[#allocation2 + $0x22c] sm:$0xff]
    %v2166 = vld [vmem:[#allocation2 + $0x234] sm:$0xff]
    %v2167 = vld [vmem:[#allocation2 + $0x23c] sm:$0xf]
    %v2168 = vld [vmem:[#allocation5] sm:$0xf]
    %v2169 = vld [vmem:[#allocation5 + $0x4] sm:$0xf]
    %v2170 = vld [vmem:[#allocation5 + $0x8] sm:$0xf]
    %v2171 = vld [vmem:[#allocation5 + $0xc] sm:$0xf]
    %v2172 = vld [vmem:[#allocation5 + $0x10] sm:$0xf]
    %v2173 = vld [vmem:[#allocation5 + $0x14] sm:$0xf]
    %v2174 = vld [vmem:[#allocation5 + $0x18] sm:$0xf]
    %v2175 = vld [vmem:[#allocation5 + $0x1c] sm:$0xf]
    %v2176 = vld [vmem:[#allocation5 + $0x20] sm:$0xf]
    %v2177 = vld [vmem:[#allocation5 + $0x24] sm:$0xf]
    %v2178 = vld [vmem:[#allocation5 + $0x28] sm:$0xf]
    %v2179 = vld [vmem:[#allocation5 + $0x2c] sm:$0xf]
    %v2180 = vld [vmem:[#allocation5 + $0x30] sm:$0xf]
    %v2181 = vld [vmem:[#allocation5 + $0x34] sm:$0xf]
    %v2182 = vld [vmem:[#allocation5 + $0x38] sm:$0xf]
    %v2183 = vld [vmem:[#allocation5 + $0x3c] sm:$0xf]
    %v2184 = vld [vmem:[#allocation5 + $0x40] sm:$0xf]
    %v2185 = vld [vmem:[#allocation5 + $0x44] sm:$0xf]
    %v2186 = vld [vmem:[#allocation5 + $0x48] sm:$0xf]
    %v2187 = vld [vmem:[#allocation5 + $0x4c] sm:$0xf]
    %v2188 = vld [vmem:[#allocation5 + $0x50] sm:$0xf]
    %v2189 = vld [vmem:[#allocation5 + $0x54] sm:$0xf]
    %v2190 = vld [vmem:[#allocation5 + $0x58] sm:$0xf]
    %v2191 = vld [vmem:[#allocation5 + $0x5c] sm:$0xf]
    %v2192 = vld [vmem:[#allocation5 + $0x60] sm:$0xf]
    %v2193 = vld [vmem:[#allocation5 + $0x64] sm:$0xf]
    %v2194 = vld [vmem:[#allocation5 + $0x68] sm:$0xf]
    %v2195 = vld [vmem:[#allocation5 + $0x6c] sm:$0xf]
    %v2196 = vld [vmem:[#allocation5 + $0x70] sm:$0xf]
    %v2197 = vld [vmem:[#allocation5 + $0x74] sm:$0xf]
    %v2198 = vld [vmem:[#allocation5 + $0x78] sm:$0xf]
    %v2199 = vld [vmem:[#allocation5 + $0x7c] sm:$0xf]
    %v2200 = vld [vmem:[#allocation5 + $0x80] sm:$0xf]
    %v2201 = vld [vmem:[#allocation5 + $0x84] sm:$0xf]
    %v2202 = vld [vmem:[#allocation5 + $0x88] sm:$0xf]
    %v2203 = vld [vmem:[#allocation5 + $0x8c] sm:$0xf]
    %v2204 = vld [vmem:[#allocation5 + $0x90] sm:$0xf]
    %v2205 = vld [vmem:[#allocation5 + $0x94] sm:$0xf]
    %v2206 = vld [vmem:[#allocation5 + $0x98] sm:$0xf]
    %v2207 = vld [vmem:[#allocation5 + $0x9c] sm:$0xf]
    %v2208 = vld [vmem:[#allocation5 + $0xa0] sm:$0xf]
    %v2209 = vld [vmem:[#allocation5 + $0xa4] sm:$0xf]
    %v2210 = vld [vmem:[#allocation5 + $0xa8] sm:$0xf]
    %v2211 = vld [vmem:[#allocation5 + $0xac] sm:$0xf]
    %v2212 = vld [vmem:[#allocation5 + $0xb0] sm:$0xf]
    %v2213 = vld [vmem:[#allocation5 + $0xb4] sm:$0xf]
    %v2214 = vld [vmem:[#allocation5 + $0xb8] sm:$0xf]
    %v2215 = vld [vmem:[#allocation5 + $0xbc] sm:$0xf]
    %v2216 = vld [vmem:[#allocation5 + $0xc0] sm:$0xf]
    %v2217 = vld [vmem:[#allocation5 + $0xc4] sm:$0xf]
    %v2218 = vld [vmem:[#allocation5 + $0xc8] sm:$0xf]
    %v2219 = vld [vmem:[#allocation5 + $0xcc] sm:$0xf]
    %v2220 = vld [vmem:[#allocation5 + $0xd0] sm:$0xf]
    %v2221 = vld [vmem:[#allocation5 + $0xd4] sm:$0xf]
    %v2222 = vld [vmem:[#allocation5 + $0xd8] sm:$0xf]
    %v2223 = vld [vmem:[#allocation5 + $0xdc] sm:$0xf]
    %v2224 = vld [vmem:[#allocation5 + $0xe0] sm:$0xf]
    %v2225 = vld [vmem:[#allocation5 + $0xe4] sm:$0xf]
    %v2226 = vld [vmem:[#allocation5 + $0xe8] sm:$0xf]
    %v2227 = vld [vmem:[#allocation5 + $0xec] sm:$0xf]
    %v2228 = vld [vmem:[#allocation5 + $0xf0] sm:$0xf]
    %v2229 = vld [vmem:[#allocation5 + $0xf4] sm:$0xf]
    %v2230 = vld [vmem:[#allocation5 + $0xf8] sm:$0xf]
    %v2231 = vld [vmem:[#allocation5 + $0xfc] sm:$0xf]
    %v2232 = vld [vmem:[#allocation5 + $0x100] sm:$0xf]
    %v2233 = vld [vmem:[#allocation5 + $0x104] sm:$0xf]
    %v2234 = vld [vmem:[#allocation5 + $0x108] sm:$0xf]
    %v2235 = vld [vmem:[#allocation5 + $0x10c] sm:$0xf]
    %v2236 = vld [vmem:[#allocation5 + $0x110] sm:$0xf]
    %v2237 = vld [vmem:[#allocation5 + $0x114] sm:$0xf]
    %v2238 = vld [vmem:[#allocation5 + $0x118] sm:$0xf]
    %v2239 = vld [vmem:[#allocation5 + $0x11c] sm:$0xf]
    %v2240 = vld [vmem:[#allocation5 + $0x120] sm:$0xf]
    %v2241 = vld [vmem:[#allocation5 + $0x124] sm:$0xf]
    %v2242 = vld [vmem:[#allocation5 + $0x128] sm:$0xf]
    %v2243 = vld [vmem:[#allocation5 + $0x12c] sm:$0xf]
    %v2244 = vld [vmem:[#allocation5 + $0x130] sm:$0xf]
    %v2245 = vld [vmem:[#allocation5 + $0x134] sm:$0xf]
    %v2246 = vld [vmem:[#allocation5 + $0x138] sm:$0xf]
    %v2247 = vld [vmem:[#allocation5 + $0x13c] sm:$0xf]
    %v2248 = vld [vmem:[#allocation5 + $0x140] sm:$0xf]
    %v2249 = vld [vmem:[#allocation5 + $0x144] sm:$0xf]
    %v2250 = vld [vmem:[#allocation5 + $0x148] sm:$0xf]
    %v2251 = vld [vmem:[#allocation5 + $0x14c] sm:$0xf]
    %v2252 = vld [vmem:[#allocation5 + $0x150] sm:$0xf]
    %v2253 = vld [vmem:[#allocation5 + $0x154] sm:$0xf]
    %v2254 = vld [vmem:[#allocation5 + $0x158] sm:$0xf]
    %v2255 = vld [vmem:[#allocation5 + $0x15c] sm:$0xf]
    %v2256 = vld [vmem:[#allocation5 + $0x160] sm:$0xf]
    %v2257 = vld [vmem:[#allocation5 + $0x164] sm:$0xf]
    %v2258 = vld [vmem:[#allocation5 + $0x168] sm:$0xf]
    %v2259 = vld [vmem:[#allocation5 + $0x16c] sm:$0xf]
    %v2260 = vld [vmem:[#allocation5 + $0x170] sm:$0xf]
    %v2261 = vld [vmem:[#allocation5 + $0x174] sm:$0xf]
    %v2262 = vld [vmem:[#allocation5 + $0x178] sm:$0xf]
    %v2263 = vld [vmem:[#allocation5 + $0x17c] sm:$0xf]
    %v2264 = vld [vmem:[#allocation5 + $0x180] sm:$0xf]
    %v2265 = vld [vmem:[#allocation5 + $0x184] sm:$0xf]
    %v2266 = vld [vmem:[#allocation5 + $0x188] sm:$0xf]
    %v2267 = vld [vmem:[#allocation5 + $0x18c] sm:$0xf]
    %v2268 = vld [vmem:[#allocation5 + $0x190] sm:$0xf]
    %v2269 = vld [vmem:[#allocation5 + $0x194] sm:$0xf]
    %v2270 = vld [vmem:[#allocation5 + $0x198] sm:$0xf]
    %v2271 = vld [vmem:[#allocation5 + $0x19c] sm:$0xf]
    %v2272 = vld [vmem:[#allocation5 + $0x1a0] sm:$0xf]
    %v2273 = vld [vmem:[#allocation5 + $0x1a4] sm:$0xf]
    %v2274 = vld [vmem:[#allocation5 + $0x1a8] sm:$0xf]
    %v2275 = vld [vmem:[#allocation5 + $0x1ac] sm:$0xf]
    %v2276 = vld [vmem:[#allocation5 + $0x1b0] sm:$0xf]
    %v2277 = vld [vmem:[#allocation5 + $0x1b4] sm:$0xf]
    %v2278 = vld [vmem:[#allocation5 + $0x1b8] sm:$0xf]
    %v2279 = vld [vmem:[#allocation5 + $0x1bc] sm:$0xf]
    %v2280 = vld [vmem:[#allocation5 + $0x1c0] sm:$0xf]
    %v2281 = vld [vmem:[#allocation5 + $0x1c4] sm:$0xf]
    %v2282 = vld [vmem:[#allocation5 + $0x1c8] sm:$0xf]
    %v2283 = vld [vmem:[#allocation5 + $0x1cc] sm:$0xf]
    %v2284 = vld [vmem:[#allocation5 + $0x1d0] sm:$0xf]
    %v2285 = vld [vmem:[#allocation5 + $0x1d4] sm:$0xf]
    %v2286 = vld [vmem:[#allocation5 + $0x1d8] sm:$0xf]
    %v2287 = vld [vmem:[#allocation5 + $0x1dc] sm:$0xf]
    %v2288 = vld [vmem:[#allocation5 + $0x1e0] sm:$0xf]
    %v2289 = vld [vmem:[#allocation5 + $0x1e4] sm:$0xf]
    %v2290 = vld [vmem:[#allocation5 + $0x1e8] sm:$0xf]
    %v2291 = vld [vmem:[#allocation5 + $0x1ec] sm:$0xf]
    %v2292 = vld [vmem:[#allocation5 + $0x1f0] sm:$0xf]
    %v2293 = vld [vmem:[#allocation5 + $0x1f4] sm:$0xf]
    %v2294 = vld [vmem:[#allocation5 + $0x1f8] sm:$0xf]
    %v2295 = vld [vmem:[#allocation5 + $0x1fc] sm:$0xf]
    %v2296 = vld [vmem:[#allocation5 + $0x200] sm:$0xf]
    %v2297 = vld [vmem:[#allocation5 + $0x204] sm:$0xf]
    %v2298 = vld [vmem:[#allocation5 + $0x208] sm:$0xf]
    %v2299 = vld [vmem:[#allocation5 + $0x20c] sm:$0xf]
    %v2300 = vld [vmem:[#allocation5 + $0x210] sm:$0xf]
    %v2301 = vld [vmem:[#allocation5 + $0x214] sm:$0xf]
    %v2302 = vld [vmem:[#allocation5 + $0x218] sm:$0xf]
    %v2303 = vld [vmem:[#allocation5 + $0x21c] sm:$0xf]
    %v2304 = vld [vmem:[#allocation5 + $0x220] sm:$0xf]
    %v2305 = vld [vmem:[#allocation5 + $0x224] sm:$0xf]
    %v2306 = vld [vmem:[#allocation5 + $0x228] sm:$0xf]
    %v2307 = vld [vmem:[#allocation5 + $0x22c] sm:$0xf]
    %v2308 = vld [vmem:[#allocation5 + $0x230] sm:$0xf]
    %v2309 = vld [vmem:[#allocation5 + $0x234] sm:$0xf]
    %v2310 = vld [vmem:[#allocation5 + $0x238] sm:$0xf]
    %v2311 = vld [vmem:[#allocation5 + $0x23c] sm:$0xf]
    %v2392 = vunpack.c.l.b16 %v2088
    %v2393 = vunpack.c.h.b16 %v2088
    %v2394 = vunpack.c.l.b16 %v2089
    %v2395 = vunpack.c.h.b16 %v2089
    %v2396 = vunpack.c.l.b16 %v2090
    %v2397 = vunpack.c.h.b16 %v2090
    %v2398 = vunpack.c.l.b16 %v2091
    %v2399 = vunpack.c.h.b16 %v2091
    %v2400 = vunpack.c.l.b16 %v2092
    %v2401 = vunpack.c.l.b16 %v2093
    %v2402 = vunpack.c.h.b16 %v2093
    %v2403 = vunpack.c.l.b16 %v2094
    %v2404 = vunpack.c.h.b16 %v2094
    %v2405 = vunpack.c.l.b16 %v2095
    %v2406 = vunpack.c.h.b16 %v2095
    %v2407 = vunpack.c.l.b16 %v2096
    %v2408 = vunpack.c.h.b16 %v2096
    %v2409 = vunpack.c.l.b16 %v2097
    %v2410 = vunpack.c.l.b16 %v2098
    %v2411 = vunpack.c.h.b16 %v2098
    %v2412 = vunpack.c.l.b16 %v2099
    %v2413 = vunpack.c.h.b16 %v2099
    %v2414 = vunpack.c.l.b16 %v2100
    %v2415 = vunpack.c.h.b16 %v2100
    %v2416 = vunpack.c.l.b16 %v2101
    %v2417 = vunpack.c.h.b16 %v2101
    %v2418 = vunpack.c.l.b16 %v2102
    %v2419 = vunpack.c.l.b16 %v2103
    %v2420 = vunpack.c.h.b16 %v2103
    %v2421 = vunpack.c.l.b16 %v2104
    %v2422 = vunpack.c.h.b16 %v2104
    %v2423 = vunpack.c.l.b16 %v2105
    %v2424 = vunpack.c.h.b16 %v2105
    %v2425 = vunpack.c.l.b16 %v2106
    %v2426 = vunpack.c.h.b16 %v2106
    %v2427 = vunpack.c.l.b16 %v2107
    %v2428 = vunpack.c.l.b16 %v2108
    %v2429 = vunpack.c.h.b16 %v2108
    %v2430 = vunpack.c.l.b16 %v2109
    %v2431 = vunpack.c.h.b16 %v2109
    %v2432 = vunpack.c.l.b16 %v2110
    %v2433 = vunpack.c.h.b16 %v2110
    %v2434 = vunpack.c.l.b16 %v2111
    %v2435 = vunpack.c.h.b16 %v2111
    %v2436 = vunpack.c.l.b16 %v2112
    %v2437 = vunpack.c.l.b16 %v2113
    %v2438 = vunpack.c.h.b16 %v2113
    %v2439 = vunpack.c.l.b16 %v2114
    %v2440 = vunpack.c.h.b16 %v2114
    %v2441 = vunpack.c.l.b16 %v2115
    %v2442 = vunpack.c.h.b16 %v2115
    %v2443 = vunpack.c.l.b16 %v2116
    %v2444 = vunpack.c.h.b16 %v2116
    %v2445 = vunpack.c.l.b16 %v2117
    %v2446 = vunpack.c.l.b16 %v2118
    %v2447 = vunpack.c.h.b16 %v2118
    %v2448 = vunpack.c.l.b16 %v2119
    %v2449 = vunpack.c.h.b16 %v2119
    %v2450 = vunpack.c.l.b16 %v2120
    %v2451 = vunpack.c.h.b16 %v2120
    %v2452 = vunpack.c.l.b16 %v2121
    %v2453 = vunpack.c.h.b16 %v2121
    %v2454 = vunpack.c.l.b16 %v2122
    %v2455 = vunpack.c.l.b16 %v2123
    %v2456 = vunpack.c.h.b16 %v2123
    %v2457 = vunpack.c.l.b16 %v2124
    %v2458 = vunpack.c.h.b16 %v2124
    %v2459 = vunpack.c.l.b16 %v2125
    %v2460 = vunpack.c.h.b16 %v2125
    %v2461 = vunpack.c.l.b16 %v2126
    %v2462 = vunpack.c.h.b16 %v2126
    %v2463 = vunpack.c.l.b16 %v2127
    %v2464 = vunpack.c.l.b16 %v2128
    %v2465 = vunpack.c.h.b16 %v2128
    %v2466 = vunpack.c.l.b16 %v2129
    %v2467 = vunpack.c.h.b16 %v2129
    %v2468 = vunpack.c.l.b16 %v2130
    %v2469 = vunpack.c.h.b16 %v2130
    %v2470 = vunpack.c.l.b16 %v2131
    %v2471 = vunpack.c.h.b16 %v2131
    %v2472 = vunpack.c.l.b16 %v2132
    %v2473 = vunpack.c.l.b16 %v2133
    %v2474 = vunpack.c.h.b16 %v2133
    %v2475 = vunpack.c.l.b16 %v2134
    %v2476 = vunpack.c.h.b16 %v2134
    %v2477 = vunpack.c.l.b16 %v2135
    %v2478 = vunpack.c.h.b16 %v2135
    %v2479 = vunpack.c.l.b16 %v2136
    %v2480 = vunpack.c.h.b16 %v2136
    %v2481 = vunpack.c.l.b16 %v2137
    %v2482 = vunpack.c.l.b16 %v2138
    %v2483 = vunpack.c.h.b16 %v2138
    %v2484 = vunpack.c.l.b16 %v2139
    %v2485 = vunpack.c.h.b16 %v2139
    %v2486 = vunpack.c.l.b16 %v2140
    %v2487 = vunpack.c.h.b16 %v2140
    %v2488 = vunpack.c.l.b16 %v2141
    %v2489 = vunpack.c.h.b16 %v2141
    %v2490 = vunpack.c.l.b16 %v2142
    %v2491 = vunpack.c.l.b16 %v2143
    %v2492 = vunpack.c.h.b16 %v2143
    %v2493 = vunpack.c.l.b16 %v2144
    %v2494 = vunpack.c.h.b16 %v2144
    %v2495 = vunpack.c.l.b16 %v2145
    %v2496 = vunpack.c.h.b16 %v2145
    %v2497 = vunpack.c.l.b16 %v2146
    %v2498 = vunpack.c.h.b16 %v2146
    %v2499 = vunpack.c.l.b16 %v2147
    %v2500 = vunpack.c.l.b16 %v2148
    %v2501 = vunpack.c.h.b16 %v2148
    %v2502 = vunpack.c.l.b16 %v2149
    %v2503 = vunpack.c.h.b16 %v2149
    %v2504 = vunpack.c.l.b16 %v2150
    %v2505 = vunpack.c.h.b16 %v2150
    %v2506 = vunpack.c.l.b16 %v2151
    %v2507 = vunpack.c.h.b16 %v2151
    %v2508 = vunpack.c.l.b16 %v2152
    %v2509 = vunpack.c.l.b16 %v2153
    %v2510 = vunpack.c.h.b16 %v2153
    %v2511 = vunpack.c.l.b16 %v2154
    %v2512 = vunpack.c.h.b16 %v2154
    %v2513 = vunpack.c.l.b16 %v2155
    %v2514 = vunpack.c.h.b16 %v2155
    %v2515 = vunpack.c.l.b16 %v2156
    %v2516 = vunpack.c.h.b16 %v2156
    %v2517 = vunpack.c.l.b16 %v2157
    %v2518 = vunpack.c.l.b16 %v2158
    %v2519 = vunpack.c.h.b16 %v2158
    %v2520 = vunpack.c.l.b16 %v2159
    %v2521 = vunpack.c.h.b16 %v2159
    %v2522 = vunpack.c.l.b16 %v2160
    %v2523 = vunpack.c.h.b16 %v2160
    %v2524 = vunpack.c.l.b16 %v2161
    %v2525 = vunpack.c.h.b16 %v2161
    %v2526 = vunpack.c.l.b16 %v2162
    %v2527 = vunpack.c.l.b16 %v2163
    %v2528 = vunpack.c.h.b16 %v2163
    %v2529 = vunpack.c.l.b16 %v2164
    %v2530 = vunpack.c.h.b16 %v2164
    %v2531 = vunpack.c.l.b16 %v2165
    %v2532 = vunpack.c.h.b16 %v2165
    %v2533 = vunpack.c.l.b16 %v2166
    %v2534 = vunpack.c.h.b16 %v2166
    %v2535 = vunpack.c.l.b16 %v2167
    %v2536 = vpack.c.b16 %v2401, %v2392
    %v2537 = vpack.c.b16 %v2402, %v2393
    %v2538 = vpack.c.b16 %v2403, %v2394
    %v2539 = vpack.c.b16 %v2404, %v2395
    %v2540 = vpack.c.b16 %v2405, %v2396
    %v2541 = vpack.c.b16 %v2406, %v2397
    %v2542 = vpack.c.b16 %v2407, %v2398
    %v2543 = vpack.c.b16 %v2408, %v2399
    %v2544 = vpack.c.b16 %v2409, %v2400
    %v2545 = vpack.c.b16 %v2419, %v2410
    %v2546 = vpack.c.b16 %v2420, %v2411
    %v2547 = vpack.c.b16 %v2421, %v2412
    %v2548 = vpack.c.b16 %v2422, %v2413
    %v2549 = vpack.c.b16 %v2423, %v2414
    %v2550 = vpack.c.b16 %v2424, %v2415
    %v2551 = vpack.c.b16 %v2425, %v2416
    %v2552 = vpack.c.b16 %v2426, %v2417
    %v2553 = vpack.c.b16 %v2427, %v2418
    %v2554 = vpack.c.b16 %v2437, %v2428
    %v2555 = vpack.c.b16 %v2438, %v2429
    %v2556 = vpack.c.b16 %v2439, %v2430
    %v2557 = vpack.c.b16 %v2440, %v2431
    %v2558 = vpack.c.b16 %v2441, %v2432
    %v2559 = vpack.c.b16 %v2442, %v2433
    %v2560 = vpack.c.b16 %v2443, %v2434
    %v2561 = vpack.c.b16 %v2444, %v2435
    %v2562 = vpack.c.b16 %v2445, %v2436
    %v2563 = vpack.c.b16 %v2455, %v2446
    %v2564 = vpack.c.b16 %v2456, %v2447
    %v2565 = vpack.c.b16 %v2457, %v2448
    %v2566 = vpack.c.b16 %v2458, %v2449
    %v2567 = vpack.c.b16 %v2459, %v2450
    %v2568 = vpack.c.b16 %v2460, %v2451
    %v2569 = vpack.c.b16 %v2461, %v2452
    %v2570 = vpack.c.b16 %v2462, %v2453
    %v2571 = vpack.c.b16 %v2463, %v2454
    %v2572 = vpack.c.b16 %v2473, %v2464
    %v2573 = vpack.c.b16 %v2474, %v2465
    %v2574 = vpack.c.b16 %v2475, %v2466
    %v2575 = vpack.c.b16 %v2476, %v2467
    %v2576 = vpack.c.b16 %v2477, %v2468
    %v2577 = vpack.c.b16 %v2478, %v2469
    %v2578 = vpack.c.b16 %v2479, %v2470
    %v2579 = vpack.c.b16 %v2480, %v2471
    %v2580 = vpack.c.b16 %v2481, %v2472
    %v2581 = vpack.c.b16 %v2491, %v2482
    %v2582 = vpack.c.b16 %v2492, %v2483
    %v2583 = vpack.c.b16 %v2493, %v2484
    %v2584 = vpack.c.b16 %v2494, %v2485
    %v2585 = vpack.c.b16 %v2495, %v2486
    %v2586 = vpack.c.b16 %v2496, %v2487
    %v2587 = vpack.c.b16 %v2497, %v2488
    %v2588 = vpack.c.b16 %v2498, %v2489
    %v2589 = vpack.c.b16 %v2499, %v2490
    %v2590 = vpack.c.b16 %v2509, %v2500
    %v2591 = vpack.c.b16 %v2510, %v2501
    %v2592 = vpack.c.b16 %v2511, %v2502
    %v2593 = vpack.c.b16 %v2512, %v2503
    %v2594 = vpack.c.b16 %v2513, %v2504
    %v2595 = vpack.c.b16 %v2514, %v2505
    %v2596 = vpack.c.b16 %v2515, %v2506
    %v2597 = vpack.c.b16 %v2516, %v2507
    %v2598 = vpack.c.b16 %v2517, %v2508
    %v2599 = vpack.c.b16 %v2527, %v2518
    %v2600 = vpack.c.b16 %v2528, %v2519
    %v2601 = vpack.c.b16 %v2529, %v2520
    %v2602 = vpack.c.b16 %v2530, %v2521
    %v2603 = vpack.c.b16 %v2531, %v2522
    %v2604 = vpack.c.b16 %v2532, %v2523
    %v2605 = vpack.c.b16 %v2533, %v2524
    %v2606 = vpack.c.b16 %v2534, %v2525
    %v2607 = vpack.c.b16 %v2535, %v2526
    %v2824 = vunpack.c.l.b16 %v2168
    %v2825 = vunpack.c.l.b16 %v2169
    %v2826 = vunpack.c.l.b16 %v2170
    %v2827 = vunpack.c.l.b16 %v2171
    %v2828 = vunpack.c.l.b16 %v2172
    %v2829 = vunpack.c.l.b16 %v2173
    %v2830 = vunpack.c.l.b16 %v2174
    %v2831 = vunpack.c.l.b16 %v2175
    %v2832 = vunpack.c.l.b16 %v2176
    %v2833 = vunpack.c.l.b16 %v2177
    %v2834 = vunpack.c.l.b16 %v2178
    %v2835 = vunpack.c.l.b16 %v2179
    %v2836 = vunpack.c.l.b16 %v2180
    %v2837 = vunpack.c.l.b16 %v2181
    %v2838 = vunpack.c.l.b16 %v2182
    %v2839 = vunpack.c.l.b16 %v2183
    %v2840 = vunpack.c.l.b16 %v2184
    %v2841 = vunpack.c.l.b16 %v2185
    %v2842 = vunpack.c.l.b16 %v2186
    %v2843 = vunpack.c.l.b16 %v2187
    %v2844 = vunpack.c.l.b16 %v2188
    %v2845 = vunpack.c.l.b16 %v2189
    %v2846 = vunpack.c.l.b16 %v2190
    %v2847 = vunpack.c.l.b16 %v2191
    %v2848 = vunpack.c.l.b16 %v2192
    %v2849 = vunpack.c.l.b16 %v2193
    %v2850 = vunpack.c.l.b16 %v2194
    %v2851 = vunpack.c.l.b16 %v2195
    %v2852 = vunpack.c.l.b16 %v2196
    %v2853 = vunpack.c.l.b16 %v2197
    %v2854 = vunpack.c.l.b16 %v2198
    %v2855 = vunpack.c.l.b16 %v2199
    %v2856 = vunpack.c.l.b16 %v2200
    %v2857 = vunpack.c.l.b16 %v2201
    %v2858 = vunpack.c.l.b16 %v2202
    %v2859 = vunpack.c.l.b16 %v2203
    %v2860 = vunpack.c.l.b16 %v2204
    %v2861 = vunpack.c.l.b16 %v2205
    %v2862 = vunpack.c.l.b16 %v2206
    %v2863 = vunpack.c.l.b16 %v2207
    %v2864 = vunpack.c.l.b16 %v2208
    %v2865 = vunpack.c.l.b16 %v2209
    %v2866 = vunpack.c.l.b16 %v2210
    %v2867 = vunpack.c.l.b16 %v2211
    %v2868 = vunpack.c.l.b16 %v2212
    %v2869 = vunpack.c.l.b16 %v2213
    %v2870 = vunpack.c.l.b16 %v2214
    %v2871 = vunpack.c.l.b16 %v2215
    %v2872 = vunpack.c.l.b16 %v2216
    %v2873 = vunpack.c.l.b16 %v2217
    %v2874 = vunpack.c.l.b16 %v2218
    %v2875 = vunpack.c.l.b16 %v2219
    %v2876 = vunpack.c.l.b16 %v2220
    %v2877 = vunpack.c.l.b16 %v2221
    %v2878 = vunpack.c.l.b16 %v2222
    %v2879 = vunpack.c.l.b16 %v2223
    %v2880 = vunpack.c.l.b16 %v2224
    %v2881 = vunpack.c.l.b16 %v2225
    %v2882 = vunpack.c.l.b16 %v2226
    %v2883 = vunpack.c.l.b16 %v2227
    %v2884 = vunpack.c.l.b16 %v2228
    %v2885 = vunpack.c.l.b16 %v2229
    %v2886 = vunpack.c.l.b16 %v2230
    %v2887 = vunpack.c.l.b16 %v2231
    %v2888 = vunpack.c.l.b16 %v2232
    %v2889 = vunpack.c.l.b16 %v2233
    %v2890 = vunpack.c.l.b16 %v2234
    %v2891 = vunpack.c.l.b16 %v2235
    %v2892 = vunpack.c.l.b16 %v2236
    %v2893 = vunpack.c.l.b16 %v2237
    %v2894 = vunpack.c.l.b16 %v2238
    %v2895 = vunpack.c.l.b16 %v2239
    %v2896 = vunpack.c.l.b16 %v2240
    %v2897 = vunpack.c.l.b16 %v2241
    %v2898 = vunpack.c.l.b16 %v2242
    %v2899 = vunpack.c.l.b16 %v2243
    %v2900 = vunpack.c.l.b16 %v2244
    %v2901 = vunpack.c.l.b16 %v2245
    %v2902 = vunpack.c.l.b16 %v2246
    %v2903 = vunpack.c.l.b16 %v2247
    %v2904 = vunpack.c.l.b16 %v2248
    %v2905 = vunpack.c.l.b16 %v2249
    %v2906 = vunpack.c.l.b16 %v2250
    %v2907 = vunpack.c.l.b16 %v2251
    %v2908 = vunpack.c.l.b16 %v2252
    %v2909 = vunpack.c.l.b16 %v2253
    %v2910 = vunpack.c.l.b16 %v2254
    %v2911 = vunpack.c.l.b16 %v2255
    %v2912 = vunpack.c.l.b16 %v2256
    %v2913 = vunpack.c.l.b16 %v2257
    %v2914 = vunpack.c.l.b16 %v2258
    %v2915 = vunpack.c.l.b16 %v2259
    %v2916 = vunpack.c.l.b16 %v2260
    %v2917 = vunpack.c.l.b16 %v2261
    %v2918 = vunpack.c.l.b16 %v2262
    %v2919 = vunpack.c.l.b16 %v2263
    %v2920 = vunpack.c.l.b16 %v2264
    %v2921 = vunpack.c.l.b16 %v2265
    %v2922 = vunpack.c.l.b16 %v2266
    %v2923 = vunpack.c.l.b16 %v2267
    %v2924 = vunpack.c.l.b16 %v2268
    %v2925 = vunpack.c.l.b16 %v2269
    %v2926 = vunpack.c.l.b16 %v2270
    %v2927 = vunpack.c.l.b16 %v2271
    %v2928 = vunpack.c.l.b16 %v2272
    %v2929 = vunpack.c.l.b16 %v2273
    %v2930 = vunpack.c.l.b16 %v2274
    %v2931 = vunpack.c.l.b16 %v2275
    %v2932 = vunpack.c.l.b16 %v2276
    %v2933 = vunpack.c.l.b16 %v2277
    %v2934 = vunpack.c.l.b16 %v2278
    %v2935 = vunpack.c.l.b16 %v2279
    %v2936 = vunpack.c.l.b16 %v2280
    %v2937 = vunpack.c.l.b16 %v2281
    %v2938 = vunpack.c.l.b16 %v2282
    %v2939 = vunpack.c.l.b16 %v2283
    %v2940 = vunpack.c.l.b16 %v2284
    %v2941 = vunpack.c.l.b16 %v2285
    %v2942 = vunpack.c.l.b16 %v2286
    %v2943 = vunpack.c.l.b16 %v2287
    %v2944 = vunpack.c.l.b16 %v2288
    %v2945 = vunpack.c.l.b16 %v2289
    %v2946 = vunpack.c.l.b16 %v2290
    %v2947 = vunpack.c.l.b16 %v2291
    %v2948 = vunpack.c.l.b16 %v2292
    %v2949 = vunpack.c.l.b16 %v2293
    %v2950 = vunpack.c.l.b16 %v2294
    %v2951 = vunpack.c.l.b16 %v2295
    %v2952 = vunpack.c.l.b16 %v2296
    %v2953 = vunpack.c.l.b16 %v2297
    %v2954 = vunpack.c.l.b16 %v2298
    %v2955 = vunpack.c.l.b16 %v2299
    %v2956 = vunpack.c.l.b16 %v2300
    %v2957 = vunpack.c.l.b16 %v2301
    %v2958 = vunpack.c.l.b16 %v2302
    %v2959 = vunpack.c.l.b16 %v2303
    %v2960 = vunpack.c.l.b16 %v2304
    %v2961 = vunpack.c.l.b16 %v2305
    %v2962 = vunpack.c.l.b16 %v2306
    %v2963 = vunpack.c.l.b16 %v2307
    %v2964 = vunpack.c.l.b16 %v2308
    %v2965 = vunpack.c.l.b16 %v2309
    %v2966 = vunpack.c.l.b16 %v2310
    %v2967 = vunpack.c.l.b16 %v2311
    %v2968 = vpack.c.b16 %v2825, %v2824
    %v2969 = vpack.c.b16 %v2827, %v2826
    %v2970 = vpack.c.b16 %v2829, %v2828
    %v2971 = vpack.c.b16 %v2831, %v2830
    %v2972 = vpack.c.b16 %v2833, %v2832
    %v2973 = vpack.c.b16 %v2835, %v2834
    %v2974 = vpack.c.b16 %v2837, %v2836
    %v2975 = vpack.c.b16 %v2839, %v2838
    %v2976 = vpack.c.b16 %v2841, %v2840
    %v2977 = vpack.c.b16 %v2843, %v2842
    %v2978 = vpack.c.b16 %v2845, %v2844
    %v2979 = vpack.c.b16 %v2847, %v2846
    %v2980 = vpack.c.b16 %v2849, %v2848
    %v2981 = vpack.c.b16 %v2851, %v2850
    %v2982 = vpack.c.b16 %v2853, %v2852
    %v2983 = vpack.c.b16 %v2855, %v2854
    %v2984 = vpack.c.b16 %v2857, %v2856
    %v2985 = vpack.c.b16 %v2859, %v2858
    %v2986 = vpack.c.b16 %v2861, %v2860
    %v2987 = vpack.c.b16 %v2863, %v2862
    %v2988 = vpack.c.b16 %v2865, %v2864
    %v2989 = vpack.c.b16 %v2867, %v2866
    %v2990 = vpack.c.b16 %v2869, %v2868
    %v2991 = vpack.c.b16 %v2871, %v2870
    %v2992 = vpack.c.b16 %v2873, %v2872
    %v2993 = vpack.c.b16 %v2875, %v2874
    %v2994 = vpack.c.b16 %v2877, %v2876
    %v2995 = vpack.c.b16 %v2879, %v2878
    %v2996 = vpack.c.b16 %v2881, %v2880
    %v2997 = vpack.c.b16 %v2883, %v2882
    %v2998 = vpack.c.b16 %v2885, %v2884
    %v2999 = vpack.c.b16 %v2887, %v2886
    %v3000 = vpack.c.b16 %v2889, %v2888
    %v3001 = vpack.c.b16 %v2891, %v2890
    %v3002 = vpack.c.b16 %v2893, %v2892
    %v3003 = vpack.c.b16 %v2895, %v2894
    %v3004 = vpack.c.b16 %v2897, %v2896
    %v3005 = vpack.c.b16 %v2899, %v2898
    %v3006 = vpack.c.b16 %v2901, %v2900
    %v3007 = vpack.c.b16 %v2903, %v2902
    %v3008 = vpack.c.b16 %v2905, %v2904
    %v3009 = vpack.c.b16 %v2907, %v2906
    %v3010 = vpack.c.b16 %v2909, %v2908
    %v3011 = vpack.c.b16 %v2911, %v2910
    %v3012 = vpack.c.b16 %v2913, %v2912
    %v3013 = vpack.c.b16 %v2915, %v2914
    %v3014 = vpack.c.b16 %v2917, %v2916
    %v3015 = vpack.c.b16 %v2919, %v2918
    %v3016 = vpack.c.b16 %v2921, %v2920
    %v3017 = vpack.c.b16 %v2923, %v2922
    %v3018 = vpack.c.b16 %v2925, %v2924
    %v3019 = vpack.c.b16 %v2927, %v2926
    %v3020 = vpack.c.b16 %v2929, %v2928
    %v3021 = vpack.c.b16 %v2931, %v2930
    %v3022 = vpack.c.b16 %v2933, %v2932
    %v3023 = vpack.c.b16 %v2935, %v2934
    %v3024 = vpack.c.b16 %v2937, %v2936
    %v3025 = vpack.c.b16 %v2939, %v2938
    %v3026 = vpack.c.b16 %v2941, %v2940
    %v3027 = vpack.c.b16 %v2943, %v2942
    %v3028 = vpack.c.b16 %v2945, %v2944
    %v3029 = vpack.c.b16 %v2947, %v2946
    %v3030 = vpack.c.b16 %v2949, %v2948
    %v3031 = vpack.c.b16 %v2951, %v2950
    %v3032 = vpack.c.b16 %v2953, %v2952
    %v3033 = vpack.c.b16 %v2955, %v2954
    %v3034 = vpack.c.b16 %v2957, %v2956
    %v3035 = vpack.c.b16 %v2959, %v2958
    %v3036 = vpack.c.b16 %v2961, %v2960
    %v3037 = vpack.c.b16 %v2963, %v2962
    %v3038 = vpack.c.b16 %v2965, %v2964
    %v3039 = vpack.c.b16 %v2967, %v2966
    %3112 = vmatpush.bf16.msra.mxu0 %v2975
    %3113 = vmatpush.bf16.msra.mxu0 %v2974
    %3114 = vmatpush.bf16.msra.mxu0 %v2973
    %3115 = vmatpush.bf16.msra.mxu0 %v2972
    %3116 = vmatpush.bf16.msra.mxu0 %v2971
    %3117 = vmatpush.bf16.msra.mxu0 %v2970
    %3118 = vmatpush.bf16.msra.mxu0 %v2969
    %3119 = vmatpush.bf16.msra.mxu0 %v2968
    %3120 = vmatmul.bf16.gmra.mxu0 %v2536
    %v3121 = vpop.f32.mrf.mxu0
    %v3122 = vadd.f32 0.0, %v3121
    %v3123 = vpop.f32.mrf.mxu0
    %v3124 = vadd.f32 0.0, %v3123
    %3125 = vmatmul.bf16.gmra.mxu0 %v2545
    %v3126 = vpop.f32.mrf.mxu0
    %v3127 = vadd.f32 0.0, %v3126
    %v3128 = vpop.f32.mrf.mxu0
    %v3129 = vadd.f32 0.0, %v3128
    %3130 = vmatmul.bf16.gmra.mxu0 %v2554
    %v3131 = vpop.f32.mrf.mxu0
    %v3132 = vadd.f32 0.0, %v3131
    %v3133 = vpop.f32.mrf.mxu0
    %v3134 = vadd.f32 0.0, %v3133
    %3135 = vmatmul.bf16.gmra.mxu0 %v2563
    %v3136 = vpop.f32.mrf.mxu0
    %v3137 = vadd.f32 0.0, %v3136
    %v3138 = vpop.f32.mrf.mxu0
    %v3139 = vadd.f32 0.0, %v3138
    %3140 = vmatmul.bf16.gmra.mxu0 %v2572
    %v3141 = vpop.f32.mrf.mxu0
    %v3142 = vadd.f32 0.0, %v3141
    %v3143 = vpop.f32.mrf.mxu0
    %v3144 = vadd.f32 0.0, %v3143
    %3145 = vmatmul.bf16.gmra.mxu0 %v2581
    %v3146 = vpop.f32.mrf.mxu0
    %v3147 = vadd.f32 0.0, %v3146
    %v3148 = vpop.f32.mrf.mxu0
    %v3149 = vadd.f32 0.0, %v3148
    %3150 = vmatmul.bf16.gmra.mxu0 %v2590
    %v3151 = vpop.f32.mrf.mxu0
    %v3152 = vadd.f32 0.0, %v3151
    %v3153 = vpop.f32.mrf.mxu0
    %v3154 = vadd.f32 0.0, %v3153
    %3155 = vmatmul.bf16.gmra.mxu0 %v2599
    %v3156 = vpop.f32.mrf.mxu0
    %v3157 = vadd.f32 0.0, %v3156
    %v3158 = vpop.f32.mrf.mxu0
    %v3159 = vadd.f32 0.0, %v3158
    %3160 = vdwg.mxu0
    %3161 = vmatpush.bf16.msra.mxu0 %v2983
    %3162 = vmatpush.bf16.msra.mxu0 %v2982
    %3163 = vmatpush.bf16.msra.mxu0 %v2981
    %3164 = vmatpush.bf16.msra.mxu0 %v2980
    %3165 = vmatpush.bf16.msra.mxu0 %v2979
    %3166 = vmatpush.bf16.msra.mxu0 %v2978
    %3167 = vmatpush.bf16.msra.mxu0 %v2977
    %3168 = vmatpush.bf16.msra.mxu0 %v2976
    %3169 = vmatmul.bf16.gmra.mxu0 %v2537
    %v3170 = vpop.f32.mrf.mxu0
    %v3171 = vadd.f32 %v3122, %v3170
    %v3172 = vpop.f32.mrf.mxu0
    %v3173 = vadd.f32 %v3124, %v3172
    %3174 = vmatmul.bf16.gmra.mxu0 %v2546
    %v3175 = vpop.f32.mrf.mxu0
    %v3176 = vadd.f32 %v3127, %v3175
    %v3177 = vpop.f32.mrf.mxu0
    %v3178 = vadd.f32 %v3129, %v3177
    %3179 = vmatmul.bf16.gmra.mxu0 %v2555
    %v3180 = vpop.f32.mrf.mxu0
    %v3181 = vadd.f32 %v3132, %v3180
    %v3182 = vpop.f32.mrf.mxu0
    %v3183 = vadd.f32 %v3134, %v3182
    %3184 = vmatmul.bf16.gmra.mxu0 %v2564
    %v3185 = vpop.f32.mrf.mxu0
    %v3186 = vadd.f32 %v3137, %v3185
    %v3187 = vpop.f32.mrf.mxu0
    %v3188 = vadd.f32 %v3139, %v3187
    %3189 = vmatmul.bf16.gmra.mxu0 %v2573
    %v3190 = vpop.f32.mrf.mxu0
    %v3191 = vadd.f32 %v3142, %v3190
    %v3192 = vpop.f32.mrf.mxu0
    %v3193 = vadd.f32 %v3144, %v3192
    %3194 = vmatmul.bf16.gmra.mxu0 %v2582
    %v3195 = vpop.f32.mrf.mxu0
    %v3196 = vadd.f32 %v3147, %v3195
    %v3197 = vpop.f32.mrf.mxu0
    %v3198 = vadd.f32 %v3149, %v3197
    %3199 = vmatmul.bf16.gmra.mxu0 %v2591
    %v3200 = vpop.f32.mrf.mxu0
    %v3201 = vadd.f32 %v3152, %v3200
    %v3202 = vpop.f32.mrf.mxu0
    %v3203 = vadd.f32 %v3154, %v3202
    %3204 = vmatmul.bf16.gmra.mxu0 %v2600
    %v3205 = vpop.f32.mrf.mxu0
    %v3206 = vadd.f32 %v3157, %v3205
    %v3207 = vpop.f32.mrf.mxu0
    %v3208 = vadd.f32 %v3159, %v3207
    %3209 = vdwg.mxu0
    %3210 = vmatpush.bf16.msra.mxu0 %v2991
    %3211 = vmatpush.bf16.msra.mxu0 %v2990
    %3212 = vmatpush.bf16.msra.mxu0 %v2989
    %3213 = vmatpush.bf16.msra.mxu0 %v2988
    %3214 = vmatpush.bf16.msra.mxu0 %v2987
    %3215 = vmatpush.bf16.msra.mxu0 %v2986
    %3216 = vmatpush.bf16.msra.mxu0 %v2985
    %3217 = vmatpush.bf16.msra.mxu0 %v2984
    %3218 = vmatmul.bf16.gmra.mxu0 %v2538
    %v3219 = vpop.f32.mrf.mxu0
    %v3220 = vadd.f32 %v3171, %v3219
    %v3221 = vpop.f32.mrf.mxu0
    %v3222 = vadd.f32 %v3173, %v3221
    %3223 = vmatmul.bf16.gmra.mxu0 %v2547
    %v3224 = vpop.f32.mrf.mxu0
    %v3225 = vadd.f32 %v3176, %v3224
    %v3226 = vpop.f32.mrf.mxu0
    %v3227 = vadd.f32 %v3178, %v3226
    %3228 = vmatmul.bf16.gmra.mxu0 %v2556
    %v3229 = vpop.f32.mrf.mxu0
    %v3230 = vadd.f32 %v3181, %v3229
    %v3231 = vpop.f32.mrf.mxu0
    %v3232 = vadd.f32 %v3183, %v3231
    %3233 = vmatmul.bf16.gmra.mxu0 %v2565
    %v3234 = vpop.f32.mrf.mxu0
    %v3235 = vadd.f32 %v3186, %v3234
    %v3236 = vpop.f32.mrf.mxu0
    %v3237 = vadd.f32 %v3188, %v3236
    %3238 = vmatmul.bf16.gmra.mxu0 %v2574
    %v3239 = vpop.f32.mrf.mxu0
    %v3240 = vadd.f32 %v3191, %v3239
    %v3241 = vpop.f32.mrf.mxu0
    %v3242 = vadd.f32 %v3193, %v3241
    %3243 = vmatmul.bf16.gmra.mxu0 %v2583
    %v3244 = vpop.f32.mrf.mxu0
    %v3245 = vadd.f32 %v3196, %v3244
    %v3246 = vpop.f32.mrf.mxu0
    %v3247 = vadd.f32 %v3198, %v3246
    %3248 = vmatmul.bf16.gmra.mxu0 %v2592
    %v3249 = vpop.f32.mrf.mxu0
    %v3250 = vadd.f32 %v3201, %v3249
    %v3251 = vpop.f32.mrf.mxu0
    %v3252 = vadd.f32 %v3203, %v3251
    %3253 = vmatmul.bf16.gmra.mxu0 %v2601
    %v3254 = vpop.f32.mrf.mxu0
    %v3255 = vadd.f32 %v3206, %v3254
    %v3256 = vpop.f32.mrf.mxu0
    %v3257 = vadd.f32 %v3208, %v3256
    %3258 = vdwg.mxu0
    %3259 = vmatpush.bf16.msra.mxu0 %v2999
    %3260 = vmatpush.bf16.msra.mxu0 %v2998
    %3261 = vmatpush.bf16.msra.mxu0 %v2997
    %3262 = vmatpush.bf16.msra.mxu0 %v2996
    %3263 = vmatpush.bf16.msra.mxu0 %v2995
    %3264 = vmatpush.bf16.msra.mxu0 %v2994
    %3265 = vmatpush.bf16.msra.mxu0 %v2993
    %3266 = vmatpush.bf16.msra.mxu0 %v2992
    %3267 = vmatmul.bf16.gmra.mxu0 %v2539
    %v3268 = vpop.f32.mrf.mxu0
    %v3269 = vadd.f32 %v3220, %v3268
    %v3270 = vpop.f32.mrf.mxu0
    %v3271 = vadd.f32 %v3222, %v3270
    %3272 = vmatmul.bf16.gmra.mxu0 %v2548
    %v3273 = vpop.f32.mrf.mxu0
    %v3274 = vadd.f32 %v3225, %v3273
    %v3275 = vpop.f32.mrf.mxu0
    %v3276 = vadd.f32 %v3227, %v3275
    %3277 = vmatmul.bf16.gmra.mxu0 %v2557
    %v3278 = vpop.f32.mrf.mxu0
    %v3279 = vadd.f32 %v3230, %v3278
    %v3280 = vpop.f32.mrf.mxu0
    %v3281 = vadd.f32 %v3232, %v3280
    %3282 = vmatmul.bf16.gmra.mxu0 %v2566
    %v3283 = vpop.f32.mrf.mxu0
    %v3284 = vadd.f32 %v3235, %v3283
    %v3285 = vpop.f32.mrf.mxu0
    %v3286 = vadd.f32 %v3237, %v3285
    %3287 = vmatmul.bf16.gmra.mxu0 %v2575
    %v3288 = vpop.f32.mrf.mxu0
    %v3289 = vadd.f32 %v3240, %v3288
    %v3290 = vpop.f32.mrf.mxu0
    %v3291 = vadd.f32 %v3242, %v3290
    %3292 = vmatmul.bf16.gmra.mxu0 %v2584
    %v3293 = vpop.f32.mrf.mxu0
    %v3294 = vadd.f32 %v3245, %v3293
    %v3295 = vpop.f32.mrf.mxu0
    %v3296 = vadd.f32 %v3247, %v3295
    %3297 = vmatmul.bf16.gmra.mxu0 %v2593
    %v3298 = vpop.f32.mrf.mxu0
    %v3299 = vadd.f32 %v3250, %v3298
    %v3300 = vpop.f32.mrf.mxu0
    %v3301 = vadd.f32 %v3252, %v3300
    %3302 = vmatmul.bf16.gmra.mxu0 %v2602
    %v3303 = vpop.f32.mrf.mxu0
    %v3304 = vadd.f32 %v3255, %v3303
    %v3305 = vpop.f32.mrf.mxu0
    %v3306 = vadd.f32 %v3257, %v3305
    %3307 = vdwg.mxu0
    %3308 = vmatpush.bf16.msra.mxu0 %v3007
    %3309 = vmatpush.bf16.msra.mxu0 %v3006
    %3310 = vmatpush.bf16.msra.mxu0 %v3005
    %3311 = vmatpush.bf16.msra.mxu0 %v3004
    %3312 = vmatpush.bf16.msra.mxu0 %v3003
    %3313 = vmatpush.bf16.msra.mxu0 %v3002
    %3314 = vmatpush.bf16.msra.mxu0 %v3001
    %3315 = vmatpush.bf16.msra.mxu0 %v3000
    %3316 = vmatmul.bf16.gmra.mxu0 %v2540
    %v3317 = vpop.f32.mrf.mxu0
    %v3318 = vadd.f32 %v3269, %v3317
    %v3319 = vpop.f32.mrf.mxu0
    %v3320 = vadd.f32 %v3271, %v3319
    %3321 = vmatmul.bf16.gmra.mxu0 %v2549
    %v3322 = vpop.f32.mrf.mxu0
    %v3323 = vadd.f32 %v3274, %v3322
    %v3324 = vpop.f32.mrf.mxu0
    %v3325 = vadd.f32 %v3276, %v3324
    %3326 = vmatmul.bf16.gmra.mxu0 %v2558
    %v3327 = vpop.f32.mrf.mxu0
    %v3328 = vadd.f32 %v3279, %v3327
    %v3329 = vpop.f32.mrf.mxu0
    %v3330 = vadd.f32 %v3281, %v3329
    %3331 = vmatmul.bf16.gmra.mxu0 %v2567
    %v3332 = vpop.f32.mrf.mxu0
    %v3333 = vadd.f32 %v3284, %v3332
    %v3334 = vpop.f32.mrf.mxu0
    %v3335 = vadd.f32 %v3286, %v3334
    %3336 = vmatmul.bf16.gmra.mxu0 %v2576
    %v3337 = vpop.f32.mrf.mxu0
    %v3338 = vadd.f32 %v3289, %v3337
    %v3339 = vpop.f32.mrf.mxu0
    %v3340 = vadd.f32 %v3291, %v3339
    %3341 = vmatmul.bf16.gmra.mxu0 %v2585
    %v3342 = vpop.f32.mrf.mxu0
    %v3343 = vadd.f32 %v3294, %v3342
    %v3344 = vpop.f32.mrf.mxu0
    %v3345 = vadd.f32 %v3296, %v3344
    %3346 = vmatmul.bf16.gmra.mxu0 %v2594
    %v3347 = vpop.f32.mrf.mxu0
    %v3348 = vadd.f32 %v3299, %v3347
    %v3349 = vpop.f32.mrf.mxu0
    %v3350 = vadd.f32 %v3301, %v3349
    %3351 = vmatmul.bf16.gmra.mxu0 %v2603
    %v3352 = vpop.f32.mrf.mxu0
    %v3353 = vadd.f32 %v3304, %v3352
    %v3354 = vpop.f32.mrf.mxu0
    %v3355 = vadd.f32 %v3306, %v3354
    %3356 = vdwg.mxu0
    %3357 = vmatpush.bf16.msra.mxu0 %v3015
    %3358 = vmatpush.bf16.msra.mxu0 %v3014
    %3359 = vmatpush.bf16.msra.mxu0 %v3013
    %3360 = vmatpush.bf16.msra.mxu0 %v3012
    %3361 = vmatpush.bf16.msra.mxu0 %v3011
    %3362 = vmatpush.bf16.msra.mxu0 %v3010
    %3363 = vmatpush.bf16.msra.mxu0 %v3009
    %3364 = vmatpush.bf16.msra.mxu0 %v3008
    %3365 = vmatmul.bf16.gmra.mxu0 %v2541
    %v3366 = vpop.f32.mrf.mxu0
    %v3367 = vadd.f32 %v3318, %v3366
    %v3368 = vpop.f32.mrf.mxu0
    %v3369 = vadd.f32 %v3320, %v3368
    %3370 = vmatmul.bf16.gmra.mxu0 %v2550
    %v3371 = vpop.f32.mrf.mxu0
    %v3372 = vadd.f32 %v3323, %v3371
    %v3373 = vpop.f32.mrf.mxu0
    %v3374 = vadd.f32 %v3325, %v3373
    %3375 = vmatmul.bf16.gmra.mxu0 %v2559
    %v3376 = vpop.f32.mrf.mxu0
    %v3377 = vadd.f32 %v3328, %v3376
    %v3378 = vpop.f32.mrf.mxu0
    %v3379 = vadd.f32 %v3330, %v3378
    %3380 = vmatmul.bf16.gmra.mxu0 %v2568
    %v3381 = vpop.f32.mrf.mxu0
    %v3382 = vadd.f32 %v3333, %v3381
    %v3383 = vpop.f32.mrf.mxu0
    %v3384 = vadd.f32 %v3335, %v3383
    %3385 = vmatmul.bf16.gmra.mxu0 %v2577
    %v3386 = vpop.f32.mrf.mxu0
    %v3387 = vadd.f32 %v3338, %v3386
    %v3388 = vpop.f32.mrf.mxu0
    %v3389 = vadd.f32 %v3340, %v3388
    %3390 = vmatmul.bf16.gmra.mxu0 %v2586
    %v3391 = vpop.f32.mrf.mxu0
    %v3392 = vadd.f32 %v3343, %v3391
    %v3393 = vpop.f32.mrf.mxu0
    %v3394 = vadd.f32 %v3345, %v3393
    %3395 = vmatmul.bf16.gmra.mxu0 %v2595
    %v3396 = vpop.f32.mrf.mxu0
    %v3397 = vadd.f32 %v3348, %v3396
    %v3398 = vpop.f32.mrf.mxu0
    %v3399 = vadd.f32 %v3350, %v3398
    %3400 = vmatmul.bf16.gmra.mxu0 %v2604
    %v3401 = vpop.f32.mrf.mxu0
    %v3402 = vadd.f32 %v3353, %v3401
    %v3403 = vpop.f32.mrf.mxu0
    %v3404 = vadd.f32 %v3355, %v3403
    %3405 = vdwg.mxu0
    %3406 = vmatpush.bf16.msra.mxu0 %v3023
    %3407 = vmatpush.bf16.msra.mxu0 %v3022
    %3408 = vmatpush.bf16.msra.mxu0 %v3021
    %3409 = vmatpush.bf16.msra.mxu0 %v3020
    %3410 = vmatpush.bf16.msra.mxu0 %v3019
    %3411 = vmatpush.bf16.msra.mxu0 %v3018
    %3412 = vmatpush.bf16.msra.mxu0 %v3017
    %3413 = vmatpush.bf16.msra.mxu0 %v3016
    %3414 = vmatmul.bf16.gmra.mxu0 %v2542
    %v3415 = vpop.f32.mrf.mxu0
    %v3416 = vadd.f32 %v3367, %v3415
    %v3417 = vpop.f32.mrf.mxu0
    %v3418 = vadd.f32 %v3369, %v3417
    %3419 = vmatmul.bf16.gmra.mxu0 %v2551
    %v3420 = vpop.f32.mrf.mxu0
    %v3421 = vadd.f32 %v3372, %v3420
    %v3422 = vpop.f32.mrf.mxu0
    %v3423 = vadd.f32 %v3374, %v3422
    %3424 = vmatmul.bf16.gmra.mxu0 %v2560
    %v3425 = vpop.f32.mrf.mxu0
    %v3426 = vadd.f32 %v3377, %v3425
    %v3427 = vpop.f32.mrf.mxu0
    %v3428 = vadd.f32 %v3379, %v3427
    %3429 = vmatmul.bf16.gmra.mxu0 %v2569
    %v3430 = vpop.f32.mrf.mxu0
    %v3431 = vadd.f32 %v3382, %v3430
    %v3432 = vpop.f32.mrf.mxu0
    %v3433 = vadd.f32 %v3384, %v3432
    %3434 = vmatmul.bf16.gmra.mxu0 %v2578
    %v3435 = vpop.f32.mrf.mxu0
    %v3436 = vadd.f32 %v3387, %v3435
    %v3437 = vpop.f32.mrf.mxu0
    %v3438 = vadd.f32 %v3389, %v3437
    %3439 = vmatmul.bf16.gmra.mxu0 %v2587
    %v3440 = vpop.f32.mrf.mxu0
    %v3441 = vadd.f32 %v3392, %v3440
    %v3442 = vpop.f32.mrf.mxu0
    %v3443 = vadd.f32 %v3394, %v3442
    %3444 = vmatmul.bf16.gmra.mxu0 %v2596
    %v3445 = vpop.f32.mrf.mxu0
    %v3446 = vadd.f32 %v3397, %v3445
    %v3447 = vpop.f32.mrf.mxu0
    %v3448 = vadd.f32 %v3399, %v3447
    %3449 = vmatmul.bf16.gmra.mxu0 %v2605
    %v3450 = vpop.f32.mrf.mxu0
    %v3451 = vadd.f32 %v3402, %v3450
    %v3452 = vpop.f32.mrf.mxu0
    %v3453 = vadd.f32 %v3404, %v3452
    %3454 = vdwg.mxu0
    %3455 = vmatpush.bf16.msra.mxu0 %v3031
    %3456 = vmatpush.bf16.msra.mxu0 %v3030
    %3457 = vmatpush.bf16.msra.mxu0 %v3029
    %3458 = vmatpush.bf16.msra.mxu0 %v3028
    %3459 = vmatpush.bf16.msra.mxu0 %v3027
    %3460 = vmatpush.bf16.msra.mxu0 %v3026
    %3461 = vmatpush.bf16.msra.mxu0 %v3025
    %3462 = vmatpush.bf16.msra.mxu0 %v3024
    %3463 = vmatmul.bf16.gmra.mxu0 %v2543
    %v3464 = vpop.f32.mrf.mxu0
    %v3465 = vadd.f32 %v3416, %v3464
    %v3466 = vpop.f32.mrf.mxu0
    %v3467 = vadd.f32 %v3418, %v3466
    %3468 = vmatmul.bf16.gmra.mxu0 %v2552
    %v3469 = vpop.f32.mrf.mxu0
    %v3470 = vadd.f32 %v3421, %v3469
    %v3471 = vpop.f32.mrf.mxu0
    %v3472 = vadd.f32 %v3423, %v3471
    %3473 = vmatmul.bf16.gmra.mxu0 %v2561
    %v3474 = vpop.f32.mrf.mxu0
    %v3475 = vadd.f32 %v3426, %v3474
    %v3476 = vpop.f32.mrf.mxu0
    %v3477 = vadd.f32 %v3428, %v3476
    %3478 = vmatmul.bf16.gmra.mxu0 %v2570
    %v3479 = vpop.f32.mrf.mxu0
    %v3480 = vadd.f32 %v3431, %v3479
    %v3481 = vpop.f32.mrf.mxu0
    %v3482 = vadd.f32 %v3433, %v3481
    %3483 = vmatmul.bf16.gmra.mxu0 %v2579
    %v3484 = vpop.f32.mrf.mxu0
    %v3485 = vadd.f32 %v3436, %v3484
    %v3486 = vpop.f32.mrf.mxu0
    %v3487 = vadd.f32 %v3438, %v3486
    %3488 = vmatmul.bf16.gmra.mxu0 %v2588
    %v3489 = vpop.f32.mrf.mxu0
    %v3490 = vadd.f32 %v3441, %v3489
    %v3491 = vpop.f32.mrf.mxu0
    %v3492 = vadd.f32 %v3443, %v3491
    %3493 = vmatmul.bf16.gmra.mxu0 %v2597
    %v3494 = vpop.f32.mrf.mxu0
    %v3495 = vadd.f32 %v3446, %v3494
    %v3496 = vpop.f32.mrf.mxu0
    %v3497 = vadd.f32 %v3448, %v3496
    %3498 = vmatmul.bf16.gmra.mxu0 %v2606
    %v3499 = vpop.f32.mrf.mxu0
    %v3500 = vadd.f32 %v3451, %v3499
    %v3501 = vpop.f32.mrf.mxu0
    %v3502 = vadd.f32 %v3453, %v3501
    %3503 = vdwg.mxu0
    %3504 = vmatpush.bf16.msra.mxu0 %v3039
    %3505 = vmatpush.bf16.msra.mxu0 %v3038
    %3506 = vmatpush.bf16.msra.mxu0 %v3037
    %3507 = vmatpush.bf16.msra.mxu0 %v3036
    %3508 = vmatpush.bf16.msra.mxu0 %v3035
    %3509 = vmatpush.bf16.msra.mxu0 %v3034
    %3510 = vmatpush.bf16.msra.mxu0 %v3033
    %3511 = vmatpush.bf16.msra.mxu0 %v3032
    %3512 = vmatmul.bf16.gmra.mxu0 %v2544
    %v3513 = vpop.f32.mrf.mxu0
    %v3514 = vadd.f32 %v3465, %v3513
    %v3515 = vpop.f32.mrf.mxu0
    %v3516 = vadd.f32 %v3467, %v3515
    %3517 = vmatmul.bf16.gmra.mxu0 %v2553
    %v3518 = vpop.f32.mrf.mxu0
    %v3519 = vadd.f32 %v3470, %v3518
    %v3520 = vpop.f32.mrf.mxu0
    %v3521 = vadd.f32 %v3472, %v3520
    %3522 = vmatmul.bf16.gmra.mxu0 %v2562
    %v3523 = vpop.f32.mrf.mxu0
    %v3524 = vadd.f32 %v3475, %v3523
    %v3525 = vpop.f32.mrf.mxu0
    %v3526 = vadd.f32 %v3477, %v3525
    %3527 = vmatmul.bf16.gmra.mxu0 %v2571
    %v3528 = vpop.f32.mrf.mxu0
    %v3529 = vadd.f32 %v3480, %v3528
    %v3530 = vpop.f32.mrf.mxu0
    %v3531 = vadd.f32 %v3482, %v3530
    %3532 = vmatmul.bf16.gmra.mxu0 %v2580
    %v3533 = vpop.f32.mrf.mxu0
    %v3534 = vadd.f32 %v3485, %v3533
    %v3535 = vpop.f32.mrf.mxu0
    %v3536 = vadd.f32 %v3487, %v3535
    %3537 = vmatmul.bf16.gmra.mxu0 %v2589
    %v3538 = vpop.f32.mrf.mxu0
    %v3539 = vadd.f32 %v3490, %v3538
    %v3540 = vpop.f32.mrf.mxu0
    %v3541 = vadd.f32 %v3492, %v3540
    %3542 = vmatmul.bf16.gmra.mxu0 %v2598
    %v3543 = vpop.f32.mrf.mxu0
    %v3544 = vadd.f32 %v3495, %v3543
    %v3545 = vpop.f32.mrf.mxu0
    %v3546 = vadd.f32 %v3497, %v3545
    %3547 = vmatmul.bf16.gmra.mxu0 %v2607
    %v3548 = vpop.f32.mrf.mxu0
    %v3549 = vadd.f32 %v3500, %v3548
    %v3550 = vpop.f32.mrf.mxu0
    %v3551 = vadd.f32 %v3502, %v3550
    %3552 = vdwg.mxu0
    %v3553 = vadd.f32 %v3514, %v3516
    %v3554 = vadd.f32 %v3553, %v3519
    %v3555 = vadd.f32 %v3554, %v3521
    %v3556 = vadd.f32 %v3555, %v3524
    %v3557 = vadd.f32 %v3556, %v3526
    %v3558 = vadd.f32 %v3557, %v3529
    %v3559 = vadd.f32 %v3558, %v3531
    %v3560 = vadd.f32 %v3559, %v3534
    %v3561 = vadd.f32 %v3560, %v3536
    %v3562 = vadd.f32 %v3561, %v3539
    %v3563 = vadd.f32 %v3562, %v3541
    %v3564 = vadd.f32 %v3563, %v3544
    %v3565 = vadd.f32 %v3564, %v3546
    %v3566 = vadd.f32 %v3565, %v3549
    %v3567 = vadd.f32 %v3566, %v3551
    %v3568 = vrot.slane %v3567, 4
    %v3569 = vadd.f32 %v3567, %v3568
    %v3570 = vrot.slane %v3569, 2
    %v3571 = vadd.f32 %v3569, %v3570
    %v3572 = vrot.slane %v3571, 1
    %v3573 = vadd.f32 %v3571, %v3572
    %v3574 = vmul.f32 %v3573, 0.010204081
    %v3575 = vmul.f32 %v3514, %v3514
    %v3576 = vmul.f32 %v3516, %v3516
    %v3577 = vmul.f32 %v3519, %v3519
    %v3578 = vmul.f32 %v3521, %v3521
    %v3579 = vmul.f32 %v3524, %v3524
    %v3580 = vmul.f32 %v3526, %v3526
    %v3581 = vmul.f32 %v3529, %v3529
    %v3582 = vmul.f32 %v3531, %v3531
    %v3583 = vmul.f32 %v3534, %v3534
    %v3584 = vmul.f32 %v3536, %v3536
    %v3585 = vmul.f32 %v3539, %v3539
    %v3586 = vmul.f32 %v3541, %v3541
    %v3587 = vmul.f32 %v3544, %v3544
    %v3588 = vmul.f32 %v3546, %v3546
    %v3589 = vmul.f32 %v3549, %v3549
    %v3590 = vmul.f32 %v3551, %v3551
    %v3591 = vadd.f32 %v3575, %v3576
    %v3592 = vadd.f32 %v3591, %v3577
    %v3593 = vadd.f32 %v3592, %v3578
    %v3594 = vadd.f32 %v3593, %v3579
    %v3595 = vadd.f32 %v3594, %v3580
    %v3596 = vadd.f32 %v3595, %v3581
    %v3597 = vadd.f32 %v3596, %v3582
    %v3598 = vadd.f32 %v3597, %v3583
    %v3599 = vadd.f32 %v3598, %v3584
    %v3600 = vadd.f32 %v3599, %v3585
    %v3601 = vadd.f32 %v3600, %v3586
    %v3602 = vadd.f32 %v3601, %v3587
    %v3603 = vadd.f32 %v3602, %v3588
    %v3604 = vadd.f32 %v3603, %v3589
    %v3605 = vadd.f32 %v3604, %v3590
    %v3606 = vrot.slane %v3605, 4
    %v3607 = vadd.f32 %v3605, %v3606
    %v3608 = vrot.slane %v3607, 2
    %v3609 = vadd.f32 %v3607, %v3608
    %v3610 = vrot.slane %v3609, 1
    %v3611 = vadd.f32 %v3609, %v3610
    %v3612 = vmul.f32 %v3611, 0.010204081
    %v3613 = vmul.f32 %v3574, %v3574
    %v3614 = vsub.f32 %v3612, %v3613
    %v3615 = vmax.f32 %v3614, 0.0
    %v3616 = vsub.f32 %v3514, %v3574
    %v3617 = vsub.f32 %v3516, %v3574
    %v3618 = vsub.f32 %v3519, %v3574
    %v3619 = vsub.f32 %v3521, %v3574
    %v3620 = vsub.f32 %v3524, %v3574
    %v3621 = vsub.f32 %v3526, %v3574
    %v3622 = vsub.f32 %v3529, %v3574
    %v3623 = vsub.f32 %v3531, %v3574
    %v3624 = vsub.f32 %v3534, %v3574
    %v3625 = vsub.f32 %v3536, %v3574
    %v3626 = vsub.f32 %v3539, %v3574
    %v3627 = vsub.f32 %v3541, %v3574
    %v3628 = vsub.f32 %v3544, %v3574
    %v3629 = vsub.f32 %v3546, %v3574
    %v3630 = vsub.f32 %v3549, %v3574
    %v3631 = vsub.f32 %v3551, %v3574
    %v3632 = vadd.f32 %v3615, 1e-05
    %v3633 = vrsqrt.pop %v3632
    %v3634 = vmul.f32 %v3633, %v3632
    %v3635 = vmul.f32 %v3634, %v3633
    %v3636 = vmul.f32 0.5, %v3635
    %v3637 = vsub.f32 1.5, %v3636
    %v3638 = vmul.f32 %v3633, %v3637
    %vm3639 = vweird.f32 %v3632
    %vm3640 = vweird.f32 %v3633
    %vm3641 = vmor %vm3639, %vm3640
    %v3642 = vsel %vm3641, %v3633, %v3638
    %v3643 = vmul.f32 %v3616, %v3642
    %v3644 = vmul.f32 %v3617, %v3642
    %v3645 = vmul.f32 %v3618, %v3642
    %v3646 = vmul.f32 %v3619, %v3642
    %v3647 = vmul.f32 %v3620, %v3642
    %v3648 = vmul.f32 %v3621, %v3642
    %v3649 = vmul.f32 %v3622, %v3642
    %v3650 = vmul.f32 %v3623, %v3642
    %v3651 = vmul.f32 %v3624, %v3642
    %v3652 = vmul.f32 %v3625, %v3642
    %v3653 = vmul.f32 %v3626, %v3642
    %v3654 = vmul.f32 %v3627, %v3642
    %v3655 = vmul.f32 %v3628, %v3642
    %v3656 = vmul.f32 %v3629, %v3642
    %v3657 = vmul.f32 %v3630, %v3642
    %v3658 = vmul.f32 %v3631, %v3642
    %v3660 = vperm.slane %v632, 0
    %v3662 = vmul.f32 %v3643, %v3660
    %v3663 = vmul.f32 %v3644, %v3660
    %v3664 = vmul.f32 %v3645, %v3660
    %v3665 = vmul.f32 %v3646, %v3660
    %v3666 = vmul.f32 %v3647, %v3660
    %v3667 = vmul.f32 %v3648, %v3660
    %v3668 = vmul.f32 %v3649, %v3660
    %v3669 = vmul.f32 %v3650, %v3660
    %v3670 = vmul.f32 %v3651, %v3660
    %v3671 = vmul.f32 %v3652, %v3660
    %v3672 = vmul.f32 %v3653, %v3660
    %v3673 = vmul.f32 %v3654, %v3660
    %v3674 = vmul.f32 %v3655, %v3660
    %v3675 = vmul.f32 %v3656, %v3660
    %v3676 = vmul.f32 %v3657, %v3660
    %v3677 = vmul.f32 %v3658, %v3660
    %v3679 = vperm.slane %v633, 0
    %v3681 = vadd.f32 %v3662, %v3679
    %v3682 = vadd.f32 %v3663, %v3679
    %v3683 = vadd.f32 %v3664, %v3679
    %v3684 = vadd.f32 %v3665, %v3679
    %v3685 = vadd.f32 %v3666, %v3679
    %v3686 = vadd.f32 %v3667, %v3679
    %v3687 = vadd.f32 %v3668, %v3679
    %v3688 = vadd.f32 %v3669, %v3679
    %v3689 = vadd.f32 %v3670, %v3679
    %v3690 = vadd.f32 %v3671, %v3679
    %v3691 = vadd.f32 %v3672, %v3679
    %v3692 = vadd.f32 %v3673, %v3679
    %v3693 = vadd.f32 %v3674, %v3679
    %v3694 = vadd.f32 %v3675, %v3679
    %v3695 = vadd.f32 %v3676, %v3679
    %v3696 = vadd.f32 %v3677, %v3679
    %v3697 = vmax.f32 %v3681, 0.0
    %v3698 = vmax.f32 %v3682, 0.0
    %v3699 = vmax.f32 %v3683, 0.0
    %v3700 = vmax.f32 %v3684, 0.0
    %v3701 = vmax.f32 %v3685, 0.0
    %v3702 = vmax.f32 %v3686, 0.0
    %v3703 = vmax.f32 %v3687, 0.0
    %v3704 = vmax.f32 %v3688, 0.0
    %v3705 = vmax.f32 %v3689, 0.0
    %v3706 = vmax.f32 %v3690, 0.0
    %v3707 = vmax.f32 %v3691, 0.0
    %v3708 = vmax.f32 %v3692, 0.0
    %v3709 = vmax.f32 %v3693, 0.0
    %v3710 = vmax.f32 %v3694, 0.0
    %v3711 = vmax.f32 %v3695, 0.0
    %v3712 = vmax.f32 %v3696, 0.0
    %3714 = vset.pattern.permute.xlu0 0
    %3715 = vperm.xlu0 %3714, %v635
    %v3716 = vpop.permute.xlu0 %3715
    %3719 = vset.pattern.permute.xlu0 0
    %3720 = vperm.xlu0 %3719, %v636
    %v3721 = vpop.permute.xlu0 %3720
    %3724 = vset.pattern.permute.xlu0 0
    %3725 = vperm.xlu0 %3724, %v637
    %v3726 = vpop.permute.xlu0 %3725
    %3729 = vset.pattern.permute.xlu0 0
    %3730 = vperm.xlu0 %3729, %v638
    %v3731 = vpop.permute.xlu0 %3730
    %3734 = vset.pattern.permute.xlu0 0
    %3735 = vperm.xlu0 %3734, %v639
    %v3736 = vpop.permute.xlu0 %3735
    %3739 = vset.pattern.permute.xlu0 0
    %3740 = vperm.xlu0 %3739, %v640
    %v3741 = vpop.permute.xlu0 %3740
    %3744 = vset.pattern.permute.xlu0 0
    %3745 = vperm.xlu0 %3744, %v641
    %v3746 = vpop.permute.xlu0 %3745
    %3749 = vset.pattern.permute.xlu0 0
    %3750 = vperm.xlu0 %3749, %v642
    %v3751 = vpop.permute.xlu0 %3750
    %3754 = vset.pattern.permute.xlu0 0
    %3755 = vperm.xlu0 %3754, %v643
    %v3756 = vpop.permute.xlu0 %3755
    %3759 = vset.pattern.permute.xlu0 0
    %3760 = vperm.xlu0 %3759, %v644
    %v3761 = vpop.permute.xlu0 %3760
    %3764 = vset.pattern.permute.xlu0 0
    %3765 = vperm.xlu0 %3764, %v645
    %v3766 = vpop.permute.xlu0 %3765
    %3769 = vset.pattern.permute.xlu0 0
    %3770 = vperm.xlu0 %3769, %v646
    %v3771 = vpop.permute.xlu0 %3770
    %3774 = vset.pattern.permute.xlu0 0
    %3775 = vperm.xlu0 %3774, %v647
    %v3776 = vpop.permute.xlu0 %3775
    %3779 = vset.pattern.permute.xlu0 0
    %3780 = vperm.xlu0 %3779, %v648
    %v3781 = vpop.permute.xlu0 %3780
    %3784 = vset.pattern.permute.xlu0 0
    %3785 = vperm.xlu0 %3784, %v649
    %v3786 = vpop.permute.xlu0 %3785
    %3789 = vset.pattern.permute.xlu0 0
    %3790 = vperm.xlu0 %3789, %v650
    %v3791 = vpop.permute.xlu0 %3790
    %v3793 = vmul.f32 %v3697, %v3716
    %v3794 = vmul.f32 %v3698, %v3721
    %v3795 = vmul.f32 %v3699, %v3726
    %v3796 = vmul.f32 %v3700, %v3731
    %v3797 = vmul.f32 %v3701, %v3736
    %v3798 = vmul.f32 %v3702, %v3741
    %v3799 = vmul.f32 %v3703, %v3746
    %v3800 = vmul.f32 %v3704, %v3751
    %v3801 = vmul.f32 %v3705, %v3756
    %v3802 = vmul.f32 %v3706, %v3761
    %v3803 = vmul.f32 %v3707, %v3766
    %v3804 = vmul.f32 %v3708, %v3771
    %v3805 = vmul.f32 %v3709, %v3776
    %v3806 = vmul.f32 %v3710, %v3781
    %v3807 = vmul.f32 %v3711, %v3786
    %v3808 = vmul.f32 %v3712, %v3791
    %v3809 = vld [vmem:[%s7] sm:$0x1]
    %v3810 = vld [vmem:[%s8] sm:$0x1]
    %v3811 = vld [vmem:[%s634] sm:$0xff]
    %v3812 = vld [vmem:[%s634 + $0x8] sm:$0xff]
    %v3813 = vld [vmem:[%s634 + $0x10] sm:$0xff]
    %v3814 = vld [vmem:[%s634 + $0x18] sm:$0xff]
    %v3815 = vld [vmem:[%s634 + $0x20] sm:$0xff]
    %v3816 = vld [vmem:[%s634 + $0x28] sm:$0xff]
    %v3817 = vld [vmem:[%s634 + $0x30] sm:$0xff]
    %v3818 = vld [vmem:[%s634 + $0x38] sm:$0xff]
    %v3819 = vld [vmem:[%s634 + $0x40] sm:$0xff]
    %v3820 = vld [vmem:[%s634 + $0x48] sm:$0xff]
    %v3821 = vld [vmem:[%s634 + $0x50] sm:$0xff]
    %v3822 = vld [vmem:[%s634 + $0x58] sm:$0xff]
    %v3823 = vld [vmem:[%s634 + $0x60] sm:$0xff]
    %v3824 = vld [vmem:[%s634 + $0x68] sm:$0xff]
    %v3825 = vld [vmem:[%s634 + $0x70] sm:$0xff]
    %v3826 = vld [vmem:[%s634 + $0x78] sm:$0xff]
    %v3827 = vld [vmem:[#allocation3] sm:$0xff]
    %v3828 = vld [vmem:[#allocation3 + $0x8] sm:$0xff]
    %v3829 = vld [vmem:[#allocation3 + $0x10] sm:$0xff]
    %v3830 = vld [vmem:[#allocation3 + $0x18] sm:$0xff]
    %v3831 = vld [vmem:[#allocation3 + $0x20] sm:$0xff]
    %v3832 = vld [vmem:[#allocation3 + $0x28] sm:$0xff]
    %v3833 = vld [vmem:[#allocation3 + $0x30] sm:$0xff]
    %v3834 = vld [vmem:[#allocation3 + $0x38] sm:$0xff]
    %v3835 = vld [vmem:[#allocation3 + $0x40] sm:$0xff]
    %v3836 = vld [vmem:[#allocation3 + $0x48] sm:$0xff]
    %v3837 = vld [vmem:[#allocation3 + $0x50] sm:$0xff]
    %v3838 = vld [vmem:[#allocation3 + $0x58] sm:$0xff]
    %v3839 = vld [vmem:[#allocation3 + $0x60] sm:$0xff]
    %v3840 = vld [vmem:[#allocation3 + $0x68] sm:$0xff]
    %v3841 = vld [vmem:[#allocation3 + $0x70] sm:$0xff]
    %v3842 = vld [vmem:[#allocation3 + $0x78] sm:$0xff]
    %3844 = vset.pattern.permute.xlu0 0
    %3845 = vperm.xlu0 %3844, %v3827
    %v3846 = vpop.permute.xlu0 %3845
    %3849 = vset.pattern.permute.xlu0 0
    %3850 = vperm.xlu0 %3849, %v3828
    %v3851 = vpop.permute.xlu0 %3850
    %3854 = vset.pattern.permute.xlu0 0
    %3855 = vperm.xlu0 %3854, %v3829
    %v3856 = vpop.permute.xlu0 %3855
    %3859 = vset.pattern.permute.xlu0 0
    %3860 = vperm.xlu0 %3859, %v3830
    %v3861 = vpop.permute.xlu0 %3860
    %3864 = vset.pattern.permute.xlu0 0
    %3865 = vperm.xlu0 %3864, %v3831
    %v3866 = vpop.permute.xlu0 %3865
    %3869 = vset.pattern.permute.xlu0 0
    %3870 = vperm.xlu0 %3869, %v3832
    %v3871 = vpop.permute.xlu0 %3870
    %3874 = vset.pattern.permute.xlu0 0
    %3875 = vperm.xlu0 %3874, %v3833
    %v3876 = vpop.permute.xlu0 %3875
    %3879 = vset.pattern.permute.xlu0 0
    %3880 = vperm.xlu0 %3879, %v3834
    %v3881 = vpop.permute.xlu0 %3880
    %3884 = vset.pattern.permute.xlu0 0
    %3885 = vperm.xlu0 %3884, %v3835
    %v3886 = vpop.permute.xlu0 %3885
    %3889 = vset.pattern.permute.xlu0 0
    %3890 = vperm.xlu0 %3889, %v3836
    %v3891 = vpop.permute.xlu0 %3890
    %3894 = vset.pattern.permute.xlu0 0
    %3895 = vperm.xlu0 %3894, %v3837
    %v3896 = vpop.permute.xlu0 %3895
    %3899 = vset.pattern.permute.xlu0 0
    %3900 = vperm.xlu0 %3899, %v3838
    %v3901 = vpop.permute.xlu0 %3900
    %3904 = vset.pattern.permute.xlu0 0
    %3905 = vperm.xlu0 %3904, %v3839
    %v3906 = vpop.permute.xlu0 %3905
    %3909 = vset.pattern.permute.xlu0 0
    %3910 = vperm.xlu0 %3909, %v3840
    %v3911 = vpop.permute.xlu0 %3910
    %3914 = vset.pattern.permute.xlu0 0
    %3915 = vperm.xlu0 %3914, %v3841
    %v3916 = vpop.permute.xlu0 %3915
    %3919 = vset.pattern.permute.xlu0 0
    %3920 = vperm.xlu0 %3919, %v3842
    %v3921 = vpop.permute.xlu0 %3920
    %v3923 = vmul.f32 %v3808, %v3846
    %v3924 = vmul.f32 %v3793, %v3851
    %v3925 = vmul.f32 %v3794, %v3856
    %v3926 = vmul.f32 %v3795, %v3861
    %v3927 = vmul.f32 %v3796, %v3866
    %v3928 = vmul.f32 %v3797, %v3871
    %v3929 = vmul.f32 %v3798, %v3876
    %v3930 = vmul.f32 %v3799, %v3881
    %v3931 = vmul.f32 %v3800, %v3886
    %v3932 = vmul.f32 %v3801, %v3891
    %v3933 = vmul.f32 %v3802, %v3896
    %v3934 = vmul.f32 %v3803, %v3901
    %v3935 = vmul.f32 %v3804, %v3906
    %v3936 = vmul.f32 %v3805, %v3911
    %v3937 = vmul.f32 %v3806, %v3916
    %v3938 = vmul.f32 %v3807, %v3921
    %v3939 = vpack.c.bf16 %v3923, %v3923
    %v3940 = vpack.c.bf16 %v3924, %v3924
    %v3941 = vpack.c.bf16 %v3925, %v3925
    %v3942 = vpack.c.bf16 %v3926, %v3926
    %v3943 = vpack.c.bf16 %v3927, %v3927
    %v3944 = vpack.c.bf16 %v3928, %v3928
    %v3945 = vpack.c.bf16 %v3929, %v3929
    %v3946 = vpack.c.bf16 %v3930, %v3930
    %v3947 = vpack.c.bf16 %v3931, %v3931
    %v3948 = vpack.c.bf16 %v3932, %v3932
    %v3949 = vpack.c.bf16 %v3933, %v3933
    %v3950 = vpack.c.bf16 %v3934, %v3934
    %v3951 = vpack.c.bf16 %v3935, %v3935
    %v3952 = vpack.c.bf16 %v3936, %v3936
    %v3953 = vpack.c.bf16 %v3937, %v3937
    %v3954 = vpack.c.bf16 %v3938, %v3938
    %3955 = vst [vmem:[#allocation2] sm:$0xf] %v3939
    %3956 = vst [vmem:[#allocation2 + $0x24] sm:$0xf] %v3940
    %3957 = vst [vmem:[#allocation2 + $0x48] sm:$0xf] %v3941
    %3958 = vst [vmem:[#allocation2 + $0x6c] sm:$0xf] %v3942
    %3959 = vst [vmem:[#allocation2 + $0x90] sm:$0xf] %v3943
    %3960 = vst [vmem:[#allocation2 + $0xb4] sm:$0xf] %v3944
    %3961 = vst [vmem:[#allocation2 + $0xd8] sm:$0xf] %v3945
    %3962 = vst [vmem:[#allocation2 + $0xfc] sm:$0xf] %v3946
    %3963 = vst [vmem:[#allocation2 + $0x120] sm:$0xf] %v3947
    %3964 = vst [vmem:[#allocation2 + $0x144] sm:$0xf] %v3948
    %3965 = vst [vmem:[#allocation2 + $0x168] sm:$0xf] %v3949
    %3966 = vst [vmem:[#allocation2 + $0x18c] sm:$0xf] %v3950
    %3967 = vst [vmem:[#allocation2 + $0x1b0] sm:$0xf] %v3951
    %3968 = vst [vmem:[#allocation2 + $0x1d4] sm:$0xf] %v3952
    %3969 = vst [vmem:[#allocation2 + $0x1f8] sm:$0xf] %v3953
    %3970 = vst [vmem:[#allocation2 + $0x21c] sm:$0xf] %v3954
    %v3971 = vrot.slane %v3793, 1
    %v3972 = vrot.slane %v3794, 1
    %v3973 = vrot.slane %v3795, 1
    %v3974 = vrot.slane %v3796, 1
    %v3975 = vrot.slane %v3797, 1
    %v3976 = vrot.slane %v3798, 1
    %v3977 = vrot.slane %v3799, 1
    %v3978 = vrot.slane %v3800, 1
    %v3979 = vrot.slane %v3801, 1
    %v3980 = vrot.slane %v3802, 1
    %v3981 = vrot.slane %v3803, 1
    %v3982 = vrot.slane %v3804, 1
    %v3983 = vrot.slane %v3805, 1
    %v3984 = vrot.slane %v3806, 1
    %v3985 = vrot.slane %v3807, 1
    %v3986 = vrot.slane %v3808, 1
    %v3987 = vsel %vm813, %v3985, %v3986
    %v3988 = vsel %vm813, %v3984, %v3985
    %v3989 = vsel %vm813, %v3983, %v3984
    %v3990 = vsel %vm813, %v3982, %v3983
    %v3991 = vsel %vm813, %v3981, %v3982
    %v3992 = vsel %vm813, %v3980, %v3981
    %v3993 = vsel %vm813, %v3979, %v3980
    %v3994 = vsel %vm813, %v3978, %v3979
    %v3995 = vsel %vm813, %v3977, %v3978
    %v3996 = vsel %vm813, %v3976, %v3977
    %v3997 = vsel %vm813, %v3975, %v3976
    %v3998 = vsel %vm813, %v3974, %v3975
    %v3999 = vsel %vm813, %v3973, %v3974
    %v4000 = vsel %vm813, %v3972, %v3973
    %v4001 = vsel %vm813, %v3971, %v3972
    %v4002 = vsel %vm813, %v3986, %v3971
    %v4003 = vld [vmem:[%s830] sm:$0xff]
    %v4004 = vld [vmem:[%s830 + $0x8] sm:$0xff]
    %v4005 = vld [vmem:[%s830 + $0x10] sm:$0xff]
    %v4006 = vld [vmem:[%s830 + $0x18] sm:$0xff]
    %v4007 = vld [vmem:[%s830 + $0x20] sm:$0xff]
    %v4008 = vld [vmem:[%s830 + $0x28] sm:$0xff]
    %v4009 = vld [vmem:[%s830 + $0x30] sm:$0xff]
    %v4010 = vld [vmem:[%s830 + $0x38] sm:$0xff]
    %v4011 = vld [vmem:[%s830 + $0x40] sm:$0xff]
    %v4012 = vld [vmem:[%s830 + $0x48] sm:$0xff]
    %v4013 = vld [vmem:[%s830 + $0x50] sm:$0xff]
    %v4014 = vld [vmem:[%s830 + $0x58] sm:$0xff]
    %v4015 = vld [vmem:[%s830 + $0x60] sm:$0xff]
    %v4016 = vld [vmem:[%s830 + $0x68] sm:$0xff]
    %v4017 = vld [vmem:[%s830 + $0x70] sm:$0xff]
    %v4018 = vld [vmem:[%s830 + $0x78] sm:$0xff]
    %4020 = vset.pattern.permute.xlu0 0
    %4021 = vperm.xlu0 %4020, %v4003
    %v4022 = vpop.permute.xlu0 %4021
    %4025 = vset.pattern.permute.xlu0 0
    %4026 = vperm.xlu0 %4025, %v4004
    %v4027 = vpop.permute.xlu0 %4026
    %4030 = vset.pattern.permute.xlu0 0
    %4031 = vperm.xlu0 %4030, %v4005
    %v4032 = vpop.permute.xlu0 %4031
    %4035 = vset.pattern.permute.xlu0 0
    %4036 = vperm.xlu0 %4035, %v4006
    %v4037 = vpop.permute.xlu0 %4036
    %4040 = vset.pattern.permute.xlu0 0
    %4041 = vperm.xlu0 %4040, %v4007
    %v4042 = vpop.permute.xlu0 %4041
    %4045 = vset.pattern.permute.xlu0 0
    %4046 = vperm.xlu0 %4045, %v4008
    %v4047 = vpop.permute.xlu0 %4046
    %4050 = vset.pattern.permute.xlu0 0
    %4051 = vperm.xlu0 %4050, %v4009
    %v4052 = vpop.permute.xlu0 %4051
    %4055 = vset.pattern.permute.xlu0 0
    %4056 = vperm.xlu0 %4055, %v4010
    %v4057 = vpop.permute.xlu0 %4056
    %4060 = vset.pattern.permute.xlu0 0
    %4061 = vperm.xlu0 %4060, %v4011
    %v4062 = vpop.permute.xlu0 %4061
    %4065 = vset.pattern.permute.xlu0 0
    %4066 = vperm.xlu0 %4065, %v4012
    %v4067 = vpop.permute.xlu0 %4066
    %4070 = vset.pattern.permute.xlu0 0
    %4071 = vperm.xlu0 %4070, %v4013
    %v4072 = vpop.permute.xlu0 %4071
    %4075 = vset.pattern.permute.xlu0 0
    %4076 = vperm.xlu0 %4075, %v4014
    %v4077 = vpop.permute.xlu0 %4076
    %4080 = vset.pattern.permute.xlu0 0
    %4081 = vperm.xlu0 %4080, %v4015
    %v4082 = vpop.permute.xlu0 %4081
    %4085 = vset.pattern.permute.xlu0 0
    %4086 = vperm.xlu0 %4085, %v4016
    %v4087 = vpop.permute.xlu0 %4086
    %4090 = vset.pattern.permute.xlu0 0
    %4091 = vperm.xlu0 %4090, %v4017
    %v4092 = vpop.permute.xlu0 %4091
    %4095 = vset.pattern.permute.xlu0 0
    %4096 = vperm.xlu0 %4095, %v4018
    %v4097 = vpop.permute.xlu0 %4096
    %v4099 = vmul.f32 %v4002, %v4022
    %v4100 = vmul.f32 %v4001, %v4027
    %v4101 = vmul.f32 %v4000, %v4032
    %v4102 = vmul.f32 %v3999, %v4037
    %v4103 = vmul.f32 %v3998, %v4042
    %v4104 = vmul.f32 %v3997, %v4047
    %v4105 = vmul.f32 %v3996, %v4052
    %v4106 = vmul.f32 %v3995, %v4057
    %v4107 = vmul.f32 %v3994, %v4062
    %v4108 = vmul.f32 %v3993, %v4067
    %v4109 = vmul.f32 %v3992, %v4072
    %v4110 = vmul.f32 %v3991, %v4077
    %v4111 = vmul.f32 %v3990, %v4082
    %v4112 = vmul.f32 %v3989, %v4087
    %v4113 = vmul.f32 %v3988, %v4092
    %v4114 = vmul.f32 %v3987, %v4097
    %v4115 = vpack.c.bf16 %v4099, %v4099
    %v4116 = vpack.c.bf16 %v4100, %v4100
    %v4117 = vpack.c.bf16 %v4101, %v4101
    %v4118 = vpack.c.bf16 %v4102, %v4102
    %v4119 = vpack.c.bf16 %v4103, %v4103
    %v4120 = vpack.c.bf16 %v4104, %v4104
    %v4121 = vpack.c.bf16 %v4105, %v4105
    %v4122 = vpack.c.bf16 %v4106, %v4106
    %v4123 = vpack.c.bf16 %v4107, %v4107
    %v4124 = vpack.c.bf16 %v4108, %v4108
    %v4125 = vpack.c.bf16 %v4109, %v4109
    %v4126 = vpack.c.bf16 %v4110, %v4110
    %v4127 = vpack.c.bf16 %v4111, %v4111
    %v4128 = vpack.c.bf16 %v4112, %v4112
    %v4129 = vpack.c.bf16 %v4113, %v4113
    %v4130 = vpack.c.bf16 %v4114, %v4114
    %4131 = vst [vmem:[#allocation2 + $0x4] sm:$0xf] %v4115
    %4132 = vst [vmem:[#allocation2 + $0x28] sm:$0xf] %v4116
    %4133 = vst [vmem:[#allocation2 + $0x4c] sm:$0xf] %v4117
    %4134 = vst [vmem:[#allocation2 + $0x70] sm:$0xf] %v4118
    %4135 = vst [vmem:[#allocation2 + $0x94] sm:$0xf] %v4119
    %4136 = vst [vmem:[#allocation2 + $0xb8] sm:$0xf] %v4120
    %4137 = vst [vmem:[#allocation2 + $0xdc] sm:$0xf] %v4121
    %4138 = vst [vmem:[#allocation2 + $0x100] sm:$0xf] %v4122
    %4139 = vst [vmem:[#allocation2 + $0x124] sm:$0xf] %v4123
    %4140 = vst [vmem:[#allocation2 + $0x148] sm:$0xf] %v4124
    %4141 = vst [vmem:[#allocation2 + $0x16c] sm:$0xf] %v4125
    %4142 = vst [vmem:[#allocation2 + $0x190] sm:$0xf] %v4126
    %4143 = vst [vmem:[#allocation2 + $0x1b4] sm:$0xf] %v4127
    %4144 = vst [vmem:[#allocation2 + $0x1d8] sm:$0xf] %v4128
    %4145 = vst [vmem:[#allocation2 + $0x1fc] sm:$0xf] %v4129
    %4146 = vst [vmem:[#allocation2 + $0x220] sm:$0xf] %v4130
    %v4147 = vrot.slane %v3793, 2
    %v4148 = vrot.slane %v3794, 2
    %v4149 = vrot.slane %v3795, 2
    %v4150 = vrot.slane %v3796, 2
    %v4151 = vrot.slane %v3797, 2
    %v4152 = vrot.slane %v3798, 2
    %v4153 = vrot.slane %v3799, 2
    %v4154 = vrot.slane %v3800, 2
    %v4155 = vrot.slane %v3801, 2
    %v4156 = vrot.slane %v3802, 2
    %v4157 = vrot.slane %v3803, 2
    %v4158 = vrot.slane %v3804, 2
    %v4159 = vrot.slane %v3805, 2
    %v4160 = vrot.slane %v3806, 2
    %v4161 = vrot.slane %v3807, 2
    %v4162 = vrot.slane %v3808, 2
    %v4163 = vsel %vm991, %v4161, %v4162
    %v4164 = vsel %vm991, %v4160, %v4161
    %v4165 = vsel %vm991, %v4159, %v4160
    %v4166 = vsel %vm991, %v4158, %v4159
    %v4167 = vsel %vm991, %v4157, %v4158
    %v4168 = vsel %vm991, %v4156, %v4157
    %v4169 = vsel %vm991, %v4155, %v4156
    %v4170 = vsel %vm991, %v4154, %v4155
    %v4171 = vsel %vm991, %v4153, %v4154
    %v4172 = vsel %vm991, %v4152, %v4153
    %v4173 = vsel %vm991, %v4151, %v4152
    %v4174 = vsel %vm991, %v4150, %v4151
    %v4175 = vsel %vm991, %v4149, %v4150
    %v4176 = vsel %vm991, %v4148, %v4149
    %v4177 = vsel %vm991, %v4147, %v4148
    %v4178 = vsel %vm991, %v4162, %v4147
    %v4179 = vld [vmem:[%s1008] sm:$0xff]
    %v4180 = vld [vmem:[%s1008 + $0x8] sm:$0xff]
    %v4181 = vld [vmem:[%s1008 + $0x10] sm:$0xff]
    %v4182 = vld [vmem:[%s1008 + $0x18] sm:$0xff]
    %v4183 = vld [vmem:[%s1008 + $0x20] sm:$0xff]
    %v4184 = vld [vmem:[%s1008 + $0x28] sm:$0xff]
    %v4185 = vld [vmem:[%s1008 + $0x30] sm:$0xff]
    %v4186 = vld [vmem:[%s1008 + $0x38] sm:$0xff]
    %v4187 = vld [vmem:[%s1008 + $0x40] sm:$0xff]
    %v4188 = vld [vmem:[%s1008 + $0x48] sm:$0xff]
    %v4189 = vld [vmem:[%s1008 + $0x50] sm:$0xff]
    %v4190 = vld [vmem:[%s1008 + $0x58] sm:$0xff]
    %v4191 = vld [vmem:[%s1008 + $0x60] sm:$0xff]
    %v4192 = vld [vmem:[%s1008 + $0x68] sm:$0xff]
    %v4193 = vld [vmem:[%s1008 + $0x70] sm:$0xff]
    %v4194 = vld [vmem:[%s1008 + $0x78] sm:$0xff]
    %4196 = vset.pattern.permute.xlu0 0
    %4197 = vperm.xlu0 %4196, %v4179
    %v4198 = vpop.permute.xlu0 %4197
    %4201 = vset.pattern.permute.xlu0 0
    %4202 = vperm.xlu0 %4201, %v4180
    %v4203 = vpop.permute.xlu0 %4202
    %4206 = vset.pattern.permute.xlu0 0
    %4207 = vperm.xlu0 %4206, %v4181
    %v4208 = vpop.permute.xlu0 %4207
    %4211 = vset.pattern.permute.xlu0 0
    %4212 = vperm.xlu0 %4211, %v4182
    %v4213 = vpop.permute.xlu0 %4212
    %4216 = vset.pattern.permute.xlu0 0
    %4217 = vperm.xlu0 %4216, %v4183
    %v4218 = vpop.permute.xlu0 %4217
    %4221 = vset.pattern.permute.xlu0 0
    %4222 = vperm.xlu0 %4221, %v4184
    %v4223 = vpop.permute.xlu0 %4222
    %4226 = vset.pattern.permute.xlu0 0
    %4227 = vperm.xlu0 %4226, %v4185
    %v4228 = vpop.permute.xlu0 %4227
    %4231 = vset.pattern.permute.xlu0 0
    %4232 = vperm.xlu0 %4231, %v4186
    %v4233 = vpop.permute.xlu0 %4232
    %4236 = vset.pattern.permute.xlu0 0
    %4237 = vperm.xlu0 %4236, %v4187
    %v4238 = vpop.permute.xlu0 %4237
    %4241 = vset.pattern.permute.xlu0 0
    %4242 = vperm.xlu0 %4241, %v4188
    %v4243 = vpop.permute.xlu0 %4242
    %4246 = vset.pattern.permute.xlu0 0
    %4247 = vperm.xlu0 %4246, %v4189
    %v4248 = vpop.permute.xlu0 %4247
    %4251 = vset.pattern.permute.xlu0 0
    %4252 = vperm.xlu0 %4251, %v4190
    %v4253 = vpop.permute.xlu0 %4252
    %4256 = vset.pattern.permute.xlu0 0
    %4257 = vperm.xlu0 %4256, %v4191
    %v4258 = vpop.permute.xlu0 %4257
    %4261 = vset.pattern.permute.xlu0 0
    %4262 = vperm.xlu0 %4261, %v4192
    %v4263 = vpop.permute.xlu0 %4262
    %4266 = vset.pattern.permute.xlu0 0
    %4267 = vperm.xlu0 %4266, %v4193
    %v4268 = vpop.permute.xlu0 %4267
    %4271 = vset.pattern.permute.xlu0 0
    %4272 = vperm.xlu0 %4271, %v4194
    %v4273 = vpop.permute.xlu0 %4272
    %v4275 = vmul.f32 %v4178, %v4198
    %v4276 = vmul.f32 %v4177, %v4203
    %v4277 = vmul.f32 %v4176, %v4208
    %v4278 = vmul.f32 %v4175, %v4213
    %v4279 = vmul.f32 %v4174, %v4218
    %v4280 = vmul.f32 %v4173, %v4223
    %v4281 = vmul.f32 %v4172, %v4228
    %v4282 = vmul.f32 %v4171, %v4233
    %v4283 = vmul.f32 %v4170, %v4238
    %v4284 = vmul.f32 %v4169, %v4243
    %v4285 = vmul.f32 %v4168, %v4248
    %v4286 = vmul.f32 %v4167, %v4253
    %v4287 = vmul.f32 %v4166, %v4258
    %v4288 = vmul.f32 %v4165, %v4263
    %v4289 = vmul.f32 %v4164, %v4268
    %v4290 = vmul.f32 %v4163, %v4273
    %v4291 = vpack.c.bf16 %v4275, %v4275
    %v4292 = vpack.c.bf16 %v4276, %v4276
    %v4293 = vpack.c.bf16 %v4277, %v4277
    %v4294 = vpack.c.bf16 %v4278, %v4278
    %v4295 = vpack.c.bf16 %v4279, %v4279
    %v4296 = vpack.c.bf16 %v4280, %v4280
    %v4297 = vpack.c.bf16 %v4281, %v4281
    %v4298 = vpack.c.bf16 %v4282, %v4282
    %v4299 = vpack.c.bf16 %v4283, %v4283
    %v4300 = vpack.c.bf16 %v4284, %v4284
    %v4301 = vpack.c.bf16 %v4285, %v4285
    %v4302 = vpack.c.bf16 %v4286, %v4286
    %v4303 = vpack.c.bf16 %v4287, %v4287
    %v4304 = vpack.c.bf16 %v4288, %v4288
    %v4305 = vpack.c.bf16 %v4289, %v4289
    %v4306 = vpack.c.bf16 %v4290, %v4290
    %4307 = vst [vmem:[#allocation2 + $0x8] sm:$0xf] %v4291
    %4308 = vst [vmem:[#allocation2 + $0x2c] sm:$0xf] %v4292
    %4309 = vst [vmem:[#allocation2 + $0x50] sm:$0xf] %v4293
    %4310 = vst [vmem:[#allocation2 + $0x74] sm:$0xf] %v4294
    %4311 = vst [vmem:[#allocation2 + $0x98] sm:$0xf] %v4295
    %4312 = vst [vmem:[#allocation2 + $0xbc] sm:$0xf] %v4296
    %4313 = vst [vmem:[#allocation2 + $0xe0] sm:$0xf] %v4297
    %4314 = vst [vmem:[#allocation2 + $0x104] sm:$0xf] %v4298
    %4315 = vst [vmem:[#allocation2 + $0x128] sm:$0xf] %v4299
    %4316 = vst [vmem:[#allocation2 + $0x14c] sm:$0xf] %v4300
    %4317 = vst [vmem:[#allocation2 + $0x170] sm:$0xf] %v4301
    %4318 = vst [vmem:[#allocation2 + $0x194] sm:$0xf] %v4302
    %4319 = vst [vmem:[#allocation2 + $0x1b8] sm:$0xf] %v4303
    %4320 = vst [vmem:[#allocation2 + $0x1dc] sm:$0xf] %v4304
    %4321 = vst [vmem:[#allocation2 + $0x200] sm:$0xf] %v4305
    %4322 = vst [vmem:[#allocation2 + $0x224] sm:$0xf] %v4306
    %v4323 = vrot.slane %v3793, 7
    %v4324 = vrot.slane %v3794, 7
    %v4325 = vrot.slane %v3795, 7
    %v4326 = vrot.slane %v3796, 7
    %v4327 = vrot.slane %v3797, 7
    %v4328 = vrot.slane %v3798, 7
    %v4329 = vrot.slane %v3799, 7
    %v4330 = vrot.slane %v3800, 7
    %v4331 = vrot.slane %v3801, 7
    %v4332 = vrot.slane %v3802, 7
    %v4333 = vrot.slane %v3803, 7
    %v4334 = vrot.slane %v3804, 7
    %v4335 = vrot.slane %v3805, 7
    %v4336 = vrot.slane %v3806, 7
    %v4337 = vrot.slane %v3807, 7
    %v4338 = vrot.slane %v3808, 7
    %v4339 = vsel %vm1169, %v4337, %v4338
    %v4340 = vsel %vm1169, %v4336, %v4337
    %v4341 = vsel %vm1169, %v4335, %v4336
    %v4342 = vsel %vm1169, %v4334, %v4335
    %v4343 = vsel %vm1169, %v4333, %v4334
    %v4344 = vsel %vm1169, %v4332, %v4333
    %v4345 = vsel %vm1169, %v4331, %v4332
    %v4346 = vsel %vm1169, %v4330, %v4331
    %v4347 = vsel %vm1169, %v4329, %v4330
    %v4348 = vsel %vm1169, %v4328, %v4329
    %v4349 = vsel %vm1169, %v4327, %v4328
    %v4350 = vsel %vm1169, %v4326, %v4327
    %v4351 = vsel %vm1169, %v4325, %v4326
    %v4352 = vsel %vm1169, %v4324, %v4325
    %v4353 = vsel %vm1169, %v4323, %v4324
    %v4354 = vsel %vm1169, %v4338, %v4323
    %v4355 = vld [vmem:[%s1186] sm:$0xff]
    %v4356 = vld [vmem:[%s1186 + $0x8] sm:$0xff]
    %v4357 = vld [vmem:[%s1186 + $0x10] sm:$0xff]
    %v4358 = vld [vmem:[%s1186 + $0x18] sm:$0xff]
    %v4359 = vld [vmem:[%s1186 + $0x20] sm:$0xff]
    %v4360 = vld [vmem:[%s1186 + $0x28] sm:$0xff]
    %v4361 = vld [vmem:[%s1186 + $0x30] sm:$0xff]
    %v4362 = vld [vmem:[%s1186 + $0x38] sm:$0xff]
    %v4363 = vld [vmem:[%s1186 + $0x40] sm:$0xff]
    %v4364 = vld [vmem:[%s1186 + $0x48] sm:$0xff]
    %v4365 = vld [vmem:[%s1186 + $0x50] sm:$0xff]
    %v4366 = vld [vmem:[%s1186 + $0x58] sm:$0xff]
    %v4367 = vld [vmem:[%s1186 + $0x60] sm:$0xff]
    %v4368 = vld [vmem:[%s1186 + $0x68] sm:$0xff]
    %v4369 = vld [vmem:[%s1186 + $0x70] sm:$0xff]
    %v4370 = vld [vmem:[%s1186 + $0x78] sm:$0xff]
    %4372 = vset.pattern.permute.xlu0 0
    %4373 = vperm.xlu0 %4372, %v4355
    %v4374 = vpop.permute.xlu0 %4373
    %4377 = vset.pattern.permute.xlu0 0
    %4378 = vperm.xlu0 %4377, %v4356
    %v4379 = vpop.permute.xlu0 %4378
    %4382 = vset.pattern.permute.xlu0 0
    %4383 = vperm.xlu0 %4382, %v4357
    %v4384 = vpop.permute.xlu0 %4383
    %4387 = vset.pattern.permute.xlu0 0
    %4388 = vperm.xlu0 %4387, %v4358
    %v4389 = vpop.permute.xlu0 %4388
    %4392 = vset.pattern.permute.xlu0 0
    %4393 = vperm.xlu0 %4392, %v4359
    %v4394 = vpop.permute.xlu0 %4393
    %4397 = vset.pattern.permute.xlu0 0
    %4398 = vperm.xlu0 %4397, %v4360
    %v4399 = vpop.permute.xlu0 %4398
    %4402 = vset.pattern.permute.xlu0 0
    %4403 = vperm.xlu0 %4402, %v4361
    %v4404 = vpop.permute.xlu0 %4403
    %4407 = vset.pattern.permute.xlu0 0
    %4408 = vperm.xlu0 %4407, %v4362
    %v4409 = vpop.permute.xlu0 %4408
    %4412 = vset.pattern.permute.xlu0 0
    %4413 = vperm.xlu0 %4412, %v4363
    %v4414 = vpop.permute.xlu0 %4413
    %4417 = vset.pattern.permute.xlu0 0
    %4418 = vperm.xlu0 %4417, %v4364
    %v4419 = vpop.permute.xlu0 %4418
    %4422 = vset.pattern.permute.xlu0 0
    %4423 = vperm.xlu0 %4422, %v4365
    %v4424 = vpop.permute.xlu0 %4423
    %4427 = vset.pattern.permute.xlu0 0
    %4428 = vperm.xlu0 %4427, %v4366
    %v4429 = vpop.permute.xlu0 %4428
    %4432 = vset.pattern.permute.xlu0 0
    %4433 = vperm.xlu0 %4432, %v4367
    %v4434 = vpop.permute.xlu0 %4433
    %4437 = vset.pattern.permute.xlu0 0
    %4438 = vperm.xlu0 %4437, %v4368
    %v4439 = vpop.permute.xlu0 %4438
    %4442 = vset.pattern.permute.xlu0 0
    %4443 = vperm.xlu0 %4442, %v4369
    %v4444 = vpop.permute.xlu0 %4443
    %4447 = vset.pattern.permute.xlu0 0
    %4448 = vperm.xlu0 %4447, %v4370
    %v4449 = vpop.permute.xlu0 %4448
    %v4451 = vmul.f32 %v4354, %v4374
    %v4452 = vmul.f32 %v4353, %v4379
    %v4453 = vmul.f32 %v4352, %v4384
    %v4454 = vmul.f32 %v4351, %v4389
    %v4455 = vmul.f32 %v4350, %v4394
    %v4456 = vmul.f32 %v4349, %v4399
    %v4457 = vmul.f32 %v4348, %v4404
    %v4458 = vmul.f32 %v4347, %v4409
    %v4459 = vmul.f32 %v4346, %v4414
    %v4460 = vmul.f32 %v4345, %v4419
    %v4461 = vmul.f32 %v4344, %v4424
    %v4462 = vmul.f32 %v4343, %v4429
    %v4463 = vmul.f32 %v4342, %v4434
    %v4464 = vmul.f32 %v4341, %v4439
    %v4465 = vmul.f32 %v4340, %v4444
    %v4466 = vmul.f32 %v4339, %v4449
    %v4467 = vpack.c.bf16 %v4451, %v4451
    %v4468 = vpack.c.bf16 %v4452, %v4452
    %v4469 = vpack.c.bf16 %v4453, %v4453
    %v4470 = vpack.c.bf16 %v4454, %v4454
    %v4471 = vpack.c.bf16 %v4455, %v4455
    %v4472 = vpack.c.bf16 %v4456, %v4456
    %v4473 = vpack.c.bf16 %v4457, %v4457
    %v4474 = vpack.c.bf16 %v4458, %v4458
    %v4475 = vpack.c.bf16 %v4459, %v4459
    %v4476 = vpack.c.bf16 %v4460, %v4460
    %v4477 = vpack.c.bf16 %v4461, %v4461
    %v4478 = vpack.c.bf16 %v4462, %v4462
    %v4479 = vpack.c.bf16 %v4463, %v4463
    %v4480 = vpack.c.bf16 %v4464, %v4464
    %v4481 = vpack.c.bf16 %v4465, %v4465
    %v4482 = vpack.c.bf16 %v4466, %v4466
    %4483 = vst [vmem:[#allocation2 + $0xc] sm:$0xf] %v4467
    %4484 = vst [vmem:[#allocation2 + $0x30] sm:$0xf] %v4468
    %4485 = vst [vmem:[#allocation2 + $0x54] sm:$0xf] %v4469
    %4486 = vst [vmem:[#allocation2 + $0x78] sm:$0xf] %v4470
    %4487 = vst [vmem:[#allocation2 + $0x9c] sm:$0xf] %v4471
    %4488 = vst [vmem:[#allocation2 + $0xc0] sm:$0xf] %v4472
    %4489 = vst [vmem:[#allocation2 + $0xe4] sm:$0xf] %v4473
    %4490 = vst [vmem:[#allocation2 + $0x108] sm:$0xf] %v4474
    %4491 = vst [vmem:[#allocation2 + $0x12c] sm:$0xf] %v4475
    %4492 = vst [vmem:[#allocation2 + $0x150] sm:$0xf] %v4476
    %4493 = vst [vmem:[#allocation2 + $0x174] sm:$0xf] %v4477
    %4494 = vst [vmem:[#allocation2 + $0x198] sm:$0xf] %v4478
    %4495 = vst [vmem:[#allocation2 + $0x1bc] sm:$0xf] %v4479
    %4496 = vst [vmem:[#allocation2 + $0x1e0] sm:$0xf] %v4480
    %4497 = vst [vmem:[#allocation2 + $0x204] sm:$0xf] %v4481
    %4498 = vst [vmem:[#allocation2 + $0x228] sm:$0xf] %v4482
    %v4499 = vld [vmem:[%s634] sm:$0xff]
    %v4500 = vld [vmem:[%s634 + $0x8] sm:$0xff]
    %v4501 = vld [vmem:[%s634 + $0x10] sm:$0xff]
    %v4502 = vld [vmem:[%s634 + $0x18] sm:$0xff]
    %v4503 = vld [vmem:[%s634 + $0x20] sm:$0xff]
    %v4504 = vld [vmem:[%s634 + $0x28] sm:$0xff]
    %v4505 = vld [vmem:[%s634 + $0x30] sm:$0xff]
    %v4506 = vld [vmem:[%s634 + $0x38] sm:$0xff]
    %v4507 = vld [vmem:[%s634 + $0x40] sm:$0xff]
    %v4508 = vld [vmem:[%s634 + $0x48] sm:$0xff]
    %v4509 = vld [vmem:[%s634 + $0x50] sm:$0xff]
    %v4510 = vld [vmem:[%s634 + $0x58] sm:$0xff]
    %v4511 = vld [vmem:[%s634 + $0x60] sm:$0xff]
    %v4512 = vld [vmem:[%s634 + $0x68] sm:$0xff]
    %v4513 = vld [vmem:[%s634 + $0x70] sm:$0xff]
    %v4514 = vld [vmem:[%s634 + $0x78] sm:$0xff]
    %4516 = vset.pattern.permute.xlu0 0
    %4517 = vperm.xlu0 %4516, %v4499
    %v4518 = vpop.permute.xlu0 %4517
    %4521 = vset.pattern.permute.xlu0 0
    %4522 = vperm.xlu0 %4521, %v4500
    %v4523 = vpop.permute.xlu0 %4522
    %4526 = vset.pattern.permute.xlu0 0
    %4527 = vperm.xlu0 %4526, %v4501
    %v4528 = vpop.permute.xlu0 %4527
    %4531 = vset.pattern.permute.xlu0 0
    %4532 = vperm.xlu0 %4531, %v4502
    %v4533 = vpop.permute.xlu0 %4532
    %4536 = vset.pattern.permute.xlu0 0
    %4537 = vperm.xlu0 %4536, %v4503
    %v4538 = vpop.permute.xlu0 %4537
    %4541 = vset.pattern.permute.xlu0 0
    %4542 = vperm.xlu0 %4541, %v4504
    %v4543 = vpop.permute.xlu0 %4542
    %4546 = vset.pattern.permute.xlu0 0
    %4547 = vperm.xlu0 %4546, %v4505
    %v4548 = vpop.permute.xlu0 %4547
    %4551 = vset.pattern.permute.xlu0 0
    %4552 = vperm.xlu0 %4551, %v4506
    %v4553 = vpop.permute.xlu0 %4552
    %4556 = vset.pattern.permute.xlu0 0
    %4557 = vperm.xlu0 %4556, %v4507
    %v4558 = vpop.permute.xlu0 %4557
    %4561 = vset.pattern.permute.xlu0 0
    %4562 = vperm.xlu0 %4561, %v4508
    %v4563 = vpop.permute.xlu0 %4562
    %4566 = vset.pattern.permute.xlu0 0
    %4567 = vperm.xlu0 %4566, %v4509
    %v4568 = vpop.permute.xlu0 %4567
    %4571 = vset.pattern.permute.xlu0 0
    %4572 = vperm.xlu0 %4571, %v4510
    %v4573 = vpop.permute.xlu0 %4572
    %4576 = vset.pattern.permute.xlu0 0
    %4577 = vperm.xlu0 %4576, %v4511
    %v4578 = vpop.permute.xlu0 %4577
    %4581 = vset.pattern.permute.xlu0 0
    %4582 = vperm.xlu0 %4581, %v4512
    %v4583 = vpop.permute.xlu0 %4582
    %4586 = vset.pattern.permute.xlu0 0
    %4587 = vperm.xlu0 %4586, %v4513
    %v4588 = vpop.permute.xlu0 %4587
    %4591 = vset.pattern.permute.xlu0 0
    %4592 = vperm.xlu0 %4591, %v4514
    %v4593 = vpop.permute.xlu0 %4592
    %v4595 = vmul.f32 %v3793, %v4518
    %v4596 = vmul.f32 %v3794, %v4523
    %v4597 = vmul.f32 %v3795, %v4528
    %v4598 = vmul.f32 %v3796, %v4533
    %v4599 = vmul.f32 %v3797, %v4538
    %v4600 = vmul.f32 %v3798, %v4543
    %v4601 = vmul.f32 %v3799, %v4548
    %v4602 = vmul.f32 %v3800, %v4553
    %v4603 = vmul.f32 %v3801, %v4558
    %v4604 = vmul.f32 %v3802, %v4563
    %v4605 = vmul.f32 %v3803, %v4568
    %v4606 = vmul.f32 %v3804, %v4573
    %v4607 = vmul.f32 %v3805, %v4578
    %v4608 = vmul.f32 %v3806, %v4583
    %v4609 = vmul.f32 %v3807, %v4588
    %v4610 = vmul.f32 %v3808, %v4593
    %v4611 = vpack.c.bf16 %v4595, %v4595
    %v4612 = vpack.c.bf16 %v4596, %v4596
    %v4613 = vpack.c.bf16 %v4597, %v4597
    %v4614 = vpack.c.bf16 %v4598, %v4598
    %v4615 = vpack.c.bf16 %v4599, %v4599
    %v4616 = vpack.c.bf16 %v4600, %v4600
    %v4617 = vpack.c.bf16 %v4601, %v4601
    %v4618 = vpack.c.bf16 %v4602, %v4602
    %v4619 = vpack.c.bf16 %v4603, %v4603
    %v4620 = vpack.c.bf16 %v4604, %v4604
    %v4621 = vpack.c.bf16 %v4605, %v4605
    %v4622 = vpack.c.bf16 %v4606, %v4606
    %v4623 = vpack.c.bf16 %v4607, %v4607
    %v4624 = vpack.c.bf16 %v4608, %v4608
    %v4625 = vpack.c.bf16 %v4609, %v4609
    %v4626 = vpack.c.bf16 %v4610, %v4610
    %4627 = vst [vmem:[#allocation2 + $0x10] sm:$0xf] %v4611
    %4628 = vst [vmem:[#allocation2 + $0x34] sm:$0xf] %v4612
    %4629 = vst [vmem:[#allocation2 + $0x58] sm:$0xf] %v4613
    %4630 = vst [vmem:[#allocation2 + $0x7c] sm:$0xf] %v4614
    %4631 = vst [vmem:[#allocation2 + $0xa0] sm:$0xf] %v4615
    %4632 = vst [vmem:[#allocation2 + $0xc4] sm:$0xf] %v4616
    %4633 = vst [vmem:[#allocation2 + $0xe8] sm:$0xf] %v4617
    %4634 = vst [vmem:[#allocation2 + $0x10c] sm:$0xf] %v4618
    %4635 = vst [vmem:[#allocation2 + $0x130] sm:$0xf] %v4619
    %4636 = vst [vmem:[#allocation2 + $0x154] sm:$0xf] %v4620
    %4637 = vst [vmem:[#allocation2 + $0x178] sm:$0xf] %v4621
    %4638 = vst [vmem:[#allocation2 + $0x19c] sm:$0xf] %v4622
    %4639 = vst [vmem:[#allocation2 + $0x1c0] sm:$0xf] %v4623
    %4640 = vst [vmem:[#allocation2 + $0x1e4] sm:$0xf] %v4624
    %4641 = vst [vmem:[#allocation2 + $0x208] sm:$0xf] %v4625
    %4642 = vst [vmem:[#allocation2 + $0x22c] sm:$0xf] %v4626
    %v4643 = vld [vmem:[%s1475] sm:$0xff]
    %v4644 = vld [vmem:[%s1475 + $0x8] sm:$0xff]
    %v4645 = vld [vmem:[%s1475 + $0x10] sm:$0xff]
    %v4646 = vld [vmem:[%s1475 + $0x18] sm:$0xff]
    %v4647 = vld [vmem:[%s1475 + $0x20] sm:$0xff]
    %v4648 = vld [vmem:[%s1475 + $0x28] sm:$0xff]
    %v4649 = vld [vmem:[%s1475 + $0x30] sm:$0xff]
    %v4650 = vld [vmem:[%s1475 + $0x38] sm:$0xff]
    %v4651 = vld [vmem:[%s1475 + $0x40] sm:$0xff]
    %v4652 = vld [vmem:[%s1475 + $0x48] sm:$0xff]
    %v4653 = vld [vmem:[%s1475 + $0x50] sm:$0xff]
    %v4654 = vld [vmem:[%s1475 + $0x58] sm:$0xff]
    %v4655 = vld [vmem:[%s1475 + $0x60] sm:$0xff]
    %v4656 = vld [vmem:[%s1475 + $0x68] sm:$0xff]
    %v4657 = vld [vmem:[%s1475 + $0x70] sm:$0xff]
    %v4658 = vld [vmem:[%s1475 + $0x78] sm:$0xff]
    %4660 = vset.pattern.permute.xlu0 0
    %4661 = vperm.xlu0 %4660, %v4643
    %v4662 = vpop.permute.xlu0 %4661
    %4665 = vset.pattern.permute.xlu0 0
    %4666 = vperm.xlu0 %4665, %v4644
    %v4667 = vpop.permute.xlu0 %4666
    %4670 = vset.pattern.permute.xlu0 0
    %4671 = vperm.xlu0 %4670, %v4645
    %v4672 = vpop.permute.xlu0 %4671
    %4675 = vset.pattern.permute.xlu0 0
    %4676 = vperm.xlu0 %4675, %v4646
    %v4677 = vpop.permute.xlu0 %4676
    %4680 = vset.pattern.permute.xlu0 0
    %4681 = vperm.xlu0 %4680, %v4647
    %v4682 = vpop.permute.xlu0 %4681
    %4685 = vset.pattern.permute.xlu0 0
    %4686 = vperm.xlu0 %4685, %v4648
    %v4687 = vpop.permute.xlu0 %4686
    %4690 = vset.pattern.permute.xlu0 0
    %4691 = vperm.xlu0 %4690, %v4649
    %v4692 = vpop.permute.xlu0 %4691
    %4695 = vset.pattern.permute.xlu0 0
    %4696 = vperm.xlu0 %4695, %v4650
    %v4697 = vpop.permute.xlu0 %4696
    %4700 = vset.pattern.permute.xlu0 0
    %4701 = vperm.xlu0 %4700, %v4651
    %v4702 = vpop.permute.xlu0 %4701
    %4705 = vset.pattern.permute.xlu0 0
    %4706 = vperm.xlu0 %4705, %v4652
    %v4707 = vpop.permute.xlu0 %4706
    %4710 = vset.pattern.permute.xlu0 0
    %4711 = vperm.xlu0 %4710, %v4653
    %v4712 = vpop.permute.xlu0 %4711
    %4715 = vset.pattern.permute.xlu0 0
    %4716 = vperm.xlu0 %4715, %v4654
    %v4717 = vpop.permute.xlu0 %4716
    %4720 = vset.pattern.permute.xlu0 0
    %4721 = vperm.xlu0 %4720, %v4655
    %v4722 = vpop.permute.xlu0 %4721
    %4725 = vset.pattern.permute.xlu0 0
    %4726 = vperm.xlu0 %4725, %v4656
    %v4727 = vpop.permute.xlu0 %4726
    %4730 = vset.pattern.permute.xlu0 0
    %4731 = vperm.xlu0 %4730, %v4657
    %v4732 = vpop.permute.xlu0 %4731
    %4735 = vset.pattern.permute.xlu0 0
    %4736 = vperm.xlu0 %4735, %v4658
    %v4737 = vpop.permute.xlu0 %4736
    %v4739 = vmul.f32 %v4001, %v4662
    %v4740 = vmul.f32 %v4000, %v4667
    %v4741 = vmul.f32 %v3999, %v4672
    %v4742 = vmul.f32 %v3998, %v4677
    %v4743 = vmul.f32 %v3997, %v4682
    %v4744 = vmul.f32 %v3996, %v4687
    %v4745 = vmul.f32 %v3995, %v4692
    %v4746 = vmul.f32 %v3994, %v4697
    %v4747 = vmul.f32 %v3993, %v4702
    %v4748 = vmul.f32 %v3992, %v4707
    %v4749 = vmul.f32 %v3991, %v4712
    %v4750 = vmul.f32 %v3990, %v4717
    %v4751 = vmul.f32 %v3989, %v4722
    %v4752 = vmul.f32 %v3988, %v4727
    %v4753 = vmul.f32 %v3987, %v4732
    %v4754 = vmul.f32 %v4002, %v4737
    %v4755 = vpack.c.bf16 %v4739, %v4739
    %v4756 = vpack.c.bf16 %v4740, %v4740
    %v4757 = vpack.c.bf16 %v4741, %v4741
    %v4758 = vpack.c.bf16 %v4742, %v4742
    %v4759 = vpack.c.bf16 %v4743, %v4743
    %v4760 = vpack.c.bf16 %v4744, %v4744
    %v4761 = vpack.c.bf16 %v4745, %v4745
    %v4762 = vpack.c.bf16 %v4746, %v4746
    %v4763 = vpack.c.bf16 %v4747, %v4747
    %v4764 = vpack.c.bf16 %v4748, %v4748
    %v4765 = vpack.c.bf16 %v4749, %v4749
    %v4766 = vpack.c.bf16 %v4750, %v4750
    %v4767 = vpack.c.bf16 %v4751, %v4751
    %v4768 = vpack.c.bf16 %v4752, %v4752
    %v4769 = vpack.c.bf16 %v4753, %v4753
    %v4770 = vpack.c.bf16 %v4754, %v4754
    %4771 = vst [vmem:[#allocation2 + $0x14] sm:$0xf] %v4755
    %4772 = vst [vmem:[#allocation2 + $0x38] sm:$0xf] %v4756
    %4773 = vst [vmem:[#allocation2 + $0x5c] sm:$0xf] %v4757
    %4774 = vst [vmem:[#allocation2 + $0x80] sm:$0xf] %v4758
    %4775 = vst [vmem:[#allocation2 + $0xa4] sm:$0xf] %v4759
    %4776 = vst [vmem:[#allocation2 + $0xc8] sm:$0xf] %v4760
    %4777 = vst [vmem:[#allocation2 + $0xec] sm:$0xf] %v4761
    %4778 = vst [vmem:[#allocation2 + $0x110] sm:$0xf] %v4762
    %4779 = vst [vmem:[#allocation2 + $0x134] sm:$0xf] %v4763
    %4780 = vst [vmem:[#allocation2 + $0x158] sm:$0xf] %v4764
    %4781 = vst [vmem:[#allocation2 + $0x17c] sm:$0xf] %v4765
    %4782 = vst [vmem:[#allocation2 + $0x1a0] sm:$0xf] %v4766
    %4783 = vst [vmem:[#allocation2 + $0x1c4] sm:$0xf] %v4767
    %4784 = vst [vmem:[#allocation2 + $0x1e8] sm:$0xf] %v4768
    %4785 = vst [vmem:[#allocation2 + $0x20c] sm:$0xf] %v4769
    %4786 = vst [vmem:[#allocation2 + $0x230] sm:$0xf] %v4770
    %v4787 = vrot.slane %v3793, 6
    %v4788 = vrot.slane %v3794, 6
    %v4789 = vrot.slane %v3795, 6
    %v4790 = vrot.slane %v3796, 6
    %v4791 = vrot.slane %v3797, 6
    %v4792 = vrot.slane %v3798, 6
    %v4793 = vrot.slane %v3799, 6
    %v4794 = vrot.slane %v3800, 6
    %v4795 = vrot.slane %v3801, 6
    %v4796 = vrot.slane %v3802, 6
    %v4797 = vrot.slane %v3803, 6
    %v4798 = vrot.slane %v3804, 6
    %v4799 = vrot.slane %v3805, 6
    %v4800 = vrot.slane %v3806, 6
    %v4801 = vrot.slane %v3807, 6
    %v4802 = vrot.slane %v3808, 6
    %v4803 = vsel %vm1636, %v4801, %v4802
    %v4804 = vsel %vm1636, %v4800, %v4801
    %v4805 = vsel %vm1636, %v4799, %v4800
    %v4806 = vsel %vm1636, %v4798, %v4799
    %v4807 = vsel %vm1636, %v4797, %v4798
    %v4808 = vsel %vm1636, %v4796, %v4797
    %v4809 = vsel %vm1636, %v4795, %v4796
    %v4810 = vsel %vm1636, %v4794, %v4795
    %v4811 = vsel %vm1636, %v4793, %v4794
    %v4812 = vsel %vm1636, %v4792, %v4793
    %v4813 = vsel %vm1636, %v4791, %v4792
    %v4814 = vsel %vm1636, %v4790, %v4791
    %v4815 = vsel %vm1636, %v4789, %v4790
    %v4816 = vsel %vm1636, %v4788, %v4789
    %v4817 = vsel %vm1636, %v4787, %v4788
    %v4818 = vsel %vm1636, %v4802, %v4787
    %v4819 = vld [vmem:[%s1653] sm:$0xff]
    %v4820 = vld [vmem:[%s1653 + $0x8] sm:$0xff]
    %v4821 = vld [vmem:[%s1653 + $0x10] sm:$0xff]
    %v4822 = vld [vmem:[%s1653 + $0x18] sm:$0xff]
    %v4823 = vld [vmem:[%s1653 + $0x20] sm:$0xff]
    %v4824 = vld [vmem:[%s1653 + $0x28] sm:$0xff]
    %v4825 = vld [vmem:[%s1653 + $0x30] sm:$0xff]
    %v4826 = vld [vmem:[%s1653 + $0x38] sm:$0xff]
    %v4827 = vld [vmem:[%s1653 + $0x40] sm:$0xff]
    %v4828 = vld [vmem:[%s1653 + $0x48] sm:$0xff]
    %v4829 = vld [vmem:[%s1653 + $0x50] sm:$0xff]
    %v4830 = vld [vmem:[%s1653 + $0x58] sm:$0xff]
    %v4831 = vld [vmem:[%s1653 + $0x60] sm:$0xff]
    %v4832 = vld [vmem:[%s1653 + $0x68] sm:$0xff]
    %v4833 = vld [vmem:[%s1653 + $0x70] sm:$0xff]
    %v4834 = vld [vmem:[%s1653 + $0x78] sm:$0xff]
    %4836 = vset.pattern.permute.xlu0 0
    %4837 = vperm.xlu0 %4836, %v4819
    %v4838 = vpop.permute.xlu0 %4837
    %4841 = vset.pattern.permute.xlu0 0
    %4842 = vperm.xlu0 %4841, %v4820
    %v4843 = vpop.permute.xlu0 %4842
    %4846 = vset.pattern.permute.xlu0 0
    %4847 = vperm.xlu0 %4846, %v4821
    %v4848 = vpop.permute.xlu0 %4847
    %4851 = vset.pattern.permute.xlu0 0
    %4852 = vperm.xlu0 %4851, %v4822
    %v4853 = vpop.permute.xlu0 %4852
    %4856 = vset.pattern.permute.xlu0 0
    %4857 = vperm.xlu0 %4856, %v4823
    %v4858 = vpop.permute.xlu0 %4857
    %4861 = vset.pattern.permute.xlu0 0
    %4862 = vperm.xlu0 %4861, %v4824
    %v4863 = vpop.permute.xlu0 %4862
    %4866 = vset.pattern.permute.xlu0 0
    %4867 = vperm.xlu0 %4866, %v4825
    %v4868 = vpop.permute.xlu0 %4867
    %4871 = vset.pattern.permute.xlu0 0
    %4872 = vperm.xlu0 %4871, %v4826
    %v4873 = vpop.permute.xlu0 %4872
    %4876 = vset.pattern.permute.xlu0 0
    %4877 = vperm.xlu0 %4876, %v4827
    %v4878 = vpop.permute.xlu0 %4877
    %4881 = vset.pattern.permute.xlu0 0
    %4882 = vperm.xlu0 %4881, %v4828
    %v4883 = vpop.permute.xlu0 %4882
    %4886 = vset.pattern.permute.xlu0 0
    %4887 = vperm.xlu0 %4886, %v4829
    %v4888 = vpop.permute.xlu0 %4887
    %4891 = vset.pattern.permute.xlu0 0
    %4892 = vperm.xlu0 %4891, %v4830
    %v4893 = vpop.permute.xlu0 %4892
    %4896 = vset.pattern.permute.xlu0 0
    %4897 = vperm.xlu0 %4896, %v4831
    %v4898 = vpop.permute.xlu0 %4897
    %4901 = vset.pattern.permute.xlu0 0
    %4902 = vperm.xlu0 %4901, %v4832
    %v4903 = vpop.permute.xlu0 %4902
    %4906 = vset.pattern.permute.xlu0 0
    %4907 = vperm.xlu0 %4906, %v4833
    %v4908 = vpop.permute.xlu0 %4907
    %4911 = vset.pattern.permute.xlu0 0
    %4912 = vperm.xlu0 %4911, %v4834
    %v4913 = vpop.permute.xlu0 %4912
    %v4915 = vmul.f32 %v4817, %v4838
    %v4916 = vmul.f32 %v4816, %v4843
    %v4917 = vmul.f32 %v4815, %v4848
    %v4918 = vmul.f32 %v4814, %v4853
    %v4919 = vmul.f32 %v4813, %v4858
    %v4920 = vmul.f32 %v4812, %v4863
    %v4921 = vmul.f32 %v4811, %v4868
    %v4922 = vmul.f32 %v4810, %v4873
    %v4923 = vmul.f32 %v4809, %v4878
    %v4924 = vmul.f32 %v4808, %v4883
    %v4925 = vmul.f32 %v4807, %v4888
    %v4926 = vmul.f32 %v4806, %v4893
    %v4927 = vmul.f32 %v4805, %v4898
    %v4928 = vmul.f32 %v4804, %v4903
    %v4929 = vmul.f32 %v4803, %v4908
    %v4930 = vmul.f32 %v4818, %v4913
    %v4931 = vpack.c.bf16 %v4915, %v4915
    %v4932 = vpack.c.bf16 %v4916, %v4916
    %v4933 = vpack.c.bf16 %v4917, %v4917
    %v4934 = vpack.c.bf16 %v4918, %v4918
    %v4935 = vpack.c.bf16 %v4919, %v4919
    %v4936 = vpack.c.bf16 %v4920, %v4920
    %v4937 = vpack.c.bf16 %v4921, %v4921
    %v4938 = vpack.c.bf16 %v4922, %v4922
    %v4939 = vpack.c.bf16 %v4923, %v4923
    %v4940 = vpack.c.bf16 %v4924, %v4924
    %v4941 = vpack.c.bf16 %v4925, %v4925
    %v4942 = vpack.c.bf16 %v4926, %v4926
    %v4943 = vpack.c.bf16 %v4927, %v4927
    %v4944 = vpack.c.bf16 %v4928, %v4928
    %v4945 = vpack.c.bf16 %v4929, %v4929
    %v4946 = vpack.c.bf16 %v4930, %v4930
    %4947 = vst [vmem:[#allocation2 + $0x18] sm:$0xf] %v4931
    %4948 = vst [vmem:[#allocation2 + $0x3c] sm:$0xf] %v4932
    %4949 = vst [vmem:[#allocation2 + $0x60] sm:$0xf] %v4933
    %4950 = vst [vmem:[#allocation2 + $0x84] sm:$0xf] %v4934
    %4951 = vst [vmem:[#allocation2 + $0xa8] sm:$0xf] %v4935
    %4952 = vst [vmem:[#allocation2 + $0xcc] sm:$0xf] %v4936
    %4953 = vst [vmem:[#allocation2 + $0xf0] sm:$0xf] %v4937
    %4954 = vst [vmem:[#allocation2 + $0x114] sm:$0xf] %v4938
    %4955 = vst [vmem:[#allocation2 + $0x138] sm:$0xf] %v4939
    %4956 = vst [vmem:[#allocation2 + $0x15c] sm:$0xf] %v4940
    %4957 = vst [vmem:[#allocation2 + $0x180] sm:$0xf] %v4941
    %4958 = vst [vmem:[#allocation2 + $0x1a4] sm:$0xf] %v4942
    %4959 = vst [vmem:[#allocation2 + $0x1c8] sm:$0xf] %v4943
    %4960 = vst [vmem:[#allocation2 + $0x1ec] sm:$0xf] %v4944
    %4961 = vst [vmem:[#allocation2 + $0x210] sm:$0xf] %v4945
    %4962 = vst [vmem:[#allocation2 + $0x234] sm:$0xf] %v4946
    %v4963 = vld [vmem:[%s1798] sm:$0xff]
    %v4964 = vld [vmem:[%s1798 + $0x8] sm:$0xff]
    %v4965 = vld [vmem:[%s1798 + $0x10] sm:$0xff]
    %v4966 = vld [vmem:[%s1798 + $0x18] sm:$0xff]
    %v4967 = vld [vmem:[%s1798 + $0x20] sm:$0xff]
    %v4968 = vld [vmem:[%s1798 + $0x28] sm:$0xff]
    %v4969 = vld [vmem:[%s1798 + $0x30] sm:$0xff]
    %v4970 = vld [vmem:[%s1798 + $0x38] sm:$0xff]
    %v4971 = vld [vmem:[%s1798 + $0x40] sm:$0xff]
    %v4972 = vld [vmem:[%s1798 + $0x48] sm:$0xff]
    %v4973 = vld [vmem:[%s1798 + $0x50] sm:$0xff]
    %v4974 = vld [vmem:[%s1798 + $0x58] sm:$0xff]
    %v4975 = vld [vmem:[%s1798 + $0x60] sm:$0xff]
    %v4976 = vld [vmem:[%s1798 + $0x68] sm:$0xff]
    %v4977 = vld [vmem:[%s1798 + $0x70] sm:$0xff]
    %v4978 = vld [vmem:[%s1798 + $0x78] sm:$0xff]
    %4980 = vset.pattern.permute.xlu0 0
    %4981 = vperm.xlu0 %4980, %v4963
    %v4982 = vpop.permute.xlu0 %4981
    %4985 = vset.pattern.permute.xlu0 0
    %4986 = vperm.xlu0 %4985, %v4964
    %v4987 = vpop.permute.xlu0 %4986
    %4990 = vset.pattern.permute.xlu0 0
    %4991 = vperm.xlu0 %4990, %v4965
    %v4992 = vpop.permute.xlu0 %4991
    %4995 = vset.pattern.permute.xlu0 0
    %4996 = vperm.xlu0 %4995, %v4966
    %v4997 = vpop.permute.xlu0 %4996
    %5000 = vset.pattern.permute.xlu0 0
    %5001 = vperm.xlu0 %5000, %v4967
    %v5002 = vpop.permute.xlu0 %5001
    %5005 = vset.pattern.permute.xlu0 0
    %5006 = vperm.xlu0 %5005, %v4968
    %v5007 = vpop.permute.xlu0 %5006
    %5010 = vset.pattern.permute.xlu0 0
    %5011 = vperm.xlu0 %5010, %v4969
    %v5012 = vpop.permute.xlu0 %5011
    %5015 = vset.pattern.permute.xlu0 0
    %5016 = vperm.xlu0 %5015, %v4970
    %v5017 = vpop.permute.xlu0 %5016
    %5020 = vset.pattern.permute.xlu0 0
    %5021 = vperm.xlu0 %5020, %v4971
    %v5022 = vpop.permute.xlu0 %5021
    %5025 = vset.pattern.permute.xlu0 0
    %5026 = vperm.xlu0 %5025, %v4972
    %v5027 = vpop.permute.xlu0 %5026
    %5030 = vset.pattern.permute.xlu0 0
    %5031 = vperm.xlu0 %5030, %v4973
    %v5032 = vpop.permute.xlu0 %5031
    %5035 = vset.pattern.permute.xlu0 0
    %5036 = vperm.xlu0 %5035, %v4974
    %v5037 = vpop.permute.xlu0 %5036
    %5040 = vset.pattern.permute.xlu0 0
    %5041 = vperm.xlu0 %5040, %v4975
    %v5042 = vpop.permute.xlu0 %5041
    %5045 = vset.pattern.permute.xlu0 0
    %5046 = vperm.xlu0 %5045, %v4976
    %v5047 = vpop.permute.xlu0 %5046
    %5050 = vset.pattern.permute.xlu0 0
    %5051 = vperm.xlu0 %5050, %v4977
    %v5052 = vpop.permute.xlu0 %5051
    %5055 = vset.pattern.permute.xlu0 0
    %5056 = vperm.xlu0 %5055, %v4978
    %v5057 = vpop.permute.xlu0 %5056
    %v5059 = vmul.f32 %v4353, %v4982
    %v5060 = vmul.f32 %v4352, %v4987
    %v5061 = vmul.f32 %v4351, %v4992
    %v5062 = vmul.f32 %v4350, %v4997
    %v5063 = vmul.f32 %v4349, %v5002
    %v5064 = vmul.f32 %v4348, %v5007
    %v5065 = vmul.f32 %v4347, %v5012
    %v5066 = vmul.f32 %v4346, %v5017
    %v5067 = vmul.f32 %v4345, %v5022
    %v5068 = vmul.f32 %v4344, %v5027
    %v5069 = vmul.f32 %v4343, %v5032
    %v5070 = vmul.f32 %v4342, %v5037
    %v5071 = vmul.f32 %v4341, %v5042
    %v5072 = vmul.f32 %v4340, %v5047
    %v5073 = vmul.f32 %v4339, %v5052
    %v5074 = vmul.f32 %v4354, %v5057
    %v5075 = vpack.c.bf16 %v5059, %v5059
    %v5076 = vpack.c.bf16 %v5060, %v5060
    %v5077 = vpack.c.bf16 %v5061, %v5061
    %v5078 = vpack.c.bf16 %v5062, %v5062
    %v5079 = vpack.c.bf16 %v5063, %v5063
    %v5080 = vpack.c.bf16 %v5064, %v5064
    %v5081 = vpack.c.bf16 %v5065, %v5065
    %v5082 = vpack.c.bf16 %v5066, %v5066
    %v5083 = vpack.c.bf16 %v5067, %v5067
    %v5084 = vpack.c.bf16 %v5068, %v5068
    %v5085 = vpack.c.bf16 %v5069, %v5069
    %v5086 = vpack.c.bf16 %v5070, %v5070
    %v5087 = vpack.c.bf16 %v5071, %v5071
    %v5088 = vpack.c.bf16 %v5072, %v5072
    %v5089 = vpack.c.bf16 %v5073, %v5073
    %v5090 = vpack.c.bf16 %v5074, %v5074
    %5091 = vst [vmem:[#allocation2 + $0x1c] sm:$0xf] %v5075
    %5092 = vst [vmem:[#allocation2 + $0x40] sm:$0xf] %v5076
    %5093 = vst [vmem:[#allocation2 + $0x64] sm:$0xf] %v5077
    %5094 = vst [vmem:[#allocation2 + $0x88] sm:$0xf] %v5078
    %5095 = vst [vmem:[#allocation2 + $0xac] sm:$0xf] %v5079
    %5096 = vst [vmem:[#allocation2 + $0xd0] sm:$0xf] %v5080
    %5097 = vst [vmem:[#allocation2 + $0xf4] sm:$0xf] %v5081
    %5098 = vst [vmem:[#allocation2 + $0x118] sm:$0xf] %v5082
    %5099 = vst [vmem:[#allocation2 + $0x13c] sm:$0xf] %v5083
    %5100 = vst [vmem:[#allocation2 + $0x160] sm:$0xf] %v5084
    %5101 = vst [vmem:[#allocation2 + $0x184] sm:$0xf] %v5085
    %5102 = vst [vmem:[#allocation2 + $0x1a8] sm:$0xf] %v5086
    %5103 = vst [vmem:[#allocation2 + $0x1cc] sm:$0xf] %v5087
    %5104 = vst [vmem:[#allocation2 + $0x1f0] sm:$0xf] %v5088
    %5105 = vst [vmem:[#allocation2 + $0x214] sm:$0xf] %v5089
    %5106 = vst [vmem:[#allocation2 + $0x238] sm:$0xf] %v5090
    %v5107 = vld [vmem:[%s1943] sm:$0xff]
    %v5108 = vld [vmem:[%s1943 + $0x8] sm:$0xff]
    %v5109 = vld [vmem:[%s1943 + $0x10] sm:$0xff]
    %v5110 = vld [vmem:[%s1943 + $0x18] sm:$0xff]
    %v5111 = vld [vmem:[%s1943 + $0x20] sm:$0xff]
    %v5112 = vld [vmem:[%s1943 + $0x28] sm:$0xff]
    %v5113 = vld [vmem:[%s1943 + $0x30] sm:$0xff]
    %v5114 = vld [vmem:[%s1943 + $0x38] sm:$0xff]
    %v5115 = vld [vmem:[%s1943 + $0x40] sm:$0xff]
    %v5116 = vld [vmem:[%s1943 + $0x48] sm:$0xff]
    %v5117 = vld [vmem:[%s1943 + $0x50] sm:$0xff]
    %v5118 = vld [vmem:[%s1943 + $0x58] sm:$0xff]
    %v5119 = vld [vmem:[%s1943 + $0x60] sm:$0xff]
    %v5120 = vld [vmem:[%s1943 + $0x68] sm:$0xff]
    %v5121 = vld [vmem:[%s1943 + $0x70] sm:$0xff]
    %v5122 = vld [vmem:[%s1943 + $0x78] sm:$0xff]
    %5124 = vset.pattern.permute.xlu0 0
    %5125 = vperm.xlu0 %5124, %v5107
    %v5126 = vpop.permute.xlu0 %5125
    %5129 = vset.pattern.permute.xlu0 0
    %5130 = vperm.xlu0 %5129, %v5108
    %v5131 = vpop.permute.xlu0 %5130
    %5134 = vset.pattern.permute.xlu0 0
    %5135 = vperm.xlu0 %5134, %v5109
    %v5136 = vpop.permute.xlu0 %5135
    %5139 = vset.pattern.permute.xlu0 0
    %5140 = vperm.xlu0 %5139, %v5110
    %v5141 = vpop.permute.xlu0 %5140
    %5144 = vset.pattern.permute.xlu0 0
    %5145 = vperm.xlu0 %5144, %v5111
    %v5146 = vpop.permute.xlu0 %5145
    %5149 = vset.pattern.permute.xlu0 0
    %5150 = vperm.xlu0 %5149, %v5112
    %v5151 = vpop.permute.xlu0 %5150
    %5154 = vset.pattern.permute.xlu0 0
    %5155 = vperm.xlu0 %5154, %v5113
    %v5156 = vpop.permute.xlu0 %5155
    %5159 = vset.pattern.permute.xlu0 0
    %5160 = vperm.xlu0 %5159, %v5114
    %v5161 = vpop.permute.xlu0 %5160
    %5164 = vset.pattern.permute.xlu0 0
    %5165 = vperm.xlu0 %5164, %v5115
    %v5166 = vpop.permute.xlu0 %5165
    %5169 = vset.pattern.permute.xlu0 0
    %5170 = vperm.xlu0 %5169, %v5116
    %v5171 = vpop.permute.xlu0 %5170
    %5174 = vset.pattern.permute.xlu0 0
    %5175 = vperm.xlu0 %5174, %v5117
    %v5176 = vpop.permute.xlu0 %5175
    %5179 = vset.pattern.permute.xlu0 0
    %5180 = vperm.xlu0 %5179, %v5118
    %v5181 = vpop.permute.xlu0 %5180
    %5184 = vset.pattern.permute.xlu0 0
    %5185 = vperm.xlu0 %5184, %v5119
    %v5186 = vpop.permute.xlu0 %5185
    %5189 = vset.pattern.permute.xlu0 0
    %5190 = vperm.xlu0 %5189, %v5120
    %v5191 = vpop.permute.xlu0 %5190
    %5194 = vset.pattern.permute.xlu0 0
    %5195 = vperm.xlu0 %5194, %v5121
    %v5196 = vpop.permute.xlu0 %5195
    %5199 = vset.pattern.permute.xlu0 0
    %5200 = vperm.xlu0 %5199, %v5122
    %v5201 = vpop.permute.xlu0 %5200
    %v5203 = vmul.f32 %v3794, %v5126
    %v5204 = vmul.f32 %v3795, %v5131
    %v5205 = vmul.f32 %v3796, %v5136
    %v5206 = vmul.f32 %v3797, %v5141
    %v5207 = vmul.f32 %v3798, %v5146
    %v5208 = vmul.f32 %v3799, %v5151
    %v5209 = vmul.f32 %v3800, %v5156
    %v5210 = vmul.f32 %v3801, %v5161
    %v5211 = vmul.f32 %v3802, %v5166
    %v5212 = vmul.f32 %v3803, %v5171
    %v5213 = vmul.f32 %v3804, %v5176
    %v5214 = vmul.f32 %v3805, %v5181
    %v5215 = vmul.f32 %v3806, %v5186
    %v5216 = vmul.f32 %v3807, %v5191
    %v5217 = vmul.f32 %v3808, %v5196
    %v5218 = vmul.f32 %v3793, %v5201
    %v5219 = vpack.c.bf16 %v5203, %v5203
    %v5220 = vpack.c.bf16 %v5204, %v5204
    %v5221 = vpack.c.bf16 %v5205, %v5205
    %v5222 = vpack.c.bf16 %v5206, %v5206
    %v5223 = vpack.c.bf16 %v5207, %v5207
    %v5224 = vpack.c.bf16 %v5208, %v5208
    %v5225 = vpack.c.bf16 %v5209, %v5209
    %v5226 = vpack.c.bf16 %v5210, %v5210
    %v5227 = vpack.c.bf16 %v5211, %v5211
    %v5228 = vpack.c.bf16 %v5212, %v5212
    %v5229 = vpack.c.bf16 %v5213, %v5213
    %v5230 = vpack.c.bf16 %v5214, %v5214
    %v5231 = vpack.c.bf16 %v5215, %v5215
    %v5232 = vpack.c.bf16 %v5216, %v5216
    %v5233 = vpack.c.bf16 %v5217, %v5217
    %v5234 = vpack.c.bf16 %v5218, %v5218
    %5235 = vst [vmem:[#allocation2 + $0x20] sm:$0xf] %v5219
    %5236 = vst [vmem:[#allocation2 + $0x44] sm:$0xf] %v5220
    %5237 = vst [vmem:[#allocation2 + $0x68] sm:$0xf] %v5221
    %5238 = vst [vmem:[#allocation2 + $0x8c] sm:$0xf] %v5222
    %5239 = vst [vmem:[#allocation2 + $0xb0] sm:$0xf] %v5223
    %5240 = vst [vmem:[#allocation2 + $0xd4] sm:$0xf] %v5224
    %5241 = vst [vmem:[#allocation2 + $0xf8] sm:$0xf] %v5225
    %5242 = vst [vmem:[#allocation2 + $0x11c] sm:$0xf] %v5226
    %5243 = vst [vmem:[#allocation2 + $0x140] sm:$0xf] %v5227
    %5244 = vst [vmem:[#allocation2 + $0x164] sm:$0xf] %v5228
    %5245 = vst [vmem:[#allocation2 + $0x188] sm:$0xf] %v5229
    %5246 = vst [vmem:[#allocation2 + $0x1ac] sm:$0xf] %v5230
    %5247 = vst [vmem:[#allocation2 + $0x1d0] sm:$0xf] %v5231
    %5248 = vst [vmem:[#allocation2 + $0x1f4] sm:$0xf] %v5232
    %5249 = vst [vmem:[#allocation2 + $0x218] sm:$0xf] %v5233
    %5250 = vst [vmem:[#allocation2 + $0x23c] sm:$0xf] %v5234
    %v5251 = vld [vmem:[#allocation2] sm:$0xff]
    %v5252 = vld [vmem:[#allocation2 + $0x8] sm:$0xff]
    %v5253 = vld [vmem:[#allocation2 + $0x10] sm:$0xff]
    %v5254 = vld [vmem:[#allocation2 + $0x18] sm:$0xff]
    %v5255 = vld [vmem:[#allocation2 + $0x20] sm:$0xf]
    %v5256 = vld [vmem:[#allocation2 + $0x24] sm:$0xff]
    %v5257 = vld [vmem:[#allocation2 + $0x2c] sm:$0xff]
    %v5258 = vld [vmem:[#allocation2 + $0x34] sm:$0xff]
    %v5259 = vld [vmem:[#allocation2 + $0x3c] sm:$0xff]
    %v5260 = vld [vmem:[#allocation2 + $0x44] sm:$0xf]
    %v5261 = vld [vmem:[#allocation2 + $0x48] sm:$0xff]
    %v5262 = vld [vmem:[#allocation2 + $0x50] sm:$0xff]
    %v5263 = vld [vmem:[#allocation2 + $0x58] sm:$0xff]
    %v5264 = vld [vmem:[#allocation2 + $0x60] sm:$0xff]
    %v5265 = vld [vmem:[#allocation2 + $0x68] sm:$0xf]
    %v5266 = vld [vmem:[#allocation2 + $0x6c] sm:$0xff]
    %v5267 = vld [vmem:[#allocation2 + $0x74] sm:$0xff]
    %v5268 = vld [vmem:[#allocation2 + $0x7c] sm:$0xff]
    %v5269 = vld [vmem:[#allocation2 + $0x84] sm:$0xff]
    %v5270 = vld [vmem:[#allocation2 + $0x8c] sm:$0xf]
    %v5271 = vld [vmem:[#allocation2 + $0x90] sm:$0xff]
    %v5272 = vld [vmem:[#allocation2 + $0x98] sm:$0xff]
    %v5273 = vld [vmem:[#allocation2 + $0xa0] sm:$0xff]
    %v5274 = vld [vmem:[#allocation2 + $0xa8] sm:$0xff]
    %v5275 = vld [vmem:[#allocation2 + $0xb0] sm:$0xf]
    %v5276 = vld [vmem:[#allocation2 + $0xb4] sm:$0xff]
    %v5277 = vld [vmem:[#allocation2 + $0xbc] sm:$0xff]
    %v5278 = vld [vmem:[#allocation2 + $0xc4] sm:$0xff]
    %v5279 = vld [vmem:[#allocation2 + $0xcc] sm:$0xff]
    %v5280 = vld [vmem:[#allocation2 + $0xd4] sm:$0xf]
    %v5281 = vld [vmem:[#allocation2 + $0xd8] sm:$0xff]
    %v5282 = vld [vmem:[#allocation2 + $0xe0] sm:$0xff]
    %v5283 = vld [vmem:[#allocation2 + $0xe8] sm:$0xff]
    %v5284 = vld [vmem:[#allocation2 + $0xf0] sm:$0xff]
    %v5285 = vld [vmem:[#allocation2 + $0xf8] sm:$0xf]
    %v5286 = vld [vmem:[#allocation2 + $0xfc] sm:$0xff]
    %v5287 = vld [vmem:[#allocation2 + $0x104] sm:$0xff]
    %v5288 = vld [vmem:[#allocation2 + $0x10c] sm:$0xff]
    %v5289 = vld [vmem:[#allocation2 + $0x114] sm:$0xff]
    %v5290 = vld [vmem:[#allocation2 + $0x11c] sm:$0xf]
    %v5291 = vld [vmem:[#allocation2 + $0x120] sm:$0xff]
    %v5292 = vld [vmem:[#allocation2 + $0x128] sm:$0xff]
    %v5293 = vld [vmem:[#allocation2 + $0x130] sm:$0xff]
    %v5294 = vld [vmem:[#allocation2 + $0x138] sm:$0xff]
    %v5295 = vld [vmem:[#allocation2 + $0x140] sm:$0xf]
    %v5296 = vld [vmem:[#allocation2 + $0x144] sm:$0xff]
    %v5297 = vld [vmem:[#allocation2 + $0x14c] sm:$0xff]
    %v5298 = vld [vmem:[#allocation2 + $0x154] sm:$0xff]
    %v5299 = vld [vmem:[#allocation2 + $0x15c] sm:$0xff]
    %v5300 = vld [vmem:[#allocation2 + $0x164] sm:$0xf]
    %v5301 = vld [vmem:[#allocation2 + $0x168] sm:$0xff]
    %v5302 = vld [vmem:[#allocation2 + $0x170] sm:$0xff]
    %v5303 = vld [vmem:[#allocation2 + $0x178] sm:$0xff]
    %v5304 = vld [vmem:[#allocation2 + $0x180] sm:$0xff]
    %v5305 = vld [vmem:[#allocation2 + $0x188] sm:$0xf]
    %v5306 = vld [vmem:[#allocation2 + $0x18c] sm:$0xff]
    %v5307 = vld [vmem:[#allocation2 + $0x194] sm:$0xff]
    %v5308 = vld [vmem:[#allocation2 + $0x19c] sm:$0xff]
    %v5309 = vld [vmem:[#allocation2 + $0x1a4] sm:$0xff]
    %v5310 = vld [vmem:[#allocation2 + $0x1ac] sm:$0xf]
    %v5311 = vld [vmem:[#allocation2 + $0x1b0] sm:$0xff]
    %v5312 = vld [vmem:[#allocation2 + $0x1b8] sm:$0xff]
    %v5313 = vld [vmem:[#allocation2 + $0x1c0] sm:$0xff]
    %v5314 = vld [vmem:[#allocation2 + $0x1c8] sm:$0xff]
    %v5315 = vld [vmem:[#allocation2 + $0x1d0] sm:$0xf]
    %v5316 = vld [vmem:[#allocation2 + $0x1d4] sm:$0xff]
    %v5317 = vld [vmem:[#allocation2 + $0x1dc] sm:$0xff]
    %v5318 = vld [vmem:[#allocation2 + $0x1e4] sm:$0xff]
    %v5319 = vld [vmem:[#allocation2 + $0x1ec] sm:$0xff]
    %v5320 = vld [vmem:[#allocation2 + $0x1f4] sm:$0xf]
    %v5321 = vld [vmem:[#allocation2 + $0x1f8] sm:$0xff]
    %v5322 = vld [vmem:[#allocation2 + $0x200] sm:$0xff]
    %v5323 = vld [vmem:[#allocation2 + $0x208] sm:$0xff]
    %v5324 = vld [vmem:[#allocation2 + $0x210] sm:$0xff]
    %v5325 = vld [vmem:[#allocation2 + $0x218] sm:$0xf]
    %v5326 = vld [vmem:[#allocation2 + $0x21c] sm:$0xff]
    %v5327 = vld [vmem:[#allocation2 + $0x224] sm:$0xff]
    %v5328 = vld [vmem:[#allocation2 + $0x22c] sm:$0xff]
    %v5329 = vld [vmem:[#allocation2 + $0x234] sm:$0xff]
    %v5330 = vld [vmem:[#allocation2 + $0x23c] sm:$0xf]
    %v5331 = vld [vmem:[#allocation7] sm:$0xf]
    %v5332 = vld [vmem:[#allocation7 + $0x4] sm:$0xf]
    %v5333 = vld [vmem:[#allocation7 + $0x8] sm:$0xf]
    %v5334 = vld [vmem:[#allocation7 + $0xc] sm:$0xf]
    %v5335 = vld [vmem:[#allocation7 + $0x10] sm:$0xf]
    %v5336 = vld [vmem:[#allocation7 + $0x14] sm:$0xf]
    %v5337 = vld [vmem:[#allocation7 + $0x18] sm:$0xf]
    %v5338 = vld [vmem:[#allocation7 + $0x1c] sm:$0xf]
    %v5339 = vld [vmem:[#allocation7 + $0x20] sm:$0xf]
    %v5340 = vld [vmem:[#allocation7 + $0x24] sm:$0xf]
    %v5341 = vld [vmem:[#allocation7 + $0x28] sm:$0xf]
    %v5342 = vld [vmem:[#allocation7 + $0x2c] sm:$0xf]
    %v5343 = vld [vmem:[#allocation7 + $0x30] sm:$0xf]
    %v5344 = vld [vmem:[#allocation7 + $0x34] sm:$0xf]
    %v5345 = vld [vmem:[#allocation7 + $0x38] sm:$0xf]
    %v5346 = vld [vmem:[#allocation7 + $0x3c] sm:$0xf]
    %v5347 = vld [vmem:[#allocation7 + $0x40] sm:$0xf]
    %v5348 = vld [vmem:[#allocation7 + $0x44] sm:$0xf]
    %v5349 = vld [vmem:[#allocation7 + $0x48] sm:$0xf]
    %v5350 = vld [vmem:[#allocation7 + $0x4c] sm:$0xf]
    %v5351 = vld [vmem:[#allocation7 + $0x50] sm:$0xf]
    %v5352 = vld [vmem:[#allocation7 + $0x54] sm:$0xf]
    %v5353 = vld [vmem:[#allocation7 + $0x58] sm:$0xf]
    %v5354 = vld [vmem:[#allocation7 + $0x5c] sm:$0xf]
    %v5355 = vld [vmem:[#allocation7 + $0x60] sm:$0xf]
    %v5356 = vld [vmem:[#allocation7 + $0x64] sm:$0xf]
    %v5357 = vld [vmem:[#allocation7 + $0x68] sm:$0xf]
    %v5358 = vld [vmem:[#allocation7 + $0x6c] sm:$0xf]
    %v5359 = vld [vmem:[#allocation7 + $0x70] sm:$0xf]
    %v5360 = vld [vmem:[#allocation7 + $0x74] sm:$0xf]
    %v5361 = vld [vmem:[#allocation7 + $0x78] sm:$0xf]
    %v5362 = vld [vmem:[#allocation7 + $0x7c] sm:$0xf]
    %v5363 = vld [vmem:[#allocation7 + $0x80] sm:$0xf]
    %v5364 = vld [vmem:[#allocation7 + $0x84] sm:$0xf]
    %v5365 = vld [vmem:[#allocation7 + $0x88] sm:$0xf]
    %v5366 = vld [vmem:[#allocation7 + $0x8c] sm:$0xf]
    %v5367 = vld [vmem:[#allocation7 + $0x90] sm:$0xf]
    %v5368 = vld [vmem:[#allocation7 + $0x94] sm:$0xf]
    %v5369 = vld [vmem:[#allocation7 + $0x98] sm:$0xf]
    %v5370 = vld [vmem:[#allocation7 + $0x9c] sm:$0xf]
    %v5371 = vld [vmem:[#allocation7 + $0xa0] sm:$0xf]
    %v5372 = vld [vmem:[#allocation7 + $0xa4] sm:$0xf]
    %v5373 = vld [vmem:[#allocation7 + $0xa8] sm:$0xf]
    %v5374 = vld [vmem:[#allocation7 + $0xac] sm:$0xf]
    %v5375 = vld [vmem:[#allocation7 + $0xb0] sm:$0xf]
    %v5376 = vld [vmem:[#allocation7 + $0xb4] sm:$0xf]
    %v5377 = vld [vmem:[#allocation7 + $0xb8] sm:$0xf]
    %v5378 = vld [vmem:[#allocation7 + $0xbc] sm:$0xf]
    %v5379 = vld [vmem:[#allocation7 + $0xc0] sm:$0xf]
    %v5380 = vld [vmem:[#allocation7 + $0xc4] sm:$0xf]
    %v5381 = vld [vmem:[#allocation7 + $0xc8] sm:$0xf]
    %v5382 = vld [vmem:[#allocation7 + $0xcc] sm:$0xf]
    %v5383 = vld [vmem:[#allocation7 + $0xd0] sm:$0xf]
    %v5384 = vld [vmem:[#allocation7 + $0xd4] sm:$0xf]
    %v5385 = vld [vmem:[#allocation7 + $0xd8] sm:$0xf]
    %v5386 = vld [vmem:[#allocation7 + $0xdc] sm:$0xf]
    %v5387 = vld [vmem:[#allocation7 + $0xe0] sm:$0xf]
    %v5388 = vld [vmem:[#allocation7 + $0xe4] sm:$0xf]
    %v5389 = vld [vmem:[#allocation7 + $0xe8] sm:$0xf]
    %v5390 = vld [vmem:[#allocation7 + $0xec] sm:$0xf]
    %v5391 = vld [vmem:[#allocation7 + $0xf0] sm:$0xf]
    %v5392 = vld [vmem:[#allocation7 + $0xf4] sm:$0xf]
    %v5393 = vld [vmem:[#allocation7 + $0xf8] sm:$0xf]
    %v5394 = vld [vmem:[#allocation7 + $0xfc] sm:$0xf]
    %v5395 = vld [vmem:[#allocation7 + $0x100] sm:$0xf]
    %v5396 = vld [vmem:[#allocation7 + $0x104] sm:$0xf]
    %v5397 = vld [vmem:[#allocation7 + $0x108] sm:$0xf]
    %v5398 = vld [vmem:[#allocation7 + $0x10c] sm:$0xf]
    %v5399 = vld [vmem:[#allocation7 + $0x110] sm:$0xf]
    %v5400 = vld [vmem:[#allocation7 + $0x114] sm:$0xf]
    %v5401 = vld [vmem:[#allocation7 + $0x118] sm:$0xf]
    %v5402 = vld [vmem:[#allocation7 + $0x11c] sm:$0xf]
    %v5403 = vld [vmem:[#allocation7 + $0x120] sm:$0xf]
    %v5404 = vld [vmem:[#allocation7 + $0x124] sm:$0xf]
    %v5405 = vld [vmem:[#allocation7 + $0x128] sm:$0xf]
    %v5406 = vld [vmem:[#allocation7 + $0x12c] sm:$0xf]
    %v5407 = vld [vmem:[#allocation7 + $0x130] sm:$0xf]
    %v5408 = vld [vmem:[#allocation7 + $0x134] sm:$0xf]
    %v5409 = vld [vmem:[#allocation7 + $0x138] sm:$0xf]
    %v5410 = vld [vmem:[#allocation7 + $0x13c] sm:$0xf]
    %v5411 = vld [vmem:[#allocation7 + $0x140] sm:$0xf]
    %v5412 = vld [vmem:[#allocation7 + $0x144] sm:$0xf]
    %v5413 = vld [vmem:[#allocation7 + $0x148] sm:$0xf]
    %v5414 = vld [vmem:[#allocation7 + $0x14c] sm:$0xf]
    %v5415 = vld [vmem:[#allocation7 + $0x150] sm:$0xf]
    %v5416 = vld [vmem:[#allocation7 + $0x154] sm:$0xf]
    %v5417 = vld [vmem:[#allocation7 + $0x158] sm:$0xf]
    %v5418 = vld [vmem:[#allocation7 + $0x15c] sm:$0xf]
    %v5419 = vld [vmem:[#allocation7 + $0x160] sm:$0xf]
    %v5420 = vld [vmem:[#allocation7 + $0x164] sm:$0xf]
    %v5421 = vld [vmem:[#allocation7 + $0x168] sm:$0xf]
    %v5422 = vld [vmem:[#allocation7 + $0x16c] sm:$0xf]
    %v5423 = vld [vmem:[#allocation7 + $0x170] sm:$0xf]
    %v5424 = vld [vmem:[#allocation7 + $0x174] sm:$0xf]
    %v5425 = vld [vmem:[#allocation7 + $0x178] sm:$0xf]
    %v5426 = vld [vmem:[#allocation7 + $0x17c] sm:$0xf]
    %v5427 = vld [vmem:[#allocation7 + $0x180] sm:$0xf]
    %v5428 = vld [vmem:[#allocation7 + $0x184] sm:$0xf]
    %v5429 = vld [vmem:[#allocation7 + $0x188] sm:$0xf]
    %v5430 = vld [vmem:[#allocation7 + $0x18c] sm:$0xf]
    %v5431 = vld [vmem:[#allocation7 + $0x190] sm:$0xf]
    %v5432 = vld [vmem:[#allocation7 + $0x194] sm:$0xf]
    %v5433 = vld [vmem:[#allocation7 + $0x198] sm:$0xf]
    %v5434 = vld [vmem:[#allocation7 + $0x19c] sm:$0xf]
    %v5435 = vld [vmem:[#allocation7 + $0x1a0] sm:$0xf]
    %v5436 = vld [vmem:[#allocation7 + $0x1a4] sm:$0xf]
    %v5437 = vld [vmem:[#allocation7 + $0x1a8] sm:$0xf]
    %v5438 = vld [vmem:[#allocation7 + $0x1ac] sm:$0xf]
    %v5439 = vld [vmem:[#allocation7 + $0x1b0] sm:$0xf]
    %v5440 = vld [vmem:[#allocation7 + $0x1b4] sm:$0xf]
    %v5441 = vld [vmem:[#allocation7 + $0x1b8] sm:$0xf]
    %v5442 = vld [vmem:[#allocation7 + $0x1bc] sm:$0xf]
    %v5443 = vld [vmem:[#allocation7 + $0x1c0] sm:$0xf]
    %v5444 = vld [vmem:[#allocation7 + $0x1c4] sm:$0xf]
    %v5445 = vld [vmem:[#allocation7 + $0x1c8] sm:$0xf]
    %v5446 = vld [vmem:[#allocation7 + $0x1cc] sm:$0xf]
    %v5447 = vld [vmem:[#allocation7 + $0x1d0] sm:$0xf]
    %v5448 = vld [vmem:[#allocation7 + $0x1d4] sm:$0xf]
    %v5449 = vld [vmem:[#allocation7 + $0x1d8] sm:$0xf]
    %v5450 = vld [vmem:[#allocation7 + $0x1dc] sm:$0xf]
    %v5451 = vld [vmem:[#allocation7 + $0x1e0] sm:$0xf]
    %v5452 = vld [vmem:[#allocation7 + $0x1e4] sm:$0xf]
    %v5453 = vld [vmem:[#allocation7 + $0x1e8] sm:$0xf]
    %v5454 = vld [vmem:[#allocation7 + $0x1ec] sm:$0xf]
    %v5455 = vld [vmem:[#allocation7 + $0x1f0] sm:$0xf]
    %v5456 = vld [vmem:[#allocation7 + $0x1f4] sm:$0xf]
    %v5457 = vld [vmem:[#allocation7 + $0x1f8] sm:$0xf]
    %v5458 = vld [vmem:[#allocation7 + $0x1fc] sm:$0xf]
    %v5459 = vld [vmem:[#allocation7 + $0x200] sm:$0xf]
    %v5460 = vld [vmem:[#allocation7 + $0x204] sm:$0xf]
    %v5461 = vld [vmem:[#allocation7 + $0x208] sm:$0xf]
    %v5462 = vld [vmem:[#allocation7 + $0x20c] sm:$0xf]
    %v5463 = vld [vmem:[#allocation7 + $0x210] sm:$0xf]
    %v5464 = vld [vmem:[#allocation7 + $0x214] sm:$0xf]
    %v5465 = vld [vmem:[#allocation7 + $0x218] sm:$0xf]
    %v5466 = vld [vmem:[#allocation7 + $0x21c] sm:$0xf]
    %v5467 = vld [vmem:[#allocation7 + $0x220] sm:$0xf]
    %v5468 = vld [vmem:[#allocation7 + $0x224] sm:$0xf]
    %v5469 = vld [vmem:[#allocation7 + $0x228] sm:$0xf]
    %v5470 = vld [vmem:[#allocation7 + $0x22c] sm:$0xf]
    %v5471 = vld [vmem:[#allocation7 + $0x230] sm:$0xf]
    %v5472 = vld [vmem:[#allocation7 + $0x234] sm:$0xf]
    %v5473 = vld [vmem:[#allocation7 + $0x238] sm:$0xf]
    %v5474 = vld [vmem:[#allocation7 + $0x23c] sm:$0xf]
    %v5555 = vunpack.c.l.b16 %v5251
    %v5556 = vunpack.c.h.b16 %v5251
    %v5557 = vunpack.c.l.b16 %v5252
    %v5558 = vunpack.c.h.b16 %v5252
    %v5559 = vunpack.c.l.b16 %v5253
    %v5560 = vunpack.c.h.b16 %v5253
    %v5561 = vunpack.c.l.b16 %v5254
    %v5562 = vunpack.c.h.b16 %v5254
    %v5563 = vunpack.c.l.b16 %v5255
    %v5564 = vunpack.c.l.b16 %v5256
    %v5565 = vunpack.c.h.b16 %v5256
    %v5566 = vunpack.c.l.b16 %v5257
    %v5567 = vunpack.c.h.b16 %v5257
    %v5568 = vunpack.c.l.b16 %v5258
    %v5569 = vunpack.c.h.b16 %v5258
    %v5570 = vunpack.c.l.b16 %v5259
    %v5571 = vunpack.c.h.b16 %v5259
    %v5572 = vunpack.c.l.b16 %v5260
    %v5573 = vunpack.c.l.b16 %v5261
    %v5574 = vunpack.c.h.b16 %v5261
    %v5575 = vunpack.c.l.b16 %v5262
    %v5576 = vunpack.c.h.b16 %v5262
    %v5577 = vunpack.c.l.b16 %v5263
    %v5578 = vunpack.c.h.b16 %v5263
    %v5579 = vunpack.c.l.b16 %v5264
    %v5580 = vunpack.c.h.b16 %v5264
    %v5581 = vunpack.c.l.b16 %v5265
    %v5582 = vunpack.c.l.b16 %v5266
    %v5583 = vunpack.c.h.b16 %v5266
    %v5584 = vunpack.c.l.b16 %v5267
    %v5585 = vunpack.c.h.b16 %v5267
    %v5586 = vunpack.c.l.b16 %v5268
    %v5587 = vunpack.c.h.b16 %v5268
    %v5588 = vunpack.c.l.b16 %v5269
    %v5589 = vunpack.c.h.b16 %v5269
    %v5590 = vunpack.c.l.b16 %v5270
    %v5591 = vunpack.c.l.b16 %v5271
    %v5592 = vunpack.c.h.b16 %v5271
    %v5593 = vunpack.c.l.b16 %v5272
    %v5594 = vunpack.c.h.b16 %v5272
    %v5595 = vunpack.c.l.b16 %v5273
    %v5596 = vunpack.c.h.b16 %v5273
    %v5597 = vunpack.c.l.b16 %v5274
    %v5598 = vunpack.c.h.b16 %v5274
    %v5599 = vunpack.c.l.b16 %v5275
    %v5600 = vunpack.c.l.b16 %v5276
    %v5601 = vunpack.c.h.b16 %v5276
    %v5602 = vunpack.c.l.b16 %v5277
    %v5603 = vunpack.c.h.b16 %v5277
    %v5604 = vunpack.c.l.b16 %v5278
    %v5605 = vunpack.c.h.b16 %v5278
    %v5606 = vunpack.c.l.b16 %v5279
    %v5607 = vunpack.c.h.b16 %v5279
    %v5608 = vunpack.c.l.b16 %v5280
    %v5609 = vunpack.c.l.b16 %v5281
    %v5610 = vunpack.c.h.b16 %v5281
    %v5611 = vunpack.c.l.b16 %v5282
    %v5612 = vunpack.c.h.b16 %v5282
    %v5613 = vunpack.c.l.b16 %v5283
    %v5614 = vunpack.c.h.b16 %v5283
    %v5615 = vunpack.c.l.b16 %v5284
    %v5616 = vunpack.c.h.b16 %v5284
    %v5617 = vunpack.c.l.b16 %v5285
    %v5618 = vunpack.c.l.b16 %v5286
    %v5619 = vunpack.c.h.b16 %v5286
    %v5620 = vunpack.c.l.b16 %v5287
    %v5621 = vunpack.c.h.b16 %v5287
    %v5622 = vunpack.c.l.b16 %v5288
    %v5623 = vunpack.c.h.b16 %v5288
    %v5624 = vunpack.c.l.b16 %v5289
    %v5625 = vunpack.c.h.b16 %v5289
    %v5626 = vunpack.c.l.b16 %v5290
    %v5627 = vunpack.c.l.b16 %v5291
    %v5628 = vunpack.c.h.b16 %v5291
    %v5629 = vunpack.c.l.b16 %v5292
    %v5630 = vunpack.c.h.b16 %v5292
    %v5631 = vunpack.c.l.b16 %v5293
    %v5632 = vunpack.c.h.b16 %v5293
    %v5633 = vunpack.c.l.b16 %v5294
    %v5634 = vunpack.c.h.b16 %v5294
    %v5635 = vunpack.c.l.b16 %v5295
    %v5636 = vunpack.c.l.b16 %v5296
    %v5637 = vunpack.c.h.b16 %v5296
    %v5638 = vunpack.c.l.b16 %v5297
    %v5639 = vunpack.c.h.b16 %v5297
    %v5640 = vunpack.c.l.b16 %v5298
    %v5641 = vunpack.c.h.b16 %v5298
    %v5642 = vunpack.c.l.b16 %v5299
    %v5643 = vunpack.c.h.b16 %v5299
    %v5644 = vunpack.c.l.b16 %v5300
    %v5645 = vunpack.c.l.b16 %v5301
    %v5646 = vunpack.c.h.b16 %v5301
    %v5647 = vunpack.c.l.b16 %v5302
    %v5648 = vunpack.c.h.b16 %v5302
    %v5649 = vunpack.c.l.b16 %v5303
    %v5650 = vunpack.c.h.b16 %v5303
    %v5651 = vunpack.c.l.b16 %v5304
    %v5652 = vunpack.c.h.b16 %v5304
    %v5653 = vunpack.c.l.b16 %v5305
    %v5654 = vunpack.c.l.b16 %v5306
    %v5655 = vunpack.c.h.b16 %v5306
    %v5656 = vunpack.c.l.b16 %v5307
    %v5657 = vunpack.c.h.b16 %v5307
    %v5658 = vunpack.c.l.b16 %v5308
    %v5659 = vunpack.c.h.b16 %v5308
    %v5660 = vunpack.c.l.b16 %v5309
    %v5661 = vunpack.c.h.b16 %v5309
    %v5662 = vunpack.c.l.b16 %v5310
    %v5663 = vunpack.c.l.b16 %v5311
    %v5664 = vunpack.c.h.b16 %v5311
    %v5665 = vunpack.c.l.b16 %v5312
    %v5666 = vunpack.c.h.b16 %v5312
    %v5667 = vunpack.c.l.b16 %v5313
    %v5668 = vunpack.c.h.b16 %v5313
    %v5669 = vunpack.c.l.b16 %v5314
    %v5670 = vunpack.c.h.b16 %v5314
    %v5671 = vunpack.c.l.b16 %v5315
    %v5672 = vunpack.c.l.b16 %v5316
    %v5673 = vunpack.c.h.b16 %v5316
    %v5674 = vunpack.c.l.b16 %v5317
    %v5675 = vunpack.c.h.b16 %v5317
    %v5676 = vunpack.c.l.b16 %v5318
    %v5677 = vunpack.c.h.b16 %v5318
    %v5678 = vunpack.c.l.b16 %v5319
    %v5679 = vunpack.c.h.b16 %v5319
    %v5680 = vunpack.c.l.b16 %v5320
    %v5681 = vunpack.c.l.b16 %v5321
    %v5682 = vunpack.c.h.b16 %v5321
    %v5683 = vunpack.c.l.b16 %v5322
    %v5684 = vunpack.c.h.b16 %v5322
    %v5685 = vunpack.c.l.b16 %v5323
    %v5686 = vunpack.c.h.b16 %v5323
    %v5687 = vunpack.c.l.b16 %v5324
    %v5688 = vunpack.c.h.b16 %v5324
    %v5689 = vunpack.c.l.b16 %v5325
    %v5690 = vunpack.c.l.b16 %v5326
    %v5691 = vunpack.c.h.b16 %v5326
    %v5692 = vunpack.c.l.b16 %v5327
    %v5693 = vunpack.c.h.b16 %v5327
    %v5694 = vunpack.c.l.b16 %v5328
    %v5695 = vunpack.c.h.b16 %v5328
    %v5696 = vunpack.c.l.b16 %v5329
    %v5697 = vunpack.c.h.b16 %v5329
    %v5698 = vunpack.c.l.b16 %v5330
    %v5699 = vpack.c.b16 %v5564, %v5555
    %v5700 = vpack.c.b16 %v5565, %v5556
    %v5701 = vpack.c.b16 %v5566, %v5557
    %v5702 = vpack.c.b16 %v5567, %v5558
    %v5703 = vpack.c.b16 %v5568, %v5559
    %v5704 = vpack.c.b16 %v5569, %v5560
    %v5705 = vpack.c.b16 %v5570, %v5561
    %v5706 = vpack.c.b16 %v5571, %v5562
    %v5707 = vpack.c.b16 %v5572, %v5563
    %v5708 = vpack.c.b16 %v5582, %v5573
    %v5709 = vpack.c.b16 %v5583, %v5574
    %v5710 = vpack.c.b16 %v5584, %v5575
    %v5711 = vpack.c.b16 %v5585, %v5576
    %v5712 = vpack.c.b16 %v5586, %v5577
    %v5713 = vpack.c.b16 %v5587, %v5578
    %v5714 = vpack.c.b16 %v5588, %v5579
    %v5715 = vpack.c.b16 %v5589, %v5580
    %v5716 = vpack.c.b16 %v5590, %v5581
    %v5717 = vpack.c.b16 %v5600, %v5591
    %v5718 = vpack.c.b16 %v5601, %v5592
    %v5719 = vpack.c.b16 %v5602, %v5593
    %v5720 = vpack.c.b16 %v5603, %v5594
    %v5721 = vpack.c.b16 %v5604, %v5595
    %v5722 = vpack.c.b16 %v5605, %v5596
    %v5723 = vpack.c.b16 %v5606, %v5597
    %v5724 = vpack.c.b16 %v5607, %v5598
    %v5725 = vpack.c.b16 %v5608, %v5599
    %v5726 = vpack.c.b16 %v5618, %v5609
    %v5727 = vpack.c.b16 %v5619, %v5610
    %v5728 = vpack.c.b16 %v5620, %v5611
    %v5729 = vpack.c.b16 %v5621, %v5612
    %v5730 = vpack.c.b16 %v5622, %v5613
    %v5731 = vpack.c.b16 %v5623, %v5614
    %v5732 = vpack.c.b16 %v5624, %v5615
    %v5733 = vpack.c.b16 %v5625, %v5616
    %v5734 = vpack.c.b16 %v5626, %v5617
    %v5735 = vpack.c.b16 %v5636, %v5627
    %v5736 = vpack.c.b16 %v5637, %v5628
    %v5737 = vpack.c.b16 %v5638, %v5629
    %v5738 = vpack.c.b16 %v5639, %v5630
    %v5739 = vpack.c.b16 %v5640, %v5631
    %v5740 = vpack.c.b16 %v5641, %v5632
    %v5741 = vpack.c.b16 %v5642, %v5633
    %v5742 = vpack.c.b16 %v5643, %v5634
    %v5743 = vpack.c.b16 %v5644, %v5635
    %v5744 = vpack.c.b16 %v5654, %v5645
    %v5745 = vpack.c.b16 %v5655, %v5646
    %v5746 = vpack.c.b16 %v5656, %v5647
    %v5747 = vpack.c.b16 %v5657, %v5648
    %v5748 = vpack.c.b16 %v5658, %v5649
    %v5749 = vpack.c.b16 %v5659, %v5650
    %v5750 = vpack.c.b16 %v5660, %v5651
    %v5751 = vpack.c.b16 %v5661, %v5652
    %v5752 = vpack.c.b16 %v5662, %v5653
    %v5753 = vpack.c.b16 %v5672, %v5663
    %v5754 = vpack.c.b16 %v5673, %v5664
    %v5755 = vpack.c.b16 %v5674, %v5665
    %v5756 = vpack.c.b16 %v5675, %v5666
    %v5757 = vpack.c.b16 %v5676, %v5667
    %v5758 = vpack.c.b16 %v5677, %v5668
    %v5759 = vpack.c.b16 %v5678, %v5669
    %v5760 = vpack.c.b16 %v5679, %v5670
    %v5761 = vpack.c.b16 %v5680, %v5671
    %v5762 = vpack.c.b16 %v5690, %v5681
    %v5763 = vpack.c.b16 %v5691, %v5682
    %v5764 = vpack.c.b16 %v5692, %v5683
    %v5765 = vpack.c.b16 %v5693, %v5684
    %v5766 = vpack.c.b16 %v5694, %v5685
    %v5767 = vpack.c.b16 %v5695, %v5686
    %v5768 = vpack.c.b16 %v5696, %v5687
    %v5769 = vpack.c.b16 %v5697, %v5688
    %v5770 = vpack.c.b16 %v5698, %v5689
    %v5987 = vunpack.c.l.b16 %v5331
    %v5988 = vunpack.c.l.b16 %v5332
    %v5989 = vunpack.c.l.b16 %v5333
    %v5990 = vunpack.c.l.b16 %v5334
    %v5991 = vunpack.c.l.b16 %v5335
    %v5992 = vunpack.c.l.b16 %v5336
    %v5993 = vunpack.c.l.b16 %v5337
    %v5994 = vunpack.c.l.b16 %v5338
    %v5995 = vunpack.c.l.b16 %v5339
    %v5996 = vunpack.c.l.b16 %v5340
    %v5997 = vunpack.c.l.b16 %v5341
    %v5998 = vunpack.c.l.b16 %v5342
    %v5999 = vunpack.c.l.b16 %v5343
    %v6000 = vunpack.c.l.b16 %v5344
    %v6001 = vunpack.c.l.b16 %v5345
    %v6002 = vunpack.c.l.b16 %v5346
    %v6003 = vunpack.c.l.b16 %v5347
    %v6004 = vunpack.c.l.b16 %v5348
    %v6005 = vunpack.c.l.b16 %v5349
    %v6006 = vunpack.c.l.b16 %v5350
    %v6007 = vunpack.c.l.b16 %v5351
    %v6008 = vunpack.c.l.b16 %v5352
    %v6009 = vunpack.c.l.b16 %v5353
    %v6010 = vunpack.c.l.b16 %v5354
    %v6011 = vunpack.c.l.b16 %v5355
    %v6012 = vunpack.c.l.b16 %v5356
    %v6013 = vunpack.c.l.b16 %v5357
    %v6014 = vunpack.c.l.b16 %v5358
    %v6015 = vunpack.c.l.b16 %v5359
    %v6016 = vunpack.c.l.b16 %v5360
    %v6017 = vunpack.c.l.b16 %v5361
    %v6018 = vunpack.c.l.b16 %v5362
    %v6019 = vunpack.c.l.b16 %v5363
    %v6020 = vunpack.c.l.b16 %v5364
    %v6021 = vunpack.c.l.b16 %v5365
    %v6022 = vunpack.c.l.b16 %v5366
    %v6023 = vunpack.c.l.b16 %v5367
    %v6024 = vunpack.c.l.b16 %v5368
    %v6025 = vunpack.c.l.b16 %v5369
    %v6026 = vunpack.c.l.b16 %v5370
    %v6027 = vunpack.c.l.b16 %v5371
    %v6028 = vunpack.c.l.b16 %v5372
    %v6029 = vunpack.c.l.b16 %v5373
    %v6030 = vunpack.c.l.b16 %v5374
    %v6031 = vunpack.c.l.b16 %v5375
    %v6032 = vunpack.c.l.b16 %v5376
    %v6033 = vunpack.c.l.b16 %v5377
    %v6034 = vunpack.c.l.b16 %v5378
    %v6035 = vunpack.c.l.b16 %v5379
    %v6036 = vunpack.c.l.b16 %v5380
    %v6037 = vunpack.c.l.b16 %v5381
    %v6038 = vunpack.c.l.b16 %v5382
    %v6039 = vunpack.c.l.b16 %v5383
    %v6040 = vunpack.c.l.b16 %v5384
    %v6041 = vunpack.c.l.b16 %v5385
    %v6042 = vunpack.c.l.b16 %v5386
    %v6043 = vunpack.c.l.b16 %v5387
    %v6044 = vunpack.c.l.b16 %v5388
    %v6045 = vunpack.c.l.b16 %v5389
    %v6046 = vunpack.c.l.b16 %v5390
    %v6047 = vunpack.c.l.b16 %v5391
    %v6048 = vunpack.c.l.b16 %v5392
    %v6049 = vunpack.c.l.b16 %v5393
    %v6050 = vunpack.c.l.b16 %v5394
    %v6051 = vunpack.c.l.b16 %v5395
    %v6052 = vunpack.c.l.b16 %v5396
    %v6053 = vunpack.c.l.b16 %v5397
    %v6054 = vunpack.c.l.b16 %v5398
    %v6055 = vunpack.c.l.b16 %v5399
    %v6056 = vunpack.c.l.b16 %v5400
    %v6057 = vunpack.c.l.b16 %v5401
    %v6058 = vunpack.c.l.b16 %v5402
    %v6059 = vunpack.c.l.b16 %v5403
    %v6060 = vunpack.c.l.b16 %v5404
    %v6061 = vunpack.c.l.b16 %v5405
    %v6062 = vunpack.c.l.b16 %v5406
    %v6063 = vunpack.c.l.b16 %v5407
    %v6064 = vunpack.c.l.b16 %v5408
    %v6065 = vunpack.c.l.b16 %v5409
    %v6066 = vunpack.c.l.b16 %v5410
    %v6067 = vunpack.c.l.b16 %v5411
    %v6068 = vunpack.c.l.b16 %v5412
    %v6069 = vunpack.c.l.b16 %v5413
    %v6070 = vunpack.c.l.b16 %v5414
    %v6071 = vunpack.c.l.b16 %v5415
    %v6072 = vunpack.c.l.b16 %v5416
    %v6073 = vunpack.c.l.b16 %v5417
    %v6074 = vunpack.c.l.b16 %v5418
    %v6075 = vunpack.c.l.b16 %v5419
    %v6076 = vunpack.c.l.b16 %v5420
    %v6077 = vunpack.c.l.b16 %v5421
    %v6078 = vunpack.c.l.b16 %v5422
    %v6079 = vunpack.c.l.b16 %v5423
    %v6080 = vunpack.c.l.b16 %v5424
    %v6081 = vunpack.c.l.b16 %v5425
    %v6082 = vunpack.c.l.b16 %v5426
    %v6083 = vunpack.c.l.b16 %v5427
    %v6084 = vunpack.c.l.b16 %v5428
    %v6085 = vunpack.c.l.b16 %v5429
    %v6086 = vunpack.c.l.b16 %v5430
    %v6087 = vunpack.c.l.b16 %v5431
    %v6088 = vunpack.c.l.b16 %v5432
    %v6089 = vunpack.c.l.b16 %v5433
    %v6090 = vunpack.c.l.b16 %v5434
    %v6091 = vunpack.c.l.b16 %v5435
    %v6092 = vunpack.c.l.b16 %v5436
    %v6093 = vunpack.c.l.b16 %v5437
    %v6094 = vunpack.c.l.b16 %v5438
    %v6095 = vunpack.c.l.b16 %v5439
    %v6096 = vunpack.c.l.b16 %v5440
    %v6097 = vunpack.c.l.b16 %v5441
    %v6098 = vunpack.c.l.b16 %v5442
    %v6099 = vunpack.c.l.b16 %v5443
    %v6100 = vunpack.c.l.b16 %v5444
    %v6101 = vunpack.c.l.b16 %v5445
    %v6102 = vunpack.c.l.b16 %v5446
    %v6103 = vunpack.c.l.b16 %v5447
    %v6104 = vunpack.c.l.b16 %v5448
    %v6105 = vunpack.c.l.b16 %v5449
    %v6106 = vunpack.c.l.b16 %v5450
    %v6107 = vunpack.c.l.b16 %v5451
    %v6108 = vunpack.c.l.b16 %v5452
    %v6109 = vunpack.c.l.b16 %v5453
    %v6110 = vunpack.c.l.b16 %v5454
    %v6111 = vunpack.c.l.b16 %v5455
    %v6112 = vunpack.c.l.b16 %v5456
    %v6113 = vunpack.c.l.b16 %v5457
    %v6114 = vunpack.c.l.b16 %v5458
    %v6115 = vunpack.c.l.b16 %v5459
    %v6116 = vunpack.c.l.b16 %v5460
    %v6117 = vunpack.c.l.b16 %v5461
    %v6118 = vunpack.c.l.b16 %v5462
    %v6119 = vunpack.c.l.b16 %v5463
    %v6120 = vunpack.c.l.b16 %v5464
    %v6121 = vunpack.c.l.b16 %v5465
    %v6122 = vunpack.c.l.b16 %v5466
    %v6123 = vunpack.c.l.b16 %v5467
    %v6124 = vunpack.c.l.b16 %v5468
    %v6125 = vunpack.c.l.b16 %v5469
    %v6126 = vunpack.c.l.b16 %v5470
    %v6127 = vunpack.c.l.b16 %v5471
    %v6128 = vunpack.c.l.b16 %v5472
    %v6129 = vunpack.c.l.b16 %v5473
    %v6130 = vunpack.c.l.b16 %v5474
    %v6131 = vpack.c.b16 %v5988, %v5987
    %v6132 = vpack.c.b16 %v5990, %v5989
    %v6133 = vpack.c.b16 %v5992, %v5991
    %v6134 = vpack.c.b16 %v5994, %v5993
    %v6135 = vpack.c.b16 %v5996, %v5995
    %v6136 = vpack.c.b16 %v5998, %v5997
    %v6137 = vpack.c.b16 %v6000, %v5999
    %v6138 = vpack.c.b16 %v6002, %v6001
    %v6139 = vpack.c.b16 %v6004, %v6003
    %v6140 = vpack.c.b16 %v6006, %v6005
    %v6141 = vpack.c.b16 %v6008, %v6007
    %v6142 = vpack.c.b16 %v6010, %v6009
    %v6143 = vpack.c.b16 %v6012, %v6011
    %v6144 = vpack.c.b16 %v6014, %v6013
    %v6145 = vpack.c.b16 %v6016, %v6015
    %v6146 = vpack.c.b16 %v6018, %v6017
    %v6147 = vpack.c.b16 %v6020, %v6019
    %v6148 = vpack.c.b16 %v6022, %v6021
    %v6149 = vpack.c.b16 %v6024, %v6023
    %v6150 = vpack.c.b16 %v6026, %v6025
    %v6151 = vpack.c.b16 %v6028, %v6027
    %v6152 = vpack.c.b16 %v6030, %v6029
    %v6153 = vpack.c.b16 %v6032, %v6031
    %v6154 = vpack.c.b16 %v6034, %v6033
    %v6155 = vpack.c.b16 %v6036, %v6035
    %v6156 = vpack.c.b16 %v6038, %v6037
    %v6157 = vpack.c.b16 %v6040, %v6039
    %v6158 = vpack.c.b16 %v6042, %v6041
    %v6159 = vpack.c.b16 %v6044, %v6043
    %v6160 = vpack.c.b16 %v6046, %v6045
    %v6161 = vpack.c.b16 %v6048, %v6047
    %v6162 = vpack.c.b16 %v6050, %v6049
    %v6163 = vpack.c.b16 %v6052, %v6051
    %v6164 = vpack.c.b16 %v6054, %v6053
    %v6165 = vpack.c.b16 %v6056, %v6055
    %v6166 = vpack.c.b16 %v6058, %v6057
    %v6167 = vpack.c.b16 %v6060, %v6059
    %v6168 = vpack.c.b16 %v6062, %v6061
    %v6169 = vpack.c.b16 %v6064, %v6063
    %v6170 = vpack.c.b16 %v6066, %v6065
    %v6171 = vpack.c.b16 %v6068, %v6067
    %v6172 = vpack.c.b16 %v6070, %v6069
    %v6173 = vpack.c.b16 %v6072, %v6071
    %v6174 = vpack.c.b16 %v6074, %v6073
    %v6175 = vpack.c.b16 %v6076, %v6075
    %v6176 = vpack.c.b16 %v6078, %v6077
    %v6177 = vpack.c.b16 %v6080, %v6079
    %v6178 = vpack.c.b16 %v6082, %v6081
    %v6179 = vpack.c.b16 %v6084, %v6083
    %v6180 = vpack.c.b16 %v6086, %v6085
    %v6181 = vpack.c.b16 %v6088, %v6087
    %v6182 = vpack.c.b16 %v6090, %v6089
    %v6183 = vpack.c.b16 %v6092, %v6091
    %v6184 = vpack.c.b16 %v6094, %v6093
    %v6185 = vpack.c.b16 %v6096, %v6095
    %v6186 = vpack.c.b16 %v6098, %v6097
    %v6187 = vpack.c.b16 %v6100, %v6099
    %v6188 = vpack.c.b16 %v6102, %v6101
    %v6189 = vpack.c.b16 %v6104, %v6103
    %v6190 = vpack.c.b16 %v6106, %v6105
    %v6191 = vpack.c.b16 %v6108, %v6107
    %v6192 = vpack.c.b16 %v6110, %v6109
    %v6193 = vpack.c.b16 %v6112, %v6111
    %v6194 = vpack.c.b16 %v6114, %v6113
    %v6195 = vpack.c.b16 %v6116, %v6115
    %v6196 = vpack.c.b16 %v6118, %v6117
    %v6197 = vpack.c.b16 %v6120, %v6119
    %v6198 = vpack.c.b16 %v6122, %v6121
    %v6199 = vpack.c.b16 %v6124, %v6123
    %v6200 = vpack.c.b16 %v6126, %v6125
    %v6201 = vpack.c.b16 %v6128, %v6127
    %v6202 = vpack.c.b16 %v6130, %v6129
    %6275 = vmatpush.bf16.msra.mxu0 %v6138
    %6276 = vmatpush.bf16.msra.mxu0 %v6137
    %6277 = vmatpush.bf16.msra.mxu0 %v6136
    %6278 = vmatpush.bf16.msra.mxu0 %v6135
    %6279 = vmatpush.bf16.msra.mxu0 %v6134
    %6280 = vmatpush.bf16.msra.mxu0 %v6133
    %6281 = vmatpush.bf16.msra.mxu0 %v6132
    %6282 = vmatpush.bf16.msra.mxu0 %v6131
    %6283 = vmatmul.bf16.gmra.mxu0 %v5699
    %v6284 = vpop.f32.mrf.mxu0
    %v6285 = vadd.f32 0.0, %v6284
    %v6286 = vpop.f32.mrf.mxu0
    %v6287 = vadd.f32 0.0, %v6286
    %6288 = vmatmul.bf16.gmra.mxu0 %v5708
    %v6289 = vpop.f32.mrf.mxu0
    %v6290 = vadd.f32 0.0, %v6289
    %v6291 = vpop.f32.mrf.mxu0
    %v6292 = vadd.f32 0.0, %v6291
    %6293 = vmatmul.bf16.gmra.mxu0 %v5717
    %v6294 = vpop.f32.mrf.mxu0
    %v6295 = vadd.f32 0.0, %v6294
    %v6296 = vpop.f32.mrf.mxu0
    %v6297 = vadd.f32 0.0, %v6296
    %6298 = vmatmul.bf16.gmra.mxu0 %v5726
    %v6299 = vpop.f32.mrf.mxu0
    %v6300 = vadd.f32 0.0, %v6299
    %v6301 = vpop.f32.mrf.mxu0
    %v6302 = vadd.f32 0.0, %v6301
    %6303 = vmatmul.bf16.gmra.mxu0 %v5735
    %v6304 = vpop.f32.mrf.mxu0
    %v6305 = vadd.f32 0.0, %v6304
    %v6306 = vpop.f32.mrf.mxu0
    %v6307 = vadd.f32 0.0, %v6306
    %6308 = vmatmul.bf16.gmra.mxu0 %v5744
    %v6309 = vpop.f32.mrf.mxu0
    %v6310 = vadd.f32 0.0, %v6309
    %v6311 = vpop.f32.mrf.mxu0
    %v6312 = vadd.f32 0.0, %v6311
    %6313 = vmatmul.bf16.gmra.mxu0 %v5753
    %v6314 = vpop.f32.mrf.mxu0
    %v6315 = vadd.f32 0.0, %v6314
    %v6316 = vpop.f32.mrf.mxu0
    %v6317 = vadd.f32 0.0, %v6316
    %6318 = vmatmul.bf16.gmra.mxu0 %v5762
    %v6319 = vpop.f32.mrf.mxu0
    %v6320 = vadd.f32 0.0, %v6319
    %v6321 = vpop.f32.mrf.mxu0
    %v6322 = vadd.f32 0.0, %v6321
    %6323 = vdwg.mxu0
    %6324 = vmatpush.bf16.msra.mxu0 %v6146
    %6325 = vmatpush.bf16.msra.mxu0 %v6145
    %6326 = vmatpush.bf16.msra.mxu0 %v6144
    %6327 = vmatpush.bf16.msra.mxu0 %v6143
    %6328 = vmatpush.bf16.msra.mxu0 %v6142
    %6329 = vmatpush.bf16.msra.mxu0 %v6141
    %6330 = vmatpush.bf16.msra.mxu0 %v6140
    %6331 = vmatpush.bf16.msra.mxu0 %v6139
    %6332 = vmatmul.bf16.gmra.mxu0 %v5700
    %v6333 = vpop.f32.mrf.mxu0
    %v6334 = vadd.f32 %v6285, %v6333
    %v6335 = vpop.f32.mrf.mxu0
    %v6336 = vadd.f32 %v6287, %v6335
    %6337 = vmatmul.bf16.gmra.mxu0 %v5709
    %v6338 = vpop.f32.mrf.mxu0
    %v6339 = vadd.f32 %v6290, %v6338
    %v6340 = vpop.f32.mrf.mxu0
    %v6341 = vadd.f32 %v6292, %v6340
    %6342 = vmatmul.bf16.gmra.mxu0 %v5718
    %v6343 = vpop.f32.mrf.mxu0
    %v6344 = vadd.f32 %v6295, %v6343
    %v6345 = vpop.f32.mrf.mxu0
    %v6346 = vadd.f32 %v6297, %v6345
    %6347 = vmatmul.bf16.gmra.mxu0 %v5727
    %v6348 = vpop.f32.mrf.mxu0
    %v6349 = vadd.f32 %v6300, %v6348
    %v6350 = vpop.f32.mrf.mxu0
    %v6351 = vadd.f32 %v6302, %v6350
    %6352 = vmatmul.bf16.gmra.mxu0 %v5736
    %v6353 = vpop.f32.mrf.mxu0
    %v6354 = vadd.f32 %v6305, %v6353
    %v6355 = vpop.f32.mrf.mxu0
    %v6356 = vadd.f32 %v6307, %v6355
    %6357 = vmatmul.bf16.gmra.mxu0 %v5745
    %v6358 = vpop.f32.mrf.mxu0
    %v6359 = vadd.f32 %v6310, %v6358
    %v6360 = vpop.f32.mrf.mxu0
    %v6361 = vadd.f32 %v6312, %v6360
    %6362 = vmatmul.bf16.gmra.mxu0 %v5754
    %v6363 = vpop.f32.mrf.mxu0
    %v6364 = vadd.f32 %v6315, %v6363
    %v6365 = vpop.f32.mrf.mxu0
    %v6366 = vadd.f32 %v6317, %v6365
    %6367 = vmatmul.bf16.gmra.mxu0 %v5763
    %v6368 = vpop.f32.mrf.mxu0
    %v6369 = vadd.f32 %v6320, %v6368
    %v6370 = vpop.f32.mrf.mxu0
    %v6371 = vadd.f32 %v6322, %v6370
    %6372 = vdwg.mxu0
    %6373 = vmatpush.bf16.msra.mxu0 %v6154
    %6374 = vmatpush.bf16.msra.mxu0 %v6153
    %6375 = vmatpush.bf16.msra.mxu0 %v6152
    %6376 = vmatpush.bf16.msra.mxu0 %v6151
    %6377 = vmatpush.bf16.msra.mxu0 %v6150
    %6378 = vmatpush.bf16.msra.mxu0 %v6149
    %6379 = vmatpush.bf16.msra.mxu0 %v6148
    %6380 = vmatpush.bf16.msra.mxu0 %v6147
    %6381 = vmatmul.bf16.gmra.mxu0 %v5701
    %v6382 = vpop.f32.mrf.mxu0
    %v6383 = vadd.f32 %v6334, %v6382
    %v6384 = vpop.f32.mrf.mxu0
    %v6385 = vadd.f32 %v6336, %v6384
    %6386 = vmatmul.bf16.gmra.mxu0 %v5710
    %v6387 = vpop.f32.mrf.mxu0
    %v6388 = vadd.f32 %v6339, %v6387
    %v6389 = vpop.f32.mrf.mxu0
    %v6390 = vadd.f32 %v6341, %v6389
    %6391 = vmatmul.bf16.gmra.mxu0 %v5719
    %v6392 = vpop.f32.mrf.mxu0
    %v6393 = vadd.f32 %v6344, %v6392
    %v6394 = vpop.f32.mrf.mxu0
    %v6395 = vadd.f32 %v6346, %v6394
    %6396 = vmatmul.bf16.gmra.mxu0 %v5728
    %v6397 = vpop.f32.mrf.mxu0
    %v6398 = vadd.f32 %v6349, %v6397
    %v6399 = vpop.f32.mrf.mxu0
    %v6400 = vadd.f32 %v6351, %v6399
    %6401 = vmatmul.bf16.gmra.mxu0 %v5737
    %v6402 = vpop.f32.mrf.mxu0
    %v6403 = vadd.f32 %v6354, %v6402
    %v6404 = vpop.f32.mrf.mxu0
    %v6405 = vadd.f32 %v6356, %v6404
    %6406 = vmatmul.bf16.gmra.mxu0 %v5746
    %v6407 = vpop.f32.mrf.mxu0
    %v6408 = vadd.f32 %v6359, %v6407
    %v6409 = vpop.f32.mrf.mxu0
    %v6410 = vadd.f32 %v6361, %v6409
    %6411 = vmatmul.bf16.gmra.mxu0 %v5755
    %v6412 = vpop.f32.mrf.mxu0
    %v6413 = vadd.f32 %v6364, %v6412
    %v6414 = vpop.f32.mrf.mxu0
    %v6415 = vadd.f32 %v6366, %v6414
    %6416 = vmatmul.bf16.gmra.mxu0 %v5764
    %v6417 = vpop.f32.mrf.mxu0
    %v6418 = vadd.f32 %v6369, %v6417
    %v6419 = vpop.f32.mrf.mxu0
    %v6420 = vadd.f32 %v6371, %v6419
    %6421 = vdwg.mxu0
    %6422 = vmatpush.bf16.msra.mxu0 %v6162
    %6423 = vmatpush.bf16.msra.mxu0 %v6161
    %6424 = vmatpush.bf16.msra.mxu0 %v6160
    %6425 = vmatpush.bf16.msra.mxu0 %v6159
    %6426 = vmatpush.bf16.msra.mxu0 %v6158
    %6427 = vmatpush.bf16.msra.mxu0 %v6157
    %6428 = vmatpush.bf16.msra.mxu0 %v6156
    %6429 = vmatpush.bf16.msra.mxu0 %v6155
    %6430 = vmatmul.bf16.gmra.mxu0 %v5702
    %v6431 = vpop.f32.mrf.mxu0
    %v6432 = vadd.f32 %v6383, %v6431
    %v6433 = vpop.f32.mrf.mxu0
    %v6434 = vadd.f32 %v6385, %v6433
    %6435 = vmatmul.bf16.gmra.mxu0 %v5711
    %v6436 = vpop.f32.mrf.mxu0
    %v6437 = vadd.f32 %v6388, %v6436
    %v6438 = vpop.f32.mrf.mxu0
    %v6439 = vadd.f32 %v6390, %v6438
    %6440 = vmatmul.bf16.gmra.mxu0 %v5720
    %v6441 = vpop.f32.mrf.mxu0
    %v6442 = vadd.f32 %v6393, %v6441
    %v6443 = vpop.f32.mrf.mxu0
    %v6444 = vadd.f32 %v6395, %v6443
    %6445 = vmatmul.bf16.gmra.mxu0 %v5729
    %v6446 = vpop.f32.mrf.mxu0
    %v6447 = vadd.f32 %v6398, %v6446
    %v6448 = vpop.f32.mrf.mxu0
    %v6449 = vadd.f32 %v6400, %v6448
    %6450 = vmatmul.bf16.gmra.mxu0 %v5738
    %v6451 = vpop.f32.mrf.mxu0
    %v6452 = vadd.f32 %v6403, %v6451
    %v6453 = vpop.f32.mrf.mxu0
    %v6454 = vadd.f32 %v6405, %v6453
    %6455 = vmatmul.bf16.gmra.mxu0 %v5747
    %v6456 = vpop.f32.mrf.mxu0
    %v6457 = vadd.f32 %v6408, %v6456
    %v6458 = vpop.f32.mrf.mxu0
    %v6459 = vadd.f32 %v6410, %v6458
    %6460 = vmatmul.bf16.gmra.mxu0 %v5756
    %v6461 = vpop.f32.mrf.mxu0
    %v6462 = vadd.f32 %v6413, %v6461
    %v6463 = vpop.f32.mrf.mxu0
    %v6464 = vadd.f32 %v6415, %v6463
    %6465 = vmatmul.bf16.gmra.mxu0 %v5765
    %v6466 = vpop.f32.mrf.mxu0
    %v6467 = vadd.f32 %v6418, %v6466
    %v6468 = vpop.f32.mrf.mxu0
    %v6469 = vadd.f32 %v6420, %v6468
    %6470 = vdwg.mxu0
    %6471 = vmatpush.bf16.msra.mxu0 %v6170
    %6472 = vmatpush.bf16.msra.mxu0 %v6169
    %6473 = vmatpush.bf16.msra.mxu0 %v6168
    %6474 = vmatpush.bf16.msra.mxu0 %v6167
    %6475 = vmatpush.bf16.msra.mxu0 %v6166
    %6476 = vmatpush.bf16.msra.mxu0 %v6165
    %6477 = vmatpush.bf16.msra.mxu0 %v6164
    %6478 = vmatpush.bf16.msra.mxu0 %v6163
    %6479 = vmatmul.bf16.gmra.mxu0 %v5703
    %v6480 = vpop.f32.mrf.mxu0
    %v6481 = vadd.f32 %v6432, %v6480
    %v6482 = vpop.f32.mrf.mxu0
    %v6483 = vadd.f32 %v6434, %v6482
    %6484 = vmatmul.bf16.gmra.mxu0 %v5712
    %v6485 = vpop.f32.mrf.mxu0
    %v6486 = vadd.f32 %v6437, %v6485
    %v6487 = vpop.f32.mrf.mxu0
    %v6488 = vadd.f32 %v6439, %v6487
    %6489 = vmatmul.bf16.gmra.mxu0 %v5721
    %v6490 = vpop.f32.mrf.mxu0
    %v6491 = vadd.f32 %v6442, %v6490
    %v6492 = vpop.f32.mrf.mxu0
    %v6493 = vadd.f32 %v6444, %v6492
    %6494 = vmatmul.bf16.gmra.mxu0 %v5730
    %v6495 = vpop.f32.mrf.mxu0
    %v6496 = vadd.f32 %v6447, %v6495
    %v6497 = vpop.f32.mrf.mxu0
    %v6498 = vadd.f32 %v6449, %v6497
    %6499 = vmatmul.bf16.gmra.mxu0 %v5739
    %v6500 = vpop.f32.mrf.mxu0
    %v6501 = vadd.f32 %v6452, %v6500
    %v6502 = vpop.f32.mrf.mxu0
    %v6503 = vadd.f32 %v6454, %v6502
    %6504 = vmatmul.bf16.gmra.mxu0 %v5748
    %v6505 = vpop.f32.mrf.mxu0
    %v6506 = vadd.f32 %v6457, %v6505
    %v6507 = vpop.f32.mrf.mxu0
    %v6508 = vadd.f32 %v6459, %v6507
    %6509 = vmatmul.bf16.gmra.mxu0 %v5757
    %v6510 = vpop.f32.mrf.mxu0
    %v6511 = vadd.f32 %v6462, %v6510
    %v6512 = vpop.f32.mrf.mxu0
    %v6513 = vadd.f32 %v6464, %v6512
    %6514 = vmatmul.bf16.gmra.mxu0 %v5766
    %v6515 = vpop.f32.mrf.mxu0
    %v6516 = vadd.f32 %v6467, %v6515
    %v6517 = vpop.f32.mrf.mxu0
    %v6518 = vadd.f32 %v6469, %v6517
    %6519 = vdwg.mxu0
    %6520 = vmatpush.bf16.msra.mxu0 %v6178
    %6521 = vmatpush.bf16.msra.mxu0 %v6177
    %6522 = vmatpush.bf16.msra.mxu0 %v6176
    %6523 = vmatpush.bf16.msra.mxu0 %v6175
    %6524 = vmatpush.bf16.msra.mxu0 %v6174
    %6525 = vmatpush.bf16.msra.mxu0 %v6173
    %6526 = vmatpush.bf16.msra.mxu0 %v6172
    %6527 = vmatpush.bf16.msra.mxu0 %v6171
    %6528 = vmatmul.bf16.gmra.mxu0 %v5704
    %v6529 = vpop.f32.mrf.mxu0
    %v6530 = vadd.f32 %v6481, %v6529
    %v6531 = vpop.f32.mrf.mxu0
    %v6532 = vadd.f32 %v6483, %v6531
    %6533 = vmatmul.bf16.gmra.mxu0 %v5713
    %v6534 = vpop.f32.mrf.mxu0
    %v6535 = vadd.f32 %v6486, %v6534
    %v6536 = vpop.f32.mrf.mxu0
    %v6537 = vadd.f32 %v6488, %v6536
    %6538 = vmatmul.bf16.gmra.mxu0 %v5722
    %v6539 = vpop.f32.mrf.mxu0
    %v6540 = vadd.f32 %v6491, %v6539
    %v6541 = vpop.f32.mrf.mxu0
    %v6542 = vadd.f32 %v6493, %v6541
    %6543 = vmatmul.bf16.gmra.mxu0 %v5731
    %v6544 = vpop.f32.mrf.mxu0
    %v6545 = vadd.f32 %v6496, %v6544
    %v6546 = vpop.f32.mrf.mxu0
    %v6547 = vadd.f32 %v6498, %v6546
    %6548 = vmatmul.bf16.gmra.mxu0 %v5740
    %v6549 = vpop.f32.mrf.mxu0
    %v6550 = vadd.f32 %v6501, %v6549
    %v6551 = vpop.f32.mrf.mxu0
    %v6552 = vadd.f32 %v6503, %v6551
    %6553 = vmatmul.bf16.gmra.mxu0 %v5749
    %v6554 = vpop.f32.mrf.mxu0
    %v6555 = vadd.f32 %v6506, %v6554
    %v6556 = vpop.f32.mrf.mxu0
    %v6557 = vadd.f32 %v6508, %v6556
    %6558 = vmatmul.bf16.gmra.mxu0 %v5758
    %v6559 = vpop.f32.mrf.mxu0
    %v6560 = vadd.f32 %v6511, %v6559
    %v6561 = vpop.f32.mrf.mxu0
    %v6562 = vadd.f32 %v6513, %v6561
    %6563 = vmatmul.bf16.gmra.mxu0 %v5767
    %v6564 = vpop.f32.mrf.mxu0
    %v6565 = vadd.f32 %v6516, %v6564
    %v6566 = vpop.f32.mrf.mxu0
    %v6567 = vadd.f32 %v6518, %v6566
    %6568 = vdwg.mxu0
    %6569 = vmatpush.bf16.msra.mxu0 %v6186
    %6570 = vmatpush.bf16.msra.mxu0 %v6185
    %6571 = vmatpush.bf16.msra.mxu0 %v6184
    %6572 = vmatpush.bf16.msra.mxu0 %v6183
    %6573 = vmatpush.bf16.msra.mxu0 %v6182
    %6574 = vmatpush.bf16.msra.mxu0 %v6181
    %6575 = vmatpush.bf16.msra.mxu0 %v6180
    %6576 = vmatpush.bf16.msra.mxu0 %v6179
    %6577 = vmatmul.bf16.gmra.mxu0 %v5705
    %v6578 = vpop.f32.mrf.mxu0
    %v6579 = vadd.f32 %v6530, %v6578
    %v6580 = vpop.f32.mrf.mxu0
    %v6581 = vadd.f32 %v6532, %v6580
    %6582 = vmatmul.bf16.gmra.mxu0 %v5714
    %v6583 = vpop.f32.mrf.mxu0
    %v6584 = vadd.f32 %v6535, %v6583
    %v6585 = vpop.f32.mrf.mxu0
    %v6586 = vadd.f32 %v6537, %v6585
    %6587 = vmatmul.bf16.gmra.mxu0 %v5723
    %v6588 = vpop.f32.mrf.mxu0
    %v6589 = vadd.f32 %v6540, %v6588
    %v6590 = vpop.f32.mrf.mxu0
    %v6591 = vadd.f32 %v6542, %v6590
    %6592 = vmatmul.bf16.gmra.mxu0 %v5732
    %v6593 = vpop.f32.mrf.mxu0
    %v6594 = vadd.f32 %v6545, %v6593
    %v6595 = vpop.f32.mrf.mxu0
    %v6596 = vadd.f32 %v6547, %v6595
    %6597 = vmatmul.bf16.gmra.mxu0 %v5741
    %v6598 = vpop.f32.mrf.mxu0
    %v6599 = vadd.f32 %v6550, %v6598
    %v6600 = vpop.f32.mrf.mxu0
    %v6601 = vadd.f32 %v6552, %v6600
    %6602 = vmatmul.bf16.gmra.mxu0 %v5750
    %v6603 = vpop.f32.mrf.mxu0
    %v6604 = vadd.f32 %v6555, %v6603
    %v6605 = vpop.f32.mrf.mxu0
    %v6606 = vadd.f32 %v6557, %v6605
    %6607 = vmatmul.bf16.gmra.mxu0 %v5759
    %v6608 = vpop.f32.mrf.mxu0
    %v6609 = vadd.f32 %v6560, %v6608
    %v6610 = vpop.f32.mrf.mxu0
    %v6611 = vadd.f32 %v6562, %v6610
    %6612 = vmatmul.bf16.gmra.mxu0 %v5768
    %v6613 = vpop.f32.mrf.mxu0
    %v6614 = vadd.f32 %v6565, %v6613
    %v6615 = vpop.f32.mrf.mxu0
    %v6616 = vadd.f32 %v6567, %v6615
    %6617 = vdwg.mxu0
    %6618 = vmatpush.bf16.msra.mxu0 %v6194
    %6619 = vmatpush.bf16.msra.mxu0 %v6193
    %6620 = vmatpush.bf16.msra.mxu0 %v6192
    %6621 = vmatpush.bf16.msra.mxu0 %v6191
    %6622 = vmatpush.bf16.msra.mxu0 %v6190
    %6623 = vmatpush.bf16.msra.mxu0 %v6189
    %6624 = vmatpush.bf16.msra.mxu0 %v6188
    %6625 = vmatpush.bf16.msra.mxu0 %v6187
    %6626 = vmatmul.bf16.gmra.mxu0 %v5706
    %v6627 = vpop.f32.mrf.mxu0
    %v6628 = vadd.f32 %v6579, %v6627
    %v6629 = vpop.f32.mrf.mxu0
    %v6630 = vadd.f32 %v6581, %v6629
    %6631 = vmatmul.bf16.gmra.mxu0 %v5715
    %v6632 = vpop.f32.mrf.mxu0
    %v6633 = vadd.f32 %v6584, %v6632
    %v6634 = vpop.f32.mrf.mxu0
    %v6635 = vadd.f32 %v6586, %v6634
    %6636 = vmatmul.bf16.gmra.mxu0 %v5724
    %v6637 = vpop.f32.mrf.mxu0
    %v6638 = vadd.f32 %v6589, %v6637
    %v6639 = vpop.f32.mrf.mxu0
    %v6640 = vadd.f32 %v6591, %v6639
    %6641 = vmatmul.bf16.gmra.mxu0 %v5733
    %v6642 = vpop.f32.mrf.mxu0
    %v6643 = vadd.f32 %v6594, %v6642
    %v6644 = vpop.f32.mrf.mxu0
    %v6645 = vadd.f32 %v6596, %v6644
    %6646 = vmatmul.bf16.gmra.mxu0 %v5742
    %v6647 = vpop.f32.mrf.mxu0
    %v6648 = vadd.f32 %v6599, %v6647
    %v6649 = vpop.f32.mrf.mxu0
    %v6650 = vadd.f32 %v6601, %v6649
    %6651 = vmatmul.bf16.gmra.mxu0 %v5751
    %v6652 = vpop.f32.mrf.mxu0
    %v6653 = vadd.f32 %v6604, %v6652
    %v6654 = vpop.f32.mrf.mxu0
    %v6655 = vadd.f32 %v6606, %v6654
    %6656 = vmatmul.bf16.gmra.mxu0 %v5760
    %v6657 = vpop.f32.mrf.mxu0
    %v6658 = vadd.f32 %v6609, %v6657
    %v6659 = vpop.f32.mrf.mxu0
    %v6660 = vadd.f32 %v6611, %v6659
    %6661 = vmatmul.bf16.gmra.mxu0 %v5769
    %v6662 = vpop.f32.mrf.mxu0
    %v6663 = vadd.f32 %v6614, %v6662
    %v6664 = vpop.f32.mrf.mxu0
    %v6665 = vadd.f32 %v6616, %v6664
    %6666 = vdwg.mxu0
    %6667 = vmatpush.bf16.msra.mxu0 %v6202
    %6668 = vmatpush.bf16.msra.mxu0 %v6201
    %6669 = vmatpush.bf16.msra.mxu0 %v6200
    %6670 = vmatpush.bf16.msra.mxu0 %v6199
    %6671 = vmatpush.bf16.msra.mxu0 %v6198
    %6672 = vmatpush.bf16.msra.mxu0 %v6197
    %6673 = vmatpush.bf16.msra.mxu0 %v6196
    %6674 = vmatpush.bf16.msra.mxu0 %v6195
    %6675 = vmatmul.bf16.gmra.mxu0 %v5707
    %v6676 = vpop.f32.mrf.mxu0
    %v6677 = vadd.f32 %v6628, %v6676
    %v6678 = vpop.f32.mrf.mxu0
    %v6679 = vadd.f32 %v6630, %v6678
    %6680 = vmatmul.bf16.gmra.mxu0 %v5716
    %v6681 = vpop.f32.mrf.mxu0
    %v6682 = vadd.f32 %v6633, %v6681
    %v6683 = vpop.f32.mrf.mxu0
    %v6684 = vadd.f32 %v6635, %v6683
    %6685 = vmatmul.bf16.gmra.mxu0 %v5725
    %v6686 = vpop.f32.mrf.mxu0
    %v6687 = vadd.f32 %v6638, %v6686
    %v6688 = vpop.f32.mrf.mxu0
    %v6689 = vadd.f32 %v6640, %v6688
    %6690 = vmatmul.bf16.gmra.mxu0 %v5734
    %v6691 = vpop.f32.mrf.mxu0
    %v6692 = vadd.f32 %v6643, %v6691
    %v6693 = vpop.f32.mrf.mxu0
    %v6694 = vadd.f32 %v6645, %v6693
    %6695 = vmatmul.bf16.gmra.mxu0 %v5743
    %v6696 = vpop.f32.mrf.mxu0
    %v6697 = vadd.f32 %v6648, %v6696
    %v6698 = vpop.f32.mrf.mxu0
    %v6699 = vadd.f32 %v6650, %v6698
    %6700 = vmatmul.bf16.gmra.mxu0 %v5752
    %v6701 = vpop.f32.mrf.mxu0
    %v6702 = vadd.f32 %v6653, %v6701
    %v6703 = vpop.f32.mrf.mxu0
    %v6704 = vadd.f32 %v6655, %v6703
    %6705 = vmatmul.bf16.gmra.mxu0 %v5761
    %v6706 = vpop.f32.mrf.mxu0
    %v6707 = vadd.f32 %v6658, %v6706
    %v6708 = vpop.f32.mrf.mxu0
    %v6709 = vadd.f32 %v6660, %v6708
    %6710 = vmatmul.bf16.gmra.mxu0 %v5770
    %v6711 = vpop.f32.mrf.mxu0
    %v6712 = vadd.f32 %v6663, %v6711
    %v6713 = vpop.f32.mrf.mxu0
    %v6714 = vadd.f32 %v6665, %v6713
    %6715 = vdwg.mxu0
    %v6716 = vadd.f32 %v6677, %v6679
    %v6717 = vadd.f32 %v6716, %v6682
    %v6718 = vadd.f32 %v6717, %v6684
    %v6719 = vadd.f32 %v6718, %v6687
    %v6720 = vadd.f32 %v6719, %v6689
    %v6721 = vadd.f32 %v6720, %v6692
    %v6722 = vadd.f32 %v6721, %v6694
    %v6723 = vadd.f32 %v6722, %v6697
    %v6724 = vadd.f32 %v6723, %v6699
    %v6725 = vadd.f32 %v6724, %v6702
    %v6726 = vadd.f32 %v6725, %v6704
    %v6727 = vadd.f32 %v6726, %v6707
    %v6728 = vadd.f32 %v6727, %v6709
    %v6729 = vadd.f32 %v6728, %v6712
    %v6730 = vadd.f32 %v6729, %v6714
    %v6731 = vrot.slane %v6730, 4
    %v6732 = vadd.f32 %v6730, %v6731
    %v6733 = vrot.slane %v6732, 2
    %v6734 = vadd.f32 %v6732, %v6733
    %v6735 = vrot.slane %v6734, 1
    %v6736 = vadd.f32 %v6734, %v6735
    %v6737 = vmul.f32 %v6736, 0.010204081
    %v6738 = vmul.f32 %v6677, %v6677
    %v6739 = vmul.f32 %v6679, %v6679
    %v6740 = vmul.f32 %v6682, %v6682
    %v6741 = vmul.f32 %v6684, %v6684
    %v6742 = vmul.f32 %v6687, %v6687
    %v6743 = vmul.f32 %v6689, %v6689
    %v6744 = vmul.f32 %v6692, %v6692
    %v6745 = vmul.f32 %v6694, %v6694
    %v6746 = vmul.f32 %v6697, %v6697
    %v6747 = vmul.f32 %v6699, %v6699
    %v6748 = vmul.f32 %v6702, %v6702
    %v6749 = vmul.f32 %v6704, %v6704
    %v6750 = vmul.f32 %v6707, %v6707
    %v6751 = vmul.f32 %v6709, %v6709
    %v6752 = vmul.f32 %v6712, %v6712
    %v6753 = vmul.f32 %v6714, %v6714
    %v6754 = vadd.f32 %v6738, %v6739
    %v6755 = vadd.f32 %v6754, %v6740
    %v6756 = vadd.f32 %v6755, %v6741
    %v6757 = vadd.f32 %v6756, %v6742
    %v6758 = vadd.f32 %v6757, %v6743
    %v6759 = vadd.f32 %v6758, %v6744
    %v6760 = vadd.f32 %v6759, %v6745
    %v6761 = vadd.f32 %v6760, %v6746
    %v6762 = vadd.f32 %v6761, %v6747
    %v6763 = vadd.f32 %v6762, %v6748
    %v6764 = vadd.f32 %v6763, %v6749
    %v6765 = vadd.f32 %v6764, %v6750
    %v6766 = vadd.f32 %v6765, %v6751
    %v6767 = vadd.f32 %v6766, %v6752
    %v6768 = vadd.f32 %v6767, %v6753
    %v6769 = vrot.slane %v6768, 4
    %v6770 = vadd.f32 %v6768, %v6769
    %v6771 = vrot.slane %v6770, 2
    %v6772 = vadd.f32 %v6770, %v6771
    %v6773 = vrot.slane %v6772, 1
    %v6774 = vadd.f32 %v6772, %v6773
    %v6775 = vmul.f32 %v6774, 0.010204081
    %v6776 = vmul.f32 %v6737, %v6737
    %v6777 = vsub.f32 %v6775, %v6776
    %v6778 = vmax.f32 %v6777, 0.0
    %v6779 = vsub.f32 %v6677, %v6737
    %v6780 = vsub.f32 %v6679, %v6737
    %v6781 = vsub.f32 %v6682, %v6737
    %v6782 = vsub.f32 %v6684, %v6737
    %v6783 = vsub.f32 %v6687, %v6737
    %v6784 = vsub.f32 %v6689, %v6737
    %v6785 = vsub.f32 %v6692, %v6737
    %v6786 = vsub.f32 %v6694, %v6737
    %v6787 = vsub.f32 %v6697, %v6737
    %v6788 = vsub.f32 %v6699, %v6737
    %v6789 = vsub.f32 %v6702, %v6737
    %v6790 = vsub.f32 %v6704, %v6737
    %v6791 = vsub.f32 %v6707, %v6737
    %v6792 = vsub.f32 %v6709, %v6737
    %v6793 = vsub.f32 %v6712, %v6737
    %v6794 = vsub.f32 %v6714, %v6737
    %v6795 = vadd.f32 %v6778, 1e-05
    %v6796 = vrsqrt.pop %v6795
    %v6797 = vmul.f32 %v6796, %v6795
    %v6798 = vmul.f32 %v6797, %v6796
    %v6799 = vmul.f32 0.5, %v6798
    %v6800 = vsub.f32 1.5, %v6799
    %v6801 = vmul.f32 %v6796, %v6800
    %vm6802 = vweird.f32 %v6795
    %vm6803 = vweird.f32 %v6796
    %vm6804 = vmor %vm6802, %vm6803
    %v6805 = vsel %vm6804, %v6796, %v6801
    %v6806 = vmul.f32 %v6779, %v6805
    %v6807 = vmul.f32 %v6780, %v6805
    %v6808 = vmul.f32 %v6781, %v6805
    %v6809 = vmul.f32 %v6782, %v6805
    %v6810 = vmul.f32 %v6783, %v6805
    %v6811 = vmul.f32 %v6784, %v6805
    %v6812 = vmul.f32 %v6785, %v6805
    %v6813 = vmul.f32 %v6786, %v6805
    %v6814 = vmul.f32 %v6787, %v6805
    %v6815 = vmul.f32 %v6788, %v6805
    %v6816 = vmul.f32 %v6789, %v6805
    %v6817 = vmul.f32 %v6790, %v6805
    %v6818 = vmul.f32 %v6791, %v6805
    %v6819 = vmul.f32 %v6792, %v6805
    %v6820 = vmul.f32 %v6793, %v6805
    %v6821 = vmul.f32 %v6794, %v6805
    %v6823 = vperm.slane %v3809, 0
    %v6825 = vmul.f32 %v6806, %v6823
    %v6826 = vmul.f32 %v6807, %v6823
    %v6827 = vmul.f32 %v6808, %v6823
    %v6828 = vmul.f32 %v6809, %v6823
    %v6829 = vmul.f32 %v6810, %v6823
    %v6830 = vmul.f32 %v6811, %v6823
    %v6831 = vmul.f32 %v6812, %v6823
    %v6832 = vmul.f32 %v6813, %v6823
    %v6833 = vmul.f32 %v6814, %v6823
    %v6834 = vmul.f32 %v6815, %v6823
    %v6835 = vmul.f32 %v6816, %v6823
    %v6836 = vmul.f32 %v6817, %v6823
    %v6837 = vmul.f32 %v6818, %v6823
    %v6838 = vmul.f32 %v6819, %v6823
    %v6839 = vmul.f32 %v6820, %v6823
    %v6840 = vmul.f32 %v6821, %v6823
    %v6842 = vperm.slane %v3810, 0
    %v6844 = vadd.f32 %v6825, %v6842
    %v6845 = vadd.f32 %v6826, %v6842
    %v6846 = vadd.f32 %v6827, %v6842
    %v6847 = vadd.f32 %v6828, %v6842
    %v6848 = vadd.f32 %v6829, %v6842
    %v6849 = vadd.f32 %v6830, %v6842
    %v6850 = vadd.f32 %v6831, %v6842
    %v6851 = vadd.f32 %v6832, %v6842
    %v6852 = vadd.f32 %v6833, %v6842
    %v6853 = vadd.f32 %v6834, %v6842
    %v6854 = vadd.f32 %v6835, %v6842
    %v6855 = vadd.f32 %v6836, %v6842
    %v6856 = vadd.f32 %v6837, %v6842
    %v6857 = vadd.f32 %v6838, %v6842
    %v6858 = vadd.f32 %v6839, %v6842
    %v6859 = vadd.f32 %v6840, %v6842
    %v6860 = vmax.f32 %v6844, 0.0
    %v6861 = vmax.f32 %v6845, 0.0
    %v6862 = vmax.f32 %v6846, 0.0
    %v6863 = vmax.f32 %v6847, 0.0
    %v6864 = vmax.f32 %v6848, 0.0
    %v6865 = vmax.f32 %v6849, 0.0
    %v6866 = vmax.f32 %v6850, 0.0
    %v6867 = vmax.f32 %v6851, 0.0
    %v6868 = vmax.f32 %v6852, 0.0
    %v6869 = vmax.f32 %v6853, 0.0
    %v6870 = vmax.f32 %v6854, 0.0
    %v6871 = vmax.f32 %v6855, 0.0
    %v6872 = vmax.f32 %v6856, 0.0
    %v6873 = vmax.f32 %v6857, 0.0
    %v6874 = vmax.f32 %v6858, 0.0
    %v6875 = vmax.f32 %v6859, 0.0
    %6877 = vset.pattern.permute.xlu0 0
    %6878 = vperm.xlu0 %6877, %v3811
    %v6879 = vpop.permute.xlu0 %6878
    %6882 = vset.pattern.permute.xlu0 0
    %6883 = vperm.xlu0 %6882, %v3812
    %v6884 = vpop.permute.xlu0 %6883
    %6887 = vset.pattern.permute.xlu0 0
    %6888 = vperm.xlu0 %6887, %v3813
    %v6889 = vpop.permute.xlu0 %6888
    %6892 = vset.pattern.permute.xlu0 0
    %6893 = vperm.xlu0 %6892, %v3814
    %v6894 = vpop.permute.xlu0 %6893
    %6897 = vset.pattern.permute.xlu0 0
    %6898 = vperm.xlu0 %6897, %v3815
    %v6899 = vpop.permute.xlu0 %6898
    %6902 = vset.pattern.permute.xlu0 0
    %6903 = vperm.xlu0 %6902, %v3816
    %v6904 = vpop.permute.xlu0 %6903
    %6907 = vset.pattern.permute.xlu0 0
    %6908 = vperm.xlu0 %6907, %v3817
    %v6909 = vpop.permute.xlu0 %6908
    %6912 = vset.pattern.permute.xlu0 0
    %6913 = vperm.xlu0 %6912, %v3818
    %v6914 = vpop.permute.xlu0 %6913
    %6917 = vset.pattern.permute.xlu0 0
    %6918 = vperm.xlu0 %6917, %v3819
    %v6919 = vpop.permute.xlu0 %6918
    %6922 = vset.pattern.permute.xlu0 0
    %6923 = vperm.xlu0 %6922, %v3820
    %v6924 = vpop.permute.xlu0 %6923
    %6927 = vset.pattern.permute.xlu0 0
    %6928 = vperm.xlu0 %6927, %v3821
    %v6929 = vpop.permute.xlu0 %6928
    %6932 = vset.pattern.permute.xlu0 0
    %6933 = vperm.xlu0 %6932, %v3822
    %v6934 = vpop.permute.xlu0 %6933
    %6937 = vset.pattern.permute.xlu0 0
    %6938 = vperm.xlu0 %6937, %v3823
    %v6939 = vpop.permute.xlu0 %6938
    %6942 = vset.pattern.permute.xlu0 0
    %6943 = vperm.xlu0 %6942, %v3824
    %v6944 = vpop.permute.xlu0 %6943
    %6947 = vset.pattern.permute.xlu0 0
    %6948 = vperm.xlu0 %6947, %v3825
    %v6949 = vpop.permute.xlu0 %6948
    %6952 = vset.pattern.permute.xlu0 0
    %6953 = vperm.xlu0 %6952, %v3826
    %v6954 = vpop.permute.xlu0 %6953
    %v6956 = vmul.f32 %v6860, %v6879
    %v6957 = vmul.f32 %v6861, %v6884
    %v6958 = vmul.f32 %v6862, %v6889
    %v6959 = vmul.f32 %v6863, %v6894
    %v6960 = vmul.f32 %v6864, %v6899
    %v6961 = vmul.f32 %v6865, %v6904
    %v6962 = vmul.f32 %v6866, %v6909
    %v6963 = vmul.f32 %v6867, %v6914
    %v6964 = vmul.f32 %v6868, %v6919
    %v6965 = vmul.f32 %v6869, %v6924
    %v6966 = vmul.f32 %v6870, %v6929
    %v6967 = vmul.f32 %v6871, %v6934
    %v6968 = vmul.f32 %v6872, %v6939
    %v6969 = vmul.f32 %v6873, %v6944
    %v6970 = vmul.f32 %v6874, %v6949
    %v6971 = vmul.f32 %v6875, %v6954
    %v6972 = vmax.f32 %v6956, %v6960
    %v6973 = vmax.f32 %v6957, %v6961
    %v6974 = vmax.f32 %v6958, %v6962
    %v6975 = vmax.f32 %v6959, %v6963
    %v6976 = vmax.f32 %v6972, %v6973
    %v6977 = vmax.f32 %v6974, %v6975
    %v6978 = vmax.f32 %v6976, %v6977
    %v6979 = vrot.slane %v6978, 4
    %v6980 = vmax.f32 %v6978, %v6979
    %v6981 = vrot.slane %v6980, 2
    %v6982 = vmax.f32 %v6980, %v6981
    %v6983 = vrot.slane %v6982, 1
    %v6984 = vmax.f32 %v6982, %v6983
    %v6985 = vmax.f32 %v6964, %v6968
    %v6986 = vmax.f32 %v6965, %v6969
    %v6987 = vmax.f32 %v6966, %v6970
    %v6988 = vmax.f32 %v6967, %v6971
    %v6989 = vmax.f32 %v6985, %v6986
    %v6990 = vmax.f32 %v6987, %v6988
    %v6991 = vmax.f32 %v6989, %v6990
    %v6992 = vrot.slane %v6991, 4
    %v6993 = vmax.f32 %v6991, %v6992
    %v6994 = vrot.slane %v6993, 2
    %v6995 = vmax.f32 %v6993, %v6994
    %v6996 = vrot.slane %v6995, 1
    %v6997 = vmax.f32 %v6995, %v6996
    %vm6998 = vcmask 1040384
    %v6999 = vsel %vm6998, %v6984, %v6997
    %v7000 = vmax.f32 %v6999, 0.0
    %v7001 = vpack.c.bf16 %v7000, %v7000
    %v7002 = vld [vmem:[%s9] sm:$0xf]
    %v7003 = vld [vmem:[%s9 + $0x4] sm:$0xf]
    %v7004 = vld [vmem:[%s9 + $0x8] sm:$0xf]
    %v7005 = vld [vmem:[%s9 + $0xc] sm:$0xf]
    %v7006 = vld [vmem:[%s9 + $0x10] sm:$0xf]
    %v7007 = vld [vmem:[%s9 + $0x14] sm:$0xf]
    %v7008 = vld [vmem:[%s9 + $0x18] sm:$0xf]
    %v7009 = vld [vmem:[%s9 + $0x1c] sm:$0xf]
    %v7010 = vld [vmem:[%s9 + $0x20] sm:$0xf]
    %v7011 = vld [vmem:[%s9 + $0x24] sm:$0xf]
    %v7012 = vld [vmem:[%s9 + $0x28] sm:$0xf]
    %v7013 = vld [vmem:[%s9 + $0x2c] sm:$0xf]
    %v7014 = vld [vmem:[%s9 + $0x30] sm:$0xf]
    %v7015 = vld [vmem:[%s9 + $0x34] sm:$0xf]
    %v7016 = vld [vmem:[%s9 + $0x38] sm:$0xf]
    %v7017 = vld [vmem:[%s9 + $0x3c] sm:$0xf]
    %v7018 = vld [vmem:[%s10] sm:$0x1]
    %v7020 = vperm.slane %v7018, 0
    %v7038 = vunpack.c.l.b16 %v7002
    %v7039 = vunpack.c.l.b16 %v7003
    %v7040 = vunpack.c.l.b16 %v7004
    %v7041 = vunpack.c.l.b16 %v7005
    %v7042 = vunpack.c.l.b16 %v7006
    %v7043 = vunpack.c.l.b16 %v7007
    %v7044 = vunpack.c.l.b16 %v7008
    %v7045 = vunpack.c.l.b16 %v7009
    %v7046 = vunpack.c.l.b16 %v7010
    %v7047 = vunpack.c.l.b16 %v7011
    %v7048 = vunpack.c.l.b16 %v7012
    %v7049 = vunpack.c.l.b16 %v7013
    %v7050 = vunpack.c.l.b16 %v7014
    %v7051 = vunpack.c.l.b16 %v7015
    %v7052 = vunpack.c.l.b16 %v7016
    %v7053 = vunpack.c.l.b16 %v7017
    %v7054 = vpack.c.b16 %v7039, %v7038
    %v7055 = vpack.c.b16 %v7041, %v7040
    %v7056 = vpack.c.b16 %v7043, %v7042
    %v7057 = vpack.c.b16 %v7045, %v7044
    %v7058 = vpack.c.b16 %v7047, %v7046
    %v7059 = vpack.c.b16 %v7049, %v7048
    %v7060 = vpack.c.b16 %v7051, %v7050
    %v7061 = vpack.c.b16 %v7053, %v7052
    %7070 = vmatpush.bf16.msra.mxu0 %v7061
    %7071 = vmatpush.bf16.msra.mxu0 %v7060
    %7072 = vmatpush.bf16.msra.mxu0 %v7059
    %7073 = vmatpush.bf16.msra.mxu0 %v7058
    %7074 = vmatpush.bf16.msra.mxu0 %v7057
    %7075 = vmatpush.bf16.msra.mxu0 %v7056
    %7076 = vmatpush.bf16.msra.mxu0 %v7055
    %7077 = vmatpush.bf16.msra.mxu0 %v7054
    %7078 = vmatmul.bf16.gmra.mxu0 %v7001
    %v7079 = vpop.f32.mrf.mxu0
    %v7080 = vadd.f32 %v7020, %v7079
    %v7081 = vpop.f32.mrf.mxu0
    %7082 = vdwg.mxu0
    %v7083 = vtanh.pop %v7080
    %v7084 = vpack.c.bf16 %v7083, %v7083
    %v7085 = vld [vmem:[%s11] sm:$0xf]
    %v7086 = vld [vmem:[%s11 + $0x4] sm:$0xf]
    %v7087 = vld [vmem:[%s11 + $0x8] sm:$0xf]
    %v7088 = vld [vmem:[%s11 + $0xc] sm:$0xf]
    %v7089 = vld [vmem:[%s11 + $0x10] sm:$0xf]
    %v7090 = vld [vmem:[%s11 + $0x14] sm:$0xf]
    %v7091 = vld [vmem:[%s11 + $0x18] sm:$0xf]
    %v7092 = vld [vmem:[%s11 + $0x1c] sm:$0xf]
    %v7093 = vld [vmem:[%s11 + $0x20] sm:$0xf]
    %v7094 = vld [vmem:[%s11 + $0x24] sm:$0xf]
    %v7095 = vld [vmem:[%s11 + $0x28] sm:$0xf]
    %v7096 = vld [vmem:[%s11 + $0x2c] sm:$0xf]
    %v7097 = vld [vmem:[%s11 + $0x30] sm:$0xf]
    %v7098 = vld [vmem:[%s11 + $0x34] sm:$0xf]
    %v7099 = vld [vmem:[%s11 + $0x38] sm:$0xf]
    %v7100 = vld [vmem:[%s11 + $0x3c] sm:$0xf]
    %v7101 = vld [vmem:[%s12] sm:$0x1]
    %v7103 = vperm.slane %v7101, 0
    %v7121 = vunpack.c.l.b16 %v7085
    %v7122 = vunpack.c.l.b16 %v7086
    %v7123 = vunpack.c.l.b16 %v7087
    %v7124 = vunpack.c.l.b16 %v7088
    %v7125 = vunpack.c.l.b16 %v7089
    %v7126 = vunpack.c.l.b16 %v7090
    %v7127 = vunpack.c.l.b16 %v7091
    %v7128 = vunpack.c.l.b16 %v7092
    %v7129 = vunpack.c.l.b16 %v7093
    %v7130 = vunpack.c.l.b16 %v7094
    %v7131 = vunpack.c.l.b16 %v7095
    %v7132 = vunpack.c.l.b16 %v7096
    %v7133 = vunpack.c.l.b16 %v7097
    %v7134 = vunpack.c.l.b16 %v7098
    %v7135 = vunpack.c.l.b16 %v7099
    %v7136 = vunpack.c.l.b16 %v7100
    %v7137 = vpack.c.b16 %v7122, %v7121
    %v7138 = vpack.c.b16 %v7124, %v7123
    %v7139 = vpack.c.b16 %v7126, %v7125
    %v7140 = vpack.c.b16 %v7128, %v7127
    %v7141 = vpack.c.b16 %v7130, %v7129
    %v7142 = vpack.c.b16 %v7132, %v7131
    %v7143 = vpack.c.b16 %v7134, %v7133
    %v7144 = vpack.c.b16 %v7136, %v7135
    %7153 = vmatpush.bf16.msra.mxu0 %v7144
    %7154 = vmatpush.bf16.msra.mxu0 %v7143
    %7155 = vmatpush.bf16.msra.mxu0 %v7142
    %7156 = vmatpush.bf16.msra.mxu0 %v7141
    %7157 = vmatpush.bf16.msra.mxu0 %v7140
    %7158 = vmatpush.bf16.msra.mxu0 %v7139
    %7159 = vmatpush.bf16.msra.mxu0 %v7138
    %7160 = vmatpush.bf16.msra.mxu0 %v7137
    %7161 = vmatmul.bf16.gmra.mxu0 %v7084
    %v7162 = vpop.f32.mrf.mxu0
    %v7163 = vadd.f32 %v7103, %v7162
    %v7164 = vpop.f32.mrf.mxu0
    %7165 = vdwg.mxu0
    %vm7166 = vcmp.lt.s32.totalorder %v92, 7
    %v7167 = vsel %vm7166, %v7163, -1e+30
    %vm7168 = vcmask 1041408
    %v7169 = vsel %vm7168, %v7167, -inf
    %7170 = vmax.xlane.f32.xlu0 %v7169
    %v7171 = vpop.xlane.xlu0 %7170
    %v7172 = vsub.f32 %v7167, %v7171
    %v7173 = vmul.f32 %v7172, 1.442695
    %v7174 = vpow.pop %v7173
    %v7175 = vsel %vm7166, %v7174, 0.0
    %v7176 = vsel %vm7168, %v7175, 0.0
    %7177 = vadd.xlane.f32.xlu0 %v7176
    %v7178 = vpop.xlane.xlu0 %7177
    %v7179 = vlog2.pop %v7178
    %v7180 = vmul.f32 %v7179, 0.6931472
    %v7181 = vsub.f32 %v7172, %v7180
    %vm7182 = vcmp.eq.s32.totalorder %v92, 7
    %v7183 = vsel %vm7182, %v7163, 0.0
    %v7184 = vsel %vm7166, %v7181, %v7183
    %7185 = vst [vmem:[%s13] sm:$0x3] %v7184
    // Predicated region
    $region66: #{acmodel_forward.1} parent=1 // pred_check
      _
    $region67: #{acmodel_forward.1} parent=1 // pred_check_branch
      %7187 = sbr.rel (0) target = $region69
    $region68: #{acmodel_forward.1} parent=1 // pred_region
      _
    $region69: #{acmodel_forward.1} parent=1 // pred_fallthru
      _
    // Predicated region
    $region70: #{acmodel_forward.1} parent=1 // pred_check
      _
    $region71: #{acmodel_forward.1} parent=1 // pred_check_branch
      %7189 = sbr.rel (0) target = $region73
    $region72: #{acmodel_forward.1} parent=1 // pred_region
      _
    $region73: #{acmodel_forward.1} parent=1 // pred_fallthru
      _
    %7190 = vsyncpa [#allocation4], 1
    %7191 = vsyncpa [#allocation6], 1

</llo_original>
